<compile_context>
chip_gen: v6e
topology: v6e:2x2x1
jax: 0.10.0
libtpu: 0.0.40
codegen_flags: <defaults>
</compile_context>

<pallas_src>
import functools

import jax
import jax.numpy as jnp
from jax.experimental import pallas as pl
from jax.experimental.pallas import tpu as pltpu

_C = 64  # channel width of every layer


def _maxpool2(y, bb, h, w, c):
    """nn.MaxPool2d(2): 2x2 window, stride 2, on a (bb, h, w, c) value."""
    y = y.reshape(bb, h // 2, 2, w, c)
    y = jnp.max(y, axis=2)                       # row pairs: cheap major-axis max
    y = y.reshape(bb, h // 2, w // 2, 2, c)
    return jnp.max(y, axis=3)                    # column pairs (see TODO above)


def convnet_kernel(x1_ref, w1_ref, b1_ref, w2_ref, b2_ref, w3_ref, b3_ref,
                   w4_ref, b4_ref, o_ref, p2, p3, p4, q_ref, *, BB, H, W):
    """Fused 4-layer ConvNet forward for one batch block of BB images.

    x1_ref : (BB, H*W, 32) bf16   layer-1 im2col patches (K = 27 padded to 32)
    w1     : (32, 64) bf16        folded conv1+BN weight (rows 27..31 are zero)
    w2..w4 : (576, 64) bf16       K-packed folded conv+BN weights
    b1..b4 : (1, 64) f32          folded biases
    o_ref  : (1, BB, 64) f32      avg-pooled flattened features for this block
    p2..p4 : (BB, h+2, w+2, 64) f32  zero-padded activation scratch (pad=1)
    q_ref  : (BB*h2*w2, 576) bf16 shared im2col patch scratch (layers 2-4)
    """
    f32 = jnp.float32
    bf16 = jnp.bfloat16
    C = _C

    def conv_block(a, p_ref, w_ref, b_ref, h, w):
        """conv3x3(pad=1) + folded-BN bias + ReLU: (BB,h,w,C) -> (BB*h*w,C) f32."""
        m = BB * h * w
        # Zero only the 1-pixel border; the interior is fully overwritten below.
        # (Never gated on program_id -> megacore-safe on v7x.)
        zrow = jnp.zeros((BB, 1, w + 2, C), f32)
        zcol = jnp.zeros((BB, h + 2, 1, C), f32)
        p_ref[:, 0:1, :, :] = zrow
        p_ref[:, h + 1:h + 2, :, :] = zrow
        p_ref[:, :, 0:1, :] = zcol
        p_ref[:, :, w + 1:w + 2, :] = zcol
        p_ref[:, 1:h + 1, 1:w + 1, :] = a
        # K-packed im2col into the shared scratch; two taps per store so every
        # store is a full, 128-lane-aligned vst (v5e has one vector-store slot).
        taps = [p_ref[:, dy:dy + h, dx:dx + w, :].reshape(m, C)
                for dy in range(3) for dx in range(3)]
        for t in range(0, 8, 2):
            pair = jnp.concatenate([taps[t], taps[t + 1]], axis=-1)
            q_ref[:m, t * C:(t + 2) * C] = pair.astype(bf16)
        q_ref[:m, 8 * C:9 * C] = taps[8].astype(bf16)
        acc = jnp.dot(q_ref[:m, :], w_ref[...], preferred_element_type=f32)
        return jnp.maximum(acc + b_ref[...], 0.0)            # (m, C) f32

    # ---- layer 1: single (BB*H*W, 32) @ (32, 64) matmul + BN + ReLU + pool ----
    m1 = BB * H * W
    x1 = x1_ref[...].reshape(m1, 32)
    y = jnp.dot(x1, w1_ref[...], preferred_element_type=f32)
    y = jnp.maximum(y + b1_ref[...], 0.0)
    a = _maxpool2(y.reshape(BB, H, W, C), BB, H, W, C)
    h, w = H // 2, W // 2

    # ---- layer 2 ----
    y = conv_block(a, p2, w2_ref, b2_ref, h, w)
    a = _maxpool2(y.reshape(BB, h, w, C), BB, h, w, C)
    h, w = h // 2, w // 2

    # ---- layer 3 ----
    y = conv_block(a, p3, w3_ref, b3_ref, h, w)
    a = _maxpool2(y.reshape(BB, h, w, C), BB, h, w, C)
    h, w = h // 2, w // 2

    # ---- layer 4 (no maxpool) + AdaptiveAvgPool2d(1) + flatten ----
    y = conv_block(a, p4, w4_ref, b4_ref, h, w)              # (BB*h*w, 64) f32
    feat = jnp.sum(y.reshape(BB, h * w, C), axis=1) * (1.0 / float(h * w))
    o_ref[0] = feat.astype(o_ref.dtype)                      # (BB, 64)


def init_params(key):
    """Deterministic init mirroring the PyTorch module; BN folded into conv."""
    eps = 1e-5
    layer_channels = [(3, 64), (64, 64), (64, 64), (64, 64)]
    params = []
    for idx, (cin, cout) in enumerate(layer_channels):
        key, kw, kb = jax.random.split(key, 3)
        # kaiming_normal_(mode='fan_out', nonlinearity='relu')
        fan_out = cout * 9
        std = (2.0 / fan_out) ** 0.5
        w = std * jax.random.normal(kw, (3, 3, cin, cout), jnp.float32)  # HWIO
        # Conv2d default bias init: U(-1/sqrt(fan_in), 1/sqrt(fan_in))
        fan_in = cin * 9
        bound = 1.0 / (fan_in ** 0.5)
        conv_b = jax.random.uniform(kb, (cout,), jnp.float32, -bound, bound)
        # BatchNorm2d(eval): gamma=1, beta=0, running_mean=0, running_var=1.
        scale = jnp.ones((cout,), jnp.float32) / jnp.sqrt(1.0 + eps)
        w_folded = w * scale[None, None, None, :]
        bias = (conv_b * scale).reshape(1, cout).astype(jnp.float32)
        wk = w_folded.reshape(9 * cin, cout)
        if idx == 0:
            wk = jnp.pad(wk, ((0, 5), (0, 0)))               # K 27 -> 32 (zeros)
        params.append(dict(w=wk.astype(jnp.bfloat16), b=bias,
                           w_hwio=w_folded))                 # w_hwio: f32 reference
    return params


def _const_spec(shape):
    zeros = (0,) * len(shape)
    return pl.BlockSpec(shape, lambda g: zeros)


def _pick_batch_block(batch):
    """Largest batch block <= 8 that divides the batch while keeping >= 2 grid
    steps (so v7x megacore can split the grid across its two TensorCores)."""
    for bb in (8, 4, 2, 1):
        if batch % bb == 0 and batch // bb >= 2:
            return bb
    return batch   # batch == 1


def _padded_bytes(shape, dtype):
    """Rough VMEM footprint of one buffer after (8, 128) tile padding."""
    s = list(shape) if len(shape) >= 2 else [1] + list(shape)
    s[-1] = -(-s[-1] // 128) * 128
    s[-2] = -(-s[-2] // 8) * 8
    n = 1
    for d in s:
        n *= d
    return n * jnp.dtype(dtype).itemsize


def _convnet_forward_impl(x_nchw, params):
    # PyTorch input is NCHW -> NHWC; layer-1 im2col is done in the XLA wrapper
    # so the kernel sees a lane-dense, contiguous bf16 patch tensor instead of
    # a Cin=3 block (which would pad 3 -> 128 lanes in VMEM).
    x = jnp.transpose(x_nchw, (0, 2, 3, 1)).astype(jnp.float32)
    B, H, W, cin = x.shape
    assert cin == 3 and H % 8 == 0 and W % 8 == 0
    C = _C

    xp = jnp.pad(x, ((0, 0), (1, 1), (1, 1), (0, 0)))
    taps = [xp[:, dy:dy + H, dx:dx + W, :] for dy in range(3) for dx in range(3)]
    patches = jnp.concatenate(taps, axis=-1)                       # (B, H, W, 27)
    patches = jnp.pad(patches, ((0, 0), (0, 0), (0, 0), (0, 5)))   # K 27 -> 32
    patches = patches.reshape(B, H * W, 32).astype(jnp.bfloat16)

    bb = _pick_batch_block(B)
    grid_len = B // bb
    h2, w2 = H // 2, W // 2
    h3, w3 = H // 4, W // 4
    h4, w4 = H // 8, W // 8

    scratch = [
        pltpu.VMEM((bb, h2 + 2, w2 + 2, C), jnp.float32),   # p2
        pltpu.VMEM((bb, h3 + 2, w3 + 2, C), jnp.float32),   # p3
        pltpu.VMEM((bb, h4 + 2, w4 + 2, C), jnp.float32),   # p4
        pltpu.VMEM((bb * h2 * w2, 9 * C), jnp.bfloat16),    # q (shared, layer-2 sized)
    ]

    # Explicit VMEM budget: scratch + double-buffered input/weight/output blocks,
    # clamped to [32 MiB default, 64 MiB] so it also scales to larger images.
    est = sum(_padded_bytes((bb, h + 2, w + 2, C), jnp.float32)
              for h, w in ((h2, w2), (h3, w3), (h4, w4)))
    est += _padded_bytes((bb * h2 * w2, 9 * C), jnp.bfloat16)
    est += 2 * _padded_bytes((bb, H * W, 32), jnp.bfloat16)
    est += 2 * sum(_padded_bytes(p["w"].shape, p["w"].dtype)
                   + _padded_bytes(p["b"].shape, p["b"].dtype) for p in params)
    est += 2 * _padded_bytes((bb, C), jnp.float32)
    vmem_limit = int(min(max(est + (8 << 20), 32 << 20), 64 << 20))

    kernel = functools.partial(convnet_kernel, BB=bb, H=H, W=W)

    out = pl.pallas_call(
        kernel,
        out_shape=jax.ShapeDtypeStruct((grid_len, bb, C), jnp.float32),
        grid=(grid_len,),
        in_specs=[
            pl.BlockSpec((bb, H * W, 32), lambda g: (g, 0, 0)),
            _const_spec(params[0]["w"].shape), _const_spec(params[0]["b"].shape),
            _const_spec(params[1]["w"].shape), _const_spec(params[1]["b"].shape),
            _const_spec(params[2]["w"].shape), _const_spec(params[2]["b"].shape),
            _const_spec(params[3]["w"].shape), _const_spec(params[3]["b"].shape),
        ],
        out_specs=pl.BlockSpec((1, bb, C), lambda g: (g, 0, 0)),
        scratch_shapes=scratch,
        compiler_params=pltpu.CompilerParams(
            dimension_semantics=("parallel",),
            vmem_limit_bytes=vmem_limit),
    )(patches, params[0]["w"], params[0]["b"], params[1]["w"], params[1]["b"],
      params[2]["w"], params[2]["b"], params[3]["w"], params[3]["b"])
    # num_classes = -1 (module default) => no classifier; forward returns (B, 64).
    return out.reshape(B, C)


convnet_forward = jax.jit(_convnet_forward_impl)


def convnet_reference(x_nchw, params):
    """Pure-JAX (XLA) f32 reference of the same forward, for a tolerance check."""
    x = jnp.transpose(x_nchw, (0, 2, 3, 1)).astype(jnp.float32)
    for i, p in enumerate(params):
        x = jax.lax.conv_general_dilated(
            x, p["w_hwio"], window_strides=(1, 1), padding="SAME",
            dimension_numbers=("NHWC", "HWIO", "NHWC"))
        x = jnp.maximum(x + p["b"].reshape(1, 1, 1, -1), 0.0)
        if i < 3:
            x = jax.lax.reduce_window(x, -jnp.inf, jax.lax.max,
                                      (1, 2, 2, 1), (1, 2, 2, 1), "VALID")
    return jnp.mean(x, axis=(1, 2))


if __name__ == "__main__":
    key = jax.random.PRNGKey(0)
    kx, kp = jax.random.split(key)
    # Small NCHW input consistent with the module (layer1 requires 3 channels).
    x = jax.random.normal(kx, (8, 3, 16, 16), jnp.float32)
    params = init_params(kp)

    out = convnet_forward(x, params)
    out = jax.block_until_ready(out)
    assert out.shape == (8, 64), out.shape
    assert bool(jnp.all(jnp.isfinite(out)))

    # Correctness vs. pure-JAX f32 reference (loose tolerance: bf16 MXU inputs).
    ref = convnet_reference(x, params)
    assert bool(jnp.allclose(out, ref, rtol=0.1, atol=0.1)), (
        float(jnp.max(jnp.abs(out - ref))))

    print("KERNEL_OK")
</pallas_src>

<mosaic_0001>
module attributes {stable_mosaic.version = 11 : i64} {
  func.func @convnet_kernel(%arg0: i32, %arg1: memref<4x256x32xbf16, #tpu.memory_space<vmem>>, %arg2: memref<32x64xbf16, #tpu.memory_space<vmem>>, %arg3: memref<1x64xf32, #tpu.memory_space<vmem>>, %arg4: memref<576x64xbf16, #tpu.memory_space<vmem>>, %arg5: memref<1x64xf32, #tpu.memory_space<vmem>>, %arg6: memref<576x64xbf16, #tpu.memory_space<vmem>>, %arg7: memref<1x64xf32, #tpu.memory_space<vmem>>, %arg8: memref<576x64xbf16, #tpu.memory_space<vmem>>, %arg9: memref<1x64xf32, #tpu.memory_space<vmem>>, %arg10: memref<1x4x64xf32, #tpu.memory_space<vmem>>, %arg11: memref<4x10x10x64xf32, #tpu.memory_space<vmem>>, %arg12: memref<4x6x6x64xf32, #tpu.memory_space<vmem>>, %arg13: memref<4x4x4x64xf32, #tpu.memory_space<vmem>>, %arg14: memref<256x576xbf16, #tpu.memory_space<vmem>>) attributes {dimension_semantics = [#tpu.dimension_semantics<parallel>], iteration_bounds = array<i64: 2>, scalar_prefetch = 0 : i64, scratch_operands = 4 : i64, tpu.core_type = #tpu.core_type<tc>, window_params = [{transform_indices = @transform_0, window_bounds = array<i64: 4, 256, 32>}, {pipeline_mode = #tpu.pipeline_mode<synchronous>, transform_indices = @transform_1, window_bounds = array<i64: 32, 64>}, {pipeline_mode = #tpu.pipeline_mode<synchronous>, transform_indices = @transform_2, window_bounds = array<i64: 1, 64>}, {pipeline_mode = #tpu.pipeline_mode<synchronous>, transform_indices = @transform_3, window_bounds = array<i64: 576, 64>}, {pipeline_mode = #tpu.pipeline_mode<synchronous>, transform_indices = @transform_4, window_bounds = array<i64: 1, 64>}, {pipeline_mode = #tpu.pipeline_mode<synchronous>, transform_indices = @transform_5, window_bounds = array<i64: 576, 64>}, {pipeline_mode = #tpu.pipeline_mode<synchronous>, transform_indices = @transform_6, window_bounds = array<i64: 1, 64>}, {pipeline_mode = #tpu.pipeline_mode<synchronous>, transform_indices = @transform_7, window_bounds = array<i64: 576, 64>}, {pipeline_mode = #tpu.pipeline_mode<synchronous>, transform_indices = @transform_8, window_bounds = array<i64: 1, 64>}, {transform_indices = @transform_9, window_bounds = array<i64: 1, 4, 64>}]} {
    %c0 = arith.constant 0 : index
    %c0_0 = arith.constant 0 : index
    %c0_1 = arith.constant 0 : index
    %0 = vector.load %arg1[%c0, %c0_0, %c0_1] : memref<4x256x32xbf16, #tpu.memory_space<vmem>>, vector<4x256x32xbf16>
    %1 = vector.shape_cast %0 : vector<4x256x32xbf16> to vector<1024x32xbf16>
    %c0_2 = arith.constant 0 : index
    %c0_3 = arith.constant 0 : index
    %2 = vector.load %arg2[%c0_2, %c0_3] : memref<32x64xbf16, #tpu.memory_space<vmem>>, vector<32x64xbf16>
    %cst = arith.constant dense<0.000000e+00> : vector<1024x64xf32>
    %3 = tpu.matmul %1, %2, %cst {dimension_numbers = #tpu.dot_dimension_numbers<[1], [0], [0], [1], [0, 0, 1, 1], [], []>} : vector<1024x32xbf16>, vector<32x64xbf16>, vector<1024x64xf32> -> vector<1024x64xf32>
    %c0_4 = arith.constant 0 : index
    %c0_5 = arith.constant 0 : index
    %4 = vector.load %arg3[%c0_4, %c0_5] : memref<1x64xf32, #tpu.memory_space<vmem>>, vector<1x64xf32>
    %5 = vector.broadcast %4 : vector<1x64xf32> to vector<1024x64xf32>
    %6 = arith.addf %3, %5 : vector<1024x64xf32>
    %cst_6 = arith.constant 0.000000e+00 : f32
    %7 = vector.broadcast %cst_6 : f32 to vector<1024x64xf32>
    %8 = arith.maximumf %6, %7 : vector<1024x64xf32>
    %9 = vector.shape_cast %8 : vector<1024x64xf32> to vector<4x16x16x64xf32>
    %10 = vector.shape_cast %9 : vector<4x16x16x64xf32> to vector<4x8x2x16x64xf32>
    %cst_7 = arith.constant dense<0xFF800000> : vector<4x8x16x64xf32>
    %11 = vector.multi_reduction <maximumf>, %10, %cst_7 [2] : vector<4x8x2x16x64xf32> to vector<4x8x16x64xf32>
    %12 = vector.shape_cast %11 : vector<4x8x16x64xf32> to vector<4x8x8x2x64xf32>
    %cst_8 = arith.constant dense<0xFF800000> : vector<4x8x8x64xf32>
    %13 = vector.multi_reduction <maximumf>, %12, %cst_8 [3] : vector<4x8x8x2x64xf32> to vector<4x8x8x64xf32>
    %cst_9 = arith.constant 0.000000e+00 : f32
    %14 = vector.broadcast %cst_9 : f32 to vector<4x1x10x64xf32>
    %cst_10 = arith.constant 0.000000e+00 : f32
    %15 = vector.broadcast %cst_10 : f32 to vector<4x10x1x64xf32>
    %c0_11 = arith.constant 0 : index
    %c0_12 = arith.constant 0 : index
    %c0_13 = arith.constant 0 : index
    %c0_14 = arith.constant 0 : index
    %16 = vector.load %arg11[%c0_11, %c0_12, %c0_13, %c0_14] : memref<4x10x10x64xf32, #tpu.memory_space<vmem>>, vector<4x1x10x64xf32>
    tpu.vector_store %arg11[%c0_11, %c0_12, %c0_13, %c0_14], %14 {strides = array<i32>} : memref<4x10x10x64xf32, #tpu.memory_space<vmem>>, vector<4x1x10x64xf32>,
    %c0_15 = arith.constant 0 : index
    %c9 = arith.constant 9 : index
    %c0_16 = arith.constant 0 : index
    %c0_17 = arith.constant 0 : index
    %17 = vector.load %arg11[%c0_15, %c9, %c0_16, %c0_17] : memref<4x10x10x64xf32, #tpu.memory_space<vmem>>, vector<4x1x10x64xf32>
    tpu.vector_store %arg11[%c0_15, %c9, %c0_16, %c0_17], %14 {strides = array<i32>} : memref<4x10x10x64xf32, #tpu.memory_space<vmem>>, vector<4x1x10x64xf32>,
    %c0_18 = arith.constant 0 : index
    %c0_19 = arith.constant 0 : index
    %c0_20 = arith.constant 0 : index
    %c0_21 = arith.constant 0 : index
    %18 = vector.load %arg11[%c0_18, %c0_19, %c0_20, %c0_21] : memref<4x10x10x64xf32, #tpu.memory_space<vmem>>, vector<4x10x1x64xf32>
    tpu.vector_store %arg11[%c0_18, %c0_19, %c0_20, %c0_21], %15 {strides = array<i32>} : memref<4x10x10x64xf32, #tpu.memory_space<vmem>>, vector<4x10x1x64xf32>,
    %c0_22 = arith.constant 0 : index
    %c0_23 = arith.constant 0 : index
    %c9_24 = arith.constant 9 : index
    %c0_25 = arith.constant 0 : index
    %19 = vector.load %arg11[%c0_22, %c0_23, %c9_24, %c0_25] : memref<4x10x10x64xf32, #tpu.memory_space<vmem>>, vector<4x10x1x64xf32>
    tpu.vector_store %arg11[%c0_22, %c0_23, %c9_24, %c0_25], %15 {strides = array<i32>} : memref<4x10x10x64xf32, #tpu.memory_space<vmem>>, vector<4x10x1x64xf32>,
    %c0_26 = arith.constant 0 : index
    %c1 = arith.constant 1 : index
    %c1_27 = arith.constant 1 : index
    %c0_28 = arith.constant 0 : index
    %20 = vector.load %arg11[%c0_26, %c1, %c1_27, %c0_28] : memref<4x10x10x64xf32, #tpu.memory_space<vmem>>, vector<4x8x8x64xf32>
    tpu.vector_store %arg11[%c0_26, %c1, %c1_27, %c0_28], %13 {strides = array<i32>} : memref<4x10x10x64xf32, #tpu.memory_space<vmem>>, vector<4x8x8x64xf32>,
    %c0_29 = arith.constant 0 : index
    %c0_30 = arith.constant 0 : index
    %c0_31 = arith.constant 0 : index
    %c0_32 = arith.constant 0 : index
    %21 = vector.load %arg11[%c0_29, %c0_30, %c0_31, %c0_32] : memref<4x10x10x64xf32, #tpu.memory_space<vmem>>, vector<4x8x8x64xf32>
    %22 = vector.shape_cast %21 : vector<4x8x8x64xf32> to vector<256x64xf32>
    %c0_33 = arith.constant 0 : index
    %c0_34 = arith.constant 0 : index
    %c1_35 = arith.constant 1 : index
    %c0_36 = arith.constant 0 : index
    %23 = vector.load %arg11[%c0_33, %c0_34, %c1_35, %c0_36] : memref<4x10x10x64xf32, #tpu.memory_space<vmem>>, vector<4x8x8x64xf32>
    %24 = vector.shape_cast %23 : vector<4x8x8x64xf32> to vector<256x64xf32>
    %c0_37 = arith.constant 0 : index
    %c0_38 = arith.constant 0 : index
    %c2 = arith.constant 2 : index
    %c0_39 = arith.constant 0 : index
    %25 = vector.load %arg11[%c0_37, %c0_38, %c2, %c0_39] : memref<4x10x10x64xf32, #tpu.memory_space<vmem>>, vector<4x8x8x64xf32>
    %26 = vector.shape_cast %25 : vector<4x8x8x64xf32> to vector<256x64xf32>
    %c0_40 = arith.constant 0 : index
    %c1_41 = arith.constant 1 : index
    %c0_42 = arith.constant 0 : index
    %c0_43 = arith.constant 0 : index
    %27 = vector.load %arg11[%c0_40, %c1_41, %c0_42, %c0_43] : memref<4x10x10x64xf32, #tpu.memory_space<vmem>>, vector<4x8x8x64xf32>
    %28 = vector.shape_cast %27 : vector<4x8x8x64xf32> to vector<256x64xf32>
    %c0_44 = arith.constant 0 : index
    %c1_45 = arith.constant 1 : index
    %c1_46 = arith.constant 1 : index
    %c0_47 = arith.constant 0 : index
    %29 = vector.load %arg11[%c0_44, %c1_45, %c1_46, %c0_47] : memref<4x10x10x64xf32, #tpu.memory_space<vmem>>, vector<4x8x8x64xf32>
    %30 = vector.shape_cast %29 : vector<4x8x8x64xf32> to vector<256x64xf32>
    %c0_48 = arith.constant 0 : index
    %c1_49 = arith.constant 1 : index
    %c2_50 = arith.constant 2 : index
    %c0_51 = arith.constant 0 : index
    %31 = vector.load %arg11[%c0_48, %c1_49, %c2_50, %c0_51] : memref<4x10x10x64xf32, #tpu.memory_space<vmem>>, vector<4x8x8x64xf32>
    %32 = vector.shape_cast %31 : vector<4x8x8x64xf32> to vector<256x64xf32>
    %c0_52 = arith.constant 0 : index
    %c2_53 = arith.constant 2 : index
    %c0_54 = arith.constant 0 : index
    %c0_55 = arith.constant 0 : index
    %33 = vector.load %arg11[%c0_52, %c2_53, %c0_54, %c0_55] : memref<4x10x10x64xf32, #tpu.memory_space<vmem>>, vector<4x8x8x64xf32>
    %34 = vector.shape_cast %33 : vector<4x8x8x64xf32> to vector<256x64xf32>
    %c0_56 = arith.constant 0 : index
    %c2_57 = arith.constant 2 : index
    %c1_58 = arith.constant 1 : index
    %c0_59 = arith.constant 0 : index
    %35 = vector.load %arg11[%c0_56, %c2_57, %c1_58, %c0_59] : memref<4x10x10x64xf32, #tpu.memory_space<vmem>>, vector<4x8x8x64xf32>
    %36 = vector.shape_cast %35 : vector<4x8x8x64xf32> to vector<256x64xf32>
    %c0_60 = arith.constant 0 : index
    %c2_61 = arith.constant 2 : index
    %c2_62 = arith.constant 2 : index
    %c0_63 = arith.constant 0 : index
    %37 = vector.load %arg11[%c0_60, %c2_61, %c2_62, %c0_63] : memref<4x10x10x64xf32, #tpu.memory_space<vmem>>, vector<4x8x8x64xf32>
    %38 = vector.shape_cast %37 : vector<4x8x8x64xf32> to vector<256x64xf32>
    %39 = tpu.concatenate %22, %24 in 1 : vector<256x64xf32>, vector<256x64xf32> -> vector<256x128xf32>
    %40 = arith.truncf %39 : vector<256x128xf32> to vector<256x128xbf16>
    %c0_64 = arith.constant 0 : index
    %c0_65 = arith.constant 0 : index
    %41 = vector.load %arg14[%c0_64, %c0_65] : memref<256x576xbf16, #tpu.memory_space<vmem>>, vector<256x128xbf16>
    tpu.vector_store %arg14[%c0_64, %c0_65], %40 {strides = array<i32>} : memref<256x576xbf16, #tpu.memory_space<vmem>>, vector<256x128xbf16>,
    %42 = tpu.concatenate %26, %28 in 1 : vector<256x64xf32>, vector<256x64xf32> -> vector<256x128xf32>
    %43 = arith.truncf %42 : vector<256x128xf32> to vector<256x128xbf16>
    %c0_66 = arith.constant 0 : index
    %c128 = arith.constant 128 : index
    %44 = vector.load %arg14[%c0_66, %c128] : memref<256x576xbf16, #tpu.memory_space<vmem>>, vector<256x128xbf16>
    tpu.vector_store %arg14[%c0_66, %c128], %43 {strides = array<i32>} : memref<256x576xbf16, #tpu.memory_space<vmem>>, vector<256x128xbf16>,
    %45 = tpu.concatenate %30, %32 in 1 : vector<256x64xf32>, vector<256x64xf32> -> vector<256x128xf32>
    %46 = arith.truncf %45 : vector<256x128xf32> to vector<256x128xbf16>
    %c0_67 = arith.constant 0 : index
    %c256 = arith.constant 256 : index
    %47 = vector.load %arg14[%c0_67, %c256] : memref<256x576xbf16, #tpu.memory_space<vmem>>, vector<256x128xbf16>
    tpu.vector_store %arg14[%c0_67, %c256], %46 {strides = array<i32>} : memref<256x576xbf16, #tpu.memory_space<vmem>>, vector<256x128xbf16>,
    %48 = tpu.concatenate %34, %36 in 1 : vector<256x64xf32>, vector<256x64xf32> -> vector<256x128xf32>
    %49 = arith.truncf %48 : vector<256x128xf32> to vector<256x128xbf16>
    %c0_68 = arith.constant 0 : index
    %c384 = arith.constant 384 : index
    %50 = vector.load %arg14[%c0_68, %c384] : memref<256x576xbf16, #tpu.memory_space<vmem>>, vector<256x128xbf16>
    tpu.vector_store %arg14[%c0_68, %c384], %49 {strides = array<i32>} : memref<256x576xbf16, #tpu.memory_space<vmem>>, vector<256x128xbf16>,
    %51 = arith.truncf %38 : vector<256x64xf32> to vector<256x64xbf16>
    %c0_69 = arith.constant 0 : index
    %c512 = arith.constant 512 : index
    %52 = vector.load %arg14[%c0_69, %c512] : memref<256x576xbf16, #tpu.memory_space<vmem>>, vector<256x64xbf16>
    tpu.vector_store %arg14[%c0_69, %c512], %51 {strides = array<i32>} : memref<256x576xbf16, #tpu.memory_space<vmem>>, vector<256x64xbf16>,
    %c0_70 = arith.constant 0 : index
    %c0_71 = arith.constant 0 : index
    %53 = vector.load %arg14[%c0_70, %c0_71] : memref<256x576xbf16, #tpu.memory_space<vmem>>, vector<256x576xbf16>
    %c0_72 = arith.constant 0 : index
    %c0_73 = arith.constant 0 : index
    %54 = vector.load %arg4[%c0_72, %c0_73] : memref<576x64xbf16, #tpu.memory_space<vmem>>, vector<576x64xbf16>
    %cst_74 = arith.constant dense<0.000000e+00> : vector<256x64xf32>
    %55 = tpu.matmul %53, %54, %cst_74 {dimension_numbers = #tpu.dot_dimension_numbers<[1], [0], [0], [1], [0, 0, 1, 1], [], []>} : vector<256x576xbf16>, vector<576x64xbf16>, vector<256x64xf32> -> vector<256x64xf32>
    %c0_75 = arith.constant 0 : index
    %c0_76 = arith.constant 0 : index
    %56 = vector.load %arg5[%c0_75, %c0_76] : memref<1x64xf32, #tpu.memory_space<vmem>>, vector<1x64xf32>
    %57 = vector.broadcast %56 : vector<1x64xf32> to vector<256x64xf32>
    %58 = arith.addf %55, %57 : vector<256x64xf32>
    %cst_77 = arith.constant 0.000000e+00 : f32
    %59 = vector.broadcast %cst_77 : f32 to vector<256x64xf32>
    %60 = arith.maximumf %58, %59 : vector<256x64xf32>
    %61 = vector.shape_cast %60 : vector<256x64xf32> to vector<4x8x8x64xf32>
    %62 = vector.shape_cast %61 : vector<4x8x8x64xf32> to vector<4x4x2x8x64xf32>
    %cst_78 = arith.constant dense<0xFF800000> : vector<4x4x8x64xf32>
    %63 = vector.multi_reduction <maximumf>, %62, %cst_78 [2] : vector<4x4x2x8x64xf32> to vector<4x4x8x64xf32>
    %64 = vector.shape_cast %63 : vector<4x4x8x64xf32> to vector<4x4x4x2x64xf32>
    %cst_79 = arith.constant dense<0xFF800000> : vector<4x4x4x64xf32>
    %65 = vector.multi_reduction <maximumf>, %64, %cst_79 [3] : vector<4x4x4x2x64xf32> to vector<4x4x4x64xf32>
    %cst_80 = arith.constant 0.000000e+00 : f32
    %66 = vector.broadcast %cst_80 : f32 to vector<4x1x6x64xf32>
    %cst_81 = arith.constant 0.000000e+00 : f32
    %67 = vector.broadcast %cst_81 : f32 to vector<4x6x1x64xf32>
    %c0_82 = arith.constant 0 : index
    %c0_83 = arith.constant 0 : index
    %c0_84 = arith.constant 0 : index
    %c0_85 = arith.constant 0 : index
    %68 = vector.load %arg12[%c0_82, %c0_83, %c0_84, %c0_85] : memref<4x6x6x64xf32, #tpu.memory_space<vmem>>, vector<4x1x6x64xf32>
    tpu.vector_store %arg12[%c0_82, %c0_83, %c0_84, %c0_85], %66 {strides = array<i32>} : memref<4x6x6x64xf32, #tpu.memory_space<vmem>>, vector<4x1x6x64xf32>,
    %c0_86 = arith.constant 0 : index
    %c5 = arith.constant 5 : index
    %c0_87 = arith.constant 0 : index
    %c0_88 = arith.constant 0 : index
    %69 = vector.load %arg12[%c0_86, %c5, %c0_87, %c0_88] : memref<4x6x6x64xf32, #tpu.memory_space<vmem>>, vector<4x1x6x64xf32>
    tpu.vector_store %arg12[%c0_86, %c5, %c0_87, %c0_88], %66 {strides = array<i32>} : memref<4x6x6x64xf32, #tpu.memory_space<vmem>>, vector<4x1x6x64xf32>,
    %c0_89 = arith.constant 0 : index
    %c0_90 = arith.constant 0 : index
    %c0_91 = arith.constant 0 : index
    %c0_92 = arith.constant 0 : index
    %70 = vector.load %arg12[%c0_89, %c0_90, %c0_91, %c0_92] : memref<4x6x6x64xf32, #tpu.memory_space<vmem>>, vector<4x6x1x64xf32>
    tpu.vector_store %arg12[%c0_89, %c0_90, %c0_91, %c0_92], %67 {strides = array<i32>} : memref<4x6x6x64xf32, #tpu.memory_space<vmem>>, vector<4x6x1x64xf32>,
    %c0_93 = arith.constant 0 : index
    %c0_94 = arith.constant 0 : index
    %c5_95 = arith.constant 5 : index
    %c0_96 = arith.constant 0 : index
    %71 = vector.load %arg12[%c0_93, %c0_94, %c5_95, %c0_96] : memref<4x6x6x64xf32, #tpu.memory_space<vmem>>, vector<4x6x1x64xf32>
    tpu.vector_store %arg12[%c0_93, %c0_94, %c5_95, %c0_96], %67 {strides = array<i32>} : memref<4x6x6x64xf32, #tpu.memory_space<vmem>>, vector<4x6x1x64xf32>,
    %c0_97 = arith.constant 0 : index
    %c1_98 = arith.constant 1 : index
    %c1_99 = arith.constant 1 : index
    %c0_100 = arith.constant 0 : index
    %72 = vector.load %arg12[%c0_97, %c1_98, %c1_99, %c0_100] : memref<4x6x6x64xf32, #tpu.memory_space<vmem>>, vector<4x4x4x64xf32>
    tpu.vector_store %arg12[%c0_97, %c1_98, %c1_99, %c0_100], %65 {strides = array<i32>} : memref<4x6x6x64xf32, #tpu.memory_space<vmem>>, vector<4x4x4x64xf32>,
    %c0_101 = arith.constant 0 : index
    %c0_102 = arith.constant 0 : index
    %c0_103 = arith.constant 0 : index
    %c0_104 = arith.constant 0 : index
    %73 = vector.load %arg12[%c0_101, %c0_102, %c0_103, %c0_104] : memref<4x6x6x64xf32, #tpu.memory_space<vmem>>, vector<4x4x4x64xf32>
    %74 = vector.shape_cast %73 : vector<4x4x4x64xf32> to vector<64x64xf32>
    %c0_105 = arith.constant 0 : index
    %c0_106 = arith.constant 0 : index
    %c1_107 = arith.constant 1 : index
    %c0_108 = arith.constant 0 : index
    %75 = vector.load %arg12[%c0_105, %c0_106, %c1_107, %c0_108] : memref<4x6x6x64xf32, #tpu.memory_space<vmem>>, vector<4x4x4x64xf32>
    %76 = vector.shape_cast %75 : vector<4x4x4x64xf32> to vector<64x64xf32>
    %c0_109 = arith.constant 0 : index
    %c0_110 = arith.constant 0 : index
    %c2_111 = arith.constant 2 : index
    %c0_112 = arith.constant 0 : index
    %77 = vector.load %arg12[%c0_109, %c0_110, %c2_111, %c0_112] : memref<4x6x6x64xf32, #tpu.memory_space<vmem>>, vector<4x4x4x64xf32>
    %78 = vector.shape_cast %77 : vector<4x4x4x64xf32> to vector<64x64xf32>
    %c0_113 = arith.constant 0 : index
    %c1_114 = arith.constant 1 : index
    %c0_115 = arith.constant 0 : index
    %c0_116 = arith.constant 0 : index
    %79 = vector.load %arg12[%c0_113, %c1_114, %c0_115, %c0_116] : memref<4x6x6x64xf32, #tpu.memory_space<vmem>>, vector<4x4x4x64xf32>
    %80 = vector.shape_cast %79 : vector<4x4x4x64xf32> to vector<64x64xf32>
    %c0_117 = arith.constant 0 : index
    %c1_118 = arith.constant 1 : index
    %c1_119 = arith.constant 1 : index
    %c0_120 = arith.constant 0 : index
    %81 = vector.load %arg12[%c0_117, %c1_118, %c1_119, %c0_120] : memref<4x6x6x64xf32, #tpu.memory_space<vmem>>, vector<4x4x4x64xf32>
    %82 = vector.shape_cast %81 : vector<4x4x4x64xf32> to vector<64x64xf32>
    %c0_121 = arith.constant 0 : index
    %c1_122 = arith.constant 1 : index
    %c2_123 = arith.constant 2 : index
    %c0_124 = arith.constant 0 : index
    %83 = vector.load %arg12[%c0_121, %c1_122, %c2_123, %c0_124] : memref<4x6x6x64xf32, #tpu.memory_space<vmem>>, vector<4x4x4x64xf32>
    %84 = vector.shape_cast %83 : vector<4x4x4x64xf32> to vector<64x64xf32>
    %c0_125 = arith.constant 0 : index
    %c2_126 = arith.constant 2 : index
    %c0_127 = arith.constant 0 : index
    %c0_128 = arith.constant 0 : index
    %85 = vector.load %arg12[%c0_125, %c2_126, %c0_127, %c0_128] : memref<4x6x6x64xf32, #tpu.memory_space<vmem>>, vector<4x4x4x64xf32>
    %86 = vector.shape_cast %85 : vector<4x4x4x64xf32> to vector<64x64xf32>
    %c0_129 = arith.constant 0 : index
    %c2_130 = arith.constant 2 : index
    %c1_131 = arith.constant 1 : index
    %c0_132 = arith.constant 0 : index
    %87 = vector.load %arg12[%c0_129, %c2_130, %c1_131, %c0_132] : memref<4x6x6x64xf32, #tpu.memory_space<vmem>>, vector<4x4x4x64xf32>
    %88 = vector.shape_cast %87 : vector<4x4x4x64xf32> to vector<64x64xf32>
    %c0_133 = arith.constant 0 : index
    %c2_134 = arith.constant 2 : index
    %c2_135 = arith.constant 2 : index
    %c0_136 = arith.constant 0 : index
    %89 = vector.load %arg12[%c0_133, %c2_134, %c2_135, %c0_136] : memref<4x6x6x64xf32, #tpu.memory_space<vmem>>, vector<4x4x4x64xf32>
    %90 = vector.shape_cast %89 : vector<4x4x4x64xf32> to vector<64x64xf32>
    %91 = tpu.concatenate %74, %76 in 1 : vector<64x64xf32>, vector<64x64xf32> -> vector<64x128xf32>
    %92 = arith.truncf %91 : vector<64x128xf32> to vector<64x128xbf16>
    %c0_137 = arith.constant 0 : index
    %c0_138 = arith.constant 0 : index
    %93 = vector.load %arg14[%c0_137, %c0_138] : memref<256x576xbf16, #tpu.memory_space<vmem>>, vector<64x128xbf16>
    tpu.vector_store %arg14[%c0_137, %c0_138], %92 {strides = array<i32>} : memref<256x576xbf16, #tpu.memory_space<vmem>>, vector<64x128xbf16>,
    %94 = tpu.concatenate %78, %80 in 1 : vector<64x64xf32>, vector<64x64xf32> -> vector<64x128xf32>
    %95 = arith.truncf %94 : vector<64x128xf32> to vector<64x128xbf16>
    %c0_139 = arith.constant 0 : index
    %c128_140 = arith.constant 128 : index
    %96 = vector.load %arg14[%c0_139, %c128_140] : memref<256x576xbf16, #tpu.memory_space<vmem>>, vector<64x128xbf16>
    tpu.vector_store %arg14[%c0_139, %c128_140], %95 {strides = array<i32>} : memref<256x576xbf16, #tpu.memory_space<vmem>>, vector<64x128xbf16>,
    %97 = tpu.concatenate %82, %84 in 1 : vector<64x64xf32>, vector<64x64xf32> -> vector<64x128xf32>
    %98 = arith.truncf %97 : vector<64x128xf32> to vector<64x128xbf16>
    %c0_141 = arith.constant 0 : index
    %c256_142 = arith.constant 256 : index
    %99 = vector.load %arg14[%c0_141, %c256_142] : memref<256x576xbf16, #tpu.memory_space<vmem>>, vector<64x128xbf16>
    tpu.vector_store %arg14[%c0_141, %c256_142], %98 {strides = array<i32>} : memref<256x576xbf16, #tpu.memory_space<vmem>>, vector<64x128xbf16>,
    %100 = tpu.concatenate %86, %88 in 1 : vector<64x64xf32>, vector<64x64xf32> -> vector<64x128xf32>
    %101 = arith.truncf %100 : vector<64x128xf32> to vector<64x128xbf16>
    %c0_143 = arith.constant 0 : index
    %c384_144 = arith.constant 384 : index
    %102 = vector.load %arg14[%c0_143, %c384_144] : memref<256x576xbf16, #tpu.memory_space<vmem>>, vector<64x128xbf16>
    tpu.vector_store %arg14[%c0_143, %c384_144], %101 {strides = array<i32>} : memref<256x576xbf16, #tpu.memory_space<vmem>>, vector<64x128xbf16>,
    %103 = arith.truncf %90 : vector<64x64xf32> to vector<64x64xbf16>
    %c0_145 = arith.constant 0 : index
    %c512_146 = arith.constant 512 : index
    %104 = vector.load %arg14[%c0_145, %c512_146] : memref<256x576xbf16, #tpu.memory_space<vmem>>, vector<64x64xbf16>
    tpu.vector_store %arg14[%c0_145, %c512_146], %103 {strides = array<i32>} : memref<256x576xbf16, #tpu.memory_space<vmem>>, vector<64x64xbf16>,
    %c0_147 = arith.constant 0 : index
    %c0_148 = arith.constant 0 : index
    %105 = vector.load %arg14[%c0_147, %c0_148] : memref<256x576xbf16, #tpu.memory_space<vmem>>, vector<64x576xbf16>
    %c0_149 = arith.constant 0 : index
    %c0_150 = arith.constant 0 : index
    %106 = vector.load %arg6[%c0_149, %c0_150] : memref<576x64xbf16, #tpu.memory_space<vmem>>, vector<576x64xbf16>
    %cst_151 = arith.constant dense<0.000000e+00> : vector<64x64xf32>
    %107 = tpu.matmul %105, %106, %cst_151 {dimension_numbers = #tpu.dot_dimension_numbers<[1], [0], [0], [1], [0, 0, 1, 1], [], []>} : vector<64x576xbf16>, vector<576x64xbf16>, vector<64x64xf32> -> vector<64x64xf32>
    %c0_152 = arith.constant 0 : index
    %c0_153 = arith.constant 0 : index
    %108 = vector.load %arg7[%c0_152, %c0_153] : memref<1x64xf32, #tpu.memory_space<vmem>>, vector<1x64xf32>
    %109 = vector.broadcast %108 : vector<1x64xf32> to vector<64x64xf32>
    %110 = arith.addf %107, %109 : vector<64x64xf32>
    %cst_154 = arith.constant 0.000000e+00 : f32
    %111 = vector.broadcast %cst_154 : f32 to vector<64x64xf32>
    %112 = arith.maximumf %110, %111 : vector<64x64xf32>
    %113 = vector.shape_cast %112 : vector<64x64xf32> to vector<4x4x4x64xf32>
    %114 = vector.shape_cast %113 : vector<4x4x4x64xf32> to vector<4x2x2x4x64xf32>
    %cst_155 = arith.constant dense<0xFF800000> : vector<4x2x4x64xf32>
    %115 = vector.multi_reduction <maximumf>, %114, %cst_155 [2] : vector<4x2x2x4x64xf32> to vector<4x2x4x64xf32>
    %116 = vector.shape_cast %115 : vector<4x2x4x64xf32> to vector<4x2x2x2x64xf32>
    %cst_156 = arith.constant dense<0xFF800000> : vector<4x2x2x64xf32>
    %117 = vector.multi_reduction <maximumf>, %116, %cst_156 [3] : vector<4x2x2x2x64xf32> to vector<4x2x2x64xf32>
    %cst_157 = arith.constant 0.000000e+00 : f32
    %118 = vector.broadcast %cst_157 : f32 to vector<4x1x4x64xf32>
    %cst_158 = arith.constant 0.000000e+00 : f32
    %119 = vector.broadcast %cst_158 : f32 to vector<4x4x1x64xf32>
    %c0_159 = arith.constant 0 : index
    %c0_160 = arith.constant 0 : index
    %c0_161 = arith.constant 0 : index
    %c0_162 = arith.constant 0 : index
    %120 = vector.load %arg13[%c0_159, %c0_160, %c0_161, %c0_162] : memref<4x4x4x64xf32, #tpu.memory_space<vmem>>, vector<4x1x4x64xf32>
    tpu.vector_store %arg13[%c0_159, %c0_160, %c0_161, %c0_162], %118 {strides = array<i32>} : memref<4x4x4x64xf32, #tpu.memory_space<vmem>>, vector<4x1x4x64xf32>,
    %c0_163 = arith.constant 0 : index
    %c3 = arith.constant 3 : index
    %c0_164 = arith.constant 0 : index
    %c0_165 = arith.constant 0 : index
    %121 = vector.load %arg13[%c0_163, %c3, %c0_164, %c0_165] : memref<4x4x4x64xf32, #tpu.memory_space<vmem>>, vector<4x1x4x64xf32>
    tpu.vector_store %arg13[%c0_163, %c3, %c0_164, %c0_165], %118 {strides = array<i32>} : memref<4x4x4x64xf32, #tpu.memory_space<vmem>>, vector<4x1x4x64xf32>,
    %c0_166 = arith.constant 0 : index
    %c0_167 = arith.constant 0 : index
    %c0_168 = arith.constant 0 : index
    %c0_169 = arith.constant 0 : index
    %122 = vector.load %arg13[%c0_166, %c0_167, %c0_168, %c0_169] : memref<4x4x4x64xf32, #tpu.memory_space<vmem>>, vector<4x4x1x64xf32>
    tpu.vector_store %arg13[%c0_166, %c0_167, %c0_168, %c0_169], %119 {strides = array<i32>} : memref<4x4x4x64xf32, #tpu.memory_space<vmem>>, vector<4x4x1x64xf32>,
    %c0_170 = arith.constant 0 : index
    %c0_171 = arith.constant 0 : index
    %c3_172 = arith.constant 3 : index
    %c0_173 = arith.constant 0 : index
    %123 = vector.load %arg13[%c0_170, %c0_171, %c3_172, %c0_173] : memref<4x4x4x64xf32, #tpu.memory_space<vmem>>, vector<4x4x1x64xf32>
    tpu.vector_store %arg13[%c0_170, %c0_171, %c3_172, %c0_173], %119 {strides = array<i32>} : memref<4x4x4x64xf32, #tpu.memory_space<vmem>>, vector<4x4x1x64xf32>,
    %c0_174 = arith.constant 0 : index
    %c1_175 = arith.constant 1 : index
    %c1_176 = arith.constant 1 : index
    %c0_177 = arith.constant 0 : index
    %124 = vector.load %arg13[%c0_174, %c1_175, %c1_176, %c0_177] : memref<4x4x4x64xf32, #tpu.memory_space<vmem>>, vector<4x2x2x64xf32>
    tpu.vector_store %arg13[%c0_174, %c1_175, %c1_176, %c0_177], %117 {strides = array<i32>} : memref<4x4x4x64xf32, #tpu.memory_space<vmem>>, vector<4x2x2x64xf32>,
    %c0_178 = arith.constant 0 : index
    %c0_179 = arith.constant 0 : index
    %c0_180 = arith.constant 0 : index
    %c0_181 = arith.constant 0 : index
    %125 = vector.load %arg13[%c0_178, %c0_179, %c0_180, %c0_181] : memref<4x4x4x64xf32, #tpu.memory_space<vmem>>, vector<4x2x2x64xf32>
    %126 = vector.shape_cast %125 : vector<4x2x2x64xf32> to vector<16x64xf32>
    %c0_182 = arith.constant 0 : index
    %c0_183 = arith.constant 0 : index
    %c1_184 = arith.constant 1 : index
    %c0_185 = arith.constant 0 : index
    %127 = vector.load %arg13[%c0_182, %c0_183, %c1_184, %c0_185] : memref<4x4x4x64xf32, #tpu.memory_space<vmem>>, vector<4x2x2x64xf32>
    %128 = vector.shape_cast %127 : vector<4x2x2x64xf32> to vector<16x64xf32>
    %c0_186 = arith.constant 0 : index
    %c0_187 = arith.constant 0 : index
    %c2_188 = arith.constant 2 : index
    %c0_189 = arith.constant 0 : index
    %129 = vector.load %arg13[%c0_186, %c0_187, %c2_188, %c0_189] : memref<4x4x4x64xf32, #tpu.memory_space<vmem>>, vector<4x2x2x64xf32>
    %130 = vector.shape_cast %129 : vector<4x2x2x64xf32> to vector<16x64xf32>
    %c0_190 = arith.constant 0 : index
    %c1_191 = arith.constant 1 : index
    %c0_192 = arith.constant 0 : index
    %c0_193 = arith.constant 0 : index
    %131 = vector.load %arg13[%c0_190, %c1_191, %c0_192, %c0_193] : memref<4x4x4x64xf32, #tpu.memory_space<vmem>>, vector<4x2x2x64xf32>
    %132 = vector.shape_cast %131 : vector<4x2x2x64xf32> to vector<16x64xf32>
    %c0_194 = arith.constant 0 : index
    %c1_195 = arith.constant 1 : index
    %c1_196 = arith.constant 1 : index
    %c0_197 = arith.constant 0 : index
    %133 = vector.load %arg13[%c0_194, %c1_195, %c1_196, %c0_197] : memref<4x4x4x64xf32, #tpu.memory_space<vmem>>, vector<4x2x2x64xf32>
    %134 = vector.shape_cast %133 : vector<4x2x2x64xf32> to vector<16x64xf32>
    %c0_198 = arith.constant 0 : index
    %c1_199 = arith.constant 1 : index
    %c2_200 = arith.constant 2 : index
    %c0_201 = arith.constant 0 : index
    %135 = vector.load %arg13[%c0_198, %c1_199, %c2_200, %c0_201] : memref<4x4x4x64xf32, #tpu.memory_space<vmem>>, vector<4x2x2x64xf32>
    %136 = vector.shape_cast %135 : vector<4x2x2x64xf32> to vector<16x64xf32>
    %c0_202 = arith.constant 0 : index
    %c2_203 = arith.constant 2 : index
    %c0_204 = arith.constant 0 : index
    %c0_205 = arith.constant 0 : index
    %137 = vector.load %arg13[%c0_202, %c2_203, %c0_204, %c0_205] : memref<4x4x4x64xf32, #tpu.memory_space<vmem>>, vector<4x2x2x64xf32>
    %138 = vector.shape_cast %137 : vector<4x2x2x64xf32> to vector<16x64xf32>
    %c0_206 = arith.constant 0 : index
    %c2_207 = arith.constant 2 : index
    %c1_208 = arith.constant 1 : index
    %c0_209 = arith.constant 0 : index
    %139 = vector.load %arg13[%c0_206, %c2_207, %c1_208, %c0_209] : memref<4x4x4x64xf32, #tpu.memory_space<vmem>>, vector<4x2x2x64xf32>
    %140 = vector.shape_cast %139 : vector<4x2x2x64xf32> to vector<16x64xf32>
    %c0_210 = arith.constant 0 : index
    %c2_211 = arith.constant 2 : index
    %c2_212 = arith.constant 2 : index
    %c0_213 = arith.constant 0 : index
    %141 = vector.load %arg13[%c0_210, %c2_211, %c2_212, %c0_213] : memref<4x4x4x64xf32, #tpu.memory_space<vmem>>, vector<4x2x2x64xf32>
    %142 = vector.shape_cast %141 : vector<4x2x2x64xf32> to vector<16x64xf32>
    %143 = tpu.concatenate %126, %128 in 1 : vector<16x64xf32>, vector<16x64xf32> -> vector<16x128xf32>
    %144 = arith.truncf %143 : vector<16x128xf32> to vector<16x128xbf16>
    %c0_214 = arith.constant 0 : index
    %c0_215 = arith.constant 0 : index
    %145 = vector.load %arg14[%c0_214, %c0_215] : memref<256x576xbf16, #tpu.memory_space<vmem>>, vector<16x128xbf16>
    tpu.vector_store %arg14[%c0_214, %c0_215], %144 {strides = array<i32>} : memref<256x576xbf16, #tpu.memory_space<vmem>>, vector<16x128xbf16>,
    %146 = tpu.concatenate %130, %132 in 1 : vector<16x64xf32>, vector<16x64xf32> -> vector<16x128xf32>
    %147 = arith.truncf %146 : vector<16x128xf32> to vector<16x128xbf16>
    %c0_216 = arith.constant 0 : index
    %c128_217 = arith.constant 128 : index
    %148 = vector.load %arg14[%c0_216, %c128_217] : memref<256x576xbf16, #tpu.memory_space<vmem>>, vector<16x128xbf16>
    tpu.vector_store %arg14[%c0_216, %c128_217], %147 {strides = array<i32>} : memref<256x576xbf16, #tpu.memory_space<vmem>>, vector<16x128xbf16>,
    %149 = tpu.concatenate %134, %136 in 1 : vector<16x64xf32>, vector<16x64xf32> -> vector<16x128xf32>
    %150 = arith.truncf %149 : vector<16x128xf32> to vector<16x128xbf16>
    %c0_218 = arith.constant 0 : index
    %c256_219 = arith.constant 256 : index
    %151 = vector.load %arg14[%c0_218, %c256_219] : memref<256x576xbf16, #tpu.memory_space<vmem>>, vector<16x128xbf16>
    tpu.vector_store %arg14[%c0_218, %c256_219], %150 {strides = array<i32>} : memref<256x576xbf16, #tpu.memory_space<vmem>>, vector<16x128xbf16>,
    %152 = tpu.concatenate %138, %140 in 1 : vector<16x64xf32>, vector<16x64xf32> -> vector<16x128xf32>
    %153 = arith.truncf %152 : vector<16x128xf32> to vector<16x128xbf16>
    %c0_220 = arith.constant 0 : index
    %c384_221 = arith.constant 384 : index
    %154 = vector.load %arg14[%c0_220, %c384_221] : memref<256x576xbf16, #tpu.memory_space<vmem>>, vector<16x128xbf16>
    tpu.vector_store %arg14[%c0_220, %c384_221], %153 {strides = array<i32>} : memref<256x576xbf16, #tpu.memory_space<vmem>>, vector<16x128xbf16>,
    %155 = arith.truncf %142 : vector<16x64xf32> to vector<16x64xbf16>
    %c0_222 = arith.constant 0 : index
    %c512_223 = arith.constant 512 : index
    %156 = vector.load %arg14[%c0_222, %c512_223] : memref<256x576xbf16, #tpu.memory_space<vmem>>, vector<16x64xbf16>
    tpu.vector_store %arg14[%c0_222, %c512_223], %155 {strides = array<i32>} : memref<256x576xbf16, #tpu.memory_space<vmem>>, vector<16x64xbf16>,
    %c0_224 = arith.constant 0 : index
    %c0_225 = arith.constant 0 : index
    %157 = vector.load %arg14[%c0_224, %c0_225] : memref<256x576xbf16, #tpu.memory_space<vmem>>, vector<16x576xbf16>
    %c0_226 = arith.constant 0 : index
    %c0_227 = arith.constant 0 : index
    %158 = vector.load %arg8[%c0_226, %c0_227] : memref<576x64xbf16, #tpu.memory_space<vmem>>, vector<576x64xbf16>
    %cst_228 = arith.constant dense<0.000000e+00> : vector<16x64xf32>
    %159 = tpu.matmul %157, %158, %cst_228 {dimension_numbers = #tpu.dot_dimension_numbers<[1], [0], [0], [1], [0, 0, 1, 1], [], []>} : vector<16x576xbf16>, vector<576x64xbf16>, vector<16x64xf32> -> vector<16x64xf32>
    %c0_229 = arith.constant 0 : index
    %c0_230 = arith.constant 0 : index
    %160 = vector.load %arg9[%c0_229, %c0_230] : memref<1x64xf32, #tpu.memory_space<vmem>>, vector<1x64xf32>
    %161 = vector.broadcast %160 : vector<1x64xf32> to vector<16x64xf32>
    %162 = arith.addf %159, %161 : vector<16x64xf32>
    %cst_231 = arith.constant 0.000000e+00 : f32
    %163 = vector.broadcast %cst_231 : f32 to vector<16x64xf32>
    %164 = arith.maximumf %162, %163 : vector<16x64xf32>
    %165 = vector.shape_cast %164 : vector<16x64xf32> to vector<4x4x64xf32>
    %cst_232 = arith.constant dense<0.000000e+00> : vector<4x64xf32>
    %166 = vector.multi_reduction <add>, %165, %cst_232 [1] : vector<4x4x64xf32> to vector<4x64xf32>
    %cst_233 = arith.constant 2.500000e-01 : f32
    %167 = vector.broadcast %cst_233 : f32 to vector<4x64xf32>
    %168 = arith.mulf %166, %167 : vector<4x64xf32>
    %c0_234 = arith.constant 0 : index
    %c0_235 = arith.constant 0 : index
    %c0_236 = arith.constant 0 : index
    %169 = vector.load %arg10[%c0_234, %c0_235, %c0_236] : memref<1x4x64xf32, #tpu.memory_space<vmem>>, vector<1x4x64xf32>
    %170 = vector.shape_cast %169 : vector<1x4x64xf32> to vector<4x64xf32>
    %171 = vector.shape_cast %168 : vector<4x64xf32> to vector<1x4x64xf32>
    tpu.vector_store %arg10[%c0_234, %c0_235, %c0_236], %171 {strides = array<i32>} : memref<1x4x64xf32, #tpu.memory_space<vmem>>, vector<1x4x64xf32>,
    return
  }
  func.func @transform_0(%arg0: i32) -> (i32, i32, i32) {
    %c0_i32 = arith.constant 0 : i32
    %c0_i32_0 = arith.constant 0 : i32
    %c0_i32_1 = arith.constant 0 : i32
    return %arg0, %c0_i32, %c0_i32_0 : i32, i32, i32
  }
  func.func @transform_1(%arg0: i32) -> (i32, i32) {
    %c0_i32 = arith.constant 0 : i32
    %c0_i32_0 = arith.constant 0 : i32
    %c0_i32_1 = arith.constant 0 : i32
    return %c0_i32, %c0_i32_0 : i32, i32
  }
  func.func @transform_2(%arg0: i32) -> (i32, i32) {
    %c0_i32 = arith.constant 0 : i32
    %c0_i32_0 = arith.constant 0 : i32
    %c0_i32_1 = arith.constant 0 : i32
    return %c0_i32, %c0_i32_0 : i32, i32
  }
  func.func @transform_3(%arg0: i32) -> (i32, i32) {
    %c0_i32 = arith.constant 0 : i32
    %c0_i32_0 = arith.constant 0 : i32
    %c0_i32_1 = arith.constant 0 : i32
    return %c0_i32, %c0_i32_0 : i32, i32
  }
  func.func @transform_4(%arg0: i32) -> (i32, i32) {
    %c0_i32 = arith.constant 0 : i32
    %c0_i32_0 = arith.constant 0 : i32
    %c0_i32_1 = arith.constant 0 : i32
    return %c0_i32, %c0_i32_0 : i32, i32
  }
  func.func @transform_5(%arg0: i32) -> (i32, i32) {
    %c0_i32 = arith.constant 0 : i32
    %c0_i32_0 = arith.constant 0 : i32
    %c0_i32_1 = arith.constant 0 : i32
    return %c0_i32, %c0_i32_0 : i32, i32
  }
  func.func @transform_6(%arg0: i32) -> (i32, i32) {
    %c0_i32 = arith.constant 0 : i32
    %c0_i32_0 = arith.constant 0 : i32
    %c0_i32_1 = arith.constant 0 : i32
    return %c0_i32, %c0_i32_0 : i32, i32
  }
  func.func @transform_7(%arg0: i32) -> (i32, i32) {
    %c0_i32 = arith.constant 0 : i32
    %c0_i32_0 = arith.constant 0 : i32
    %c0_i32_1 = arith.constant 0 : i32
    return %c0_i32, %c0_i32_0 : i32, i32
  }
  func.func @transform_8(%arg0: i32) -> (i32, i32) {
    %c0_i32 = arith.constant 0 : i32
    %c0_i32_0 = arith.constant 0 : i32
    %c0_i32_1 = arith.constant 0 : i32
    return %c0_i32, %c0_i32_0 : i32, i32
  }
  func.func @transform_9(%arg0: i32) -> (i32, i32, i32) {
    %c0_i32 = arith.constant 0 : i32
    %c0_i32_0 = arith.constant 0 : i32
    %c0_i32_1 = arith.constant 0 : i32
    return %arg0, %c0_i32, %c0_i32_0 : i32, i32, i32
  }
}

</mosaic_0001>

<llo_original>
// kernel: _convnet_forward_impl.1
$region0: #{_convnet_forward_impl.1}
  #allocation0 [shape = 'u32[]', space=smem, size = 0x4, offset = 0x4, fixed_abs, tag = 'smem constant byte address 0x4 - core index']
  #allocation1 [shape = 'u32[144,128]{1,0:T(1,128)}', space=vmem, size = 0x12000, scoped, tag = 'internal scratch']
  #allocation2 [shape = 'f32[4,10,10,64]{3,2,1,0:T(8,128)}', space=vmem, size = 0x50000, scoped, tag = 'scratch operand']
  #allocation3 [shape = 'f32[4,6,6,64]{3,2,1,0:T(8,128)}', space=vmem, size = 0x18000, scoped, tag = 'scratch operand']
  #allocation4 [shape = 'f32[4,4,4,64]{3,2,1,0:T(4,128)}', space=vmem, size = 0x8000, scoped, tag = 'scratch operand']
  #allocation5 [shape = 'bf16[256,576]{1,0:T(8,128)(2,1)}', space=vmem, size = 0x50000, scoped, tag = 'scratch operand']
  %s0 = inlined_call_operand.vmem [shape: bf16[8,256,32], index: 0, kind: input, shape index: {}]
  %s1 = inlined_call_operand.vmem [shape: bf16[32,64], index: 1, kind: input, shape index: {}]
  %s2 = inlined_call_operand.vmem [shape: f32[1,64], index: 2, kind: input, shape index: {}]
  %s3 = inlined_call_operand.vmem [shape: bf16[576,64], index: 3, kind: input, shape index: {}]
  %s4 = inlined_call_operand.vmem [shape: f32[1,64], index: 4, kind: input, shape index: {}]
  %s5 = inlined_call_operand.vmem [shape: bf16[576,64], index: 5, kind: input, shape index: {}]
  %s6 = inlined_call_operand.vmem [shape: f32[1,64], index: 6, kind: input, shape index: {}]
  %s7 = inlined_call_operand.vmem [shape: bf16[576,64], index: 7, kind: input, shape index: {}]
  %s8 = inlined_call_operand.vmem [shape: f32[1,64], index: 8, kind: input, shape index: {}]
  %s9 = inlined_call_operand.hbm [shape: f32[2,4,64], index: 9, kind: output, shape index: {}]
  %s10 = sld [smem:[#allocation0]]
  $region69: #{_convnet_forward_impl.1} parent=0
    _
  %s12 = ssub.s32 1, %s10
  %s13 = scalar_select 0, %s12, %s10
  $region1: #{_convnet_forward_impl.1} parent=0
    #allocation6 [shape = 'u8[4096]{0}', space=vmem, size = 0x1000, scoped, tag = 'output window, operand 0']
    #allocation7 [shape = 's32[2]{0}', space=sflag, size = 0x8, scoped, tag = 'scoped memory for _convnet_forward_impl.1']
    %14 = vsyncpa [#allocation7], 0
    %s15 = scalar_lea.sflag [#allocation7], 1
    %16 = vsyncpa %s15, 0
    loop: start=0, step=1, limit=4
    $region2: #{_convnet_forward_impl.1} parent=1 // loop_pre_header
      _
    $region3: #{_convnet_forward_impl.1} parent=1 // loop_header
      %s18 = sphi 0, %s22
      %p19 = scmp.ge.s32.totalorder %s18, 4
      %s28 = sphi 0, %s30
      %s31 = sphi 0, %s28
      %s32 = sphi 0, %s31
      %s48 = sphi 0, %s32
      %s52 = sphi 0, %s52
      %s54 = sphi 0, %s52
      %s55 = sphi 0, %s54
      %s69 = sphi 0, %s55
      %s73 = sphi 0, %s73
      %s75 = sphi 0, %s73
      %s76 = sphi 0, %s75
      %s90 = sphi 0, %s76
      %s94 = sphi 0, %s94
      %s96 = sphi 0, %s94
      %s97 = sphi 0, %s96
      %s111 = sphi 0, %s97
      %s115 = sphi 0, %s115
      %s117 = sphi 0, %s115
      %s118 = sphi 0, %s117
      %s132 = sphi 0, %s118
      %s136 = sphi 0, %s136
      %s138 = sphi 0, %s136
      %s139 = sphi 0, %s138
      %s153 = sphi 0, %s139
      %s157 = sphi 0, %s157
      %s159 = sphi 0, %s157
      %s160 = sphi 0, %s159
      %s174 = sphi 0, %s160
      %s178 = sphi 0, %s178
      %s180 = sphi 0, %s178
      %s181 = sphi 0, %s180
      %s195 = sphi 0, %s181
      %s199 = sphi 0, %s199
      %s201 = sphi 0, %s199
      %s202 = sphi 0, %s201
      %s216 = sphi 0, %s202
      %s222 = sphi 0, %s224
      %s225 = sphi 0, %s222
      %s226 = sphi 0, %s225
      %s242 = sphi 0, %s226
    $region4: #{_convnet_forward_impl.1} parent=1 // loop_header_branch
      %21 = sbr.rel (%p19) target = $region8
    $region5: #{_convnet_forward_impl.1} parent=1 // loop_body
      %s23 = ssub.s32 %s18, 1
      %s24 = ssub.s32 %s18, 2
      %s25 = sadd.s32 %s18, 1
      %s26 = ssub.s32 %s18, %s25
      %p27 = scmp.eq.s32.totalorder %s26, 0
      %s29 = sadd.s32 %s28, 1
      %s30 = scalar_select %p27, %s28, %s29
      %p33 = pneg %p27
      %p34 = scmp.eq.s32.totalorder %s18, 1
      %p35 = por %p33, %p34
      %p36 = scmp.ne.s32.totalorder %s28, %s31
      %p37 = scmp.eq.s32.totalorder %s18, 0
      %p38 = por %p36, %p37
      %p39 = scmp.ne.s32.totalorder %s28, %s31
      %p40 = scmp.eq.s32.totalorder %s23, 1
      %p41 = por %p39, %p40
      %p42 = scmp.ne.s32.totalorder %s31, %s32
      %p43 = scmp.eq.s32.totalorder %s23, 0
      %p44 = por %p42, %p43
      %p45 = scmp.ne.s32.totalorder %s31, %s32
      %p46 = scmp.eq.s32.totalorder %s24, 1
      %p47 = por %p45, %p46
      %p49 = scmp.ne.s32.totalorder %s32, %s48
      %p50 = scmp.eq.s32.totalorder %s24, 0
      %p51 = por %p49, %p50
      %s53 = sadd.s32 %s52, 1
      %p56 = scmp.eq.s32.totalorder %s18, 1
      %p57 = scmp.ne.s32.totalorder %s52, %s54
      %p58 = scmp.eq.s32.totalorder %s18, 0
      %p59 = por %p57, %p58
      %p60 = scmp.ne.s32.totalorder %s52, %s54
      %p61 = scmp.eq.s32.totalorder %s23, 1
      %p62 = por %p60, %p61
      %p63 = scmp.ne.s32.totalorder %s54, %s55
      %p64 = scmp.eq.s32.totalorder %s23, 0
      %p65 = por %p63, %p64
      %p66 = scmp.ne.s32.totalorder %s54, %s55
      %p67 = scmp.eq.s32.totalorder %s24, 1
      %p68 = por %p66, %p67
      %p70 = scmp.ne.s32.totalorder %s55, %s69
      %p71 = scmp.eq.s32.totalorder %s24, 0
      %p72 = por %p70, %p71
      %s74 = sadd.s32 %s73, 1
      %p77 = scmp.eq.s32.totalorder %s18, 1
      %p78 = scmp.ne.s32.totalorder %s73, %s75
      %p79 = scmp.eq.s32.totalorder %s18, 0
      %p80 = por %p78, %p79
      %p81 = scmp.ne.s32.totalorder %s73, %s75
      %p82 = scmp.eq.s32.totalorder %s23, 1
      %p83 = por %p81, %p82
      %p84 = scmp.ne.s32.totalorder %s75, %s76
      %p85 = scmp.eq.s32.totalorder %s23, 0
      %p86 = por %p84, %p85
      %p87 = scmp.ne.s32.totalorder %s75, %s76
      %p88 = scmp.eq.s32.totalorder %s24, 1
      %p89 = por %p87, %p88
      %p91 = scmp.ne.s32.totalorder %s76, %s90
      %p92 = scmp.eq.s32.totalorder %s24, 0
      %p93 = por %p91, %p92
      %s95 = sadd.s32 %s94, 1
      %p98 = scmp.eq.s32.totalorder %s18, 1
      %p99 = scmp.ne.s32.totalorder %s94, %s96
      %p100 = scmp.eq.s32.totalorder %s18, 0
      %p101 = por %p99, %p100
      %p102 = scmp.ne.s32.totalorder %s94, %s96
      %p103 = scmp.eq.s32.totalorder %s23, 1
      %p104 = por %p102, %p103
      %p105 = scmp.ne.s32.totalorder %s96, %s97
      %p106 = scmp.eq.s32.totalorder %s23, 0
      %p107 = por %p105, %p106
      %p108 = scmp.ne.s32.totalorder %s96, %s97
      %p109 = scmp.eq.s32.totalorder %s24, 1
      %p110 = por %p108, %p109
      %p112 = scmp.ne.s32.totalorder %s97, %s111
      %p113 = scmp.eq.s32.totalorder %s24, 0
      %p114 = por %p112, %p113
      %s116 = sadd.s32 %s115, 1
      %p119 = scmp.eq.s32.totalorder %s18, 1
      %p120 = scmp.ne.s32.totalorder %s115, %s117
      %p121 = scmp.eq.s32.totalorder %s18, 0
      %p122 = por %p120, %p121
      %p123 = scmp.ne.s32.totalorder %s115, %s117
      %p124 = scmp.eq.s32.totalorder %s23, 1
      %p125 = por %p123, %p124
      %p126 = scmp.ne.s32.totalorder %s117, %s118
      %p127 = scmp.eq.s32.totalorder %s23, 0
      %p128 = por %p126, %p127
      %p129 = scmp.ne.s32.totalorder %s117, %s118
      %p130 = scmp.eq.s32.totalorder %s24, 1
      %p131 = por %p129, %p130
      %p133 = scmp.ne.s32.totalorder %s118, %s132
      %p134 = scmp.eq.s32.totalorder %s24, 0
      %p135 = por %p133, %p134
      %s137 = sadd.s32 %s136, 1
      %p140 = scmp.eq.s32.totalorder %s18, 1
      %p141 = scmp.ne.s32.totalorder %s136, %s138
      %p142 = scmp.eq.s32.totalorder %s18, 0
      %p143 = por %p141, %p142
      %p144 = scmp.ne.s32.totalorder %s136, %s138
      %p145 = scmp.eq.s32.totalorder %s23, 1
      %p146 = por %p144, %p145
      %p147 = scmp.ne.s32.totalorder %s138, %s139
      %p148 = scmp.eq.s32.totalorder %s23, 0
      %p149 = por %p147, %p148
      %p150 = scmp.ne.s32.totalorder %s138, %s139
      %p151 = scmp.eq.s32.totalorder %s24, 1
      %p152 = por %p150, %p151
      %p154 = scmp.ne.s32.totalorder %s139, %s153
      %p155 = scmp.eq.s32.totalorder %s24, 0
      %p156 = por %p154, %p155
      %s158 = sadd.s32 %s157, 1
      %p161 = scmp.eq.s32.totalorder %s18, 1
      %p162 = scmp.ne.s32.totalorder %s157, %s159
      %p163 = scmp.eq.s32.totalorder %s18, 0
      %p164 = por %p162, %p163
      %p165 = scmp.ne.s32.totalorder %s157, %s159
      %p166 = scmp.eq.s32.totalorder %s23, 1
      %p167 = por %p165, %p166
      %p168 = scmp.ne.s32.totalorder %s159, %s160
      %p169 = scmp.eq.s32.totalorder %s23, 0
      %p170 = por %p168, %p169
      %p171 = scmp.ne.s32.totalorder %s159, %s160
      %p172 = scmp.eq.s32.totalorder %s24, 1
      %p173 = por %p171, %p172
      %p175 = scmp.ne.s32.totalorder %s160, %s174
      %p176 = scmp.eq.s32.totalorder %s24, 0
      %p177 = por %p175, %p176
      %s179 = sadd.s32 %s178, 1
      %p182 = scmp.eq.s32.totalorder %s18, 1
      %p183 = scmp.ne.s32.totalorder %s178, %s180
      %p184 = scmp.eq.s32.totalorder %s18, 0
      %p185 = por %p183, %p184
      %p186 = scmp.ne.s32.totalorder %s178, %s180
      %p187 = scmp.eq.s32.totalorder %s23, 1
      %p188 = por %p186, %p187
      %p189 = scmp.ne.s32.totalorder %s180, %s181
      %p190 = scmp.eq.s32.totalorder %s23, 0
      %p191 = por %p189, %p190
      %p192 = scmp.ne.s32.totalorder %s180, %s181
      %p193 = scmp.eq.s32.totalorder %s24, 1
      %p194 = por %p192, %p193
      %p196 = scmp.ne.s32.totalorder %s181, %s195
      %p197 = scmp.eq.s32.totalorder %s24, 0
      %p198 = por %p196, %p197
      %s200 = sadd.s32 %s199, 1
      %p203 = scmp.eq.s32.totalorder %s18, 1
      %p204 = scmp.ne.s32.totalorder %s199, %s201
      %p205 = scmp.eq.s32.totalorder %s18, 0
      %p206 = por %p204, %p205
      %p207 = scmp.ne.s32.totalorder %s199, %s201
      %p208 = scmp.eq.s32.totalorder %s23, 1
      %p209 = por %p207, %p208
      %p210 = scmp.ne.s32.totalorder %s201, %s202
      %p211 = scmp.eq.s32.totalorder %s23, 0
      %p212 = por %p210, %p211
      %p213 = scmp.ne.s32.totalorder %s201, %s202
      %p214 = scmp.eq.s32.totalorder %s24, 1
      %p215 = por %p213, %p214
      %p217 = scmp.ne.s32.totalorder %s202, %s216
      %p218 = scmp.eq.s32.totalorder %s24, 0
      %p219 = por %p217, %p218
      %s220 = ssub.s32 %s18, %s25
      %p221 = scmp.eq.s32.totalorder %s220, 0
      %s223 = sadd.s32 %s222, 1
      %s224 = scalar_select %p221, %s222, %s223
      %p227 = pneg %p221
      %p228 = scmp.eq.s32.totalorder %s18, 1
      %p229 = por %p227, %p228
      %p230 = scmp.ne.s32.totalorder %s222, %s225
      %p231 = scmp.eq.s32.totalorder %s18, 0
      %p232 = por %p230, %p231
      %p233 = scmp.ne.s32.totalorder %s222, %s225
      %p234 = scmp.eq.s32.totalorder %s23, 1
      %p235 = por %p233, %p234
      %p236 = scmp.ne.s32.totalorder %s225, %s226
      %p237 = scmp.eq.s32.totalorder %s23, 0
      %p238 = por %p236, %p237
      %p239 = scmp.ne.s32.totalorder %s225, %s226
      %p240 = scmp.eq.s32.totalorder %s24, 1
      %p241 = por %p239, %p240
      %p243 = scmp.ne.s32.totalorder %s226, %s242
      %p244 = scmp.eq.s32.totalorder %s24, 0
      %p245 = por %p243, %p244
      %p246 = scmp.le.s32.totalorder 1, %s18
      %p247 = scmp.lt.s32.totalorder %s18, 3
      %p248 = pnand %p246, %p247
      %p249 = pneg %p248
      // Predicated region
      $region9: #{_convnet_forward_impl.1} parent=5 // pred_check
        _
      $region10: #{_convnet_forward_impl.1} parent=5 // pred_check_branch
        %251 = sbr.rel (%p248) target = $region12
      $region11: #{_convnet_forward_impl.1} parent=5 // pred_region
        %s252 = ssub.s32 %s18, 1
        // Predicated region
        $region13: #{_convnet_forward_impl.1} parent=11 // pred_check
          %p253 = pneg %p65
        $region14: #{_convnet_forward_impl.1} parent=11 // pred_check_branch
          %255 = sbr.rel (%p253) target = $region16
        $region15: #{_convnet_forward_impl.1} parent=11 // pred_region
          _
        $region16: #{_convnet_forward_impl.1} parent=11 // pred_fallthru
          _
        // Predicated region
        $region17: #{_convnet_forward_impl.1} parent=11 // pred_check
          %p256 = pneg %p86
        $region18: #{_convnet_forward_impl.1} parent=11 // pred_check_branch
          %258 = sbr.rel (%p256) target = $region20
        $region19: #{_convnet_forward_impl.1} parent=11 // pred_region
          _
        $region20: #{_convnet_forward_impl.1} parent=11 // pred_fallthru
          _
        // Predicated region
        $region21: #{_convnet_forward_impl.1} parent=11 // pred_check
          %p259 = pneg %p107
        $region22: #{_convnet_forward_impl.1} parent=11 // pred_check_branch
          %261 = sbr.rel (%p259) target = $region24
        $region23: #{_convnet_forward_impl.1} parent=11 // pred_region
          _
        $region24: #{_convnet_forward_impl.1} parent=11 // pred_fallthru
          _
        // Predicated region
        $region25: #{_convnet_forward_impl.1} parent=11 // pred_check
          %p262 = pneg %p128
        $region26: #{_convnet_forward_impl.1} parent=11 // pred_check_branch
          %264 = sbr.rel (%p262) target = $region28
        $region27: #{_convnet_forward_impl.1} parent=11 // pred_region
          _
        $region28: #{_convnet_forward_impl.1} parent=11 // pred_fallthru
          _
        // Predicated region
        $region29: #{_convnet_forward_impl.1} parent=11 // pred_check
          %p265 = pneg %p149
        $region30: #{_convnet_forward_impl.1} parent=11 // pred_check_branch
          %267 = sbr.rel (%p265) target = $region32
        $region31: #{_convnet_forward_impl.1} parent=11 // pred_region
          _
        $region32: #{_convnet_forward_impl.1} parent=11 // pred_fallthru
          _
        // Predicated region
        $region33: #{_convnet_forward_impl.1} parent=11 // pred_check
          %p268 = pneg %p170
        $region34: #{_convnet_forward_impl.1} parent=11 // pred_check_branch
          %270 = sbr.rel (%p268) target = $region36
        $region35: #{_convnet_forward_impl.1} parent=11 // pred_region
          _
        $region36: #{_convnet_forward_impl.1} parent=11 // pred_fallthru
          _
        // Predicated region
        $region37: #{_convnet_forward_impl.1} parent=11 // pred_check
          %p271 = pneg %p191
        $region38: #{_convnet_forward_impl.1} parent=11 // pred_check_branch
          %273 = sbr.rel (%p271) target = $region40
        $region39: #{_convnet_forward_impl.1} parent=11 // pred_region
          _
        $region40: #{_convnet_forward_impl.1} parent=11 // pred_fallthru
          _
        // Predicated region
        $region41: #{_convnet_forward_impl.1} parent=11 // pred_check
          %p274 = pneg %p212
        $region42: #{_convnet_forward_impl.1} parent=11 // pred_check_branch
          %276 = sbr.rel (%p274) target = $region44
        $region43: #{_convnet_forward_impl.1} parent=11 // pred_region
          _
        $region44: #{_convnet_forward_impl.1} parent=11 // pred_fallthru
          _
      $region12: #{_convnet_forward_impl.1} parent=5 // pred_fallthru
        _
      %p277 = scmp.lt.s32.totalorder %s18, 2
      // Predicated region
      $region45: #{_convnet_forward_impl.1} parent=5 // pred_check
        %p278 = pneg %p277
      $region46: #{_convnet_forward_impl.1} parent=5 // pred_check_branch
        %280 = sbr.rel (%p278) target = $region48
      $region47: #{_convnet_forward_impl.1} parent=5 // pred_region
        // Predicated region
        $region49: #{_convnet_forward_impl.1} parent=47 // pred_check
          %p281 = pneg %p38
        $region50: #{_convnet_forward_impl.1} parent=47 // pred_check_branch
          %283 = sbr.rel (%p281) target = $region52
        $region51: #{_convnet_forward_impl.1} parent=47 // pred_region
          %s284 = smul.u32 4, %s18
          %p285 = scmp.lt.s32.totalorder %s284, 7
          %s286 = scalar_select %p285, %s284, 7
          %s287 = smul.addr %s286, 32
          %s288 = smul.addr %s287, 4
          %s289 = scalar_lea.vmem %s0, %s288
          %s290 = smul.u32 4, %s18
        $region52: #{_convnet_forward_impl.1} parent=47 // pred_fallthru
          _
      $region48: #{_convnet_forward_impl.1} parent=5 // pred_fallthru
        _
      %p291 = scmp.le.s32.totalorder 1, %s18
      %p292 = scmp.lt.s32.totalorder %s18, 3
      %p293 = pnand %p291, %p292
      %p294 = pneg %p293
      // Predicated region
      $region53: #{_convnet_forward_impl.1} parent=5 // pred_check
        _
      $region54: #{_convnet_forward_impl.1} parent=5 // pred_check_branch
        %296 = sbr.rel (%p293) target = $region56
      $region55: #{_convnet_forward_impl.1} parent=5 // pred_region
        %s297 = ssub.s32 %s18, 1
        %s298 = smul.u32 4, %s23
        %p299 = scmp.lt.s32.totalorder %s298, 7
        %s300 = scalar_select %p299, %s298, 7
        %s301 = smul.addr %s300, 32
        %s302 = smul.addr %s301, 4
        %s303 = scalar_lea.vmem %s0, %s302
        %p304 = pneg %p44
        %p305 = pneg %p41
        %p306 = pneg %p65
        %p307 = pneg %p62
        %p308 = pneg %p86
        %p309 = pneg %p83
        %p310 = pneg %p107
        %p311 = pneg %p104
        %p312 = pneg %p128
        %p313 = pneg %p125
        %p314 = pneg %p149
        %p315 = pneg %p146
        %p316 = pneg %p170
        %p317 = pneg %p167
        %p318 = pneg %p191
        %p319 = pneg %p188
        %p320 = pneg %p212
        %p321 = pneg %p209
        %p322 = pneg %p238
        %p323 = pneg %p235
        %s324 = sand.u32 %s225, 1
        %s325 = scalar_lea.sflag [#allocation7], %s324
        %s326 = sand.u32 %s225, 1
        %s327 = smul.addr %s326, 4
        %s328 = scalar_lea.vmem [#allocation6], %s327
        %s329 = smul.u32 4, %s23
        %p330 = scmp.lt.s32.totalorder %s329, 7
        %s331 = scalar_select %p330, %s329, 7
        %s332 = smul.addr %s331, 32
        %s333 = smul.addr %s332, 4
        %s334 = scalar_lea.vmem %s0, %s333
        %s335 = smul.u32 4, %s23
        %v337 = vld [vmem:[%s334] sm:$0xf]
        %v338 = vld [vmem:[%s334 + $0x4] sm:$0xf]
        %v339 = vld [vmem:[%s334 + $0x8] sm:$0xf]
        %v340 = vld [vmem:[%s334 + $0xc] sm:$0xf]
        %v341 = vld [vmem:[%s334 + $0x10] sm:$0xf]
        %v342 = vld [vmem:[%s334 + $0x14] sm:$0xf]
        %v343 = vld [vmem:[%s334 + $0x18] sm:$0xf]
        %v344 = vld [vmem:[%s334 + $0x1c] sm:$0xf]
        %v345 = vld [vmem:[%s334 + $0x20] sm:$0xf]
        %v346 = vld [vmem:[%s334 + $0x24] sm:$0xf]
        %v347 = vld [vmem:[%s334 + $0x28] sm:$0xf]
        %v348 = vld [vmem:[%s334 + $0x2c] sm:$0xf]
        %v349 = vld [vmem:[%s334 + $0x30] sm:$0xf]
        %v350 = vld [vmem:[%s334 + $0x34] sm:$0xf]
        %v351 = vld [vmem:[%s334 + $0x38] sm:$0xf]
        %v352 = vld [vmem:[%s334 + $0x3c] sm:$0xf]
        %v353 = vld [vmem:[%s334 + $0x40] sm:$0xf]
        %v354 = vld [vmem:[%s334 + $0x44] sm:$0xf]
        %v355 = vld [vmem:[%s334 + $0x48] sm:$0xf]
        %v356 = vld [vmem:[%s334 + $0x4c] sm:$0xf]
        %v357 = vld [vmem:[%s334 + $0x50] sm:$0xf]
        %v358 = vld [vmem:[%s334 + $0x54] sm:$0xf]
        %v359 = vld [vmem:[%s334 + $0x58] sm:$0xf]
        %v360 = vld [vmem:[%s334 + $0x5c] sm:$0xf]
        %v361 = vld [vmem:[%s334 + $0x60] sm:$0xf]
        %v362 = vld [vmem:[%s334 + $0x64] sm:$0xf]
        %v363 = vld [vmem:[%s334 + $0x68] sm:$0xf]
        %v364 = vld [vmem:[%s334 + $0x6c] sm:$0xf]
        %v365 = vld [vmem:[%s334 + $0x70] sm:$0xf]
        %v366 = vld [vmem:[%s334 + $0x74] sm:$0xf]
        %v367 = vld [vmem:[%s334 + $0x78] sm:$0xf]
        %v368 = vld [vmem:[%s334 + $0x7c] sm:$0xf]
        %v369 = vld [vmem:[%s334 + $0x80] sm:$0xf]
        %v370 = vld [vmem:[%s334 + $0x84] sm:$0xf]
        %v371 = vld [vmem:[%s334 + $0x88] sm:$0xf]
        %v372 = vld [vmem:[%s334 + $0x8c] sm:$0xf]
        %v373 = vld [vmem:[%s334 + $0x90] sm:$0xf]
        %v374 = vld [vmem:[%s334 + $0x94] sm:$0xf]
        %v375 = vld [vmem:[%s334 + $0x98] sm:$0xf]
        %v376 = vld [vmem:[%s334 + $0x9c] sm:$0xf]
        %v377 = vld [vmem:[%s334 + $0xa0] sm:$0xf]
        %v378 = vld [vmem:[%s334 + $0xa4] sm:$0xf]
        %v379 = vld [vmem:[%s334 + $0xa8] sm:$0xf]
        %v380 = vld [vmem:[%s334 + $0xac] sm:$0xf]
        %v381 = vld [vmem:[%s334 + $0xb0] sm:$0xf]
        %v382 = vld [vmem:[%s334 + $0xb4] sm:$0xf]
        %v383 = vld [vmem:[%s334 + $0xb8] sm:$0xf]
        %v384 = vld [vmem:[%s334 + $0xbc] sm:$0xf]
        %v385 = vld [vmem:[%s334 + $0xc0] sm:$0xf]
        %v386 = vld [vmem:[%s334 + $0xc4] sm:$0xf]
        %v387 = vld [vmem:[%s334 + $0xc8] sm:$0xf]
        %v388 = vld [vmem:[%s334 + $0xcc] sm:$0xf]
        %v389 = vld [vmem:[%s334 + $0xd0] sm:$0xf]
        %v390 = vld [vmem:[%s334 + $0xd4] sm:$0xf]
        %v391 = vld [vmem:[%s334 + $0xd8] sm:$0xf]
        %v392 = vld [vmem:[%s334 + $0xdc] sm:$0xf]
        %v393 = vld [vmem:[%s334 + $0xe0] sm:$0xf]
        %v394 = vld [vmem:[%s334 + $0xe4] sm:$0xf]
        %v395 = vld [vmem:[%s334 + $0xe8] sm:$0xf]
        %v396 = vld [vmem:[%s334 + $0xec] sm:$0xf]
        %v397 = vld [vmem:[%s334 + $0xf0] sm:$0xf]
        %v398 = vld [vmem:[%s334 + $0xf4] sm:$0xf]
        %v399 = vld [vmem:[%s334 + $0xf8] sm:$0xf]
        %v400 = vld [vmem:[%s334 + $0xfc] sm:$0xf]
        %v401 = vld [vmem:[%s334 + $0x100] sm:$0xf]
        %v402 = vld [vmem:[%s334 + $0x104] sm:$0xf]
        %v403 = vld [vmem:[%s334 + $0x108] sm:$0xf]
        %v404 = vld [vmem:[%s334 + $0x10c] sm:$0xf]
        %v405 = vld [vmem:[%s334 + $0x110] sm:$0xf]
        %v406 = vld [vmem:[%s334 + $0x114] sm:$0xf]
        %v407 = vld [vmem:[%s334 + $0x118] sm:$0xf]
        %v408 = vld [vmem:[%s334 + $0x11c] sm:$0xf]
        %v409 = vld [vmem:[%s334 + $0x120] sm:$0xf]
        %v410 = vld [vmem:[%s334 + $0x124] sm:$0xf]
        %v411 = vld [vmem:[%s334 + $0x128] sm:$0xf]
        %v412 = vld [vmem:[%s334 + $0x12c] sm:$0xf]
        %v413 = vld [vmem:[%s334 + $0x130] sm:$0xf]
        %v414 = vld [vmem:[%s334 + $0x134] sm:$0xf]
        %v415 = vld [vmem:[%s334 + $0x138] sm:$0xf]
        %v416 = vld [vmem:[%s334 + $0x13c] sm:$0xf]
        %v417 = vld [vmem:[%s334 + $0x140] sm:$0xf]
        %v418 = vld [vmem:[%s334 + $0x144] sm:$0xf]
        %v419 = vld [vmem:[%s334 + $0x148] sm:$0xf]
        %v420 = vld [vmem:[%s334 + $0x14c] sm:$0xf]
        %v421 = vld [vmem:[%s334 + $0x150] sm:$0xf]
        %v422 = vld [vmem:[%s334 + $0x154] sm:$0xf]
        %v423 = vld [vmem:[%s334 + $0x158] sm:$0xf]
        %v424 = vld [vmem:[%s334 + $0x15c] sm:$0xf]
        %v425 = vld [vmem:[%s334 + $0x160] sm:$0xf]
        %v426 = vld [vmem:[%s334 + $0x164] sm:$0xf]
        %v427 = vld [vmem:[%s334 + $0x168] sm:$0xf]
        %v428 = vld [vmem:[%s334 + $0x16c] sm:$0xf]
        %v429 = vld [vmem:[%s334 + $0x170] sm:$0xf]
        %v430 = vld [vmem:[%s334 + $0x174] sm:$0xf]
        %v431 = vld [vmem:[%s334 + $0x178] sm:$0xf]
        %v432 = vld [vmem:[%s334 + $0x17c] sm:$0xf]
        %v433 = vld [vmem:[%s334 + $0x180] sm:$0xf]
        %v434 = vld [vmem:[%s334 + $0x184] sm:$0xf]
        %v435 = vld [vmem:[%s334 + $0x188] sm:$0xf]
        %v436 = vld [vmem:[%s334 + $0x18c] sm:$0xf]
        %v437 = vld [vmem:[%s334 + $0x190] sm:$0xf]
        %v438 = vld [vmem:[%s334 + $0x194] sm:$0xf]
        %v439 = vld [vmem:[%s334 + $0x198] sm:$0xf]
        %v440 = vld [vmem:[%s334 + $0x19c] sm:$0xf]
        %v441 = vld [vmem:[%s334 + $0x1a0] sm:$0xf]
        %v442 = vld [vmem:[%s334 + $0x1a4] sm:$0xf]
        %v443 = vld [vmem:[%s334 + $0x1a8] sm:$0xf]
        %v444 = vld [vmem:[%s334 + $0x1ac] sm:$0xf]
        %v445 = vld [vmem:[%s334 + $0x1b0] sm:$0xf]
        %v446 = vld [vmem:[%s334 + $0x1b4] sm:$0xf]
        %v447 = vld [vmem:[%s334 + $0x1b8] sm:$0xf]
        %v448 = vld [vmem:[%s334 + $0x1bc] sm:$0xf]
        %v449 = vld [vmem:[%s334 + $0x1c0] sm:$0xf]
        %v450 = vld [vmem:[%s334 + $0x1c4] sm:$0xf]
        %v451 = vld [vmem:[%s334 + $0x1c8] sm:$0xf]
        %v452 = vld [vmem:[%s334 + $0x1cc] sm:$0xf]
        %v453 = vld [vmem:[%s334 + $0x1d0] sm:$0xf]
        %v454 = vld [vmem:[%s334 + $0x1d4] sm:$0xf]
        %v455 = vld [vmem:[%s334 + $0x1d8] sm:$0xf]
        %v456 = vld [vmem:[%s334 + $0x1dc] sm:$0xf]
        %v457 = vld [vmem:[%s334 + $0x1e0] sm:$0xf]
        %v458 = vld [vmem:[%s334 + $0x1e4] sm:$0xf]
        %v459 = vld [vmem:[%s334 + $0x1e8] sm:$0xf]
        %v460 = vld [vmem:[%s334 + $0x1ec] sm:$0xf]
        %v461 = vld [vmem:[%s334 + $0x1f0] sm:$0xf]
        %v462 = vld [vmem:[%s334 + $0x1f4] sm:$0xf]
        %v463 = vld [vmem:[%s334 + $0x1f8] sm:$0xf]
        %v464 = vld [vmem:[%s334 + $0x1fc] sm:$0xf]
        %v465 = vld [vmem:[%s1] sm:$0xf]
        %v466 = vld [vmem:[%s1 + $0x4] sm:$0xf]
        %v467 = vld [vmem:[%s1 + $0x8] sm:$0xf]
        %v468 = vld [vmem:[%s1 + $0xc] sm:$0xf]
        %v469 = vld [vmem:[%s2] sm:$0x1]
        %v471 = vlaneseq
        %v472 = vshrl.u32 %v471, 7
        %v473 = vsub.s32 0, %v472
        %v474 = vrot.slane %v469, %v473
        %v604 = vunpack.c.l.b16 %v337
        %v605 = vunpack.c.l.b16 %v338
        %v606 = vunpack.c.l.b16 %v339
        %v607 = vunpack.c.l.b16 %v340
        %v608 = vunpack.c.l.b16 %v341
        %v609 = vunpack.c.l.b16 %v342
        %v610 = vunpack.c.l.b16 %v343
        %v611 = vunpack.c.l.b16 %v344
        %v612 = vunpack.c.l.b16 %v345
        %v613 = vunpack.c.l.b16 %v346
        %v614 = vunpack.c.l.b16 %v347
        %v615 = vunpack.c.l.b16 %v348
        %v616 = vunpack.c.l.b16 %v349
        %v617 = vunpack.c.l.b16 %v350
        %v618 = vunpack.c.l.b16 %v351
        %v619 = vunpack.c.l.b16 %v352
        %v620 = vunpack.c.l.b16 %v353
        %v621 = vunpack.c.l.b16 %v354
        %v622 = vunpack.c.l.b16 %v355
        %v623 = vunpack.c.l.b16 %v356
        %v624 = vunpack.c.l.b16 %v357
        %v625 = vunpack.c.l.b16 %v358
        %v626 = vunpack.c.l.b16 %v359
        %v627 = vunpack.c.l.b16 %v360
        %v628 = vunpack.c.l.b16 %v361
        %v629 = vunpack.c.l.b16 %v362
        %v630 = vunpack.c.l.b16 %v363
        %v631 = vunpack.c.l.b16 %v364
        %v632 = vunpack.c.l.b16 %v365
        %v633 = vunpack.c.l.b16 %v366
        %v634 = vunpack.c.l.b16 %v367
        %v635 = vunpack.c.l.b16 %v368
        %v636 = vunpack.c.l.b16 %v369
        %v637 = vunpack.c.l.b16 %v370
        %v638 = vunpack.c.l.b16 %v371
        %v639 = vunpack.c.l.b16 %v372
        %v640 = vunpack.c.l.b16 %v373
        %v641 = vunpack.c.l.b16 %v374
        %v642 = vunpack.c.l.b16 %v375
        %v643 = vunpack.c.l.b16 %v376
        %v644 = vunpack.c.l.b16 %v377
        %v645 = vunpack.c.l.b16 %v378
        %v646 = vunpack.c.l.b16 %v379
        %v647 = vunpack.c.l.b16 %v380
        %v648 = vunpack.c.l.b16 %v381
        %v649 = vunpack.c.l.b16 %v382
        %v650 = vunpack.c.l.b16 %v383
        %v651 = vunpack.c.l.b16 %v384
        %v652 = vunpack.c.l.b16 %v385
        %v653 = vunpack.c.l.b16 %v386
        %v654 = vunpack.c.l.b16 %v387
        %v655 = vunpack.c.l.b16 %v388
        %v656 = vunpack.c.l.b16 %v389
        %v657 = vunpack.c.l.b16 %v390
        %v658 = vunpack.c.l.b16 %v391
        %v659 = vunpack.c.l.b16 %v392
        %v660 = vunpack.c.l.b16 %v393
        %v661 = vunpack.c.l.b16 %v394
        %v662 = vunpack.c.l.b16 %v395
        %v663 = vunpack.c.l.b16 %v396
        %v664 = vunpack.c.l.b16 %v397
        %v665 = vunpack.c.l.b16 %v398
        %v666 = vunpack.c.l.b16 %v399
        %v667 = vunpack.c.l.b16 %v400
        %v668 = vunpack.c.l.b16 %v401
        %v669 = vunpack.c.l.b16 %v402
        %v670 = vunpack.c.l.b16 %v403
        %v671 = vunpack.c.l.b16 %v404
        %v672 = vunpack.c.l.b16 %v405
        %v673 = vunpack.c.l.b16 %v406
        %v674 = vunpack.c.l.b16 %v407
        %v675 = vunpack.c.l.b16 %v408
        %v676 = vunpack.c.l.b16 %v409
        %v677 = vunpack.c.l.b16 %v410
        %v678 = vunpack.c.l.b16 %v411
        %v679 = vunpack.c.l.b16 %v412
        %v680 = vunpack.c.l.b16 %v413
        %v681 = vunpack.c.l.b16 %v414
        %v682 = vunpack.c.l.b16 %v415
        %v683 = vunpack.c.l.b16 %v416
        %v684 = vunpack.c.l.b16 %v417
        %v685 = vunpack.c.l.b16 %v418
        %v686 = vunpack.c.l.b16 %v419
        %v687 = vunpack.c.l.b16 %v420
        %v688 = vunpack.c.l.b16 %v421
        %v689 = vunpack.c.l.b16 %v422
        %v690 = vunpack.c.l.b16 %v423
        %v691 = vunpack.c.l.b16 %v424
        %v692 = vunpack.c.l.b16 %v425
        %v693 = vunpack.c.l.b16 %v426
        %v694 = vunpack.c.l.b16 %v427
        %v695 = vunpack.c.l.b16 %v428
        %v696 = vunpack.c.l.b16 %v429
        %v697 = vunpack.c.l.b16 %v430
        %v698 = vunpack.c.l.b16 %v431
        %v699 = vunpack.c.l.b16 %v432
        %v700 = vunpack.c.l.b16 %v433
        %v701 = vunpack.c.l.b16 %v434
        %v702 = vunpack.c.l.b16 %v435
        %v703 = vunpack.c.l.b16 %v436
        %v704 = vunpack.c.l.b16 %v437
        %v705 = vunpack.c.l.b16 %v438
        %v706 = vunpack.c.l.b16 %v439
        %v707 = vunpack.c.l.b16 %v440
        %v708 = vunpack.c.l.b16 %v441
        %v709 = vunpack.c.l.b16 %v442
        %v710 = vunpack.c.l.b16 %v443
        %v711 = vunpack.c.l.b16 %v444
        %v712 = vunpack.c.l.b16 %v445
        %v713 = vunpack.c.l.b16 %v446
        %v714 = vunpack.c.l.b16 %v447
        %v715 = vunpack.c.l.b16 %v448
        %v716 = vunpack.c.l.b16 %v449
        %v717 = vunpack.c.l.b16 %v450
        %v718 = vunpack.c.l.b16 %v451
        %v719 = vunpack.c.l.b16 %v452
        %v720 = vunpack.c.l.b16 %v453
        %v721 = vunpack.c.l.b16 %v454
        %v722 = vunpack.c.l.b16 %v455
        %v723 = vunpack.c.l.b16 %v456
        %v724 = vunpack.c.l.b16 %v457
        %v725 = vunpack.c.l.b16 %v458
        %v726 = vunpack.c.l.b16 %v459
        %v727 = vunpack.c.l.b16 %v460
        %v728 = vunpack.c.l.b16 %v461
        %v729 = vunpack.c.l.b16 %v462
        %v730 = vunpack.c.l.b16 %v463
        %v731 = vunpack.c.l.b16 %v464
        %v732 = vpack.c.b16 %v605, %v604
        %v733 = vpack.c.b16 %v607, %v606
        %v734 = vpack.c.b16 %v609, %v608
        %v735 = vpack.c.b16 %v611, %v610
        %v736 = vpack.c.b16 %v613, %v612
        %v737 = vpack.c.b16 %v615, %v614
        %v738 = vpack.c.b16 %v617, %v616
        %v739 = vpack.c.b16 %v619, %v618
        %v740 = vpack.c.b16 %v621, %v620
        %v741 = vpack.c.b16 %v623, %v622
        %v742 = vpack.c.b16 %v625, %v624
        %v743 = vpack.c.b16 %v627, %v626
        %v744 = vpack.c.b16 %v629, %v628
        %v745 = vpack.c.b16 %v631, %v630
        %v746 = vpack.c.b16 %v633, %v632
        %v747 = vpack.c.b16 %v635, %v634
        %v748 = vpack.c.b16 %v637, %v636
        %v749 = vpack.c.b16 %v639, %v638
        %v750 = vpack.c.b16 %v641, %v640
        %v751 = vpack.c.b16 %v643, %v642
        %v752 = vpack.c.b16 %v645, %v644
        %v753 = vpack.c.b16 %v647, %v646
        %v754 = vpack.c.b16 %v649, %v648
        %v755 = vpack.c.b16 %v651, %v650
        %v756 = vpack.c.b16 %v653, %v652
        %v757 = vpack.c.b16 %v655, %v654
        %v758 = vpack.c.b16 %v657, %v656
        %v759 = vpack.c.b16 %v659, %v658
        %v760 = vpack.c.b16 %v661, %v660
        %v761 = vpack.c.b16 %v663, %v662
        %v762 = vpack.c.b16 %v665, %v664
        %v763 = vpack.c.b16 %v667, %v666
        %v764 = vpack.c.b16 %v669, %v668
        %v765 = vpack.c.b16 %v671, %v670
        %v766 = vpack.c.b16 %v673, %v672
        %v767 = vpack.c.b16 %v675, %v674
        %v768 = vpack.c.b16 %v677, %v676
        %v769 = vpack.c.b16 %v679, %v678
        %v770 = vpack.c.b16 %v681, %v680
        %v771 = vpack.c.b16 %v683, %v682
        %v772 = vpack.c.b16 %v685, %v684
        %v773 = vpack.c.b16 %v687, %v686
        %v774 = vpack.c.b16 %v689, %v688
        %v775 = vpack.c.b16 %v691, %v690
        %v776 = vpack.c.b16 %v693, %v692
        %v777 = vpack.c.b16 %v695, %v694
        %v778 = vpack.c.b16 %v697, %v696
        %v779 = vpack.c.b16 %v699, %v698
        %v780 = vpack.c.b16 %v701, %v700
        %v781 = vpack.c.b16 %v703, %v702
        %v782 = vpack.c.b16 %v705, %v704
        %v783 = vpack.c.b16 %v707, %v706
        %v784 = vpack.c.b16 %v709, %v708
        %v785 = vpack.c.b16 %v711, %v710
        %v786 = vpack.c.b16 %v713, %v712
        %v787 = vpack.c.b16 %v715, %v714
        %v788 = vpack.c.b16 %v717, %v716
        %v789 = vpack.c.b16 %v719, %v718
        %v790 = vpack.c.b16 %v721, %v720
        %v791 = vpack.c.b16 %v723, %v722
        %v792 = vpack.c.b16 %v725, %v724
        %v793 = vpack.c.b16 %v727, %v726
        %v794 = vpack.c.b16 %v729, %v728
        %v795 = vpack.c.b16 %v731, %v730
        %v800 = vunpack.c.l.b16 %v465
        %v801 = vunpack.c.l.b16 %v466
        %v802 = vunpack.c.l.b16 %v467
        %v803 = vunpack.c.l.b16 %v468
        %v804 = vpack.c.b16 %v801, %v800
        %v805 = vpack.c.b16 %v803, %v802
        %vm808 = vcmask 261120
        %v810 = vsel %vm808, %v732, 0
        %v813 = vsel %vm808, %v733, 0
        %v816 = vsel %vm808, %v734, 0
        %v819 = vsel %vm808, %v735, 0
        %v822 = vsel %vm808, %v736, 0
        %v825 = vsel %vm808, %v737, 0
        %v828 = vsel %vm808, %v738, 0
        %v831 = vsel %vm808, %v739, 0
        %v834 = vsel %vm808, %v740, 0
        %v837 = vsel %vm808, %v741, 0
        %v840 = vsel %vm808, %v742, 0
        %v843 = vsel %vm808, %v743, 0
        %v846 = vsel %vm808, %v744, 0
        %v849 = vsel %vm808, %v745, 0
        %v852 = vsel %vm808, %v746, 0
        %v855 = vsel %vm808, %v747, 0
        %v858 = vsel %vm808, %v748, 0
        %v861 = vsel %vm808, %v749, 0
        %v864 = vsel %vm808, %v750, 0
        %v867 = vsel %vm808, %v751, 0
        %v870 = vsel %vm808, %v752, 0
        %v873 = vsel %vm808, %v753, 0
        %v876 = vsel %vm808, %v754, 0
        %v879 = vsel %vm808, %v755, 0
        %v882 = vsel %vm808, %v756, 0
        %v885 = vsel %vm808, %v757, 0
        %v888 = vsel %vm808, %v758, 0
        %v891 = vsel %vm808, %v759, 0
        %v894 = vsel %vm808, %v760, 0
        %v897 = vsel %vm808, %v761, 0
        %v900 = vsel %vm808, %v762, 0
        %v903 = vsel %vm808, %v763, 0
        %v906 = vsel %vm808, %v764, 0
        %v909 = vsel %vm808, %v765, 0
        %v912 = vsel %vm808, %v766, 0
        %v915 = vsel %vm808, %v767, 0
        %v918 = vsel %vm808, %v768, 0
        %v921 = vsel %vm808, %v769, 0
        %v924 = vsel %vm808, %v770, 0
        %v927 = vsel %vm808, %v771, 0
        %v930 = vsel %vm808, %v772, 0
        %v933 = vsel %vm808, %v773, 0
        %v936 = vsel %vm808, %v774, 0
        %v939 = vsel %vm808, %v775, 0
        %v942 = vsel %vm808, %v776, 0
        %v945 = vsel %vm808, %v777, 0
        %v948 = vsel %vm808, %v778, 0
        %v951 = vsel %vm808, %v779, 0
        %v954 = vsel %vm808, %v780, 0
        %v957 = vsel %vm808, %v781, 0
        %v960 = vsel %vm808, %v782, 0
        %v963 = vsel %vm808, %v783, 0
        %v966 = vsel %vm808, %v784, 0
        %v969 = vsel %vm808, %v785, 0
        %v972 = vsel %vm808, %v786, 0
        %v975 = vsel %vm808, %v787, 0
        %v978 = vsel %vm808, %v788, 0
        %v981 = vsel %vm808, %v789, 0
        %v984 = vsel %vm808, %v790, 0
        %v987 = vsel %vm808, %v791, 0
        %v990 = vsel %vm808, %v792, 0
        %v993 = vsel %vm808, %v793, 0
        %v996 = vsel %vm808, %v794, 0
        %v999 = vsel %vm808, %v795, 0
        %1001 = vmatprep.subr.bf16.mxu0 0
        %1002 = vmatpush1.bf16.msra.mxu0 0
        %1003 = vmatprep.subr.bf16.mxu0 0
        %1004 = vmatpush1.bf16.msra.mxu0 0
        %1005 = vmatprep.subr.bf16.mxu0 0
        %1006 = vmatpush1.bf16.msra.mxu0 0
        %1007 = vmatprep.subr.bf16.mxu0 0
        %1008 = vmatpush1.bf16.msra.mxu0 0
        %1009 = vmatprep.subr.bf16.mxu0 0
        %1010 = vmatpush1.bf16.msra.mxu0 0
        %1011 = vmatprep.subr.bf16.mxu0 0
        %1012 = vmatpush1.bf16.msra.mxu0 0
        %1013 = vmatprep.subr.bf16.mxu0 0
        %1014 = vmatpush1.bf16.msra.mxu0 %v805
        %1015 = vmatprep.subr.bf16.mxu0 0
        %1016 = vmatpush1.bf16.msra.mxu0 %v804
        %1017 = vmatprep.subr.bf16.mxu0 0
        %1018 = vmatpush2.bf16.msra.mxu0 0
        %1019 = vmatprep.subr.bf16.mxu0 0
        %1020 = vmatpush2.bf16.msra.mxu0 0
        %1021 = vmatprep.subr.bf16.mxu0 0
        %1022 = vmatpush2.bf16.msra.mxu0 0
        %1023 = vmatprep.subr.bf16.mxu0 0
        %1024 = vmatpush2.bf16.msra.mxu0 0
        %1025 = vmatprep.subr.bf16.mxu0 0
        %1026 = vmatpush2.bf16.msra.mxu0 0
        %1027 = vmatprep.subr.bf16.mxu0 0
        %1028 = vmatpush2.bf16.msra.mxu0 0
        %1029 = vmatprep.subr.bf16.mxu0 0
        %1030 = vmatpush2.bf16.msra.mxu0 0
        %1031 = vmatprep.subr.bf16.mxu0 0
        %1032 = vmatpush2.bf16.msra.mxu0 0
        %1033 = vmatprep.mubr.bf16.mxu0 0
        %1034 = vmatmul.mubr.bf16.gmra.mxu0 %v810
        %v1035 = vpop.f32.mrf.mxu0
        %v1036 = vadd.f32 %v474, %v1035
        %v1037 = vpop.f32.mrf.mxu0
        %v1038 = vpop.f32.mrf.mxu0
        %v1039 = vadd.f32 %v474, %v1038
        %v1040 = vpop.f32.mrf.mxu0
        %1041 = vmatprep.mubr.bf16.mxu0 0
        %1042 = vmatmul.mubr.bf16.gmra.mxu0 %v813
        %v1043 = vpop.f32.mrf.mxu0
        %v1044 = vadd.f32 %v474, %v1043
        %v1045 = vpop.f32.mrf.mxu0
        %v1046 = vpop.f32.mrf.mxu0
        %v1047 = vadd.f32 %v474, %v1046
        %v1048 = vpop.f32.mrf.mxu0
        %1049 = vmatprep.mubr.bf16.mxu0 0
        %1050 = vmatmul.mubr.bf16.gmra.mxu0 %v816
        %v1051 = vpop.f32.mrf.mxu0
        %v1052 = vadd.f32 %v474, %v1051
        %v1053 = vpop.f32.mrf.mxu0
        %v1054 = vpop.f32.mrf.mxu0
        %v1055 = vadd.f32 %v474, %v1054
        %v1056 = vpop.f32.mrf.mxu0
        %1057 = vmatprep.mubr.bf16.mxu0 0
        %1058 = vmatmul.mubr.bf16.gmra.mxu0 %v819
        %v1059 = vpop.f32.mrf.mxu0
        %v1060 = vadd.f32 %v474, %v1059
        %v1061 = vpop.f32.mrf.mxu0
        %v1062 = vpop.f32.mrf.mxu0
        %v1063 = vadd.f32 %v474, %v1062
        %v1064 = vpop.f32.mrf.mxu0
        %1065 = vmatprep.mubr.bf16.mxu0 0
        %1066 = vmatmul.mubr.bf16.gmra.mxu0 %v822
        %v1067 = vpop.f32.mrf.mxu0
        %v1068 = vadd.f32 %v474, %v1067
        %v1069 = vpop.f32.mrf.mxu0
        %v1070 = vpop.f32.mrf.mxu0
        %v1071 = vadd.f32 %v474, %v1070
        %v1072 = vpop.f32.mrf.mxu0
        %1073 = vmatprep.mubr.bf16.mxu0 0
        %1074 = vmatmul.mubr.bf16.gmra.mxu0 %v825
        %v1075 = vpop.f32.mrf.mxu0
        %v1076 = vadd.f32 %v474, %v1075
        %v1077 = vpop.f32.mrf.mxu0
        %v1078 = vpop.f32.mrf.mxu0
        %v1079 = vadd.f32 %v474, %v1078
        %v1080 = vpop.f32.mrf.mxu0
        %1081 = vmatprep.mubr.bf16.mxu0 0
        %1082 = vmatmul.mubr.bf16.gmra.mxu0 %v828
        %v1083 = vpop.f32.mrf.mxu0
        %v1084 = vadd.f32 %v474, %v1083
        %v1085 = vpop.f32.mrf.mxu0
        %v1086 = vpop.f32.mrf.mxu0
        %v1087 = vadd.f32 %v474, %v1086
        %v1088 = vpop.f32.mrf.mxu0
        %1089 = vmatprep.mubr.bf16.mxu0 0
        %1090 = vmatmul.mubr.bf16.gmra.mxu0 %v831
        %v1091 = vpop.f32.mrf.mxu0
        %v1092 = vadd.f32 %v474, %v1091
        %v1093 = vpop.f32.mrf.mxu0
        %v1094 = vpop.f32.mrf.mxu0
        %v1095 = vadd.f32 %v474, %v1094
        %v1096 = vpop.f32.mrf.mxu0
        %1097 = vmatprep.mubr.bf16.mxu0 0
        %1098 = vmatmul.mubr.bf16.gmra.mxu0 %v834
        %v1099 = vpop.f32.mrf.mxu0
        %v1100 = vadd.f32 %v474, %v1099
        %v1101 = vpop.f32.mrf.mxu0
        %v1102 = vpop.f32.mrf.mxu0
        %v1103 = vadd.f32 %v474, %v1102
        %v1104 = vpop.f32.mrf.mxu0
        %1105 = vmatprep.mubr.bf16.mxu0 0
        %1106 = vmatmul.mubr.bf16.gmra.mxu0 %v837
        %v1107 = vpop.f32.mrf.mxu0
        %v1108 = vadd.f32 %v474, %v1107
        %v1109 = vpop.f32.mrf.mxu0
        %v1110 = vpop.f32.mrf.mxu0
        %v1111 = vadd.f32 %v474, %v1110
        %v1112 = vpop.f32.mrf.mxu0
        %1113 = vmatprep.mubr.bf16.mxu0 0
        %1114 = vmatmul.mubr.bf16.gmra.mxu0 %v840
        %v1115 = vpop.f32.mrf.mxu0
        %v1116 = vadd.f32 %v474, %v1115
        %v1117 = vpop.f32.mrf.mxu0
        %v1118 = vpop.f32.mrf.mxu0
        %v1119 = vadd.f32 %v474, %v1118
        %v1120 = vpop.f32.mrf.mxu0
        %1121 = vmatprep.mubr.bf16.mxu0 0
        %1122 = vmatmul.mubr.bf16.gmra.mxu0 %v843
        %v1123 = vpop.f32.mrf.mxu0
        %v1124 = vadd.f32 %v474, %v1123
        %v1125 = vpop.f32.mrf.mxu0
        %v1126 = vpop.f32.mrf.mxu0
        %v1127 = vadd.f32 %v474, %v1126
        %v1128 = vpop.f32.mrf.mxu0
        %1129 = vmatprep.mubr.bf16.mxu0 0
        %1130 = vmatmul.mubr.bf16.gmra.mxu0 %v846
        %v1131 = vpop.f32.mrf.mxu0
        %v1132 = vadd.f32 %v474, %v1131
        %v1133 = vpop.f32.mrf.mxu0
        %v1134 = vpop.f32.mrf.mxu0
        %v1135 = vadd.f32 %v474, %v1134
        %v1136 = vpop.f32.mrf.mxu0
        %1137 = vmatprep.mubr.bf16.mxu0 0
        %1138 = vmatmul.mubr.bf16.gmra.mxu0 %v849
        %v1139 = vpop.f32.mrf.mxu0
        %v1140 = vadd.f32 %v474, %v1139
        %v1141 = vpop.f32.mrf.mxu0
        %v1142 = vpop.f32.mrf.mxu0
        %v1143 = vadd.f32 %v474, %v1142
        %v1144 = vpop.f32.mrf.mxu0
        %1145 = vmatprep.mubr.bf16.mxu0 0
        %1146 = vmatmul.mubr.bf16.gmra.mxu0 %v852
        %v1147 = vpop.f32.mrf.mxu0
        %v1148 = vadd.f32 %v474, %v1147
        %v1149 = vpop.f32.mrf.mxu0
        %v1150 = vpop.f32.mrf.mxu0
        %v1151 = vadd.f32 %v474, %v1150
        %v1152 = vpop.f32.mrf.mxu0
        %1153 = vmatprep.mubr.bf16.mxu0 0
        %1154 = vmatmul.mubr.bf16.gmra.mxu0 %v855
        %v1155 = vpop.f32.mrf.mxu0
        %v1156 = vadd.f32 %v474, %v1155
        %v1157 = vpop.f32.mrf.mxu0
        %v1158 = vpop.f32.mrf.mxu0
        %v1159 = vadd.f32 %v474, %v1158
        %v1160 = vpop.f32.mrf.mxu0
        %1161 = vmatprep.mubr.bf16.mxu0 0
        %1162 = vmatmul.mubr.bf16.gmra.mxu0 %v858
        %v1163 = vpop.f32.mrf.mxu0
        %v1164 = vadd.f32 %v474, %v1163
        %v1165 = vpop.f32.mrf.mxu0
        %v1166 = vpop.f32.mrf.mxu0
        %v1167 = vadd.f32 %v474, %v1166
        %v1168 = vpop.f32.mrf.mxu0
        %1169 = vmatprep.mubr.bf16.mxu0 0
        %1170 = vmatmul.mubr.bf16.gmra.mxu0 %v861
        %v1171 = vpop.f32.mrf.mxu0
        %v1172 = vadd.f32 %v474, %v1171
        %v1173 = vpop.f32.mrf.mxu0
        %v1174 = vpop.f32.mrf.mxu0
        %v1175 = vadd.f32 %v474, %v1174
        %v1176 = vpop.f32.mrf.mxu0
        %1177 = vmatprep.mubr.bf16.mxu0 0
        %1178 = vmatmul.mubr.bf16.gmra.mxu0 %v864
        %v1179 = vpop.f32.mrf.mxu0
        %v1180 = vadd.f32 %v474, %v1179
        %v1181 = vpop.f32.mrf.mxu0
        %v1182 = vpop.f32.mrf.mxu0
        %v1183 = vadd.f32 %v474, %v1182
        %v1184 = vpop.f32.mrf.mxu0
        %1185 = vmatprep.mubr.bf16.mxu0 0
        %1186 = vmatmul.mubr.bf16.gmra.mxu0 %v867
        %v1187 = vpop.f32.mrf.mxu0
        %v1188 = vadd.f32 %v474, %v1187
        %v1189 = vpop.f32.mrf.mxu0
        %v1190 = vpop.f32.mrf.mxu0
        %v1191 = vadd.f32 %v474, %v1190
        %v1192 = vpop.f32.mrf.mxu0
        %1193 = vmatprep.mubr.bf16.mxu0 0
        %1194 = vmatmul.mubr.bf16.gmra.mxu0 %v870
        %v1195 = vpop.f32.mrf.mxu0
        %v1196 = vadd.f32 %v474, %v1195
        %v1197 = vpop.f32.mrf.mxu0
        %v1198 = vpop.f32.mrf.mxu0
        %v1199 = vadd.f32 %v474, %v1198
        %v1200 = vpop.f32.mrf.mxu0
        %1201 = vmatprep.mubr.bf16.mxu0 0
        %1202 = vmatmul.mubr.bf16.gmra.mxu0 %v873
        %v1203 = vpop.f32.mrf.mxu0
        %v1204 = vadd.f32 %v474, %v1203
        %v1205 = vpop.f32.mrf.mxu0
        %v1206 = vpop.f32.mrf.mxu0
        %v1207 = vadd.f32 %v474, %v1206
        %v1208 = vpop.f32.mrf.mxu0
        %1209 = vmatprep.mubr.bf16.mxu0 0
        %1210 = vmatmul.mubr.bf16.gmra.mxu0 %v876
        %v1211 = vpop.f32.mrf.mxu0
        %v1212 = vadd.f32 %v474, %v1211
        %v1213 = vpop.f32.mrf.mxu0
        %v1214 = vpop.f32.mrf.mxu0
        %v1215 = vadd.f32 %v474, %v1214
        %v1216 = vpop.f32.mrf.mxu0
        %1217 = vmatprep.mubr.bf16.mxu0 0
        %1218 = vmatmul.mubr.bf16.gmra.mxu0 %v879
        %v1219 = vpop.f32.mrf.mxu0
        %v1220 = vadd.f32 %v474, %v1219
        %v1221 = vpop.f32.mrf.mxu0
        %v1222 = vpop.f32.mrf.mxu0
        %v1223 = vadd.f32 %v474, %v1222
        %v1224 = vpop.f32.mrf.mxu0
        %1225 = vmatprep.mubr.bf16.mxu0 0
        %1226 = vmatmul.mubr.bf16.gmra.mxu0 %v882
        %v1227 = vpop.f32.mrf.mxu0
        %v1228 = vadd.f32 %v474, %v1227
        %v1229 = vpop.f32.mrf.mxu0
        %v1230 = vpop.f32.mrf.mxu0
        %v1231 = vadd.f32 %v474, %v1230
        %v1232 = vpop.f32.mrf.mxu0
        %1233 = vmatprep.mubr.bf16.mxu0 0
        %1234 = vmatmul.mubr.bf16.gmra.mxu0 %v885
        %v1235 = vpop.f32.mrf.mxu0
        %v1236 = vadd.f32 %v474, %v1235
        %v1237 = vpop.f32.mrf.mxu0
        %v1238 = vpop.f32.mrf.mxu0
        %v1239 = vadd.f32 %v474, %v1238
        %v1240 = vpop.f32.mrf.mxu0
        %1241 = vmatprep.mubr.bf16.mxu0 0
        %1242 = vmatmul.mubr.bf16.gmra.mxu0 %v888
        %v1243 = vpop.f32.mrf.mxu0
        %v1244 = vadd.f32 %v474, %v1243
        %v1245 = vpop.f32.mrf.mxu0
        %v1246 = vpop.f32.mrf.mxu0
        %v1247 = vadd.f32 %v474, %v1246
        %v1248 = vpop.f32.mrf.mxu0
        %1249 = vmatprep.mubr.bf16.mxu0 0
        %1250 = vmatmul.mubr.bf16.gmra.mxu0 %v891
        %v1251 = vpop.f32.mrf.mxu0
        %v1252 = vadd.f32 %v474, %v1251
        %v1253 = vpop.f32.mrf.mxu0
        %v1254 = vpop.f32.mrf.mxu0
        %v1255 = vadd.f32 %v474, %v1254
        %v1256 = vpop.f32.mrf.mxu0
        %1257 = vmatprep.mubr.bf16.mxu0 0
        %1258 = vmatmul.mubr.bf16.gmra.mxu0 %v894
        %v1259 = vpop.f32.mrf.mxu0
        %v1260 = vadd.f32 %v474, %v1259
        %v1261 = vpop.f32.mrf.mxu0
        %v1262 = vpop.f32.mrf.mxu0
        %v1263 = vadd.f32 %v474, %v1262
        %v1264 = vpop.f32.mrf.mxu0
        %1265 = vmatprep.mubr.bf16.mxu0 0
        %1266 = vmatmul.mubr.bf16.gmra.mxu0 %v897
        %v1267 = vpop.f32.mrf.mxu0
        %v1268 = vadd.f32 %v474, %v1267
        %v1269 = vpop.f32.mrf.mxu0
        %v1270 = vpop.f32.mrf.mxu0
        %v1271 = vadd.f32 %v474, %v1270
        %v1272 = vpop.f32.mrf.mxu0
        %1273 = vmatprep.mubr.bf16.mxu0 0
        %1274 = vmatmul.mubr.bf16.gmra.mxu0 %v900
        %v1275 = vpop.f32.mrf.mxu0
        %v1276 = vadd.f32 %v474, %v1275
        %v1277 = vpop.f32.mrf.mxu0
        %v1278 = vpop.f32.mrf.mxu0
        %v1279 = vadd.f32 %v474, %v1278
        %v1280 = vpop.f32.mrf.mxu0
        %1281 = vmatprep.mubr.bf16.mxu0 0
        %1282 = vmatmul.mubr.bf16.gmra.mxu0 %v903
        %v1283 = vpop.f32.mrf.mxu0
        %v1284 = vadd.f32 %v474, %v1283
        %v1285 = vpop.f32.mrf.mxu0
        %v1286 = vpop.f32.mrf.mxu0
        %v1287 = vadd.f32 %v474, %v1286
        %v1288 = vpop.f32.mrf.mxu0
        %1289 = vmatprep.mubr.bf16.mxu0 0
        %1290 = vmatmul.mubr.bf16.gmra.mxu0 %v906
        %v1291 = vpop.f32.mrf.mxu0
        %v1292 = vadd.f32 %v474, %v1291
        %v1293 = vpop.f32.mrf.mxu0
        %v1294 = vpop.f32.mrf.mxu0
        %v1295 = vadd.f32 %v474, %v1294
        %v1296 = vpop.f32.mrf.mxu0
        %1297 = vmatprep.mubr.bf16.mxu0 0
        %1298 = vmatmul.mubr.bf16.gmra.mxu0 %v909
        %v1299 = vpop.f32.mrf.mxu0
        %v1300 = vadd.f32 %v474, %v1299
        %v1301 = vpop.f32.mrf.mxu0
        %v1302 = vpop.f32.mrf.mxu0
        %v1303 = vadd.f32 %v474, %v1302
        %v1304 = vpop.f32.mrf.mxu0
        %1305 = vmatprep.mubr.bf16.mxu0 0
        %1306 = vmatmul.mubr.bf16.gmra.mxu0 %v912
        %v1307 = vpop.f32.mrf.mxu0
        %v1308 = vadd.f32 %v474, %v1307
        %v1309 = vpop.f32.mrf.mxu0
        %v1310 = vpop.f32.mrf.mxu0
        %v1311 = vadd.f32 %v474, %v1310
        %v1312 = vpop.f32.mrf.mxu0
        %1313 = vmatprep.mubr.bf16.mxu0 0
        %1314 = vmatmul.mubr.bf16.gmra.mxu0 %v915
        %v1315 = vpop.f32.mrf.mxu0
        %v1316 = vadd.f32 %v474, %v1315
        %v1317 = vpop.f32.mrf.mxu0
        %v1318 = vpop.f32.mrf.mxu0
        %v1319 = vadd.f32 %v474, %v1318
        %v1320 = vpop.f32.mrf.mxu0
        %1321 = vmatprep.mubr.bf16.mxu0 0
        %1322 = vmatmul.mubr.bf16.gmra.mxu0 %v918
        %v1323 = vpop.f32.mrf.mxu0
        %v1324 = vadd.f32 %v474, %v1323
        %v1325 = vpop.f32.mrf.mxu0
        %v1326 = vpop.f32.mrf.mxu0
        %v1327 = vadd.f32 %v474, %v1326
        %v1328 = vpop.f32.mrf.mxu0
        %1329 = vmatprep.mubr.bf16.mxu0 0
        %1330 = vmatmul.mubr.bf16.gmra.mxu0 %v921
        %v1331 = vpop.f32.mrf.mxu0
        %v1332 = vadd.f32 %v474, %v1331
        %v1333 = vpop.f32.mrf.mxu0
        %v1334 = vpop.f32.mrf.mxu0
        %v1335 = vadd.f32 %v474, %v1334
        %v1336 = vpop.f32.mrf.mxu0
        %1337 = vmatprep.mubr.bf16.mxu0 0
        %1338 = vmatmul.mubr.bf16.gmra.mxu0 %v924
        %v1339 = vpop.f32.mrf.mxu0
        %v1340 = vadd.f32 %v474, %v1339
        %v1341 = vpop.f32.mrf.mxu0
        %v1342 = vpop.f32.mrf.mxu0
        %v1343 = vadd.f32 %v474, %v1342
        %v1344 = vpop.f32.mrf.mxu0
        %1345 = vmatprep.mubr.bf16.mxu0 0
        %1346 = vmatmul.mubr.bf16.gmra.mxu0 %v927
        %v1347 = vpop.f32.mrf.mxu0
        %v1348 = vadd.f32 %v474, %v1347
        %v1349 = vpop.f32.mrf.mxu0
        %v1350 = vpop.f32.mrf.mxu0
        %v1351 = vadd.f32 %v474, %v1350
        %v1352 = vpop.f32.mrf.mxu0
        %1353 = vmatprep.mubr.bf16.mxu0 0
        %1354 = vmatmul.mubr.bf16.gmra.mxu0 %v930
        %v1355 = vpop.f32.mrf.mxu0
        %v1356 = vadd.f32 %v474, %v1355
        %v1357 = vpop.f32.mrf.mxu0
        %v1358 = vpop.f32.mrf.mxu0
        %v1359 = vadd.f32 %v474, %v1358
        %v1360 = vpop.f32.mrf.mxu0
        %1361 = vmatprep.mubr.bf16.mxu0 0
        %1362 = vmatmul.mubr.bf16.gmra.mxu0 %v933
        %v1363 = vpop.f32.mrf.mxu0
        %v1364 = vadd.f32 %v474, %v1363
        %v1365 = vpop.f32.mrf.mxu0
        %v1366 = vpop.f32.mrf.mxu0
        %v1367 = vadd.f32 %v474, %v1366
        %v1368 = vpop.f32.mrf.mxu0
        %1369 = vmatprep.mubr.bf16.mxu0 0
        %1370 = vmatmul.mubr.bf16.gmra.mxu0 %v936
        %v1371 = vpop.f32.mrf.mxu0
        %v1372 = vadd.f32 %v474, %v1371
        %v1373 = vpop.f32.mrf.mxu0
        %v1374 = vpop.f32.mrf.mxu0
        %v1375 = vadd.f32 %v474, %v1374
        %v1376 = vpop.f32.mrf.mxu0
        %1377 = vmatprep.mubr.bf16.mxu0 0
        %1378 = vmatmul.mubr.bf16.gmra.mxu0 %v939
        %v1379 = vpop.f32.mrf.mxu0
        %v1380 = vadd.f32 %v474, %v1379
        %v1381 = vpop.f32.mrf.mxu0
        %v1382 = vpop.f32.mrf.mxu0
        %v1383 = vadd.f32 %v474, %v1382
        %v1384 = vpop.f32.mrf.mxu0
        %1385 = vmatprep.mubr.bf16.mxu0 0
        %1386 = vmatmul.mubr.bf16.gmra.mxu0 %v942
        %v1387 = vpop.f32.mrf.mxu0
        %v1388 = vadd.f32 %v474, %v1387
        %v1389 = vpop.f32.mrf.mxu0
        %v1390 = vpop.f32.mrf.mxu0
        %v1391 = vadd.f32 %v474, %v1390
        %v1392 = vpop.f32.mrf.mxu0
        %1393 = vmatprep.mubr.bf16.mxu0 0
        %1394 = vmatmul.mubr.bf16.gmra.mxu0 %v945
        %v1395 = vpop.f32.mrf.mxu0
        %v1396 = vadd.f32 %v474, %v1395
        %v1397 = vpop.f32.mrf.mxu0
        %v1398 = vpop.f32.mrf.mxu0
        %v1399 = vadd.f32 %v474, %v1398
        %v1400 = vpop.f32.mrf.mxu0
        %1401 = vmatprep.mubr.bf16.mxu0 0
        %1402 = vmatmul.mubr.bf16.gmra.mxu0 %v948
        %v1403 = vpop.f32.mrf.mxu0
        %v1404 = vadd.f32 %v474, %v1403
        %v1405 = vpop.f32.mrf.mxu0
        %v1406 = vpop.f32.mrf.mxu0
        %v1407 = vadd.f32 %v474, %v1406
        %v1408 = vpop.f32.mrf.mxu0
        %1409 = vmatprep.mubr.bf16.mxu0 0
        %1410 = vmatmul.mubr.bf16.gmra.mxu0 %v951
        %v1411 = vpop.f32.mrf.mxu0
        %v1412 = vadd.f32 %v474, %v1411
        %v1413 = vpop.f32.mrf.mxu0
        %v1414 = vpop.f32.mrf.mxu0
        %v1415 = vadd.f32 %v474, %v1414
        %v1416 = vpop.f32.mrf.mxu0
        %1417 = vmatprep.mubr.bf16.mxu0 0
        %1418 = vmatmul.mubr.bf16.gmra.mxu0 %v954
        %v1419 = vpop.f32.mrf.mxu0
        %v1420 = vadd.f32 %v474, %v1419
        %v1421 = vpop.f32.mrf.mxu0
        %v1422 = vpop.f32.mrf.mxu0
        %v1423 = vadd.f32 %v474, %v1422
        %v1424 = vpop.f32.mrf.mxu0
        %1425 = vmatprep.mubr.bf16.mxu0 0
        %1426 = vmatmul.mubr.bf16.gmra.mxu0 %v957
        %v1427 = vpop.f32.mrf.mxu0
        %v1428 = vadd.f32 %v474, %v1427
        %v1429 = vpop.f32.mrf.mxu0
        %v1430 = vpop.f32.mrf.mxu0
        %v1431 = vadd.f32 %v474, %v1430
        %v1432 = vpop.f32.mrf.mxu0
        %1433 = vmatprep.mubr.bf16.mxu0 0
        %1434 = vmatmul.mubr.bf16.gmra.mxu0 %v960
        %v1435 = vpop.f32.mrf.mxu0
        %v1436 = vadd.f32 %v474, %v1435
        %v1437 = vpop.f32.mrf.mxu0
        %v1438 = vpop.f32.mrf.mxu0
        %v1439 = vadd.f32 %v474, %v1438
        %v1440 = vpop.f32.mrf.mxu0
        %1441 = vmatprep.mubr.bf16.mxu0 0
        %1442 = vmatmul.mubr.bf16.gmra.mxu0 %v963
        %v1443 = vpop.f32.mrf.mxu0
        %v1444 = vadd.f32 %v474, %v1443
        %v1445 = vpop.f32.mrf.mxu0
        %v1446 = vpop.f32.mrf.mxu0
        %v1447 = vadd.f32 %v474, %v1446
        %v1448 = vpop.f32.mrf.mxu0
        %1449 = vmatprep.mubr.bf16.mxu0 0
        %1450 = vmatmul.mubr.bf16.gmra.mxu0 %v966
        %v1451 = vpop.f32.mrf.mxu0
        %v1452 = vadd.f32 %v474, %v1451
        %v1453 = vpop.f32.mrf.mxu0
        %v1454 = vpop.f32.mrf.mxu0
        %v1455 = vadd.f32 %v474, %v1454
        %v1456 = vpop.f32.mrf.mxu0
        %1457 = vmatprep.mubr.bf16.mxu0 0
        %1458 = vmatmul.mubr.bf16.gmra.mxu0 %v969
        %v1459 = vpop.f32.mrf.mxu0
        %v1460 = vadd.f32 %v474, %v1459
        %v1461 = vpop.f32.mrf.mxu0
        %v1462 = vpop.f32.mrf.mxu0
        %v1463 = vadd.f32 %v474, %v1462
        %v1464 = vpop.f32.mrf.mxu0
        %1465 = vmatprep.mubr.bf16.mxu0 0
        %1466 = vmatmul.mubr.bf16.gmra.mxu0 %v972
        %v1467 = vpop.f32.mrf.mxu0
        %v1468 = vadd.f32 %v474, %v1467
        %v1469 = vpop.f32.mrf.mxu0
        %v1470 = vpop.f32.mrf.mxu0
        %v1471 = vadd.f32 %v474, %v1470
        %v1472 = vpop.f32.mrf.mxu0
        %1473 = vmatprep.mubr.bf16.mxu0 0
        %1474 = vmatmul.mubr.bf16.gmra.mxu0 %v975
        %v1475 = vpop.f32.mrf.mxu0
        %v1476 = vadd.f32 %v474, %v1475
        %v1477 = vpop.f32.mrf.mxu0
        %v1478 = vpop.f32.mrf.mxu0
        %v1479 = vadd.f32 %v474, %v1478
        %v1480 = vpop.f32.mrf.mxu0
        %1481 = vmatprep.mubr.bf16.mxu0 0
        %1482 = vmatmul.mubr.bf16.gmra.mxu0 %v978
        %v1483 = vpop.f32.mrf.mxu0
        %v1484 = vadd.f32 %v474, %v1483
        %v1485 = vpop.f32.mrf.mxu0
        %v1486 = vpop.f32.mrf.mxu0
        %v1487 = vadd.f32 %v474, %v1486
        %v1488 = vpop.f32.mrf.mxu0
        %1489 = vmatprep.mubr.bf16.mxu0 0
        %1490 = vmatmul.mubr.bf16.gmra.mxu0 %v981
        %v1491 = vpop.f32.mrf.mxu0
        %v1492 = vadd.f32 %v474, %v1491
        %v1493 = vpop.f32.mrf.mxu0
        %v1494 = vpop.f32.mrf.mxu0
        %v1495 = vadd.f32 %v474, %v1494
        %v1496 = vpop.f32.mrf.mxu0
        %1497 = vmatprep.mubr.bf16.mxu0 0
        %1498 = vmatmul.mubr.bf16.gmra.mxu0 %v984
        %v1499 = vpop.f32.mrf.mxu0
        %v1500 = vadd.f32 %v474, %v1499
        %v1501 = vpop.f32.mrf.mxu0
        %v1502 = vpop.f32.mrf.mxu0
        %v1503 = vadd.f32 %v474, %v1502
        %v1504 = vpop.f32.mrf.mxu0
        %1505 = vmatprep.mubr.bf16.mxu0 0
        %1506 = vmatmul.mubr.bf16.gmra.mxu0 %v987
        %v1507 = vpop.f32.mrf.mxu0
        %v1508 = vadd.f32 %v474, %v1507
        %v1509 = vpop.f32.mrf.mxu0
        %v1510 = vpop.f32.mrf.mxu0
        %v1511 = vadd.f32 %v474, %v1510
        %v1512 = vpop.f32.mrf.mxu0
        %1513 = vmatprep.mubr.bf16.mxu0 0
        %1514 = vmatmul.mubr.bf16.gmra.mxu0 %v990
        %v1515 = vpop.f32.mrf.mxu0
        %v1516 = vadd.f32 %v474, %v1515
        %v1517 = vpop.f32.mrf.mxu0
        %v1518 = vpop.f32.mrf.mxu0
        %v1519 = vadd.f32 %v474, %v1518
        %v1520 = vpop.f32.mrf.mxu0
        %1521 = vmatprep.mubr.bf16.mxu0 0
        %1522 = vmatmul.mubr.bf16.gmra.mxu0 %v993
        %v1523 = vpop.f32.mrf.mxu0
        %v1524 = vadd.f32 %v474, %v1523
        %v1525 = vpop.f32.mrf.mxu0
        %v1526 = vpop.f32.mrf.mxu0
        %v1527 = vadd.f32 %v474, %v1526
        %v1528 = vpop.f32.mrf.mxu0
        %1529 = vmatprep.mubr.bf16.mxu0 0
        %1530 = vmatmul.mubr.bf16.gmra.mxu0 %v996
        %v1531 = vpop.f32.mrf.mxu0
        %v1532 = vadd.f32 %v474, %v1531
        %v1533 = vpop.f32.mrf.mxu0
        %v1534 = vpop.f32.mrf.mxu0
        %v1535 = vadd.f32 %v474, %v1534
        %v1536 = vpop.f32.mrf.mxu0
        %1537 = vmatprep.mubr.bf16.mxu0 0
        %1538 = vmatmul.mubr.bf16.gmra.mxu0 %v999
        %v1539 = vpop.f32.mrf.mxu0
        %v1540 = vadd.f32 %v474, %v1539
        %v1541 = vpop.f32.mrf.mxu0
        %v1542 = vpop.f32.mrf.mxu0
        %v1543 = vadd.f32 %v474, %v1542
        %v1544 = vpop.f32.mrf.mxu0
        %1545 = vdwg.mxu0
        %v1546 = vmax.f32 %v1036, 0.0
        %v1547 = vmax.f32 %v1039, 0.0
        %v1548 = vmax.f32 %v1044, 0.0
        %v1549 = vmax.f32 %v1047, 0.0
        %v1550 = vmax.f32 %v1052, 0.0
        %v1551 = vmax.f32 %v1055, 0.0
        %v1552 = vmax.f32 %v1060, 0.0
        %v1553 = vmax.f32 %v1063, 0.0
        %v1554 = vmax.f32 %v1068, 0.0
        %v1555 = vmax.f32 %v1071, 0.0
        %v1556 = vmax.f32 %v1076, 0.0
        %v1557 = vmax.f32 %v1079, 0.0
        %v1558 = vmax.f32 %v1084, 0.0
        %v1559 = vmax.f32 %v1087, 0.0
        %v1560 = vmax.f32 %v1092, 0.0
        %v1561 = vmax.f32 %v1095, 0.0
        %v1562 = vmax.f32 %v1100, 0.0
        %v1563 = vmax.f32 %v1103, 0.0
        %v1564 = vmax.f32 %v1108, 0.0
        %v1565 = vmax.f32 %v1111, 0.0
        %v1566 = vmax.f32 %v1116, 0.0
        %v1567 = vmax.f32 %v1119, 0.0
        %v1568 = vmax.f32 %v1124, 0.0
        %v1569 = vmax.f32 %v1127, 0.0
        %v1570 = vmax.f32 %v1132, 0.0
        %v1571 = vmax.f32 %v1135, 0.0
        %v1572 = vmax.f32 %v1140, 0.0
        %v1573 = vmax.f32 %v1143, 0.0
        %v1574 = vmax.f32 %v1148, 0.0
        %v1575 = vmax.f32 %v1151, 0.0
        %v1576 = vmax.f32 %v1156, 0.0
        %v1577 = vmax.f32 %v1159, 0.0
        %v1578 = vmax.f32 %v1164, 0.0
        %v1579 = vmax.f32 %v1167, 0.0
        %v1580 = vmax.f32 %v1172, 0.0
        %v1581 = vmax.f32 %v1175, 0.0
        %v1582 = vmax.f32 %v1180, 0.0
        %v1583 = vmax.f32 %v1183, 0.0
        %v1584 = vmax.f32 %v1188, 0.0
        %v1585 = vmax.f32 %v1191, 0.0
        %v1586 = vmax.f32 %v1196, 0.0
        %v1587 = vmax.f32 %v1199, 0.0
        %v1588 = vmax.f32 %v1204, 0.0
        %v1589 = vmax.f32 %v1207, 0.0
        %v1590 = vmax.f32 %v1212, 0.0
        %v1591 = vmax.f32 %v1215, 0.0
        %v1592 = vmax.f32 %v1220, 0.0
        %v1593 = vmax.f32 %v1223, 0.0
        %v1594 = vmax.f32 %v1228, 0.0
        %v1595 = vmax.f32 %v1231, 0.0
        %v1596 = vmax.f32 %v1236, 0.0
        %v1597 = vmax.f32 %v1239, 0.0
        %v1598 = vmax.f32 %v1244, 0.0
        %v1599 = vmax.f32 %v1247, 0.0
        %v1600 = vmax.f32 %v1252, 0.0
        %v1601 = vmax.f32 %v1255, 0.0
        %v1602 = vmax.f32 %v1260, 0.0
        %v1603 = vmax.f32 %v1263, 0.0
        %v1604 = vmax.f32 %v1268, 0.0
        %v1605 = vmax.f32 %v1271, 0.0
        %v1606 = vmax.f32 %v1276, 0.0
        %v1607 = vmax.f32 %v1279, 0.0
        %v1608 = vmax.f32 %v1284, 0.0
        %v1609 = vmax.f32 %v1287, 0.0
        %v1610 = vmax.f32 %v1292, 0.0
        %v1611 = vmax.f32 %v1295, 0.0
        %v1612 = vmax.f32 %v1300, 0.0
        %v1613 = vmax.f32 %v1303, 0.0
        %v1614 = vmax.f32 %v1308, 0.0
        %v1615 = vmax.f32 %v1311, 0.0
        %v1616 = vmax.f32 %v1316, 0.0
        %v1617 = vmax.f32 %v1319, 0.0
        %v1618 = vmax.f32 %v1324, 0.0
        %v1619 = vmax.f32 %v1327, 0.0
        %v1620 = vmax.f32 %v1332, 0.0
        %v1621 = vmax.f32 %v1335, 0.0
        %v1622 = vmax.f32 %v1340, 0.0
        %v1623 = vmax.f32 %v1343, 0.0
        %v1624 = vmax.f32 %v1348, 0.0
        %v1625 = vmax.f32 %v1351, 0.0
        %v1626 = vmax.f32 %v1356, 0.0
        %v1627 = vmax.f32 %v1359, 0.0
        %v1628 = vmax.f32 %v1364, 0.0
        %v1629 = vmax.f32 %v1367, 0.0
        %v1630 = vmax.f32 %v1372, 0.0
        %v1631 = vmax.f32 %v1375, 0.0
        %v1632 = vmax.f32 %v1380, 0.0
        %v1633 = vmax.f32 %v1383, 0.0
        %v1634 = vmax.f32 %v1388, 0.0
        %v1635 = vmax.f32 %v1391, 0.0
        %v1636 = vmax.f32 %v1396, 0.0
        %v1637 = vmax.f32 %v1399, 0.0
        %v1638 = vmax.f32 %v1404, 0.0
        %v1639 = vmax.f32 %v1407, 0.0
        %v1640 = vmax.f32 %v1412, 0.0
        %v1641 = vmax.f32 %v1415, 0.0
        %v1642 = vmax.f32 %v1420, 0.0
        %v1643 = vmax.f32 %v1423, 0.0
        %v1644 = vmax.f32 %v1428, 0.0
        %v1645 = vmax.f32 %v1431, 0.0
        %v1646 = vmax.f32 %v1436, 0.0
        %v1647 = vmax.f32 %v1439, 0.0
        %v1648 = vmax.f32 %v1444, 0.0
        %v1649 = vmax.f32 %v1447, 0.0
        %v1650 = vmax.f32 %v1452, 0.0
        %v1651 = vmax.f32 %v1455, 0.0
        %v1652 = vmax.f32 %v1460, 0.0
        %v1653 = vmax.f32 %v1463, 0.0
        %v1654 = vmax.f32 %v1468, 0.0
        %v1655 = vmax.f32 %v1471, 0.0
        %v1656 = vmax.f32 %v1476, 0.0
        %v1657 = vmax.f32 %v1479, 0.0
        %v1658 = vmax.f32 %v1484, 0.0
        %v1659 = vmax.f32 %v1487, 0.0
        %v1660 = vmax.f32 %v1492, 0.0
        %v1661 = vmax.f32 %v1495, 0.0
        %v1662 = vmax.f32 %v1500, 0.0
        %v1663 = vmax.f32 %v1503, 0.0
        %v1664 = vmax.f32 %v1508, 0.0
        %v1665 = vmax.f32 %v1511, 0.0
        %v1666 = vmax.f32 %v1516, 0.0
        %v1667 = vmax.f32 %v1519, 0.0
        %v1668 = vmax.f32 %v1524, 0.0
        %v1669 = vmax.f32 %v1527, 0.0
        %v1670 = vmax.f32 %v1532, 0.0
        %v1671 = vmax.f32 %v1535, 0.0
        %v1672 = vmax.f32 %v1540, 0.0
        %v1673 = vmax.f32 %v1543, 0.0
        %vm1674 = vcmask 523264
        %v1675 = vsel %vm1674, %v1546, -inf
        %v1676 = vsel %vm1674, %v1548, -inf
        %v1677 = vmax.f32 %v1675, %v1676
        %v1678 = vsel %vm1674, %v1547, -inf
        %v1679 = vsel %vm1674, %v1549, -inf
        %v1680 = vmax.f32 %v1678, %v1679
        %v1681 = vsel %vm1674, %v1550, -inf
        %v1682 = vsel %vm1674, %v1552, -inf
        %v1683 = vmax.f32 %v1681, %v1682
        %v1684 = vsel %vm1674, %v1551, -inf
        %v1685 = vsel %vm1674, %v1553, -inf
        %v1686 = vmax.f32 %v1684, %v1685
        %v1687 = vsel %vm1674, %v1554, -inf
        %v1688 = vsel %vm1674, %v1556, -inf
        %v1689 = vmax.f32 %v1687, %v1688
        %v1690 = vsel %vm1674, %v1555, -inf
        %v1691 = vsel %vm1674, %v1557, -inf
        %v1692 = vmax.f32 %v1690, %v1691
        %v1693 = vsel %vm1674, %v1558, -inf
        %v1694 = vsel %vm1674, %v1560, -inf
        %v1695 = vmax.f32 %v1693, %v1694
        %v1696 = vsel %vm1674, %v1559, -inf
        %v1697 = vsel %vm1674, %v1561, -inf
        %v1698 = vmax.f32 %v1696, %v1697
        %v1699 = vsel %vm1674, %v1562, -inf
        %v1700 = vsel %vm1674, %v1564, -inf
        %v1701 = vmax.f32 %v1699, %v1700
        %v1702 = vsel %vm1674, %v1563, -inf
        %v1703 = vsel %vm1674, %v1565, -inf
        %v1704 = vmax.f32 %v1702, %v1703
        %v1705 = vsel %vm1674, %v1566, -inf
        %v1706 = vsel %vm1674, %v1568, -inf
        %v1707 = vmax.f32 %v1705, %v1706
        %v1708 = vsel %vm1674, %v1567, -inf
        %v1709 = vsel %vm1674, %v1569, -inf
        %v1710 = vmax.f32 %v1708, %v1709
        %v1711 = vsel %vm1674, %v1570, -inf
        %v1712 = vsel %vm1674, %v1572, -inf
        %v1713 = vmax.f32 %v1711, %v1712
        %v1714 = vsel %vm1674, %v1571, -inf
        %v1715 = vsel %vm1674, %v1573, -inf
        %v1716 = vmax.f32 %v1714, %v1715
        %v1717 = vsel %vm1674, %v1574, -inf
        %v1718 = vsel %vm1674, %v1576, -inf
        %v1719 = vmax.f32 %v1717, %v1718
        %v1720 = vsel %vm1674, %v1575, -inf
        %v1721 = vsel %vm1674, %v1577, -inf
        %v1722 = vmax.f32 %v1720, %v1721
        %v1723 = vsel %vm1674, %v1578, -inf
        %v1724 = vsel %vm1674, %v1580, -inf
        %v1725 = vmax.f32 %v1723, %v1724
        %v1726 = vsel %vm1674, %v1579, -inf
        %v1727 = vsel %vm1674, %v1581, -inf
        %v1728 = vmax.f32 %v1726, %v1727
        %v1729 = vsel %vm1674, %v1582, -inf
        %v1730 = vsel %vm1674, %v1584, -inf
        %v1731 = vmax.f32 %v1729, %v1730
        %v1732 = vsel %vm1674, %v1583, -inf
        %v1733 = vsel %vm1674, %v1585, -inf
        %v1734 = vmax.f32 %v1732, %v1733
        %v1735 = vsel %vm1674, %v1586, -inf
        %v1736 = vsel %vm1674, %v1588, -inf
        %v1737 = vmax.f32 %v1735, %v1736
        %v1738 = vsel %vm1674, %v1587, -inf
        %v1739 = vsel %vm1674, %v1589, -inf
        %v1740 = vmax.f32 %v1738, %v1739
        %v1741 = vsel %vm1674, %v1590, -inf
        %v1742 = vsel %vm1674, %v1592, -inf
        %v1743 = vmax.f32 %v1741, %v1742
        %v1744 = vsel %vm1674, %v1591, -inf
        %v1745 = vsel %vm1674, %v1593, -inf
        %v1746 = vmax.f32 %v1744, %v1745
        %v1747 = vsel %vm1674, %v1594, -inf
        %v1748 = vsel %vm1674, %v1596, -inf
        %v1749 = vmax.f32 %v1747, %v1748
        %v1750 = vsel %vm1674, %v1595, -inf
        %v1751 = vsel %vm1674, %v1597, -inf
        %v1752 = vmax.f32 %v1750, %v1751
        %v1753 = vsel %vm1674, %v1598, -inf
        %v1754 = vsel %vm1674, %v1600, -inf
        %v1755 = vmax.f32 %v1753, %v1754
        %v1756 = vsel %vm1674, %v1599, -inf
        %v1757 = vsel %vm1674, %v1601, -inf
        %v1758 = vmax.f32 %v1756, %v1757
        %v1759 = vsel %vm1674, %v1602, -inf
        %v1760 = vsel %vm1674, %v1604, -inf
        %v1761 = vmax.f32 %v1759, %v1760
        %v1762 = vsel %vm1674, %v1603, -inf
        %v1763 = vsel %vm1674, %v1605, -inf
        %v1764 = vmax.f32 %v1762, %v1763
        %v1765 = vsel %vm1674, %v1606, -inf
        %v1766 = vsel %vm1674, %v1608, -inf
        %v1767 = vmax.f32 %v1765, %v1766
        %v1768 = vsel %vm1674, %v1607, -inf
        %v1769 = vsel %vm1674, %v1609, -inf
        %v1770 = vmax.f32 %v1768, %v1769
        %v1771 = vsel %vm1674, %v1610, -inf
        %v1772 = vsel %vm1674, %v1612, -inf
        %v1773 = vmax.f32 %v1771, %v1772
        %v1774 = vsel %vm1674, %v1611, -inf
        %v1775 = vsel %vm1674, %v1613, -inf
        %v1776 = vmax.f32 %v1774, %v1775
        %v1777 = vsel %vm1674, %v1614, -inf
        %v1778 = vsel %vm1674, %v1616, -inf
        %v1779 = vmax.f32 %v1777, %v1778
        %v1780 = vsel %vm1674, %v1615, -inf
        %v1781 = vsel %vm1674, %v1617, -inf
        %v1782 = vmax.f32 %v1780, %v1781
        %v1783 = vsel %vm1674, %v1618, -inf
        %v1784 = vsel %vm1674, %v1620, -inf
        %v1785 = vmax.f32 %v1783, %v1784
        %v1786 = vsel %vm1674, %v1619, -inf
        %v1787 = vsel %vm1674, %v1621, -inf
        %v1788 = vmax.f32 %v1786, %v1787
        %v1789 = vsel %vm1674, %v1622, -inf
        %v1790 = vsel %vm1674, %v1624, -inf
        %v1791 = vmax.f32 %v1789, %v1790
        %v1792 = vsel %vm1674, %v1623, -inf
        %v1793 = vsel %vm1674, %v1625, -inf
        %v1794 = vmax.f32 %v1792, %v1793
        %v1795 = vsel %vm1674, %v1626, -inf
        %v1796 = vsel %vm1674, %v1628, -inf
        %v1797 = vmax.f32 %v1795, %v1796
        %v1798 = vsel %vm1674, %v1627, -inf
        %v1799 = vsel %vm1674, %v1629, -inf
        %v1800 = vmax.f32 %v1798, %v1799
        %v1801 = vsel %vm1674, %v1630, -inf
        %v1802 = vsel %vm1674, %v1632, -inf
        %v1803 = vmax.f32 %v1801, %v1802
        %v1804 = vsel %vm1674, %v1631, -inf
        %v1805 = vsel %vm1674, %v1633, -inf
        %v1806 = vmax.f32 %v1804, %v1805
        %v1807 = vsel %vm1674, %v1634, -inf
        %v1808 = vsel %vm1674, %v1636, -inf
        %v1809 = vmax.f32 %v1807, %v1808
        %v1810 = vsel %vm1674, %v1635, -inf
        %v1811 = vsel %vm1674, %v1637, -inf
        %v1812 = vmax.f32 %v1810, %v1811
        %v1813 = vsel %vm1674, %v1638, -inf
        %v1814 = vsel %vm1674, %v1640, -inf
        %v1815 = vmax.f32 %v1813, %v1814
        %v1816 = vsel %vm1674, %v1639, -inf
        %v1817 = vsel %vm1674, %v1641, -inf
        %v1818 = vmax.f32 %v1816, %v1817
        %v1819 = vsel %vm1674, %v1642, -inf
        %v1820 = vsel %vm1674, %v1644, -inf
        %v1821 = vmax.f32 %v1819, %v1820
        %v1822 = vsel %vm1674, %v1643, -inf
        %v1823 = vsel %vm1674, %v1645, -inf
        %v1824 = vmax.f32 %v1822, %v1823
        %v1825 = vsel %vm1674, %v1646, -inf
        %v1826 = vsel %vm1674, %v1648, -inf
        %v1827 = vmax.f32 %v1825, %v1826
        %v1828 = vsel %vm1674, %v1647, -inf
        %v1829 = vsel %vm1674, %v1649, -inf
        %v1830 = vmax.f32 %v1828, %v1829
        %v1831 = vsel %vm1674, %v1650, -inf
        %v1832 = vsel %vm1674, %v1652, -inf
        %v1833 = vmax.f32 %v1831, %v1832
        %v1834 = vsel %vm1674, %v1651, -inf
        %v1835 = vsel %vm1674, %v1653, -inf
        %v1836 = vmax.f32 %v1834, %v1835
        %v1837 = vsel %vm1674, %v1654, -inf
        %v1838 = vsel %vm1674, %v1656, -inf
        %v1839 = vmax.f32 %v1837, %v1838
        %v1840 = vsel %vm1674, %v1655, -inf
        %v1841 = vsel %vm1674, %v1657, -inf
        %v1842 = vmax.f32 %v1840, %v1841
        %v1843 = vsel %vm1674, %v1658, -inf
        %v1844 = vsel %vm1674, %v1660, -inf
        %v1845 = vmax.f32 %v1843, %v1844
        %v1846 = vsel %vm1674, %v1659, -inf
        %v1847 = vsel %vm1674, %v1661, -inf
        %v1848 = vmax.f32 %v1846, %v1847
        %v1849 = vsel %vm1674, %v1662, -inf
        %v1850 = vsel %vm1674, %v1664, -inf
        %v1851 = vmax.f32 %v1849, %v1850
        %v1852 = vsel %vm1674, %v1663, -inf
        %v1853 = vsel %vm1674, %v1665, -inf
        %v1854 = vmax.f32 %v1852, %v1853
        %v1855 = vsel %vm1674, %v1666, -inf
        %v1856 = vsel %vm1674, %v1668, -inf
        %v1857 = vmax.f32 %v1855, %v1856
        %v1858 = vsel %vm1674, %v1667, -inf
        %v1859 = vsel %vm1674, %v1669, -inf
        %v1860 = vmax.f32 %v1858, %v1859
        %v1861 = vsel %vm1674, %v1670, -inf
        %v1862 = vsel %vm1674, %v1672, -inf
        %v1863 = vmax.f32 %v1861, %v1862
        %v1864 = vsel %vm1674, %v1671, -inf
        %v1865 = vsel %vm1674, %v1673, -inf
        %v1866 = vmax.f32 %v1864, %v1865
        %v1931 = vcombine.high %v1677, %v1677
        %v1933 = vunpack.c.l.s4 1983009808
        %v1934 = vunpack.c.0.s8 %v1933
        %v1935 = vlaneseq
        %v1936 = vshrl.u32 %v1935, 7
        %v1937 = vsub.s32 %v1934, %v1936
        %v1938 = vrot.slane %v1677, %v1937
        %v1940 = vunpack.c.l.s4 1983009808
        %v1941 = vunpack.c.0.s8 %v1940
        %v1942 = vlaneseq
        %v1943 = vshrl.u32 %v1942, 7
        %v1944 = vsub.s32 %v1941, %v1943
        %v1945 = vrot.slane %v1931, %v1944
        %v1946 = vcombine.high %v1938, %v1938
        %v1947 = vcombine.high %v1945, %v1945
        %v1948 = vcombine.high %v1680, %v1680
        %v1950 = vunpack.c.l.s4 1983009808
        %v1951 = vunpack.c.0.s8 %v1950
        %v1952 = vlaneseq
        %v1953 = vshrl.u32 %v1952, 7
        %v1954 = vsub.s32 %v1951, %v1953
        %v1955 = vrot.slane %v1680, %v1954
        %v1957 = vunpack.c.l.s4 1983009808
        %v1958 = vunpack.c.0.s8 %v1957
        %v1959 = vlaneseq
        %v1960 = vshrl.u32 %v1959, 7
        %v1961 = vsub.s32 %v1958, %v1960
        %v1962 = vrot.slane %v1948, %v1961
        %v1963 = vcombine.high %v1955, %v1955
        %v1964 = vcombine.high %v1962, %v1962
        %v1965 = vcombine.high %v1683, %v1683
        %v1967 = vunpack.c.l.s4 1983009808
        %v1968 = vunpack.c.0.s8 %v1967
        %v1969 = vlaneseq
        %v1970 = vshrl.u32 %v1969, 7
        %v1971 = vsub.s32 %v1968, %v1970
        %v1972 = vrot.slane %v1683, %v1971
        %v1974 = vunpack.c.l.s4 1983009808
        %v1975 = vunpack.c.0.s8 %v1974
        %v1976 = vlaneseq
        %v1977 = vshrl.u32 %v1976, 7
        %v1978 = vsub.s32 %v1975, %v1977
        %v1979 = vrot.slane %v1965, %v1978
        %v1980 = vcombine.high %v1972, %v1972
        %v1981 = vcombine.high %v1979, %v1979
        %v1982 = vcombine.high %v1686, %v1686
        %v1984 = vunpack.c.l.s4 1983009808
        %v1985 = vunpack.c.0.s8 %v1984
        %v1986 = vlaneseq
        %v1987 = vshrl.u32 %v1986, 7
        %v1988 = vsub.s32 %v1985, %v1987
        %v1989 = vrot.slane %v1686, %v1988
        %v1991 = vunpack.c.l.s4 1983009808
        %v1992 = vunpack.c.0.s8 %v1991
        %v1993 = vlaneseq
        %v1994 = vshrl.u32 %v1993, 7
        %v1995 = vsub.s32 %v1992, %v1994
        %v1996 = vrot.slane %v1982, %v1995
        %v1997 = vcombine.high %v1989, %v1989
        %v1998 = vcombine.high %v1996, %v1996
        %v1999 = vcombine.high %v1689, %v1689
        %v2001 = vunpack.c.l.s4 1983009808
        %v2002 = vunpack.c.0.s8 %v2001
        %v2003 = vlaneseq
        %v2004 = vshrl.u32 %v2003, 7
        %v2005 = vsub.s32 %v2002, %v2004
        %v2006 = vrot.slane %v1689, %v2005
        %v2008 = vunpack.c.l.s4 1983009808
        %v2009 = vunpack.c.0.s8 %v2008
        %v2010 = vlaneseq
        %v2011 = vshrl.u32 %v2010, 7
        %v2012 = vsub.s32 %v2009, %v2011
        %v2013 = vrot.slane %v1999, %v2012
        %v2014 = vcombine.high %v2006, %v2006
        %v2015 = vcombine.high %v2013, %v2013
        %v2016 = vcombine.high %v1692, %v1692
        %v2018 = vunpack.c.l.s4 1983009808
        %v2019 = vunpack.c.0.s8 %v2018
        %v2020 = vlaneseq
        %v2021 = vshrl.u32 %v2020, 7
        %v2022 = vsub.s32 %v2019, %v2021
        %v2023 = vrot.slane %v1692, %v2022
        %v2025 = vunpack.c.l.s4 1983009808
        %v2026 = vunpack.c.0.s8 %v2025
        %v2027 = vlaneseq
        %v2028 = vshrl.u32 %v2027, 7
        %v2029 = vsub.s32 %v2026, %v2028
        %v2030 = vrot.slane %v2016, %v2029
        %v2031 = vcombine.high %v2023, %v2023
        %v2032 = vcombine.high %v2030, %v2030
        %v2033 = vcombine.high %v1695, %v1695
        %v2035 = vunpack.c.l.s4 1983009808
        %v2036 = vunpack.c.0.s8 %v2035
        %v2037 = vlaneseq
        %v2038 = vshrl.u32 %v2037, 7
        %v2039 = vsub.s32 %v2036, %v2038
        %v2040 = vrot.slane %v1695, %v2039
        %v2042 = vunpack.c.l.s4 1983009808
        %v2043 = vunpack.c.0.s8 %v2042
        %v2044 = vlaneseq
        %v2045 = vshrl.u32 %v2044, 7
        %v2046 = vsub.s32 %v2043, %v2045
        %v2047 = vrot.slane %v2033, %v2046
        %v2048 = vcombine.high %v2040, %v2040
        %v2049 = vcombine.high %v2047, %v2047
        %v2050 = vcombine.high %v1698, %v1698
        %v2052 = vunpack.c.l.s4 1983009808
        %v2053 = vunpack.c.0.s8 %v2052
        %v2054 = vlaneseq
        %v2055 = vshrl.u32 %v2054, 7
        %v2056 = vsub.s32 %v2053, %v2055
        %v2057 = vrot.slane %v1698, %v2056
        %v2059 = vunpack.c.l.s4 1983009808
        %v2060 = vunpack.c.0.s8 %v2059
        %v2061 = vlaneseq
        %v2062 = vshrl.u32 %v2061, 7
        %v2063 = vsub.s32 %v2060, %v2062
        %v2064 = vrot.slane %v2050, %v2063
        %v2065 = vcombine.high %v2057, %v2057
        %v2066 = vcombine.high %v2064, %v2064
        %v2067 = vcombine.high %v1701, %v1701
        %v2069 = vunpack.c.l.s4 1983009808
        %v2070 = vunpack.c.0.s8 %v2069
        %v2071 = vlaneseq
        %v2072 = vshrl.u32 %v2071, 7
        %v2073 = vsub.s32 %v2070, %v2072
        %v2074 = vrot.slane %v1701, %v2073
        %v2076 = vunpack.c.l.s4 1983009808
        %v2077 = vunpack.c.0.s8 %v2076
        %v2078 = vlaneseq
        %v2079 = vshrl.u32 %v2078, 7
        %v2080 = vsub.s32 %v2077, %v2079
        %v2081 = vrot.slane %v2067, %v2080
        %v2082 = vcombine.high %v2074, %v2074
        %v2083 = vcombine.high %v2081, %v2081
        %v2084 = vcombine.high %v1704, %v1704
        %v2086 = vunpack.c.l.s4 1983009808
        %v2087 = vunpack.c.0.s8 %v2086
        %v2088 = vlaneseq
        %v2089 = vshrl.u32 %v2088, 7
        %v2090 = vsub.s32 %v2087, %v2089
        %v2091 = vrot.slane %v1704, %v2090
        %v2093 = vunpack.c.l.s4 1983009808
        %v2094 = vunpack.c.0.s8 %v2093
        %v2095 = vlaneseq
        %v2096 = vshrl.u32 %v2095, 7
        %v2097 = vsub.s32 %v2094, %v2096
        %v2098 = vrot.slane %v2084, %v2097
        %v2099 = vcombine.high %v2091, %v2091
        %v2100 = vcombine.high %v2098, %v2098
        %v2101 = vcombine.high %v1707, %v1707
        %v2103 = vunpack.c.l.s4 1983009808
        %v2104 = vunpack.c.0.s8 %v2103
        %v2105 = vlaneseq
        %v2106 = vshrl.u32 %v2105, 7
        %v2107 = vsub.s32 %v2104, %v2106
        %v2108 = vrot.slane %v1707, %v2107
        %v2110 = vunpack.c.l.s4 1983009808
        %v2111 = vunpack.c.0.s8 %v2110
        %v2112 = vlaneseq
        %v2113 = vshrl.u32 %v2112, 7
        %v2114 = vsub.s32 %v2111, %v2113
        %v2115 = vrot.slane %v2101, %v2114
        %v2116 = vcombine.high %v2108, %v2108
        %v2117 = vcombine.high %v2115, %v2115
        %v2118 = vcombine.high %v1710, %v1710
        %v2120 = vunpack.c.l.s4 1983009808
        %v2121 = vunpack.c.0.s8 %v2120
        %v2122 = vlaneseq
        %v2123 = vshrl.u32 %v2122, 7
        %v2124 = vsub.s32 %v2121, %v2123
        %v2125 = vrot.slane %v1710, %v2124
        %v2127 = vunpack.c.l.s4 1983009808
        %v2128 = vunpack.c.0.s8 %v2127
        %v2129 = vlaneseq
        %v2130 = vshrl.u32 %v2129, 7
        %v2131 = vsub.s32 %v2128, %v2130
        %v2132 = vrot.slane %v2118, %v2131
        %v2133 = vcombine.high %v2125, %v2125
        %v2134 = vcombine.high %v2132, %v2132
        %v2135 = vcombine.high %v1713, %v1713
        %v2137 = vunpack.c.l.s4 1983009808
        %v2138 = vunpack.c.0.s8 %v2137
        %v2139 = vlaneseq
        %v2140 = vshrl.u32 %v2139, 7
        %v2141 = vsub.s32 %v2138, %v2140
        %v2142 = vrot.slane %v1713, %v2141
        %v2144 = vunpack.c.l.s4 1983009808
        %v2145 = vunpack.c.0.s8 %v2144
        %v2146 = vlaneseq
        %v2147 = vshrl.u32 %v2146, 7
        %v2148 = vsub.s32 %v2145, %v2147
        %v2149 = vrot.slane %v2135, %v2148
        %v2150 = vcombine.high %v2142, %v2142
        %v2151 = vcombine.high %v2149, %v2149
        %v2152 = vcombine.high %v1716, %v1716
        %v2154 = vunpack.c.l.s4 1983009808
        %v2155 = vunpack.c.0.s8 %v2154
        %v2156 = vlaneseq
        %v2157 = vshrl.u32 %v2156, 7
        %v2158 = vsub.s32 %v2155, %v2157
        %v2159 = vrot.slane %v1716, %v2158
        %v2161 = vunpack.c.l.s4 1983009808
        %v2162 = vunpack.c.0.s8 %v2161
        %v2163 = vlaneseq
        %v2164 = vshrl.u32 %v2163, 7
        %v2165 = vsub.s32 %v2162, %v2164
        %v2166 = vrot.slane %v2152, %v2165
        %v2167 = vcombine.high %v2159, %v2159
        %v2168 = vcombine.high %v2166, %v2166
        %v2169 = vcombine.high %v1719, %v1719
        %v2171 = vunpack.c.l.s4 1983009808
        %v2172 = vunpack.c.0.s8 %v2171
        %v2173 = vlaneseq
        %v2174 = vshrl.u32 %v2173, 7
        %v2175 = vsub.s32 %v2172, %v2174
        %v2176 = vrot.slane %v1719, %v2175
        %v2178 = vunpack.c.l.s4 1983009808
        %v2179 = vunpack.c.0.s8 %v2178
        %v2180 = vlaneseq
        %v2181 = vshrl.u32 %v2180, 7
        %v2182 = vsub.s32 %v2179, %v2181
        %v2183 = vrot.slane %v2169, %v2182
        %v2184 = vcombine.high %v2176, %v2176
        %v2185 = vcombine.high %v2183, %v2183
        %v2186 = vcombine.high %v1722, %v1722
        %v2188 = vunpack.c.l.s4 1983009808
        %v2189 = vunpack.c.0.s8 %v2188
        %v2190 = vlaneseq
        %v2191 = vshrl.u32 %v2190, 7
        %v2192 = vsub.s32 %v2189, %v2191
        %v2193 = vrot.slane %v1722, %v2192
        %v2195 = vunpack.c.l.s4 1983009808
        %v2196 = vunpack.c.0.s8 %v2195
        %v2197 = vlaneseq
        %v2198 = vshrl.u32 %v2197, 7
        %v2199 = vsub.s32 %v2196, %v2198
        %v2200 = vrot.slane %v2186, %v2199
        %v2201 = vcombine.high %v2193, %v2193
        %v2202 = vcombine.high %v2200, %v2200
        %v2203 = vcombine.high %v1725, %v1725
        %v2205 = vunpack.c.l.s4 1983009808
        %v2206 = vunpack.c.0.s8 %v2205
        %v2207 = vlaneseq
        %v2208 = vshrl.u32 %v2207, 7
        %v2209 = vsub.s32 %v2206, %v2208
        %v2210 = vrot.slane %v1725, %v2209
        %v2212 = vunpack.c.l.s4 1983009808
        %v2213 = vunpack.c.0.s8 %v2212
        %v2214 = vlaneseq
        %v2215 = vshrl.u32 %v2214, 7
        %v2216 = vsub.s32 %v2213, %v2215
        %v2217 = vrot.slane %v2203, %v2216
        %v2218 = vcombine.high %v2210, %v2210
        %v2219 = vcombine.high %v2217, %v2217
        %v2220 = vcombine.high %v1728, %v1728
        %v2222 = vunpack.c.l.s4 1983009808
        %v2223 = vunpack.c.0.s8 %v2222
        %v2224 = vlaneseq
        %v2225 = vshrl.u32 %v2224, 7
        %v2226 = vsub.s32 %v2223, %v2225
        %v2227 = vrot.slane %v1728, %v2226
        %v2229 = vunpack.c.l.s4 1983009808
        %v2230 = vunpack.c.0.s8 %v2229
        %v2231 = vlaneseq
        %v2232 = vshrl.u32 %v2231, 7
        %v2233 = vsub.s32 %v2230, %v2232
        %v2234 = vrot.slane %v2220, %v2233
        %v2235 = vcombine.high %v2227, %v2227
        %v2236 = vcombine.high %v2234, %v2234
        %v2237 = vcombine.high %v1731, %v1731
        %v2239 = vunpack.c.l.s4 1983009808
        %v2240 = vunpack.c.0.s8 %v2239
        %v2241 = vlaneseq
        %v2242 = vshrl.u32 %v2241, 7
        %v2243 = vsub.s32 %v2240, %v2242
        %v2244 = vrot.slane %v1731, %v2243
        %v2246 = vunpack.c.l.s4 1983009808
        %v2247 = vunpack.c.0.s8 %v2246
        %v2248 = vlaneseq
        %v2249 = vshrl.u32 %v2248, 7
        %v2250 = vsub.s32 %v2247, %v2249
        %v2251 = vrot.slane %v2237, %v2250
        %v2252 = vcombine.high %v2244, %v2244
        %v2253 = vcombine.high %v2251, %v2251
        %v2254 = vcombine.high %v1734, %v1734
        %v2256 = vunpack.c.l.s4 1983009808
        %v2257 = vunpack.c.0.s8 %v2256
        %v2258 = vlaneseq
        %v2259 = vshrl.u32 %v2258, 7
        %v2260 = vsub.s32 %v2257, %v2259
        %v2261 = vrot.slane %v1734, %v2260
        %v2263 = vunpack.c.l.s4 1983009808
        %v2264 = vunpack.c.0.s8 %v2263
        %v2265 = vlaneseq
        %v2266 = vshrl.u32 %v2265, 7
        %v2267 = vsub.s32 %v2264, %v2266
        %v2268 = vrot.slane %v2254, %v2267
        %v2269 = vcombine.high %v2261, %v2261
        %v2270 = vcombine.high %v2268, %v2268
        %v2271 = vcombine.high %v1737, %v1737
        %v2273 = vunpack.c.l.s4 1983009808
        %v2274 = vunpack.c.0.s8 %v2273
        %v2275 = vlaneseq
        %v2276 = vshrl.u32 %v2275, 7
        %v2277 = vsub.s32 %v2274, %v2276
        %v2278 = vrot.slane %v1737, %v2277
        %v2280 = vunpack.c.l.s4 1983009808
        %v2281 = vunpack.c.0.s8 %v2280
        %v2282 = vlaneseq
        %v2283 = vshrl.u32 %v2282, 7
        %v2284 = vsub.s32 %v2281, %v2283
        %v2285 = vrot.slane %v2271, %v2284
        %v2286 = vcombine.high %v2278, %v2278
        %v2287 = vcombine.high %v2285, %v2285
        %v2288 = vcombine.high %v1740, %v1740
        %v2290 = vunpack.c.l.s4 1983009808
        %v2291 = vunpack.c.0.s8 %v2290
        %v2292 = vlaneseq
        %v2293 = vshrl.u32 %v2292, 7
        %v2294 = vsub.s32 %v2291, %v2293
        %v2295 = vrot.slane %v1740, %v2294
        %v2297 = vunpack.c.l.s4 1983009808
        %v2298 = vunpack.c.0.s8 %v2297
        %v2299 = vlaneseq
        %v2300 = vshrl.u32 %v2299, 7
        %v2301 = vsub.s32 %v2298, %v2300
        %v2302 = vrot.slane %v2288, %v2301
        %v2303 = vcombine.high %v2295, %v2295
        %v2304 = vcombine.high %v2302, %v2302
        %v2305 = vcombine.high %v1743, %v1743
        %v2307 = vunpack.c.l.s4 1983009808
        %v2308 = vunpack.c.0.s8 %v2307
        %v2309 = vlaneseq
        %v2310 = vshrl.u32 %v2309, 7
        %v2311 = vsub.s32 %v2308, %v2310
        %v2312 = vrot.slane %v1743, %v2311
        %v2314 = vunpack.c.l.s4 1983009808
        %v2315 = vunpack.c.0.s8 %v2314
        %v2316 = vlaneseq
        %v2317 = vshrl.u32 %v2316, 7
        %v2318 = vsub.s32 %v2315, %v2317
        %v2319 = vrot.slane %v2305, %v2318
        %v2320 = vcombine.high %v2312, %v2312
        %v2321 = vcombine.high %v2319, %v2319
        %v2322 = vcombine.high %v1746, %v1746
        %v2324 = vunpack.c.l.s4 1983009808
        %v2325 = vunpack.c.0.s8 %v2324
        %v2326 = vlaneseq
        %v2327 = vshrl.u32 %v2326, 7
        %v2328 = vsub.s32 %v2325, %v2327
        %v2329 = vrot.slane %v1746, %v2328
        %v2331 = vunpack.c.l.s4 1983009808
        %v2332 = vunpack.c.0.s8 %v2331
        %v2333 = vlaneseq
        %v2334 = vshrl.u32 %v2333, 7
        %v2335 = vsub.s32 %v2332, %v2334
        %v2336 = vrot.slane %v2322, %v2335
        %v2337 = vcombine.high %v2329, %v2329
        %v2338 = vcombine.high %v2336, %v2336
        %v2339 = vcombine.high %v1749, %v1749
        %v2341 = vunpack.c.l.s4 1983009808
        %v2342 = vunpack.c.0.s8 %v2341
        %v2343 = vlaneseq
        %v2344 = vshrl.u32 %v2343, 7
        %v2345 = vsub.s32 %v2342, %v2344
        %v2346 = vrot.slane %v1749, %v2345
        %v2348 = vunpack.c.l.s4 1983009808
        %v2349 = vunpack.c.0.s8 %v2348
        %v2350 = vlaneseq
        %v2351 = vshrl.u32 %v2350, 7
        %v2352 = vsub.s32 %v2349, %v2351
        %v2353 = vrot.slane %v2339, %v2352
        %v2354 = vcombine.high %v2346, %v2346
        %v2355 = vcombine.high %v2353, %v2353
        %v2356 = vcombine.high %v1752, %v1752
        %v2358 = vunpack.c.l.s4 1983009808
        %v2359 = vunpack.c.0.s8 %v2358
        %v2360 = vlaneseq
        %v2361 = vshrl.u32 %v2360, 7
        %v2362 = vsub.s32 %v2359, %v2361
        %v2363 = vrot.slane %v1752, %v2362
        %v2365 = vunpack.c.l.s4 1983009808
        %v2366 = vunpack.c.0.s8 %v2365
        %v2367 = vlaneseq
        %v2368 = vshrl.u32 %v2367, 7
        %v2369 = vsub.s32 %v2366, %v2368
        %v2370 = vrot.slane %v2356, %v2369
        %v2371 = vcombine.high %v2363, %v2363
        %v2372 = vcombine.high %v2370, %v2370
        %v2373 = vcombine.high %v1755, %v1755
        %v2375 = vunpack.c.l.s4 1983009808
        %v2376 = vunpack.c.0.s8 %v2375
        %v2377 = vlaneseq
        %v2378 = vshrl.u32 %v2377, 7
        %v2379 = vsub.s32 %v2376, %v2378
        %v2380 = vrot.slane %v1755, %v2379
        %v2382 = vunpack.c.l.s4 1983009808
        %v2383 = vunpack.c.0.s8 %v2382
        %v2384 = vlaneseq
        %v2385 = vshrl.u32 %v2384, 7
        %v2386 = vsub.s32 %v2383, %v2385
        %v2387 = vrot.slane %v2373, %v2386
        %v2388 = vcombine.high %v2380, %v2380
        %v2389 = vcombine.high %v2387, %v2387
        %v2390 = vcombine.high %v1758, %v1758
        %v2392 = vunpack.c.l.s4 1983009808
        %v2393 = vunpack.c.0.s8 %v2392
        %v2394 = vlaneseq
        %v2395 = vshrl.u32 %v2394, 7
        %v2396 = vsub.s32 %v2393, %v2395
        %v2397 = vrot.slane %v1758, %v2396
        %v2399 = vunpack.c.l.s4 1983009808
        %v2400 = vunpack.c.0.s8 %v2399
        %v2401 = vlaneseq
        %v2402 = vshrl.u32 %v2401, 7
        %v2403 = vsub.s32 %v2400, %v2402
        %v2404 = vrot.slane %v2390, %v2403
        %v2405 = vcombine.high %v2397, %v2397
        %v2406 = vcombine.high %v2404, %v2404
        %v2407 = vcombine.high %v1761, %v1761
        %v2409 = vunpack.c.l.s4 1983009808
        %v2410 = vunpack.c.0.s8 %v2409
        %v2411 = vlaneseq
        %v2412 = vshrl.u32 %v2411, 7
        %v2413 = vsub.s32 %v2410, %v2412
        %v2414 = vrot.slane %v1761, %v2413
        %v2416 = vunpack.c.l.s4 1983009808
        %v2417 = vunpack.c.0.s8 %v2416
        %v2418 = vlaneseq
        %v2419 = vshrl.u32 %v2418, 7
        %v2420 = vsub.s32 %v2417, %v2419
        %v2421 = vrot.slane %v2407, %v2420
        %v2422 = vcombine.high %v2414, %v2414
        %v2423 = vcombine.high %v2421, %v2421
        %v2424 = vcombine.high %v1764, %v1764
        %v2426 = vunpack.c.l.s4 1983009808
        %v2427 = vunpack.c.0.s8 %v2426
        %v2428 = vlaneseq
        %v2429 = vshrl.u32 %v2428, 7
        %v2430 = vsub.s32 %v2427, %v2429
        %v2431 = vrot.slane %v1764, %v2430
        %v2433 = vunpack.c.l.s4 1983009808
        %v2434 = vunpack.c.0.s8 %v2433
        %v2435 = vlaneseq
        %v2436 = vshrl.u32 %v2435, 7
        %v2437 = vsub.s32 %v2434, %v2436
        %v2438 = vrot.slane %v2424, %v2437
        %v2439 = vcombine.high %v2431, %v2431
        %v2440 = vcombine.high %v2438, %v2438
        %v2441 = vcombine.high %v1767, %v1767
        %v2443 = vunpack.c.l.s4 1983009808
        %v2444 = vunpack.c.0.s8 %v2443
        %v2445 = vlaneseq
        %v2446 = vshrl.u32 %v2445, 7
        %v2447 = vsub.s32 %v2444, %v2446
        %v2448 = vrot.slane %v1767, %v2447
        %v2450 = vunpack.c.l.s4 1983009808
        %v2451 = vunpack.c.0.s8 %v2450
        %v2452 = vlaneseq
        %v2453 = vshrl.u32 %v2452, 7
        %v2454 = vsub.s32 %v2451, %v2453
        %v2455 = vrot.slane %v2441, %v2454
        %v2456 = vcombine.high %v2448, %v2448
        %v2457 = vcombine.high %v2455, %v2455
        %v2458 = vcombine.high %v1770, %v1770
        %v2460 = vunpack.c.l.s4 1983009808
        %v2461 = vunpack.c.0.s8 %v2460
        %v2462 = vlaneseq
        %v2463 = vshrl.u32 %v2462, 7
        %v2464 = vsub.s32 %v2461, %v2463
        %v2465 = vrot.slane %v1770, %v2464
        %v2467 = vunpack.c.l.s4 1983009808
        %v2468 = vunpack.c.0.s8 %v2467
        %v2469 = vlaneseq
        %v2470 = vshrl.u32 %v2469, 7
        %v2471 = vsub.s32 %v2468, %v2470
        %v2472 = vrot.slane %v2458, %v2471
        %v2473 = vcombine.high %v2465, %v2465
        %v2474 = vcombine.high %v2472, %v2472
        %v2475 = vcombine.high %v1773, %v1773
        %v2477 = vunpack.c.l.s4 1983009808
        %v2478 = vunpack.c.0.s8 %v2477
        %v2479 = vlaneseq
        %v2480 = vshrl.u32 %v2479, 7
        %v2481 = vsub.s32 %v2478, %v2480
        %v2482 = vrot.slane %v1773, %v2481
        %v2484 = vunpack.c.l.s4 1983009808
        %v2485 = vunpack.c.0.s8 %v2484
        %v2486 = vlaneseq
        %v2487 = vshrl.u32 %v2486, 7
        %v2488 = vsub.s32 %v2485, %v2487
        %v2489 = vrot.slane %v2475, %v2488
        %v2490 = vcombine.high %v2482, %v2482
        %v2491 = vcombine.high %v2489, %v2489
        %v2492 = vcombine.high %v1776, %v1776
        %v2494 = vunpack.c.l.s4 1983009808
        %v2495 = vunpack.c.0.s8 %v2494
        %v2496 = vlaneseq
        %v2497 = vshrl.u32 %v2496, 7
        %v2498 = vsub.s32 %v2495, %v2497
        %v2499 = vrot.slane %v1776, %v2498
        %v2501 = vunpack.c.l.s4 1983009808
        %v2502 = vunpack.c.0.s8 %v2501
        %v2503 = vlaneseq
        %v2504 = vshrl.u32 %v2503, 7
        %v2505 = vsub.s32 %v2502, %v2504
        %v2506 = vrot.slane %v2492, %v2505
        %v2507 = vcombine.high %v2499, %v2499
        %v2508 = vcombine.high %v2506, %v2506
        %v2509 = vcombine.high %v1779, %v1779
        %v2511 = vunpack.c.l.s4 1983009808
        %v2512 = vunpack.c.0.s8 %v2511
        %v2513 = vlaneseq
        %v2514 = vshrl.u32 %v2513, 7
        %v2515 = vsub.s32 %v2512, %v2514
        %v2516 = vrot.slane %v1779, %v2515
        %v2518 = vunpack.c.l.s4 1983009808
        %v2519 = vunpack.c.0.s8 %v2518
        %v2520 = vlaneseq
        %v2521 = vshrl.u32 %v2520, 7
        %v2522 = vsub.s32 %v2519, %v2521
        %v2523 = vrot.slane %v2509, %v2522
        %v2524 = vcombine.high %v2516, %v2516
        %v2525 = vcombine.high %v2523, %v2523
        %v2526 = vcombine.high %v1782, %v1782
        %v2528 = vunpack.c.l.s4 1983009808
        %v2529 = vunpack.c.0.s8 %v2528
        %v2530 = vlaneseq
        %v2531 = vshrl.u32 %v2530, 7
        %v2532 = vsub.s32 %v2529, %v2531
        %v2533 = vrot.slane %v1782, %v2532
        %v2535 = vunpack.c.l.s4 1983009808
        %v2536 = vunpack.c.0.s8 %v2535
        %v2537 = vlaneseq
        %v2538 = vshrl.u32 %v2537, 7
        %v2539 = vsub.s32 %v2536, %v2538
        %v2540 = vrot.slane %v2526, %v2539
        %v2541 = vcombine.high %v2533, %v2533
        %v2542 = vcombine.high %v2540, %v2540
        %v2543 = vcombine.high %v1785, %v1785
        %v2545 = vunpack.c.l.s4 1983009808
        %v2546 = vunpack.c.0.s8 %v2545
        %v2547 = vlaneseq
        %v2548 = vshrl.u32 %v2547, 7
        %v2549 = vsub.s32 %v2546, %v2548
        %v2550 = vrot.slane %v1785, %v2549
        %v2552 = vunpack.c.l.s4 1983009808
        %v2553 = vunpack.c.0.s8 %v2552
        %v2554 = vlaneseq
        %v2555 = vshrl.u32 %v2554, 7
        %v2556 = vsub.s32 %v2553, %v2555
        %v2557 = vrot.slane %v2543, %v2556
        %v2558 = vcombine.high %v2550, %v2550
        %v2559 = vcombine.high %v2557, %v2557
        %v2560 = vcombine.high %v1788, %v1788
        %v2562 = vunpack.c.l.s4 1983009808
        %v2563 = vunpack.c.0.s8 %v2562
        %v2564 = vlaneseq
        %v2565 = vshrl.u32 %v2564, 7
        %v2566 = vsub.s32 %v2563, %v2565
        %v2567 = vrot.slane %v1788, %v2566
        %v2569 = vunpack.c.l.s4 1983009808
        %v2570 = vunpack.c.0.s8 %v2569
        %v2571 = vlaneseq
        %v2572 = vshrl.u32 %v2571, 7
        %v2573 = vsub.s32 %v2570, %v2572
        %v2574 = vrot.slane %v2560, %v2573
        %v2575 = vcombine.high %v2567, %v2567
        %v2576 = vcombine.high %v2574, %v2574
        %v2577 = vcombine.high %v1791, %v1791
        %v2579 = vunpack.c.l.s4 1983009808
        %v2580 = vunpack.c.0.s8 %v2579
        %v2581 = vlaneseq
        %v2582 = vshrl.u32 %v2581, 7
        %v2583 = vsub.s32 %v2580, %v2582
        %v2584 = vrot.slane %v1791, %v2583
        %v2586 = vunpack.c.l.s4 1983009808
        %v2587 = vunpack.c.0.s8 %v2586
        %v2588 = vlaneseq
        %v2589 = vshrl.u32 %v2588, 7
        %v2590 = vsub.s32 %v2587, %v2589
        %v2591 = vrot.slane %v2577, %v2590
        %v2592 = vcombine.high %v2584, %v2584
        %v2593 = vcombine.high %v2591, %v2591
        %v2594 = vcombine.high %v1794, %v1794
        %v2596 = vunpack.c.l.s4 1983009808
        %v2597 = vunpack.c.0.s8 %v2596
        %v2598 = vlaneseq
        %v2599 = vshrl.u32 %v2598, 7
        %v2600 = vsub.s32 %v2597, %v2599
        %v2601 = vrot.slane %v1794, %v2600
        %v2603 = vunpack.c.l.s4 1983009808
        %v2604 = vunpack.c.0.s8 %v2603
        %v2605 = vlaneseq
        %v2606 = vshrl.u32 %v2605, 7
        %v2607 = vsub.s32 %v2604, %v2606
        %v2608 = vrot.slane %v2594, %v2607
        %v2609 = vcombine.high %v2601, %v2601
        %v2610 = vcombine.high %v2608, %v2608
        %v2611 = vcombine.high %v1797, %v1797
        %v2613 = vunpack.c.l.s4 1983009808
        %v2614 = vunpack.c.0.s8 %v2613
        %v2615 = vlaneseq
        %v2616 = vshrl.u32 %v2615, 7
        %v2617 = vsub.s32 %v2614, %v2616
        %v2618 = vrot.slane %v1797, %v2617
        %v2620 = vunpack.c.l.s4 1983009808
        %v2621 = vunpack.c.0.s8 %v2620
        %v2622 = vlaneseq
        %v2623 = vshrl.u32 %v2622, 7
        %v2624 = vsub.s32 %v2621, %v2623
        %v2625 = vrot.slane %v2611, %v2624
        %v2626 = vcombine.high %v2618, %v2618
        %v2627 = vcombine.high %v2625, %v2625
        %v2628 = vcombine.high %v1800, %v1800
        %v2630 = vunpack.c.l.s4 1983009808
        %v2631 = vunpack.c.0.s8 %v2630
        %v2632 = vlaneseq
        %v2633 = vshrl.u32 %v2632, 7
        %v2634 = vsub.s32 %v2631, %v2633
        %v2635 = vrot.slane %v1800, %v2634
        %v2637 = vunpack.c.l.s4 1983009808
        %v2638 = vunpack.c.0.s8 %v2637
        %v2639 = vlaneseq
        %v2640 = vshrl.u32 %v2639, 7
        %v2641 = vsub.s32 %v2638, %v2640
        %v2642 = vrot.slane %v2628, %v2641
        %v2643 = vcombine.high %v2635, %v2635
        %v2644 = vcombine.high %v2642, %v2642
        %v2645 = vcombine.high %v1803, %v1803
        %v2647 = vunpack.c.l.s4 1983009808
        %v2648 = vunpack.c.0.s8 %v2647
        %v2649 = vlaneseq
        %v2650 = vshrl.u32 %v2649, 7
        %v2651 = vsub.s32 %v2648, %v2650
        %v2652 = vrot.slane %v1803, %v2651
        %v2654 = vunpack.c.l.s4 1983009808
        %v2655 = vunpack.c.0.s8 %v2654
        %v2656 = vlaneseq
        %v2657 = vshrl.u32 %v2656, 7
        %v2658 = vsub.s32 %v2655, %v2657
        %v2659 = vrot.slane %v2645, %v2658
        %v2660 = vcombine.high %v2652, %v2652
        %v2661 = vcombine.high %v2659, %v2659
        %v2662 = vcombine.high %v1806, %v1806
        %v2664 = vunpack.c.l.s4 1983009808
        %v2665 = vunpack.c.0.s8 %v2664
        %v2666 = vlaneseq
        %v2667 = vshrl.u32 %v2666, 7
        %v2668 = vsub.s32 %v2665, %v2667
        %v2669 = vrot.slane %v1806, %v2668
        %v2671 = vunpack.c.l.s4 1983009808
        %v2672 = vunpack.c.0.s8 %v2671
        %v2673 = vlaneseq
        %v2674 = vshrl.u32 %v2673, 7
        %v2675 = vsub.s32 %v2672, %v2674
        %v2676 = vrot.slane %v2662, %v2675
        %v2677 = vcombine.high %v2669, %v2669
        %v2678 = vcombine.high %v2676, %v2676
        %v2679 = vcombine.high %v1809, %v1809
        %v2681 = vunpack.c.l.s4 1983009808
        %v2682 = vunpack.c.0.s8 %v2681
        %v2683 = vlaneseq
        %v2684 = vshrl.u32 %v2683, 7
        %v2685 = vsub.s32 %v2682, %v2684
        %v2686 = vrot.slane %v1809, %v2685
        %v2688 = vunpack.c.l.s4 1983009808
        %v2689 = vunpack.c.0.s8 %v2688
        %v2690 = vlaneseq
        %v2691 = vshrl.u32 %v2690, 7
        %v2692 = vsub.s32 %v2689, %v2691
        %v2693 = vrot.slane %v2679, %v2692
        %v2694 = vcombine.high %v2686, %v2686
        %v2695 = vcombine.high %v2693, %v2693
        %v2696 = vcombine.high %v1812, %v1812
        %v2698 = vunpack.c.l.s4 1983009808
        %v2699 = vunpack.c.0.s8 %v2698
        %v2700 = vlaneseq
        %v2701 = vshrl.u32 %v2700, 7
        %v2702 = vsub.s32 %v2699, %v2701
        %v2703 = vrot.slane %v1812, %v2702
        %v2705 = vunpack.c.l.s4 1983009808
        %v2706 = vunpack.c.0.s8 %v2705
        %v2707 = vlaneseq
        %v2708 = vshrl.u32 %v2707, 7
        %v2709 = vsub.s32 %v2706, %v2708
        %v2710 = vrot.slane %v2696, %v2709
        %v2711 = vcombine.high %v2703, %v2703
        %v2712 = vcombine.high %v2710, %v2710
        %v2713 = vcombine.high %v1815, %v1815
        %v2715 = vunpack.c.l.s4 1983009808
        %v2716 = vunpack.c.0.s8 %v2715
        %v2717 = vlaneseq
        %v2718 = vshrl.u32 %v2717, 7
        %v2719 = vsub.s32 %v2716, %v2718
        %v2720 = vrot.slane %v1815, %v2719
        %v2722 = vunpack.c.l.s4 1983009808
        %v2723 = vunpack.c.0.s8 %v2722
        %v2724 = vlaneseq
        %v2725 = vshrl.u32 %v2724, 7
        %v2726 = vsub.s32 %v2723, %v2725
        %v2727 = vrot.slane %v2713, %v2726
        %v2728 = vcombine.high %v2720, %v2720
        %v2729 = vcombine.high %v2727, %v2727
        %v2730 = vcombine.high %v1818, %v1818
        %v2732 = vunpack.c.l.s4 1983009808
        %v2733 = vunpack.c.0.s8 %v2732
        %v2734 = vlaneseq
        %v2735 = vshrl.u32 %v2734, 7
        %v2736 = vsub.s32 %v2733, %v2735
        %v2737 = vrot.slane %v1818, %v2736
        %v2739 = vunpack.c.l.s4 1983009808
        %v2740 = vunpack.c.0.s8 %v2739
        %v2741 = vlaneseq
        %v2742 = vshrl.u32 %v2741, 7
        %v2743 = vsub.s32 %v2740, %v2742
        %v2744 = vrot.slane %v2730, %v2743
        %v2745 = vcombine.high %v2737, %v2737
        %v2746 = vcombine.high %v2744, %v2744
        %v2747 = vcombine.high %v1821, %v1821
        %v2749 = vunpack.c.l.s4 1983009808
        %v2750 = vunpack.c.0.s8 %v2749
        %v2751 = vlaneseq
        %v2752 = vshrl.u32 %v2751, 7
        %v2753 = vsub.s32 %v2750, %v2752
        %v2754 = vrot.slane %v1821, %v2753
        %v2756 = vunpack.c.l.s4 1983009808
        %v2757 = vunpack.c.0.s8 %v2756
        %v2758 = vlaneseq
        %v2759 = vshrl.u32 %v2758, 7
        %v2760 = vsub.s32 %v2757, %v2759
        %v2761 = vrot.slane %v2747, %v2760
        %v2762 = vcombine.high %v2754, %v2754
        %v2763 = vcombine.high %v2761, %v2761
        %v2764 = vcombine.high %v1824, %v1824
        %v2766 = vunpack.c.l.s4 1983009808
        %v2767 = vunpack.c.0.s8 %v2766
        %v2768 = vlaneseq
        %v2769 = vshrl.u32 %v2768, 7
        %v2770 = vsub.s32 %v2767, %v2769
        %v2771 = vrot.slane %v1824, %v2770
        %v2773 = vunpack.c.l.s4 1983009808
        %v2774 = vunpack.c.0.s8 %v2773
        %v2775 = vlaneseq
        %v2776 = vshrl.u32 %v2775, 7
        %v2777 = vsub.s32 %v2774, %v2776
        %v2778 = vrot.slane %v2764, %v2777
        %v2779 = vcombine.high %v2771, %v2771
        %v2780 = vcombine.high %v2778, %v2778
        %v2781 = vcombine.high %v1827, %v1827
        %v2783 = vunpack.c.l.s4 1983009808
        %v2784 = vunpack.c.0.s8 %v2783
        %v2785 = vlaneseq
        %v2786 = vshrl.u32 %v2785, 7
        %v2787 = vsub.s32 %v2784, %v2786
        %v2788 = vrot.slane %v1827, %v2787
        %v2790 = vunpack.c.l.s4 1983009808
        %v2791 = vunpack.c.0.s8 %v2790
        %v2792 = vlaneseq
        %v2793 = vshrl.u32 %v2792, 7
        %v2794 = vsub.s32 %v2791, %v2793
        %v2795 = vrot.slane %v2781, %v2794
        %v2796 = vcombine.high %v2788, %v2788
        %v2797 = vcombine.high %v2795, %v2795
        %v2798 = vcombine.high %v1830, %v1830
        %v2800 = vunpack.c.l.s4 1983009808
        %v2801 = vunpack.c.0.s8 %v2800
        %v2802 = vlaneseq
        %v2803 = vshrl.u32 %v2802, 7
        %v2804 = vsub.s32 %v2801, %v2803
        %v2805 = vrot.slane %v1830, %v2804
        %v2807 = vunpack.c.l.s4 1983009808
        %v2808 = vunpack.c.0.s8 %v2807
        %v2809 = vlaneseq
        %v2810 = vshrl.u32 %v2809, 7
        %v2811 = vsub.s32 %v2808, %v2810
        %v2812 = vrot.slane %v2798, %v2811
        %v2813 = vcombine.high %v2805, %v2805
        %v2814 = vcombine.high %v2812, %v2812
        %v2815 = vcombine.high %v1833, %v1833
        %v2817 = vunpack.c.l.s4 1983009808
        %v2818 = vunpack.c.0.s8 %v2817
        %v2819 = vlaneseq
        %v2820 = vshrl.u32 %v2819, 7
        %v2821 = vsub.s32 %v2818, %v2820
        %v2822 = vrot.slane %v1833, %v2821
        %v2824 = vunpack.c.l.s4 1983009808
        %v2825 = vunpack.c.0.s8 %v2824
        %v2826 = vlaneseq
        %v2827 = vshrl.u32 %v2826, 7
        %v2828 = vsub.s32 %v2825, %v2827
        %v2829 = vrot.slane %v2815, %v2828
        %v2830 = vcombine.high %v2822, %v2822
        %v2831 = vcombine.high %v2829, %v2829
        %v2832 = vcombine.high %v1836, %v1836
        %v2834 = vunpack.c.l.s4 1983009808
        %v2835 = vunpack.c.0.s8 %v2834
        %v2836 = vlaneseq
        %v2837 = vshrl.u32 %v2836, 7
        %v2838 = vsub.s32 %v2835, %v2837
        %v2839 = vrot.slane %v1836, %v2838
        %v2841 = vunpack.c.l.s4 1983009808
        %v2842 = vunpack.c.0.s8 %v2841
        %v2843 = vlaneseq
        %v2844 = vshrl.u32 %v2843, 7
        %v2845 = vsub.s32 %v2842, %v2844
        %v2846 = vrot.slane %v2832, %v2845
        %v2847 = vcombine.high %v2839, %v2839
        %v2848 = vcombine.high %v2846, %v2846
        %v2849 = vcombine.high %v1839, %v1839
        %v2851 = vunpack.c.l.s4 1983009808
        %v2852 = vunpack.c.0.s8 %v2851
        %v2853 = vlaneseq
        %v2854 = vshrl.u32 %v2853, 7
        %v2855 = vsub.s32 %v2852, %v2854
        %v2856 = vrot.slane %v1839, %v2855
        %v2858 = vunpack.c.l.s4 1983009808
        %v2859 = vunpack.c.0.s8 %v2858
        %v2860 = vlaneseq
        %v2861 = vshrl.u32 %v2860, 7
        %v2862 = vsub.s32 %v2859, %v2861
        %v2863 = vrot.slane %v2849, %v2862
        %v2864 = vcombine.high %v2856, %v2856
        %v2865 = vcombine.high %v2863, %v2863
        %v2866 = vcombine.high %v1842, %v1842
        %v2868 = vunpack.c.l.s4 1983009808
        %v2869 = vunpack.c.0.s8 %v2868
        %v2870 = vlaneseq
        %v2871 = vshrl.u32 %v2870, 7
        %v2872 = vsub.s32 %v2869, %v2871
        %v2873 = vrot.slane %v1842, %v2872
        %v2875 = vunpack.c.l.s4 1983009808
        %v2876 = vunpack.c.0.s8 %v2875
        %v2877 = vlaneseq
        %v2878 = vshrl.u32 %v2877, 7
        %v2879 = vsub.s32 %v2876, %v2878
        %v2880 = vrot.slane %v2866, %v2879
        %v2881 = vcombine.high %v2873, %v2873
        %v2882 = vcombine.high %v2880, %v2880
        %v2883 = vcombine.high %v1845, %v1845
        %v2885 = vunpack.c.l.s4 1983009808
        %v2886 = vunpack.c.0.s8 %v2885
        %v2887 = vlaneseq
        %v2888 = vshrl.u32 %v2887, 7
        %v2889 = vsub.s32 %v2886, %v2888
        %v2890 = vrot.slane %v1845, %v2889
        %v2892 = vunpack.c.l.s4 1983009808
        %v2893 = vunpack.c.0.s8 %v2892
        %v2894 = vlaneseq
        %v2895 = vshrl.u32 %v2894, 7
        %v2896 = vsub.s32 %v2893, %v2895
        %v2897 = vrot.slane %v2883, %v2896
        %v2898 = vcombine.high %v2890, %v2890
        %v2899 = vcombine.high %v2897, %v2897
        %v2900 = vcombine.high %v1848, %v1848
        %v2902 = vunpack.c.l.s4 1983009808
        %v2903 = vunpack.c.0.s8 %v2902
        %v2904 = vlaneseq
        %v2905 = vshrl.u32 %v2904, 7
        %v2906 = vsub.s32 %v2903, %v2905
        %v2907 = vrot.slane %v1848, %v2906
        %v2909 = vunpack.c.l.s4 1983009808
        %v2910 = vunpack.c.0.s8 %v2909
        %v2911 = vlaneseq
        %v2912 = vshrl.u32 %v2911, 7
        %v2913 = vsub.s32 %v2910, %v2912
        %v2914 = vrot.slane %v2900, %v2913
        %v2915 = vcombine.high %v2907, %v2907
        %v2916 = vcombine.high %v2914, %v2914
        %v2917 = vcombine.high %v1851, %v1851
        %v2919 = vunpack.c.l.s4 1983009808
        %v2920 = vunpack.c.0.s8 %v2919
        %v2921 = vlaneseq
        %v2922 = vshrl.u32 %v2921, 7
        %v2923 = vsub.s32 %v2920, %v2922
        %v2924 = vrot.slane %v1851, %v2923
        %v2926 = vunpack.c.l.s4 1983009808
        %v2927 = vunpack.c.0.s8 %v2926
        %v2928 = vlaneseq
        %v2929 = vshrl.u32 %v2928, 7
        %v2930 = vsub.s32 %v2927, %v2929
        %v2931 = vrot.slane %v2917, %v2930
        %v2932 = vcombine.high %v2924, %v2924
        %v2933 = vcombine.high %v2931, %v2931
        %v2934 = vcombine.high %v1854, %v1854
        %v2936 = vunpack.c.l.s4 1983009808
        %v2937 = vunpack.c.0.s8 %v2936
        %v2938 = vlaneseq
        %v2939 = vshrl.u32 %v2938, 7
        %v2940 = vsub.s32 %v2937, %v2939
        %v2941 = vrot.slane %v1854, %v2940
        %v2943 = vunpack.c.l.s4 1983009808
        %v2944 = vunpack.c.0.s8 %v2943
        %v2945 = vlaneseq
        %v2946 = vshrl.u32 %v2945, 7
        %v2947 = vsub.s32 %v2944, %v2946
        %v2948 = vrot.slane %v2934, %v2947
        %v2949 = vcombine.high %v2941, %v2941
        %v2950 = vcombine.high %v2948, %v2948
        %v2951 = vcombine.high %v1857, %v1857
        %v2953 = vunpack.c.l.s4 1983009808
        %v2954 = vunpack.c.0.s8 %v2953
        %v2955 = vlaneseq
        %v2956 = vshrl.u32 %v2955, 7
        %v2957 = vsub.s32 %v2954, %v2956
        %v2958 = vrot.slane %v1857, %v2957
        %v2960 = vunpack.c.l.s4 1983009808
        %v2961 = vunpack.c.0.s8 %v2960
        %v2962 = vlaneseq
        %v2963 = vshrl.u32 %v2962, 7
        %v2964 = vsub.s32 %v2961, %v2963
        %v2965 = vrot.slane %v2951, %v2964
        %v2966 = vcombine.high %v2958, %v2958
        %v2967 = vcombine.high %v2965, %v2965
        %v2968 = vcombine.high %v1860, %v1860
        %v2970 = vunpack.c.l.s4 1983009808
        %v2971 = vunpack.c.0.s8 %v2970
        %v2972 = vlaneseq
        %v2973 = vshrl.u32 %v2972, 7
        %v2974 = vsub.s32 %v2971, %v2973
        %v2975 = vrot.slane %v1860, %v2974
        %v2977 = vunpack.c.l.s4 1983009808
        %v2978 = vunpack.c.0.s8 %v2977
        %v2979 = vlaneseq
        %v2980 = vshrl.u32 %v2979, 7
        %v2981 = vsub.s32 %v2978, %v2980
        %v2982 = vrot.slane %v2968, %v2981
        %v2983 = vcombine.high %v2975, %v2975
        %v2984 = vcombine.high %v2982, %v2982
        %v2985 = vcombine.high %v1863, %v1863
        %v2987 = vunpack.c.l.s4 1983009808
        %v2988 = vunpack.c.0.s8 %v2987
        %v2989 = vlaneseq
        %v2990 = vshrl.u32 %v2989, 7
        %v2991 = vsub.s32 %v2988, %v2990
        %v2992 = vrot.slane %v1863, %v2991
        %v2994 = vunpack.c.l.s4 1983009808
        %v2995 = vunpack.c.0.s8 %v2994
        %v2996 = vlaneseq
        %v2997 = vshrl.u32 %v2996, 7
        %v2998 = vsub.s32 %v2995, %v2997
        %v2999 = vrot.slane %v2985, %v2998
        %v3000 = vcombine.high %v2992, %v2992
        %v3001 = vcombine.high %v2999, %v2999
        %v3002 = vcombine.high %v1866, %v1866
        %v3004 = vunpack.c.l.s4 1983009808
        %v3005 = vunpack.c.0.s8 %v3004
        %v3006 = vlaneseq
        %v3007 = vshrl.u32 %v3006, 7
        %v3008 = vsub.s32 %v3005, %v3007
        %v3009 = vrot.slane %v1866, %v3008
        %v3011 = vunpack.c.l.s4 1983009808
        %v3012 = vunpack.c.0.s8 %v3011
        %v3013 = vlaneseq
        %v3014 = vshrl.u32 %v3013, 7
        %v3015 = vsub.s32 %v3012, %v3014
        %v3016 = vrot.slane %v3002, %v3015
        %v3017 = vcombine.high %v3009, %v3009
        %v3018 = vcombine.high %v3016, %v3016
        %vm3275 = vcmask 517120
        %v3276 = vsel %vm3275, %v1938, -inf
        %v3277 = vrot.slane %v3276, 4
        %v3278 = vmax.f32 %v3276, %v3277
        %v3279 = vrot.slane %v3278, 2
        %v3280 = vmax.f32 %v3278, %v3279
        %v3281 = vrot.slane %v3280, 1
        %v3282 = vmax.f32 %v3280, %v3281
        %v3283 = vsel %vm3275, %v1946, -inf
        %v3284 = vrot.slane %v3283, 4
        %v3285 = vmax.f32 %v3283, %v3284
        %v3286 = vrot.slane %v3285, 2
        %v3287 = vmax.f32 %v3285, %v3286
        %v3288 = vrot.slane %v3287, 1
        %v3289 = vmax.f32 %v3287, %v3288
        %v3290 = vsel %vm3275, %v1945, -inf
        %v3291 = vrot.slane %v3290, 4
        %v3292 = vmax.f32 %v3290, %v3291
        %v3293 = vrot.slane %v3292, 2
        %v3294 = vmax.f32 %v3292, %v3293
        %v3295 = vrot.slane %v3294, 1
        %v3296 = vmax.f32 %v3294, %v3295
        %v3297 = vsel %vm3275, %v1947, -inf
        %v3298 = vrot.slane %v3297, 4
        %v3299 = vmax.f32 %v3297, %v3298
        %v3300 = vrot.slane %v3299, 2
        %v3301 = vmax.f32 %v3299, %v3300
        %v3302 = vrot.slane %v3301, 1
        %v3303 = vmax.f32 %v3301, %v3302
        %v3304 = vsel %vm3275, %v1955, -inf
        %v3305 = vrot.slane %v3304, 4
        %v3306 = vmax.f32 %v3304, %v3305
        %v3307 = vrot.slane %v3306, 2
        %v3308 = vmax.f32 %v3306, %v3307
        %v3309 = vrot.slane %v3308, 1
        %v3310 = vmax.f32 %v3308, %v3309
        %v3311 = vsel %vm3275, %v1963, -inf
        %v3312 = vrot.slane %v3311, 4
        %v3313 = vmax.f32 %v3311, %v3312
        %v3314 = vrot.slane %v3313, 2
        %v3315 = vmax.f32 %v3313, %v3314
        %v3316 = vrot.slane %v3315, 1
        %v3317 = vmax.f32 %v3315, %v3316
        %v3318 = vsel %vm3275, %v1962, -inf
        %v3319 = vrot.slane %v3318, 4
        %v3320 = vmax.f32 %v3318, %v3319
        %v3321 = vrot.slane %v3320, 2
        %v3322 = vmax.f32 %v3320, %v3321
        %v3323 = vrot.slane %v3322, 1
        %v3324 = vmax.f32 %v3322, %v3323
        %v3325 = vsel %vm3275, %v1964, -inf
        %v3326 = vrot.slane %v3325, 4
        %v3327 = vmax.f32 %v3325, %v3326
        %v3328 = vrot.slane %v3327, 2
        %v3329 = vmax.f32 %v3327, %v3328
        %v3330 = vrot.slane %v3329, 1
        %v3331 = vmax.f32 %v3329, %v3330
        %v3332 = vsel %vm3275, %v1972, -inf
        %v3333 = vrot.slane %v3332, 4
        %v3334 = vmax.f32 %v3332, %v3333
        %v3335 = vrot.slane %v3334, 2
        %v3336 = vmax.f32 %v3334, %v3335
        %v3337 = vrot.slane %v3336, 1
        %v3338 = vmax.f32 %v3336, %v3337
        %v3339 = vsel %vm3275, %v1980, -inf
        %v3340 = vrot.slane %v3339, 4
        %v3341 = vmax.f32 %v3339, %v3340
        %v3342 = vrot.slane %v3341, 2
        %v3343 = vmax.f32 %v3341, %v3342
        %v3344 = vrot.slane %v3343, 1
        %v3345 = vmax.f32 %v3343, %v3344
        %v3346 = vsel %vm3275, %v1979, -inf
        %v3347 = vrot.slane %v3346, 4
        %v3348 = vmax.f32 %v3346, %v3347
        %v3349 = vrot.slane %v3348, 2
        %v3350 = vmax.f32 %v3348, %v3349
        %v3351 = vrot.slane %v3350, 1
        %v3352 = vmax.f32 %v3350, %v3351
        %v3353 = vsel %vm3275, %v1981, -inf
        %v3354 = vrot.slane %v3353, 4
        %v3355 = vmax.f32 %v3353, %v3354
        %v3356 = vrot.slane %v3355, 2
        %v3357 = vmax.f32 %v3355, %v3356
        %v3358 = vrot.slane %v3357, 1
        %v3359 = vmax.f32 %v3357, %v3358
        %v3360 = vsel %vm3275, %v1989, -inf
        %v3361 = vrot.slane %v3360, 4
        %v3362 = vmax.f32 %v3360, %v3361
        %v3363 = vrot.slane %v3362, 2
        %v3364 = vmax.f32 %v3362, %v3363
        %v3365 = vrot.slane %v3364, 1
        %v3366 = vmax.f32 %v3364, %v3365
        %v3367 = vsel %vm3275, %v1997, -inf
        %v3368 = vrot.slane %v3367, 4
        %v3369 = vmax.f32 %v3367, %v3368
        %v3370 = vrot.slane %v3369, 2
        %v3371 = vmax.f32 %v3369, %v3370
        %v3372 = vrot.slane %v3371, 1
        %v3373 = vmax.f32 %v3371, %v3372
        %v3374 = vsel %vm3275, %v1996, -inf
        %v3375 = vrot.slane %v3374, 4
        %v3376 = vmax.f32 %v3374, %v3375
        %v3377 = vrot.slane %v3376, 2
        %v3378 = vmax.f32 %v3376, %v3377
        %v3379 = vrot.slane %v3378, 1
        %v3380 = vmax.f32 %v3378, %v3379
        %v3381 = vsel %vm3275, %v1998, -inf
        %v3382 = vrot.slane %v3381, 4
        %v3383 = vmax.f32 %v3381, %v3382
        %v3384 = vrot.slane %v3383, 2
        %v3385 = vmax.f32 %v3383, %v3384
        %v3386 = vrot.slane %v3385, 1
        %v3387 = vmax.f32 %v3385, %v3386
        %v3388 = vsel %vm3275, %v2006, -inf
        %v3389 = vrot.slane %v3388, 4
        %v3390 = vmax.f32 %v3388, %v3389
        %v3391 = vrot.slane %v3390, 2
        %v3392 = vmax.f32 %v3390, %v3391
        %v3393 = vrot.slane %v3392, 1
        %v3394 = vmax.f32 %v3392, %v3393
        %v3395 = vsel %vm3275, %v2014, -inf
        %v3396 = vrot.slane %v3395, 4
        %v3397 = vmax.f32 %v3395, %v3396
        %v3398 = vrot.slane %v3397, 2
        %v3399 = vmax.f32 %v3397, %v3398
        %v3400 = vrot.slane %v3399, 1
        %v3401 = vmax.f32 %v3399, %v3400
        %v3402 = vsel %vm3275, %v2013, -inf
        %v3403 = vrot.slane %v3402, 4
        %v3404 = vmax.f32 %v3402, %v3403
        %v3405 = vrot.slane %v3404, 2
        %v3406 = vmax.f32 %v3404, %v3405
        %v3407 = vrot.slane %v3406, 1
        %v3408 = vmax.f32 %v3406, %v3407
        %v3409 = vsel %vm3275, %v2015, -inf
        %v3410 = vrot.slane %v3409, 4
        %v3411 = vmax.f32 %v3409, %v3410
        %v3412 = vrot.slane %v3411, 2
        %v3413 = vmax.f32 %v3411, %v3412
        %v3414 = vrot.slane %v3413, 1
        %v3415 = vmax.f32 %v3413, %v3414
        %v3416 = vsel %vm3275, %v2023, -inf
        %v3417 = vrot.slane %v3416, 4
        %v3418 = vmax.f32 %v3416, %v3417
        %v3419 = vrot.slane %v3418, 2
        %v3420 = vmax.f32 %v3418, %v3419
        %v3421 = vrot.slane %v3420, 1
        %v3422 = vmax.f32 %v3420, %v3421
        %v3423 = vsel %vm3275, %v2031, -inf
        %v3424 = vrot.slane %v3423, 4
        %v3425 = vmax.f32 %v3423, %v3424
        %v3426 = vrot.slane %v3425, 2
        %v3427 = vmax.f32 %v3425, %v3426
        %v3428 = vrot.slane %v3427, 1
        %v3429 = vmax.f32 %v3427, %v3428
        %v3430 = vsel %vm3275, %v2030, -inf
        %v3431 = vrot.slane %v3430, 4
        %v3432 = vmax.f32 %v3430, %v3431
        %v3433 = vrot.slane %v3432, 2
        %v3434 = vmax.f32 %v3432, %v3433
        %v3435 = vrot.slane %v3434, 1
        %v3436 = vmax.f32 %v3434, %v3435
        %v3437 = vsel %vm3275, %v2032, -inf
        %v3438 = vrot.slane %v3437, 4
        %v3439 = vmax.f32 %v3437, %v3438
        %v3440 = vrot.slane %v3439, 2
        %v3441 = vmax.f32 %v3439, %v3440
        %v3442 = vrot.slane %v3441, 1
        %v3443 = vmax.f32 %v3441, %v3442
        %v3444 = vsel %vm3275, %v2040, -inf
        %v3445 = vrot.slane %v3444, 4
        %v3446 = vmax.f32 %v3444, %v3445
        %v3447 = vrot.slane %v3446, 2
        %v3448 = vmax.f32 %v3446, %v3447
        %v3449 = vrot.slane %v3448, 1
        %v3450 = vmax.f32 %v3448, %v3449
        %v3451 = vsel %vm3275, %v2048, -inf
        %v3452 = vrot.slane %v3451, 4
        %v3453 = vmax.f32 %v3451, %v3452
        %v3454 = vrot.slane %v3453, 2
        %v3455 = vmax.f32 %v3453, %v3454
        %v3456 = vrot.slane %v3455, 1
        %v3457 = vmax.f32 %v3455, %v3456
        %v3458 = vsel %vm3275, %v2047, -inf
        %v3459 = vrot.slane %v3458, 4
        %v3460 = vmax.f32 %v3458, %v3459
        %v3461 = vrot.slane %v3460, 2
        %v3462 = vmax.f32 %v3460, %v3461
        %v3463 = vrot.slane %v3462, 1
        %v3464 = vmax.f32 %v3462, %v3463
        %v3465 = vsel %vm3275, %v2049, -inf
        %v3466 = vrot.slane %v3465, 4
        %v3467 = vmax.f32 %v3465, %v3466
        %v3468 = vrot.slane %v3467, 2
        %v3469 = vmax.f32 %v3467, %v3468
        %v3470 = vrot.slane %v3469, 1
        %v3471 = vmax.f32 %v3469, %v3470
        %v3472 = vsel %vm3275, %v2057, -inf
        %v3473 = vrot.slane %v3472, 4
        %v3474 = vmax.f32 %v3472, %v3473
        %v3475 = vrot.slane %v3474, 2
        %v3476 = vmax.f32 %v3474, %v3475
        %v3477 = vrot.slane %v3476, 1
        %v3478 = vmax.f32 %v3476, %v3477
        %v3479 = vsel %vm3275, %v2065, -inf
        %v3480 = vrot.slane %v3479, 4
        %v3481 = vmax.f32 %v3479, %v3480
        %v3482 = vrot.slane %v3481, 2
        %v3483 = vmax.f32 %v3481, %v3482
        %v3484 = vrot.slane %v3483, 1
        %v3485 = vmax.f32 %v3483, %v3484
        %v3486 = vsel %vm3275, %v2064, -inf
        %v3487 = vrot.slane %v3486, 4
        %v3488 = vmax.f32 %v3486, %v3487
        %v3489 = vrot.slane %v3488, 2
        %v3490 = vmax.f32 %v3488, %v3489
        %v3491 = vrot.slane %v3490, 1
        %v3492 = vmax.f32 %v3490, %v3491
        %v3493 = vsel %vm3275, %v2066, -inf
        %v3494 = vrot.slane %v3493, 4
        %v3495 = vmax.f32 %v3493, %v3494
        %v3496 = vrot.slane %v3495, 2
        %v3497 = vmax.f32 %v3495, %v3496
        %v3498 = vrot.slane %v3497, 1
        %v3499 = vmax.f32 %v3497, %v3498
        %v3500 = vsel %vm3275, %v2074, -inf
        %v3501 = vrot.slane %v3500, 4
        %v3502 = vmax.f32 %v3500, %v3501
        %v3503 = vrot.slane %v3502, 2
        %v3504 = vmax.f32 %v3502, %v3503
        %v3505 = vrot.slane %v3504, 1
        %v3506 = vmax.f32 %v3504, %v3505
        %v3507 = vsel %vm3275, %v2082, -inf
        %v3508 = vrot.slane %v3507, 4
        %v3509 = vmax.f32 %v3507, %v3508
        %v3510 = vrot.slane %v3509, 2
        %v3511 = vmax.f32 %v3509, %v3510
        %v3512 = vrot.slane %v3511, 1
        %v3513 = vmax.f32 %v3511, %v3512
        %v3514 = vsel %vm3275, %v2081, -inf
        %v3515 = vrot.slane %v3514, 4
        %v3516 = vmax.f32 %v3514, %v3515
        %v3517 = vrot.slane %v3516, 2
        %v3518 = vmax.f32 %v3516, %v3517
        %v3519 = vrot.slane %v3518, 1
        %v3520 = vmax.f32 %v3518, %v3519
        %v3521 = vsel %vm3275, %v2083, -inf
        %v3522 = vrot.slane %v3521, 4
        %v3523 = vmax.f32 %v3521, %v3522
        %v3524 = vrot.slane %v3523, 2
        %v3525 = vmax.f32 %v3523, %v3524
        %v3526 = vrot.slane %v3525, 1
        %v3527 = vmax.f32 %v3525, %v3526
        %v3528 = vsel %vm3275, %v2091, -inf
        %v3529 = vrot.slane %v3528, 4
        %v3530 = vmax.f32 %v3528, %v3529
        %v3531 = vrot.slane %v3530, 2
        %v3532 = vmax.f32 %v3530, %v3531
        %v3533 = vrot.slane %v3532, 1
        %v3534 = vmax.f32 %v3532, %v3533
        %v3535 = vsel %vm3275, %v2099, -inf
        %v3536 = vrot.slane %v3535, 4
        %v3537 = vmax.f32 %v3535, %v3536
        %v3538 = vrot.slane %v3537, 2
        %v3539 = vmax.f32 %v3537, %v3538
        %v3540 = vrot.slane %v3539, 1
        %v3541 = vmax.f32 %v3539, %v3540
        %v3542 = vsel %vm3275, %v2098, -inf
        %v3543 = vrot.slane %v3542, 4
        %v3544 = vmax.f32 %v3542, %v3543
        %v3545 = vrot.slane %v3544, 2
        %v3546 = vmax.f32 %v3544, %v3545
        %v3547 = vrot.slane %v3546, 1
        %v3548 = vmax.f32 %v3546, %v3547
        %v3549 = vsel %vm3275, %v2100, -inf
        %v3550 = vrot.slane %v3549, 4
        %v3551 = vmax.f32 %v3549, %v3550
        %v3552 = vrot.slane %v3551, 2
        %v3553 = vmax.f32 %v3551, %v3552
        %v3554 = vrot.slane %v3553, 1
        %v3555 = vmax.f32 %v3553, %v3554
        %v3556 = vsel %vm3275, %v2108, -inf
        %v3557 = vrot.slane %v3556, 4
        %v3558 = vmax.f32 %v3556, %v3557
        %v3559 = vrot.slane %v3558, 2
        %v3560 = vmax.f32 %v3558, %v3559
        %v3561 = vrot.slane %v3560, 1
        %v3562 = vmax.f32 %v3560, %v3561
        %v3563 = vsel %vm3275, %v2116, -inf
        %v3564 = vrot.slane %v3563, 4
        %v3565 = vmax.f32 %v3563, %v3564
        %v3566 = vrot.slane %v3565, 2
        %v3567 = vmax.f32 %v3565, %v3566
        %v3568 = vrot.slane %v3567, 1
        %v3569 = vmax.f32 %v3567, %v3568
        %v3570 = vsel %vm3275, %v2115, -inf
        %v3571 = vrot.slane %v3570, 4
        %v3572 = vmax.f32 %v3570, %v3571
        %v3573 = vrot.slane %v3572, 2
        %v3574 = vmax.f32 %v3572, %v3573
        %v3575 = vrot.slane %v3574, 1
        %v3576 = vmax.f32 %v3574, %v3575
        %v3577 = vsel %vm3275, %v2117, -inf
        %v3578 = vrot.slane %v3577, 4
        %v3579 = vmax.f32 %v3577, %v3578
        %v3580 = vrot.slane %v3579, 2
        %v3581 = vmax.f32 %v3579, %v3580
        %v3582 = vrot.slane %v3581, 1
        %v3583 = vmax.f32 %v3581, %v3582
        %v3584 = vsel %vm3275, %v2125, -inf
        %v3585 = vrot.slane %v3584, 4
        %v3586 = vmax.f32 %v3584, %v3585
        %v3587 = vrot.slane %v3586, 2
        %v3588 = vmax.f32 %v3586, %v3587
        %v3589 = vrot.slane %v3588, 1
        %v3590 = vmax.f32 %v3588, %v3589
        %v3591 = vsel %vm3275, %v2133, -inf
        %v3592 = vrot.slane %v3591, 4
        %v3593 = vmax.f32 %v3591, %v3592
        %v3594 = vrot.slane %v3593, 2
        %v3595 = vmax.f32 %v3593, %v3594
        %v3596 = vrot.slane %v3595, 1
        %v3597 = vmax.f32 %v3595, %v3596
        %v3598 = vsel %vm3275, %v2132, -inf
        %v3599 = vrot.slane %v3598, 4
        %v3600 = vmax.f32 %v3598, %v3599
        %v3601 = vrot.slane %v3600, 2
        %v3602 = vmax.f32 %v3600, %v3601
        %v3603 = vrot.slane %v3602, 1
        %v3604 = vmax.f32 %v3602, %v3603
        %v3605 = vsel %vm3275, %v2134, -inf
        %v3606 = vrot.slane %v3605, 4
        %v3607 = vmax.f32 %v3605, %v3606
        %v3608 = vrot.slane %v3607, 2
        %v3609 = vmax.f32 %v3607, %v3608
        %v3610 = vrot.slane %v3609, 1
        %v3611 = vmax.f32 %v3609, %v3610
        %v3612 = vsel %vm3275, %v2142, -inf
        %v3613 = vrot.slane %v3612, 4
        %v3614 = vmax.f32 %v3612, %v3613
        %v3615 = vrot.slane %v3614, 2
        %v3616 = vmax.f32 %v3614, %v3615
        %v3617 = vrot.slane %v3616, 1
        %v3618 = vmax.f32 %v3616, %v3617
        %v3619 = vsel %vm3275, %v2150, -inf
        %v3620 = vrot.slane %v3619, 4
        %v3621 = vmax.f32 %v3619, %v3620
        %v3622 = vrot.slane %v3621, 2
        %v3623 = vmax.f32 %v3621, %v3622
        %v3624 = vrot.slane %v3623, 1
        %v3625 = vmax.f32 %v3623, %v3624
        %v3626 = vsel %vm3275, %v2149, -inf
        %v3627 = vrot.slane %v3626, 4
        %v3628 = vmax.f32 %v3626, %v3627
        %v3629 = vrot.slane %v3628, 2
        %v3630 = vmax.f32 %v3628, %v3629
        %v3631 = vrot.slane %v3630, 1
        %v3632 = vmax.f32 %v3630, %v3631
        %v3633 = vsel %vm3275, %v2151, -inf
        %v3634 = vrot.slane %v3633, 4
        %v3635 = vmax.f32 %v3633, %v3634
        %v3636 = vrot.slane %v3635, 2
        %v3637 = vmax.f32 %v3635, %v3636
        %v3638 = vrot.slane %v3637, 1
        %v3639 = vmax.f32 %v3637, %v3638
        %v3640 = vsel %vm3275, %v2159, -inf
        %v3641 = vrot.slane %v3640, 4
        %v3642 = vmax.f32 %v3640, %v3641
        %v3643 = vrot.slane %v3642, 2
        %v3644 = vmax.f32 %v3642, %v3643
        %v3645 = vrot.slane %v3644, 1
        %v3646 = vmax.f32 %v3644, %v3645
        %v3647 = vsel %vm3275, %v2167, -inf
        %v3648 = vrot.slane %v3647, 4
        %v3649 = vmax.f32 %v3647, %v3648
        %v3650 = vrot.slane %v3649, 2
        %v3651 = vmax.f32 %v3649, %v3650
        %v3652 = vrot.slane %v3651, 1
        %v3653 = vmax.f32 %v3651, %v3652
        %v3654 = vsel %vm3275, %v2166, -inf
        %v3655 = vrot.slane %v3654, 4
        %v3656 = vmax.f32 %v3654, %v3655
        %v3657 = vrot.slane %v3656, 2
        %v3658 = vmax.f32 %v3656, %v3657
        %v3659 = vrot.slane %v3658, 1
        %v3660 = vmax.f32 %v3658, %v3659
        %v3661 = vsel %vm3275, %v2168, -inf
        %v3662 = vrot.slane %v3661, 4
        %v3663 = vmax.f32 %v3661, %v3662
        %v3664 = vrot.slane %v3663, 2
        %v3665 = vmax.f32 %v3663, %v3664
        %v3666 = vrot.slane %v3665, 1
        %v3667 = vmax.f32 %v3665, %v3666
        %v3668 = vsel %vm3275, %v2176, -inf
        %v3669 = vrot.slane %v3668, 4
        %v3670 = vmax.f32 %v3668, %v3669
        %v3671 = vrot.slane %v3670, 2
        %v3672 = vmax.f32 %v3670, %v3671
        %v3673 = vrot.slane %v3672, 1
        %v3674 = vmax.f32 %v3672, %v3673
        %v3675 = vsel %vm3275, %v2184, -inf
        %v3676 = vrot.slane %v3675, 4
        %v3677 = vmax.f32 %v3675, %v3676
        %v3678 = vrot.slane %v3677, 2
        %v3679 = vmax.f32 %v3677, %v3678
        %v3680 = vrot.slane %v3679, 1
        %v3681 = vmax.f32 %v3679, %v3680
        %v3682 = vsel %vm3275, %v2183, -inf
        %v3683 = vrot.slane %v3682, 4
        %v3684 = vmax.f32 %v3682, %v3683
        %v3685 = vrot.slane %v3684, 2
        %v3686 = vmax.f32 %v3684, %v3685
        %v3687 = vrot.slane %v3686, 1
        %v3688 = vmax.f32 %v3686, %v3687
        %v3689 = vsel %vm3275, %v2185, -inf
        %v3690 = vrot.slane %v3689, 4
        %v3691 = vmax.f32 %v3689, %v3690
        %v3692 = vrot.slane %v3691, 2
        %v3693 = vmax.f32 %v3691, %v3692
        %v3694 = vrot.slane %v3693, 1
        %v3695 = vmax.f32 %v3693, %v3694
        %v3696 = vsel %vm3275, %v2193, -inf
        %v3697 = vrot.slane %v3696, 4
        %v3698 = vmax.f32 %v3696, %v3697
        %v3699 = vrot.slane %v3698, 2
        %v3700 = vmax.f32 %v3698, %v3699
        %v3701 = vrot.slane %v3700, 1
        %v3702 = vmax.f32 %v3700, %v3701
        %v3703 = vsel %vm3275, %v2201, -inf
        %v3704 = vrot.slane %v3703, 4
        %v3705 = vmax.f32 %v3703, %v3704
        %v3706 = vrot.slane %v3705, 2
        %v3707 = vmax.f32 %v3705, %v3706
        %v3708 = vrot.slane %v3707, 1
        %v3709 = vmax.f32 %v3707, %v3708
        %v3710 = vsel %vm3275, %v2200, -inf
        %v3711 = vrot.slane %v3710, 4
        %v3712 = vmax.f32 %v3710, %v3711
        %v3713 = vrot.slane %v3712, 2
        %v3714 = vmax.f32 %v3712, %v3713
        %v3715 = vrot.slane %v3714, 1
        %v3716 = vmax.f32 %v3714, %v3715
        %v3717 = vsel %vm3275, %v2202, -inf
        %v3718 = vrot.slane %v3717, 4
        %v3719 = vmax.f32 %v3717, %v3718
        %v3720 = vrot.slane %v3719, 2
        %v3721 = vmax.f32 %v3719, %v3720
        %v3722 = vrot.slane %v3721, 1
        %v3723 = vmax.f32 %v3721, %v3722
        %v3724 = vsel %vm3275, %v2210, -inf
        %v3725 = vrot.slane %v3724, 4
        %v3726 = vmax.f32 %v3724, %v3725
        %v3727 = vrot.slane %v3726, 2
        %v3728 = vmax.f32 %v3726, %v3727
        %v3729 = vrot.slane %v3728, 1
        %v3730 = vmax.f32 %v3728, %v3729
        %v3731 = vsel %vm3275, %v2218, -inf
        %v3732 = vrot.slane %v3731, 4
        %v3733 = vmax.f32 %v3731, %v3732
        %v3734 = vrot.slane %v3733, 2
        %v3735 = vmax.f32 %v3733, %v3734
        %v3736 = vrot.slane %v3735, 1
        %v3737 = vmax.f32 %v3735, %v3736
        %v3738 = vsel %vm3275, %v2217, -inf
        %v3739 = vrot.slane %v3738, 4
        %v3740 = vmax.f32 %v3738, %v3739
        %v3741 = vrot.slane %v3740, 2
        %v3742 = vmax.f32 %v3740, %v3741
        %v3743 = vrot.slane %v3742, 1
        %v3744 = vmax.f32 %v3742, %v3743
        %v3745 = vsel %vm3275, %v2219, -inf
        %v3746 = vrot.slane %v3745, 4
        %v3747 = vmax.f32 %v3745, %v3746
        %v3748 = vrot.slane %v3747, 2
        %v3749 = vmax.f32 %v3747, %v3748
        %v3750 = vrot.slane %v3749, 1
        %v3751 = vmax.f32 %v3749, %v3750
        %v3752 = vsel %vm3275, %v2227, -inf
        %v3753 = vrot.slane %v3752, 4
        %v3754 = vmax.f32 %v3752, %v3753
        %v3755 = vrot.slane %v3754, 2
        %v3756 = vmax.f32 %v3754, %v3755
        %v3757 = vrot.slane %v3756, 1
        %v3758 = vmax.f32 %v3756, %v3757
        %v3759 = vsel %vm3275, %v2235, -inf
        %v3760 = vrot.slane %v3759, 4
        %v3761 = vmax.f32 %v3759, %v3760
        %v3762 = vrot.slane %v3761, 2
        %v3763 = vmax.f32 %v3761, %v3762
        %v3764 = vrot.slane %v3763, 1
        %v3765 = vmax.f32 %v3763, %v3764
        %v3766 = vsel %vm3275, %v2234, -inf
        %v3767 = vrot.slane %v3766, 4
        %v3768 = vmax.f32 %v3766, %v3767
        %v3769 = vrot.slane %v3768, 2
        %v3770 = vmax.f32 %v3768, %v3769
        %v3771 = vrot.slane %v3770, 1
        %v3772 = vmax.f32 %v3770, %v3771
        %v3773 = vsel %vm3275, %v2236, -inf
        %v3774 = vrot.slane %v3773, 4
        %v3775 = vmax.f32 %v3773, %v3774
        %v3776 = vrot.slane %v3775, 2
        %v3777 = vmax.f32 %v3775, %v3776
        %v3778 = vrot.slane %v3777, 1
        %v3779 = vmax.f32 %v3777, %v3778
        %v3780 = vsel %vm3275, %v2244, -inf
        %v3781 = vrot.slane %v3780, 4
        %v3782 = vmax.f32 %v3780, %v3781
        %v3783 = vrot.slane %v3782, 2
        %v3784 = vmax.f32 %v3782, %v3783
        %v3785 = vrot.slane %v3784, 1
        %v3786 = vmax.f32 %v3784, %v3785
        %v3787 = vsel %vm3275, %v2252, -inf
        %v3788 = vrot.slane %v3787, 4
        %v3789 = vmax.f32 %v3787, %v3788
        %v3790 = vrot.slane %v3789, 2
        %v3791 = vmax.f32 %v3789, %v3790
        %v3792 = vrot.slane %v3791, 1
        %v3793 = vmax.f32 %v3791, %v3792
        %v3794 = vsel %vm3275, %v2251, -inf
        %v3795 = vrot.slane %v3794, 4
        %v3796 = vmax.f32 %v3794, %v3795
        %v3797 = vrot.slane %v3796, 2
        %v3798 = vmax.f32 %v3796, %v3797
        %v3799 = vrot.slane %v3798, 1
        %v3800 = vmax.f32 %v3798, %v3799
        %v3801 = vsel %vm3275, %v2253, -inf
        %v3802 = vrot.slane %v3801, 4
        %v3803 = vmax.f32 %v3801, %v3802
        %v3804 = vrot.slane %v3803, 2
        %v3805 = vmax.f32 %v3803, %v3804
        %v3806 = vrot.slane %v3805, 1
        %v3807 = vmax.f32 %v3805, %v3806
        %v3808 = vsel %vm3275, %v2261, -inf
        %v3809 = vrot.slane %v3808, 4
        %v3810 = vmax.f32 %v3808, %v3809
        %v3811 = vrot.slane %v3810, 2
        %v3812 = vmax.f32 %v3810, %v3811
        %v3813 = vrot.slane %v3812, 1
        %v3814 = vmax.f32 %v3812, %v3813
        %v3815 = vsel %vm3275, %v2269, -inf
        %v3816 = vrot.slane %v3815, 4
        %v3817 = vmax.f32 %v3815, %v3816
        %v3818 = vrot.slane %v3817, 2
        %v3819 = vmax.f32 %v3817, %v3818
        %v3820 = vrot.slane %v3819, 1
        %v3821 = vmax.f32 %v3819, %v3820
        %v3822 = vsel %vm3275, %v2268, -inf
        %v3823 = vrot.slane %v3822, 4
        %v3824 = vmax.f32 %v3822, %v3823
        %v3825 = vrot.slane %v3824, 2
        %v3826 = vmax.f32 %v3824, %v3825
        %v3827 = vrot.slane %v3826, 1
        %v3828 = vmax.f32 %v3826, %v3827
        %v3829 = vsel %vm3275, %v2270, -inf
        %v3830 = vrot.slane %v3829, 4
        %v3831 = vmax.f32 %v3829, %v3830
        %v3832 = vrot.slane %v3831, 2
        %v3833 = vmax.f32 %v3831, %v3832
        %v3834 = vrot.slane %v3833, 1
        %v3835 = vmax.f32 %v3833, %v3834
        %v3836 = vsel %vm3275, %v2278, -inf
        %v3837 = vrot.slane %v3836, 4
        %v3838 = vmax.f32 %v3836, %v3837
        %v3839 = vrot.slane %v3838, 2
        %v3840 = vmax.f32 %v3838, %v3839
        %v3841 = vrot.slane %v3840, 1
        %v3842 = vmax.f32 %v3840, %v3841
        %v3843 = vsel %vm3275, %v2286, -inf
        %v3844 = vrot.slane %v3843, 4
        %v3845 = vmax.f32 %v3843, %v3844
        %v3846 = vrot.slane %v3845, 2
        %v3847 = vmax.f32 %v3845, %v3846
        %v3848 = vrot.slane %v3847, 1
        %v3849 = vmax.f32 %v3847, %v3848
        %v3850 = vsel %vm3275, %v2285, -inf
        %v3851 = vrot.slane %v3850, 4
        %v3852 = vmax.f32 %v3850, %v3851
        %v3853 = vrot.slane %v3852, 2
        %v3854 = vmax.f32 %v3852, %v3853
        %v3855 = vrot.slane %v3854, 1
        %v3856 = vmax.f32 %v3854, %v3855
        %v3857 = vsel %vm3275, %v2287, -inf
        %v3858 = vrot.slane %v3857, 4
        %v3859 = vmax.f32 %v3857, %v3858
        %v3860 = vrot.slane %v3859, 2
        %v3861 = vmax.f32 %v3859, %v3860
        %v3862 = vrot.slane %v3861, 1
        %v3863 = vmax.f32 %v3861, %v3862
        %v3864 = vsel %vm3275, %v2295, -inf
        %v3865 = vrot.slane %v3864, 4
        %v3866 = vmax.f32 %v3864, %v3865
        %v3867 = vrot.slane %v3866, 2
        %v3868 = vmax.f32 %v3866, %v3867
        %v3869 = vrot.slane %v3868, 1
        %v3870 = vmax.f32 %v3868, %v3869
        %v3871 = vsel %vm3275, %v2303, -inf
        %v3872 = vrot.slane %v3871, 4
        %v3873 = vmax.f32 %v3871, %v3872
        %v3874 = vrot.slane %v3873, 2
        %v3875 = vmax.f32 %v3873, %v3874
        %v3876 = vrot.slane %v3875, 1
        %v3877 = vmax.f32 %v3875, %v3876
        %v3878 = vsel %vm3275, %v2302, -inf
        %v3879 = vrot.slane %v3878, 4
        %v3880 = vmax.f32 %v3878, %v3879
        %v3881 = vrot.slane %v3880, 2
        %v3882 = vmax.f32 %v3880, %v3881
        %v3883 = vrot.slane %v3882, 1
        %v3884 = vmax.f32 %v3882, %v3883
        %v3885 = vsel %vm3275, %v2304, -inf
        %v3886 = vrot.slane %v3885, 4
        %v3887 = vmax.f32 %v3885, %v3886
        %v3888 = vrot.slane %v3887, 2
        %v3889 = vmax.f32 %v3887, %v3888
        %v3890 = vrot.slane %v3889, 1
        %v3891 = vmax.f32 %v3889, %v3890
        %v3892 = vsel %vm3275, %v2312, -inf
        %v3893 = vrot.slane %v3892, 4
        %v3894 = vmax.f32 %v3892, %v3893
        %v3895 = vrot.slane %v3894, 2
        %v3896 = vmax.f32 %v3894, %v3895
        %v3897 = vrot.slane %v3896, 1
        %v3898 = vmax.f32 %v3896, %v3897
        %v3899 = vsel %vm3275, %v2320, -inf
        %v3900 = vrot.slane %v3899, 4
        %v3901 = vmax.f32 %v3899, %v3900
        %v3902 = vrot.slane %v3901, 2
        %v3903 = vmax.f32 %v3901, %v3902
        %v3904 = vrot.slane %v3903, 1
        %v3905 = vmax.f32 %v3903, %v3904
        %v3906 = vsel %vm3275, %v2319, -inf
        %v3907 = vrot.slane %v3906, 4
        %v3908 = vmax.f32 %v3906, %v3907
        %v3909 = vrot.slane %v3908, 2
        %v3910 = vmax.f32 %v3908, %v3909
        %v3911 = vrot.slane %v3910, 1
        %v3912 = vmax.f32 %v3910, %v3911
        %v3913 = vsel %vm3275, %v2321, -inf
        %v3914 = vrot.slane %v3913, 4
        %v3915 = vmax.f32 %v3913, %v3914
        %v3916 = vrot.slane %v3915, 2
        %v3917 = vmax.f32 %v3915, %v3916
        %v3918 = vrot.slane %v3917, 1
        %v3919 = vmax.f32 %v3917, %v3918
        %v3920 = vsel %vm3275, %v2329, -inf
        %v3921 = vrot.slane %v3920, 4
        %v3922 = vmax.f32 %v3920, %v3921
        %v3923 = vrot.slane %v3922, 2
        %v3924 = vmax.f32 %v3922, %v3923
        %v3925 = vrot.slane %v3924, 1
        %v3926 = vmax.f32 %v3924, %v3925
        %v3927 = vsel %vm3275, %v2337, -inf
        %v3928 = vrot.slane %v3927, 4
        %v3929 = vmax.f32 %v3927, %v3928
        %v3930 = vrot.slane %v3929, 2
        %v3931 = vmax.f32 %v3929, %v3930
        %v3932 = vrot.slane %v3931, 1
        %v3933 = vmax.f32 %v3931, %v3932
        %v3934 = vsel %vm3275, %v2336, -inf
        %v3935 = vrot.slane %v3934, 4
        %v3936 = vmax.f32 %v3934, %v3935
        %v3937 = vrot.slane %v3936, 2
        %v3938 = vmax.f32 %v3936, %v3937
        %v3939 = vrot.slane %v3938, 1
        %v3940 = vmax.f32 %v3938, %v3939
        %v3941 = vsel %vm3275, %v2338, -inf
        %v3942 = vrot.slane %v3941, 4
        %v3943 = vmax.f32 %v3941, %v3942
        %v3944 = vrot.slane %v3943, 2
        %v3945 = vmax.f32 %v3943, %v3944
        %v3946 = vrot.slane %v3945, 1
        %v3947 = vmax.f32 %v3945, %v3946
        %v3948 = vsel %vm3275, %v2346, -inf
        %v3949 = vrot.slane %v3948, 4
        %v3950 = vmax.f32 %v3948, %v3949
        %v3951 = vrot.slane %v3950, 2
        %v3952 = vmax.f32 %v3950, %v3951
        %v3953 = vrot.slane %v3952, 1
        %v3954 = vmax.f32 %v3952, %v3953
        %v3955 = vsel %vm3275, %v2354, -inf
        %v3956 = vrot.slane %v3955, 4
        %v3957 = vmax.f32 %v3955, %v3956
        %v3958 = vrot.slane %v3957, 2
        %v3959 = vmax.f32 %v3957, %v3958
        %v3960 = vrot.slane %v3959, 1
        %v3961 = vmax.f32 %v3959, %v3960
        %v3962 = vsel %vm3275, %v2353, -inf
        %v3963 = vrot.slane %v3962, 4
        %v3964 = vmax.f32 %v3962, %v3963
        %v3965 = vrot.slane %v3964, 2
        %v3966 = vmax.f32 %v3964, %v3965
        %v3967 = vrot.slane %v3966, 1
        %v3968 = vmax.f32 %v3966, %v3967
        %v3969 = vsel %vm3275, %v2355, -inf
        %v3970 = vrot.slane %v3969, 4
        %v3971 = vmax.f32 %v3969, %v3970
        %v3972 = vrot.slane %v3971, 2
        %v3973 = vmax.f32 %v3971, %v3972
        %v3974 = vrot.slane %v3973, 1
        %v3975 = vmax.f32 %v3973, %v3974
        %v3976 = vsel %vm3275, %v2363, -inf
        %v3977 = vrot.slane %v3976, 4
        %v3978 = vmax.f32 %v3976, %v3977
        %v3979 = vrot.slane %v3978, 2
        %v3980 = vmax.f32 %v3978, %v3979
        %v3981 = vrot.slane %v3980, 1
        %v3982 = vmax.f32 %v3980, %v3981
        %v3983 = vsel %vm3275, %v2371, -inf
        %v3984 = vrot.slane %v3983, 4
        %v3985 = vmax.f32 %v3983, %v3984
        %v3986 = vrot.slane %v3985, 2
        %v3987 = vmax.f32 %v3985, %v3986
        %v3988 = vrot.slane %v3987, 1
        %v3989 = vmax.f32 %v3987, %v3988
        %v3990 = vsel %vm3275, %v2370, -inf
        %v3991 = vrot.slane %v3990, 4
        %v3992 = vmax.f32 %v3990, %v3991
        %v3993 = vrot.slane %v3992, 2
        %v3994 = vmax.f32 %v3992, %v3993
        %v3995 = vrot.slane %v3994, 1
        %v3996 = vmax.f32 %v3994, %v3995
        %v3997 = vsel %vm3275, %v2372, -inf
        %v3998 = vrot.slane %v3997, 4
        %v3999 = vmax.f32 %v3997, %v3998
        %v4000 = vrot.slane %v3999, 2
        %v4001 = vmax.f32 %v3999, %v4000
        %v4002 = vrot.slane %v4001, 1
        %v4003 = vmax.f32 %v4001, %v4002
        %v4004 = vsel %vm3275, %v2380, -inf
        %v4005 = vrot.slane %v4004, 4
        %v4006 = vmax.f32 %v4004, %v4005
        %v4007 = vrot.slane %v4006, 2
        %v4008 = vmax.f32 %v4006, %v4007
        %v4009 = vrot.slane %v4008, 1
        %v4010 = vmax.f32 %v4008, %v4009
        %v4011 = vsel %vm3275, %v2388, -inf
        %v4012 = vrot.slane %v4011, 4
        %v4013 = vmax.f32 %v4011, %v4012
        %v4014 = vrot.slane %v4013, 2
        %v4015 = vmax.f32 %v4013, %v4014
        %v4016 = vrot.slane %v4015, 1
        %v4017 = vmax.f32 %v4015, %v4016
        %v4018 = vsel %vm3275, %v2387, -inf
        %v4019 = vrot.slane %v4018, 4
        %v4020 = vmax.f32 %v4018, %v4019
        %v4021 = vrot.slane %v4020, 2
        %v4022 = vmax.f32 %v4020, %v4021
        %v4023 = vrot.slane %v4022, 1
        %v4024 = vmax.f32 %v4022, %v4023
        %v4025 = vsel %vm3275, %v2389, -inf
        %v4026 = vrot.slane %v4025, 4
        %v4027 = vmax.f32 %v4025, %v4026
        %v4028 = vrot.slane %v4027, 2
        %v4029 = vmax.f32 %v4027, %v4028
        %v4030 = vrot.slane %v4029, 1
        %v4031 = vmax.f32 %v4029, %v4030
        %v4032 = vsel %vm3275, %v2397, -inf
        %v4033 = vrot.slane %v4032, 4
        %v4034 = vmax.f32 %v4032, %v4033
        %v4035 = vrot.slane %v4034, 2
        %v4036 = vmax.f32 %v4034, %v4035
        %v4037 = vrot.slane %v4036, 1
        %v4038 = vmax.f32 %v4036, %v4037
        %v4039 = vsel %vm3275, %v2405, -inf
        %v4040 = vrot.slane %v4039, 4
        %v4041 = vmax.f32 %v4039, %v4040
        %v4042 = vrot.slane %v4041, 2
        %v4043 = vmax.f32 %v4041, %v4042
        %v4044 = vrot.slane %v4043, 1
        %v4045 = vmax.f32 %v4043, %v4044
        %v4046 = vsel %vm3275, %v2404, -inf
        %v4047 = vrot.slane %v4046, 4
        %v4048 = vmax.f32 %v4046, %v4047
        %v4049 = vrot.slane %v4048, 2
        %v4050 = vmax.f32 %v4048, %v4049
        %v4051 = vrot.slane %v4050, 1
        %v4052 = vmax.f32 %v4050, %v4051
        %v4053 = vsel %vm3275, %v2406, -inf
        %v4054 = vrot.slane %v4053, 4
        %v4055 = vmax.f32 %v4053, %v4054
        %v4056 = vrot.slane %v4055, 2
        %v4057 = vmax.f32 %v4055, %v4056
        %v4058 = vrot.slane %v4057, 1
        %v4059 = vmax.f32 %v4057, %v4058
        %v4060 = vsel %vm3275, %v2414, -inf
        %v4061 = vrot.slane %v4060, 4
        %v4062 = vmax.f32 %v4060, %v4061
        %v4063 = vrot.slane %v4062, 2
        %v4064 = vmax.f32 %v4062, %v4063
        %v4065 = vrot.slane %v4064, 1
        %v4066 = vmax.f32 %v4064, %v4065
        %v4067 = vsel %vm3275, %v2422, -inf
        %v4068 = vrot.slane %v4067, 4
        %v4069 = vmax.f32 %v4067, %v4068
        %v4070 = vrot.slane %v4069, 2
        %v4071 = vmax.f32 %v4069, %v4070
        %v4072 = vrot.slane %v4071, 1
        %v4073 = vmax.f32 %v4071, %v4072
        %v4074 = vsel %vm3275, %v2421, -inf
        %v4075 = vrot.slane %v4074, 4
        %v4076 = vmax.f32 %v4074, %v4075
        %v4077 = vrot.slane %v4076, 2
        %v4078 = vmax.f32 %v4076, %v4077
        %v4079 = vrot.slane %v4078, 1
        %v4080 = vmax.f32 %v4078, %v4079
        %v4081 = vsel %vm3275, %v2423, -inf
        %v4082 = vrot.slane %v4081, 4
        %v4083 = vmax.f32 %v4081, %v4082
        %v4084 = vrot.slane %v4083, 2
        %v4085 = vmax.f32 %v4083, %v4084
        %v4086 = vrot.slane %v4085, 1
        %v4087 = vmax.f32 %v4085, %v4086
        %v4088 = vsel %vm3275, %v2431, -inf
        %v4089 = vrot.slane %v4088, 4
        %v4090 = vmax.f32 %v4088, %v4089
        %v4091 = vrot.slane %v4090, 2
        %v4092 = vmax.f32 %v4090, %v4091
        %v4093 = vrot.slane %v4092, 1
        %v4094 = vmax.f32 %v4092, %v4093
        %v4095 = vsel %vm3275, %v2439, -inf
        %v4096 = vrot.slane %v4095, 4
        %v4097 = vmax.f32 %v4095, %v4096
        %v4098 = vrot.slane %v4097, 2
        %v4099 = vmax.f32 %v4097, %v4098
        %v4100 = vrot.slane %v4099, 1
        %v4101 = vmax.f32 %v4099, %v4100
        %v4102 = vsel %vm3275, %v2438, -inf
        %v4103 = vrot.slane %v4102, 4
        %v4104 = vmax.f32 %v4102, %v4103
        %v4105 = vrot.slane %v4104, 2
        %v4106 = vmax.f32 %v4104, %v4105
        %v4107 = vrot.slane %v4106, 1
        %v4108 = vmax.f32 %v4106, %v4107
        %v4109 = vsel %vm3275, %v2440, -inf
        %v4110 = vrot.slane %v4109, 4
        %v4111 = vmax.f32 %v4109, %v4110
        %v4112 = vrot.slane %v4111, 2
        %v4113 = vmax.f32 %v4111, %v4112
        %v4114 = vrot.slane %v4113, 1
        %v4115 = vmax.f32 %v4113, %v4114
        %v4116 = vsel %vm3275, %v2448, -inf
        %v4117 = vrot.slane %v4116, 4
        %v4118 = vmax.f32 %v4116, %v4117
        %v4119 = vrot.slane %v4118, 2
        %v4120 = vmax.f32 %v4118, %v4119
        %v4121 = vrot.slane %v4120, 1
        %v4122 = vmax.f32 %v4120, %v4121
        %v4123 = vsel %vm3275, %v2456, -inf
        %v4124 = vrot.slane %v4123, 4
        %v4125 = vmax.f32 %v4123, %v4124
        %v4126 = vrot.slane %v4125, 2
        %v4127 = vmax.f32 %v4125, %v4126
        %v4128 = vrot.slane %v4127, 1
        %v4129 = vmax.f32 %v4127, %v4128
        %v4130 = vsel %vm3275, %v2455, -inf
        %v4131 = vrot.slane %v4130, 4
        %v4132 = vmax.f32 %v4130, %v4131
        %v4133 = vrot.slane %v4132, 2
        %v4134 = vmax.f32 %v4132, %v4133
        %v4135 = vrot.slane %v4134, 1
        %v4136 = vmax.f32 %v4134, %v4135
        %v4137 = vsel %vm3275, %v2457, -inf
        %v4138 = vrot.slane %v4137, 4
        %v4139 = vmax.f32 %v4137, %v4138
        %v4140 = vrot.slane %v4139, 2
        %v4141 = vmax.f32 %v4139, %v4140
        %v4142 = vrot.slane %v4141, 1
        %v4143 = vmax.f32 %v4141, %v4142
        %v4144 = vsel %vm3275, %v2465, -inf
        %v4145 = vrot.slane %v4144, 4
        %v4146 = vmax.f32 %v4144, %v4145
        %v4147 = vrot.slane %v4146, 2
        %v4148 = vmax.f32 %v4146, %v4147
        %v4149 = vrot.slane %v4148, 1
        %v4150 = vmax.f32 %v4148, %v4149
        %v4151 = vsel %vm3275, %v2473, -inf
        %v4152 = vrot.slane %v4151, 4
        %v4153 = vmax.f32 %v4151, %v4152
        %v4154 = vrot.slane %v4153, 2
        %v4155 = vmax.f32 %v4153, %v4154
        %v4156 = vrot.slane %v4155, 1
        %v4157 = vmax.f32 %v4155, %v4156
        %v4158 = vsel %vm3275, %v2472, -inf
        %v4159 = vrot.slane %v4158, 4
        %v4160 = vmax.f32 %v4158, %v4159
        %v4161 = vrot.slane %v4160, 2
        %v4162 = vmax.f32 %v4160, %v4161
        %v4163 = vrot.slane %v4162, 1
        %v4164 = vmax.f32 %v4162, %v4163
        %v4165 = vsel %vm3275, %v2474, -inf
        %v4166 = vrot.slane %v4165, 4
        %v4167 = vmax.f32 %v4165, %v4166
        %v4168 = vrot.slane %v4167, 2
        %v4169 = vmax.f32 %v4167, %v4168
        %v4170 = vrot.slane %v4169, 1
        %v4171 = vmax.f32 %v4169, %v4170
        %v4172 = vsel %vm3275, %v2482, -inf
        %v4173 = vrot.slane %v4172, 4
        %v4174 = vmax.f32 %v4172, %v4173
        %v4175 = vrot.slane %v4174, 2
        %v4176 = vmax.f32 %v4174, %v4175
        %v4177 = vrot.slane %v4176, 1
        %v4178 = vmax.f32 %v4176, %v4177
        %v4179 = vsel %vm3275, %v2490, -inf
        %v4180 = vrot.slane %v4179, 4
        %v4181 = vmax.f32 %v4179, %v4180
        %v4182 = vrot.slane %v4181, 2
        %v4183 = vmax.f32 %v4181, %v4182
        %v4184 = vrot.slane %v4183, 1
        %v4185 = vmax.f32 %v4183, %v4184
        %v4186 = vsel %vm3275, %v2489, -inf
        %v4187 = vrot.slane %v4186, 4
        %v4188 = vmax.f32 %v4186, %v4187
        %v4189 = vrot.slane %v4188, 2
        %v4190 = vmax.f32 %v4188, %v4189
        %v4191 = vrot.slane %v4190, 1
        %v4192 = vmax.f32 %v4190, %v4191
        %v4193 = vsel %vm3275, %v2491, -inf
        %v4194 = vrot.slane %v4193, 4
        %v4195 = vmax.f32 %v4193, %v4194
        %v4196 = vrot.slane %v4195, 2
        %v4197 = vmax.f32 %v4195, %v4196
        %v4198 = vrot.slane %v4197, 1
        %v4199 = vmax.f32 %v4197, %v4198
        %v4200 = vsel %vm3275, %v2499, -inf
        %v4201 = vrot.slane %v4200, 4
        %v4202 = vmax.f32 %v4200, %v4201
        %v4203 = vrot.slane %v4202, 2
        %v4204 = vmax.f32 %v4202, %v4203
        %v4205 = vrot.slane %v4204, 1
        %v4206 = vmax.f32 %v4204, %v4205
        %v4207 = vsel %vm3275, %v2507, -inf
        %v4208 = vrot.slane %v4207, 4
        %v4209 = vmax.f32 %v4207, %v4208
        %v4210 = vrot.slane %v4209, 2
        %v4211 = vmax.f32 %v4209, %v4210
        %v4212 = vrot.slane %v4211, 1
        %v4213 = vmax.f32 %v4211, %v4212
        %v4214 = vsel %vm3275, %v2506, -inf
        %v4215 = vrot.slane %v4214, 4
        %v4216 = vmax.f32 %v4214, %v4215
        %v4217 = vrot.slane %v4216, 2
        %v4218 = vmax.f32 %v4216, %v4217
        %v4219 = vrot.slane %v4218, 1
        %v4220 = vmax.f32 %v4218, %v4219
        %v4221 = vsel %vm3275, %v2508, -inf
        %v4222 = vrot.slane %v4221, 4
        %v4223 = vmax.f32 %v4221, %v4222
        %v4224 = vrot.slane %v4223, 2
        %v4225 = vmax.f32 %v4223, %v4224
        %v4226 = vrot.slane %v4225, 1
        %v4227 = vmax.f32 %v4225, %v4226
        %v4228 = vsel %vm3275, %v2516, -inf
        %v4229 = vrot.slane %v4228, 4
        %v4230 = vmax.f32 %v4228, %v4229
        %v4231 = vrot.slane %v4230, 2
        %v4232 = vmax.f32 %v4230, %v4231
        %v4233 = vrot.slane %v4232, 1
        %v4234 = vmax.f32 %v4232, %v4233
        %v4235 = vsel %vm3275, %v2524, -inf
        %v4236 = vrot.slane %v4235, 4
        %v4237 = vmax.f32 %v4235, %v4236
        %v4238 = vrot.slane %v4237, 2
        %v4239 = vmax.f32 %v4237, %v4238
        %v4240 = vrot.slane %v4239, 1
        %v4241 = vmax.f32 %v4239, %v4240
        %v4242 = vsel %vm3275, %v2523, -inf
        %v4243 = vrot.slane %v4242, 4
        %v4244 = vmax.f32 %v4242, %v4243
        %v4245 = vrot.slane %v4244, 2
        %v4246 = vmax.f32 %v4244, %v4245
        %v4247 = vrot.slane %v4246, 1
        %v4248 = vmax.f32 %v4246, %v4247
        %v4249 = vsel %vm3275, %v2525, -inf
        %v4250 = vrot.slane %v4249, 4
        %v4251 = vmax.f32 %v4249, %v4250
        %v4252 = vrot.slane %v4251, 2
        %v4253 = vmax.f32 %v4251, %v4252
        %v4254 = vrot.slane %v4253, 1
        %v4255 = vmax.f32 %v4253, %v4254
        %v4256 = vsel %vm3275, %v2533, -inf
        %v4257 = vrot.slane %v4256, 4
        %v4258 = vmax.f32 %v4256, %v4257
        %v4259 = vrot.slane %v4258, 2
        %v4260 = vmax.f32 %v4258, %v4259
        %v4261 = vrot.slane %v4260, 1
        %v4262 = vmax.f32 %v4260, %v4261
        %v4263 = vsel %vm3275, %v2541, -inf
        %v4264 = vrot.slane %v4263, 4
        %v4265 = vmax.f32 %v4263, %v4264
        %v4266 = vrot.slane %v4265, 2
        %v4267 = vmax.f32 %v4265, %v4266
        %v4268 = vrot.slane %v4267, 1
        %v4269 = vmax.f32 %v4267, %v4268
        %v4270 = vsel %vm3275, %v2540, -inf
        %v4271 = vrot.slane %v4270, 4
        %v4272 = vmax.f32 %v4270, %v4271
        %v4273 = vrot.slane %v4272, 2
        %v4274 = vmax.f32 %v4272, %v4273
        %v4275 = vrot.slane %v4274, 1
        %v4276 = vmax.f32 %v4274, %v4275
        %v4277 = vsel %vm3275, %v2542, -inf
        %v4278 = vrot.slane %v4277, 4
        %v4279 = vmax.f32 %v4277, %v4278
        %v4280 = vrot.slane %v4279, 2
        %v4281 = vmax.f32 %v4279, %v4280
        %v4282 = vrot.slane %v4281, 1
        %v4283 = vmax.f32 %v4281, %v4282
        %v4284 = vsel %vm3275, %v2550, -inf
        %v4285 = vrot.slane %v4284, 4
        %v4286 = vmax.f32 %v4284, %v4285
        %v4287 = vrot.slane %v4286, 2
        %v4288 = vmax.f32 %v4286, %v4287
        %v4289 = vrot.slane %v4288, 1
        %v4290 = vmax.f32 %v4288, %v4289
        %v4291 = vsel %vm3275, %v2558, -inf
        %v4292 = vrot.slane %v4291, 4
        %v4293 = vmax.f32 %v4291, %v4292
        %v4294 = vrot.slane %v4293, 2
        %v4295 = vmax.f32 %v4293, %v4294
        %v4296 = vrot.slane %v4295, 1
        %v4297 = vmax.f32 %v4295, %v4296
        %v4298 = vsel %vm3275, %v2557, -inf
        %v4299 = vrot.slane %v4298, 4
        %v4300 = vmax.f32 %v4298, %v4299
        %v4301 = vrot.slane %v4300, 2
        %v4302 = vmax.f32 %v4300, %v4301
        %v4303 = vrot.slane %v4302, 1
        %v4304 = vmax.f32 %v4302, %v4303
        %v4305 = vsel %vm3275, %v2559, -inf
        %v4306 = vrot.slane %v4305, 4
        %v4307 = vmax.f32 %v4305, %v4306
        %v4308 = vrot.slane %v4307, 2
        %v4309 = vmax.f32 %v4307, %v4308
        %v4310 = vrot.slane %v4309, 1
        %v4311 = vmax.f32 %v4309, %v4310
        %v4312 = vsel %vm3275, %v2567, -inf
        %v4313 = vrot.slane %v4312, 4
        %v4314 = vmax.f32 %v4312, %v4313
        %v4315 = vrot.slane %v4314, 2
        %v4316 = vmax.f32 %v4314, %v4315
        %v4317 = vrot.slane %v4316, 1
        %v4318 = vmax.f32 %v4316, %v4317
        %v4319 = vsel %vm3275, %v2575, -inf
        %v4320 = vrot.slane %v4319, 4
        %v4321 = vmax.f32 %v4319, %v4320
        %v4322 = vrot.slane %v4321, 2
        %v4323 = vmax.f32 %v4321, %v4322
        %v4324 = vrot.slane %v4323, 1
        %v4325 = vmax.f32 %v4323, %v4324
        %v4326 = vsel %vm3275, %v2574, -inf
        %v4327 = vrot.slane %v4326, 4
        %v4328 = vmax.f32 %v4326, %v4327
        %v4329 = vrot.slane %v4328, 2
        %v4330 = vmax.f32 %v4328, %v4329
        %v4331 = vrot.slane %v4330, 1
        %v4332 = vmax.f32 %v4330, %v4331
        %v4333 = vsel %vm3275, %v2576, -inf
        %v4334 = vrot.slane %v4333, 4
        %v4335 = vmax.f32 %v4333, %v4334
        %v4336 = vrot.slane %v4335, 2
        %v4337 = vmax.f32 %v4335, %v4336
        %v4338 = vrot.slane %v4337, 1
        %v4339 = vmax.f32 %v4337, %v4338
        %v4340 = vsel %vm3275, %v2584, -inf
        %v4341 = vrot.slane %v4340, 4
        %v4342 = vmax.f32 %v4340, %v4341
        %v4343 = vrot.slane %v4342, 2
        %v4344 = vmax.f32 %v4342, %v4343
        %v4345 = vrot.slane %v4344, 1
        %v4346 = vmax.f32 %v4344, %v4345
        %v4347 = vsel %vm3275, %v2592, -inf
        %v4348 = vrot.slane %v4347, 4
        %v4349 = vmax.f32 %v4347, %v4348
        %v4350 = vrot.slane %v4349, 2
        %v4351 = vmax.f32 %v4349, %v4350
        %v4352 = vrot.slane %v4351, 1
        %v4353 = vmax.f32 %v4351, %v4352
        %v4354 = vsel %vm3275, %v2591, -inf
        %v4355 = vrot.slane %v4354, 4
        %v4356 = vmax.f32 %v4354, %v4355
        %v4357 = vrot.slane %v4356, 2
        %v4358 = vmax.f32 %v4356, %v4357
        %v4359 = vrot.slane %v4358, 1
        %v4360 = vmax.f32 %v4358, %v4359
        %v4361 = vsel %vm3275, %v2593, -inf
        %v4362 = vrot.slane %v4361, 4
        %v4363 = vmax.f32 %v4361, %v4362
        %v4364 = vrot.slane %v4363, 2
        %v4365 = vmax.f32 %v4363, %v4364
        %v4366 = vrot.slane %v4365, 1
        %v4367 = vmax.f32 %v4365, %v4366
        %v4368 = vsel %vm3275, %v2601, -inf
        %v4369 = vrot.slane %v4368, 4
        %v4370 = vmax.f32 %v4368, %v4369
        %v4371 = vrot.slane %v4370, 2
        %v4372 = vmax.f32 %v4370, %v4371
        %v4373 = vrot.slane %v4372, 1
        %v4374 = vmax.f32 %v4372, %v4373
        %v4375 = vsel %vm3275, %v2609, -inf
        %v4376 = vrot.slane %v4375, 4
        %v4377 = vmax.f32 %v4375, %v4376
        %v4378 = vrot.slane %v4377, 2
        %v4379 = vmax.f32 %v4377, %v4378
        %v4380 = vrot.slane %v4379, 1
        %v4381 = vmax.f32 %v4379, %v4380
        %v4382 = vsel %vm3275, %v2608, -inf
        %v4383 = vrot.slane %v4382, 4
        %v4384 = vmax.f32 %v4382, %v4383
        %v4385 = vrot.slane %v4384, 2
        %v4386 = vmax.f32 %v4384, %v4385
        %v4387 = vrot.slane %v4386, 1
        %v4388 = vmax.f32 %v4386, %v4387
        %v4389 = vsel %vm3275, %v2610, -inf
        %v4390 = vrot.slane %v4389, 4
        %v4391 = vmax.f32 %v4389, %v4390
        %v4392 = vrot.slane %v4391, 2
        %v4393 = vmax.f32 %v4391, %v4392
        %v4394 = vrot.slane %v4393, 1
        %v4395 = vmax.f32 %v4393, %v4394
        %v4396 = vsel %vm3275, %v2618, -inf
        %v4397 = vrot.slane %v4396, 4
        %v4398 = vmax.f32 %v4396, %v4397
        %v4399 = vrot.slane %v4398, 2
        %v4400 = vmax.f32 %v4398, %v4399
        %v4401 = vrot.slane %v4400, 1
        %v4402 = vmax.f32 %v4400, %v4401
        %v4403 = vsel %vm3275, %v2626, -inf
        %v4404 = vrot.slane %v4403, 4
        %v4405 = vmax.f32 %v4403, %v4404
        %v4406 = vrot.slane %v4405, 2
        %v4407 = vmax.f32 %v4405, %v4406
        %v4408 = vrot.slane %v4407, 1
        %v4409 = vmax.f32 %v4407, %v4408
        %v4410 = vsel %vm3275, %v2625, -inf
        %v4411 = vrot.slane %v4410, 4
        %v4412 = vmax.f32 %v4410, %v4411
        %v4413 = vrot.slane %v4412, 2
        %v4414 = vmax.f32 %v4412, %v4413
        %v4415 = vrot.slane %v4414, 1
        %v4416 = vmax.f32 %v4414, %v4415
        %v4417 = vsel %vm3275, %v2627, -inf
        %v4418 = vrot.slane %v4417, 4
        %v4419 = vmax.f32 %v4417, %v4418
        %v4420 = vrot.slane %v4419, 2
        %v4421 = vmax.f32 %v4419, %v4420
        %v4422 = vrot.slane %v4421, 1
        %v4423 = vmax.f32 %v4421, %v4422
        %v4424 = vsel %vm3275, %v2635, -inf
        %v4425 = vrot.slane %v4424, 4
        %v4426 = vmax.f32 %v4424, %v4425
        %v4427 = vrot.slane %v4426, 2
        %v4428 = vmax.f32 %v4426, %v4427
        %v4429 = vrot.slane %v4428, 1
        %v4430 = vmax.f32 %v4428, %v4429
        %v4431 = vsel %vm3275, %v2643, -inf
        %v4432 = vrot.slane %v4431, 4
        %v4433 = vmax.f32 %v4431, %v4432
        %v4434 = vrot.slane %v4433, 2
        %v4435 = vmax.f32 %v4433, %v4434
        %v4436 = vrot.slane %v4435, 1
        %v4437 = vmax.f32 %v4435, %v4436
        %v4438 = vsel %vm3275, %v2642, -inf
        %v4439 = vrot.slane %v4438, 4
        %v4440 = vmax.f32 %v4438, %v4439
        %v4441 = vrot.slane %v4440, 2
        %v4442 = vmax.f32 %v4440, %v4441
        %v4443 = vrot.slane %v4442, 1
        %v4444 = vmax.f32 %v4442, %v4443
        %v4445 = vsel %vm3275, %v2644, -inf
        %v4446 = vrot.slane %v4445, 4
        %v4447 = vmax.f32 %v4445, %v4446
        %v4448 = vrot.slane %v4447, 2
        %v4449 = vmax.f32 %v4447, %v4448
        %v4450 = vrot.slane %v4449, 1
        %v4451 = vmax.f32 %v4449, %v4450
        %v4452 = vsel %vm3275, %v2652, -inf
        %v4453 = vrot.slane %v4452, 4
        %v4454 = vmax.f32 %v4452, %v4453
        %v4455 = vrot.slane %v4454, 2
        %v4456 = vmax.f32 %v4454, %v4455
        %v4457 = vrot.slane %v4456, 1
        %v4458 = vmax.f32 %v4456, %v4457
        %v4459 = vsel %vm3275, %v2660, -inf
        %v4460 = vrot.slane %v4459, 4
        %v4461 = vmax.f32 %v4459, %v4460
        %v4462 = vrot.slane %v4461, 2
        %v4463 = vmax.f32 %v4461, %v4462
        %v4464 = vrot.slane %v4463, 1
        %v4465 = vmax.f32 %v4463, %v4464
        %v4466 = vsel %vm3275, %v2659, -inf
        %v4467 = vrot.slane %v4466, 4
        %v4468 = vmax.f32 %v4466, %v4467
        %v4469 = vrot.slane %v4468, 2
        %v4470 = vmax.f32 %v4468, %v4469
        %v4471 = vrot.slane %v4470, 1
        %v4472 = vmax.f32 %v4470, %v4471
        %v4473 = vsel %vm3275, %v2661, -inf
        %v4474 = vrot.slane %v4473, 4
        %v4475 = vmax.f32 %v4473, %v4474
        %v4476 = vrot.slane %v4475, 2
        %v4477 = vmax.f32 %v4475, %v4476
        %v4478 = vrot.slane %v4477, 1
        %v4479 = vmax.f32 %v4477, %v4478
        %v4480 = vsel %vm3275, %v2669, -inf
        %v4481 = vrot.slane %v4480, 4
        %v4482 = vmax.f32 %v4480, %v4481
        %v4483 = vrot.slane %v4482, 2
        %v4484 = vmax.f32 %v4482, %v4483
        %v4485 = vrot.slane %v4484, 1
        %v4486 = vmax.f32 %v4484, %v4485
        %v4487 = vsel %vm3275, %v2677, -inf
        %v4488 = vrot.slane %v4487, 4
        %v4489 = vmax.f32 %v4487, %v4488
        %v4490 = vrot.slane %v4489, 2
        %v4491 = vmax.f32 %v4489, %v4490
        %v4492 = vrot.slane %v4491, 1
        %v4493 = vmax.f32 %v4491, %v4492
        %v4494 = vsel %vm3275, %v2676, -inf
        %v4495 = vrot.slane %v4494, 4
        %v4496 = vmax.f32 %v4494, %v4495
        %v4497 = vrot.slane %v4496, 2
        %v4498 = vmax.f32 %v4496, %v4497
        %v4499 = vrot.slane %v4498, 1
        %v4500 = vmax.f32 %v4498, %v4499
        %v4501 = vsel %vm3275, %v2678, -inf
        %v4502 = vrot.slane %v4501, 4
        %v4503 = vmax.f32 %v4501, %v4502
        %v4504 = vrot.slane %v4503, 2
        %v4505 = vmax.f32 %v4503, %v4504
        %v4506 = vrot.slane %v4505, 1
        %v4507 = vmax.f32 %v4505, %v4506
        %v4508 = vsel %vm3275, %v2686, -inf
        %v4509 = vrot.slane %v4508, 4
        %v4510 = vmax.f32 %v4508, %v4509
        %v4511 = vrot.slane %v4510, 2
        %v4512 = vmax.f32 %v4510, %v4511
        %v4513 = vrot.slane %v4512, 1
        %v4514 = vmax.f32 %v4512, %v4513
        %v4515 = vsel %vm3275, %v2694, -inf
        %v4516 = vrot.slane %v4515, 4
        %v4517 = vmax.f32 %v4515, %v4516
        %v4518 = vrot.slane %v4517, 2
        %v4519 = vmax.f32 %v4517, %v4518
        %v4520 = vrot.slane %v4519, 1
        %v4521 = vmax.f32 %v4519, %v4520
        %v4522 = vsel %vm3275, %v2693, -inf
        %v4523 = vrot.slane %v4522, 4
        %v4524 = vmax.f32 %v4522, %v4523
        %v4525 = vrot.slane %v4524, 2
        %v4526 = vmax.f32 %v4524, %v4525
        %v4527 = vrot.slane %v4526, 1
        %v4528 = vmax.f32 %v4526, %v4527
        %v4529 = vsel %vm3275, %v2695, -inf
        %v4530 = vrot.slane %v4529, 4
        %v4531 = vmax.f32 %v4529, %v4530
        %v4532 = vrot.slane %v4531, 2
        %v4533 = vmax.f32 %v4531, %v4532
        %v4534 = vrot.slane %v4533, 1
        %v4535 = vmax.f32 %v4533, %v4534
        %v4536 = vsel %vm3275, %v2703, -inf
        %v4537 = vrot.slane %v4536, 4
        %v4538 = vmax.f32 %v4536, %v4537
        %v4539 = vrot.slane %v4538, 2
        %v4540 = vmax.f32 %v4538, %v4539
        %v4541 = vrot.slane %v4540, 1
        %v4542 = vmax.f32 %v4540, %v4541
        %v4543 = vsel %vm3275, %v2711, -inf
        %v4544 = vrot.slane %v4543, 4
        %v4545 = vmax.f32 %v4543, %v4544
        %v4546 = vrot.slane %v4545, 2
        %v4547 = vmax.f32 %v4545, %v4546
        %v4548 = vrot.slane %v4547, 1
        %v4549 = vmax.f32 %v4547, %v4548
        %v4550 = vsel %vm3275, %v2710, -inf
        %v4551 = vrot.slane %v4550, 4
        %v4552 = vmax.f32 %v4550, %v4551
        %v4553 = vrot.slane %v4552, 2
        %v4554 = vmax.f32 %v4552, %v4553
        %v4555 = vrot.slane %v4554, 1
        %v4556 = vmax.f32 %v4554, %v4555
        %v4557 = vsel %vm3275, %v2712, -inf
        %v4558 = vrot.slane %v4557, 4
        %v4559 = vmax.f32 %v4557, %v4558
        %v4560 = vrot.slane %v4559, 2
        %v4561 = vmax.f32 %v4559, %v4560
        %v4562 = vrot.slane %v4561, 1
        %v4563 = vmax.f32 %v4561, %v4562
        %v4564 = vsel %vm3275, %v2720, -inf
        %v4565 = vrot.slane %v4564, 4
        %v4566 = vmax.f32 %v4564, %v4565
        %v4567 = vrot.slane %v4566, 2
        %v4568 = vmax.f32 %v4566, %v4567
        %v4569 = vrot.slane %v4568, 1
        %v4570 = vmax.f32 %v4568, %v4569
        %v4571 = vsel %vm3275, %v2728, -inf
        %v4572 = vrot.slane %v4571, 4
        %v4573 = vmax.f32 %v4571, %v4572
        %v4574 = vrot.slane %v4573, 2
        %v4575 = vmax.f32 %v4573, %v4574
        %v4576 = vrot.slane %v4575, 1
        %v4577 = vmax.f32 %v4575, %v4576
        %v4578 = vsel %vm3275, %v2727, -inf
        %v4579 = vrot.slane %v4578, 4
        %v4580 = vmax.f32 %v4578, %v4579
        %v4581 = vrot.slane %v4580, 2
        %v4582 = vmax.f32 %v4580, %v4581
        %v4583 = vrot.slane %v4582, 1
        %v4584 = vmax.f32 %v4582, %v4583
        %v4585 = vsel %vm3275, %v2729, -inf
        %v4586 = vrot.slane %v4585, 4
        %v4587 = vmax.f32 %v4585, %v4586
        %v4588 = vrot.slane %v4587, 2
        %v4589 = vmax.f32 %v4587, %v4588
        %v4590 = vrot.slane %v4589, 1
        %v4591 = vmax.f32 %v4589, %v4590
        %v4592 = vsel %vm3275, %v2737, -inf
        %v4593 = vrot.slane %v4592, 4
        %v4594 = vmax.f32 %v4592, %v4593
        %v4595 = vrot.slane %v4594, 2
        %v4596 = vmax.f32 %v4594, %v4595
        %v4597 = vrot.slane %v4596, 1
        %v4598 = vmax.f32 %v4596, %v4597
        %v4599 = vsel %vm3275, %v2745, -inf
        %v4600 = vrot.slane %v4599, 4
        %v4601 = vmax.f32 %v4599, %v4600
        %v4602 = vrot.slane %v4601, 2
        %v4603 = vmax.f32 %v4601, %v4602
        %v4604 = vrot.slane %v4603, 1
        %v4605 = vmax.f32 %v4603, %v4604
        %v4606 = vsel %vm3275, %v2744, -inf
        %v4607 = vrot.slane %v4606, 4
        %v4608 = vmax.f32 %v4606, %v4607
        %v4609 = vrot.slane %v4608, 2
        %v4610 = vmax.f32 %v4608, %v4609
        %v4611 = vrot.slane %v4610, 1
        %v4612 = vmax.f32 %v4610, %v4611
        %v4613 = vsel %vm3275, %v2746, -inf
        %v4614 = vrot.slane %v4613, 4
        %v4615 = vmax.f32 %v4613, %v4614
        %v4616 = vrot.slane %v4615, 2
        %v4617 = vmax.f32 %v4615, %v4616
        %v4618 = vrot.slane %v4617, 1
        %v4619 = vmax.f32 %v4617, %v4618
        %v4620 = vsel %vm3275, %v2754, -inf
        %v4621 = vrot.slane %v4620, 4
        %v4622 = vmax.f32 %v4620, %v4621
        %v4623 = vrot.slane %v4622, 2
        %v4624 = vmax.f32 %v4622, %v4623
        %v4625 = vrot.slane %v4624, 1
        %v4626 = vmax.f32 %v4624, %v4625
        %v4627 = vsel %vm3275, %v2762, -inf
        %v4628 = vrot.slane %v4627, 4
        %v4629 = vmax.f32 %v4627, %v4628
        %v4630 = vrot.slane %v4629, 2
        %v4631 = vmax.f32 %v4629, %v4630
        %v4632 = vrot.slane %v4631, 1
        %v4633 = vmax.f32 %v4631, %v4632
        %v4634 = vsel %vm3275, %v2761, -inf
        %v4635 = vrot.slane %v4634, 4
        %v4636 = vmax.f32 %v4634, %v4635
        %v4637 = vrot.slane %v4636, 2
        %v4638 = vmax.f32 %v4636, %v4637
        %v4639 = vrot.slane %v4638, 1
        %v4640 = vmax.f32 %v4638, %v4639
        %v4641 = vsel %vm3275, %v2763, -inf
        %v4642 = vrot.slane %v4641, 4
        %v4643 = vmax.f32 %v4641, %v4642
        %v4644 = vrot.slane %v4643, 2
        %v4645 = vmax.f32 %v4643, %v4644
        %v4646 = vrot.slane %v4645, 1
        %v4647 = vmax.f32 %v4645, %v4646
        %v4648 = vsel %vm3275, %v2771, -inf
        %v4649 = vrot.slane %v4648, 4
        %v4650 = vmax.f32 %v4648, %v4649
        %v4651 = vrot.slane %v4650, 2
        %v4652 = vmax.f32 %v4650, %v4651
        %v4653 = vrot.slane %v4652, 1
        %v4654 = vmax.f32 %v4652, %v4653
        %v4655 = vsel %vm3275, %v2779, -inf
        %v4656 = vrot.slane %v4655, 4
        %v4657 = vmax.f32 %v4655, %v4656
        %v4658 = vrot.slane %v4657, 2
        %v4659 = vmax.f32 %v4657, %v4658
        %v4660 = vrot.slane %v4659, 1
        %v4661 = vmax.f32 %v4659, %v4660
        %v4662 = vsel %vm3275, %v2778, -inf
        %v4663 = vrot.slane %v4662, 4
        %v4664 = vmax.f32 %v4662, %v4663
        %v4665 = vrot.slane %v4664, 2
        %v4666 = vmax.f32 %v4664, %v4665
        %v4667 = vrot.slane %v4666, 1
        %v4668 = vmax.f32 %v4666, %v4667
        %v4669 = vsel %vm3275, %v2780, -inf
        %v4670 = vrot.slane %v4669, 4
        %v4671 = vmax.f32 %v4669, %v4670
        %v4672 = vrot.slane %v4671, 2
        %v4673 = vmax.f32 %v4671, %v4672
        %v4674 = vrot.slane %v4673, 1
        %v4675 = vmax.f32 %v4673, %v4674
        %v4676 = vsel %vm3275, %v2788, -inf
        %v4677 = vrot.slane %v4676, 4
        %v4678 = vmax.f32 %v4676, %v4677
        %v4679 = vrot.slane %v4678, 2
        %v4680 = vmax.f32 %v4678, %v4679
        %v4681 = vrot.slane %v4680, 1
        %v4682 = vmax.f32 %v4680, %v4681
        %v4683 = vsel %vm3275, %v2796, -inf
        %v4684 = vrot.slane %v4683, 4
        %v4685 = vmax.f32 %v4683, %v4684
        %v4686 = vrot.slane %v4685, 2
        %v4687 = vmax.f32 %v4685, %v4686
        %v4688 = vrot.slane %v4687, 1
        %v4689 = vmax.f32 %v4687, %v4688
        %v4690 = vsel %vm3275, %v2795, -inf
        %v4691 = vrot.slane %v4690, 4
        %v4692 = vmax.f32 %v4690, %v4691
        %v4693 = vrot.slane %v4692, 2
        %v4694 = vmax.f32 %v4692, %v4693
        %v4695 = vrot.slane %v4694, 1
        %v4696 = vmax.f32 %v4694, %v4695
        %v4697 = vsel %vm3275, %v2797, -inf
        %v4698 = vrot.slane %v4697, 4
        %v4699 = vmax.f32 %v4697, %v4698
        %v4700 = vrot.slane %v4699, 2
        %v4701 = vmax.f32 %v4699, %v4700
        %v4702 = vrot.slane %v4701, 1
        %v4703 = vmax.f32 %v4701, %v4702
        %v4704 = vsel %vm3275, %v2805, -inf
        %v4705 = vrot.slane %v4704, 4
        %v4706 = vmax.f32 %v4704, %v4705
        %v4707 = vrot.slane %v4706, 2
        %v4708 = vmax.f32 %v4706, %v4707
        %v4709 = vrot.slane %v4708, 1
        %v4710 = vmax.f32 %v4708, %v4709
        %v4711 = vsel %vm3275, %v2813, -inf
        %v4712 = vrot.slane %v4711, 4
        %v4713 = vmax.f32 %v4711, %v4712
        %v4714 = vrot.slane %v4713, 2
        %v4715 = vmax.f32 %v4713, %v4714
        %v4716 = vrot.slane %v4715, 1
        %v4717 = vmax.f32 %v4715, %v4716
        %v4718 = vsel %vm3275, %v2812, -inf
        %v4719 = vrot.slane %v4718, 4
        %v4720 = vmax.f32 %v4718, %v4719
        %v4721 = vrot.slane %v4720, 2
        %v4722 = vmax.f32 %v4720, %v4721
        %v4723 = vrot.slane %v4722, 1
        %v4724 = vmax.f32 %v4722, %v4723
        %v4725 = vsel %vm3275, %v2814, -inf
        %v4726 = vrot.slane %v4725, 4
        %v4727 = vmax.f32 %v4725, %v4726
        %v4728 = vrot.slane %v4727, 2
        %v4729 = vmax.f32 %v4727, %v4728
        %v4730 = vrot.slane %v4729, 1
        %v4731 = vmax.f32 %v4729, %v4730
        %v4732 = vsel %vm3275, %v2822, -inf
        %v4733 = vrot.slane %v4732, 4
        %v4734 = vmax.f32 %v4732, %v4733
        %v4735 = vrot.slane %v4734, 2
        %v4736 = vmax.f32 %v4734, %v4735
        %v4737 = vrot.slane %v4736, 1
        %v4738 = vmax.f32 %v4736, %v4737
        %v4739 = vsel %vm3275, %v2830, -inf
        %v4740 = vrot.slane %v4739, 4
        %v4741 = vmax.f32 %v4739, %v4740
        %v4742 = vrot.slane %v4741, 2
        %v4743 = vmax.f32 %v4741, %v4742
        %v4744 = vrot.slane %v4743, 1
        %v4745 = vmax.f32 %v4743, %v4744
        %v4746 = vsel %vm3275, %v2829, -inf
        %v4747 = vrot.slane %v4746, 4
        %v4748 = vmax.f32 %v4746, %v4747
        %v4749 = vrot.slane %v4748, 2
        %v4750 = vmax.f32 %v4748, %v4749
        %v4751 = vrot.slane %v4750, 1
        %v4752 = vmax.f32 %v4750, %v4751
        %v4753 = vsel %vm3275, %v2831, -inf
        %v4754 = vrot.slane %v4753, 4
        %v4755 = vmax.f32 %v4753, %v4754
        %v4756 = vrot.slane %v4755, 2
        %v4757 = vmax.f32 %v4755, %v4756
        %v4758 = vrot.slane %v4757, 1
        %v4759 = vmax.f32 %v4757, %v4758
        %v4760 = vsel %vm3275, %v2839, -inf
        %v4761 = vrot.slane %v4760, 4
        %v4762 = vmax.f32 %v4760, %v4761
        %v4763 = vrot.slane %v4762, 2
        %v4764 = vmax.f32 %v4762, %v4763
        %v4765 = vrot.slane %v4764, 1
        %v4766 = vmax.f32 %v4764, %v4765
        %v4767 = vsel %vm3275, %v2847, -inf
        %v4768 = vrot.slane %v4767, 4
        %v4769 = vmax.f32 %v4767, %v4768
        %v4770 = vrot.slane %v4769, 2
        %v4771 = vmax.f32 %v4769, %v4770
        %v4772 = vrot.slane %v4771, 1
        %v4773 = vmax.f32 %v4771, %v4772
        %v4774 = vsel %vm3275, %v2846, -inf
        %v4775 = vrot.slane %v4774, 4
        %v4776 = vmax.f32 %v4774, %v4775
        %v4777 = vrot.slane %v4776, 2
        %v4778 = vmax.f32 %v4776, %v4777
        %v4779 = vrot.slane %v4778, 1
        %v4780 = vmax.f32 %v4778, %v4779
        %v4781 = vsel %vm3275, %v2848, -inf
        %v4782 = vrot.slane %v4781, 4
        %v4783 = vmax.f32 %v4781, %v4782
        %v4784 = vrot.slane %v4783, 2
        %v4785 = vmax.f32 %v4783, %v4784
        %v4786 = vrot.slane %v4785, 1
        %v4787 = vmax.f32 %v4785, %v4786
        %v4788 = vsel %vm3275, %v2856, -inf
        %v4789 = vrot.slane %v4788, 4
        %v4790 = vmax.f32 %v4788, %v4789
        %v4791 = vrot.slane %v4790, 2
        %v4792 = vmax.f32 %v4790, %v4791
        %v4793 = vrot.slane %v4792, 1
        %v4794 = vmax.f32 %v4792, %v4793
        %v4795 = vsel %vm3275, %v2864, -inf
        %v4796 = vrot.slane %v4795, 4
        %v4797 = vmax.f32 %v4795, %v4796
        %v4798 = vrot.slane %v4797, 2
        %v4799 = vmax.f32 %v4797, %v4798
        %v4800 = vrot.slane %v4799, 1
        %v4801 = vmax.f32 %v4799, %v4800
        %v4802 = vsel %vm3275, %v2863, -inf
        %v4803 = vrot.slane %v4802, 4
        %v4804 = vmax.f32 %v4802, %v4803
        %v4805 = vrot.slane %v4804, 2
        %v4806 = vmax.f32 %v4804, %v4805
        %v4807 = vrot.slane %v4806, 1
        %v4808 = vmax.f32 %v4806, %v4807
        %v4809 = vsel %vm3275, %v2865, -inf
        %v4810 = vrot.slane %v4809, 4
        %v4811 = vmax.f32 %v4809, %v4810
        %v4812 = vrot.slane %v4811, 2
        %v4813 = vmax.f32 %v4811, %v4812
        %v4814 = vrot.slane %v4813, 1
        %v4815 = vmax.f32 %v4813, %v4814
        %v4816 = vsel %vm3275, %v2873, -inf
        %v4817 = vrot.slane %v4816, 4
        %v4818 = vmax.f32 %v4816, %v4817
        %v4819 = vrot.slane %v4818, 2
        %v4820 = vmax.f32 %v4818, %v4819
        %v4821 = vrot.slane %v4820, 1
        %v4822 = vmax.f32 %v4820, %v4821
        %v4823 = vsel %vm3275, %v2881, -inf
        %v4824 = vrot.slane %v4823, 4
        %v4825 = vmax.f32 %v4823, %v4824
        %v4826 = vrot.slane %v4825, 2
        %v4827 = vmax.f32 %v4825, %v4826
        %v4828 = vrot.slane %v4827, 1
        %v4829 = vmax.f32 %v4827, %v4828
        %v4830 = vsel %vm3275, %v2880, -inf
        %v4831 = vrot.slane %v4830, 4
        %v4832 = vmax.f32 %v4830, %v4831
        %v4833 = vrot.slane %v4832, 2
        %v4834 = vmax.f32 %v4832, %v4833
        %v4835 = vrot.slane %v4834, 1
        %v4836 = vmax.f32 %v4834, %v4835
        %v4837 = vsel %vm3275, %v2882, -inf
        %v4838 = vrot.slane %v4837, 4
        %v4839 = vmax.f32 %v4837, %v4838
        %v4840 = vrot.slane %v4839, 2
        %v4841 = vmax.f32 %v4839, %v4840
        %v4842 = vrot.slane %v4841, 1
        %v4843 = vmax.f32 %v4841, %v4842
        %v4844 = vsel %vm3275, %v2890, -inf
        %v4845 = vrot.slane %v4844, 4
        %v4846 = vmax.f32 %v4844, %v4845
        %v4847 = vrot.slane %v4846, 2
        %v4848 = vmax.f32 %v4846, %v4847
        %v4849 = vrot.slane %v4848, 1
        %v4850 = vmax.f32 %v4848, %v4849
        %v4851 = vsel %vm3275, %v2898, -inf
        %v4852 = vrot.slane %v4851, 4
        %v4853 = vmax.f32 %v4851, %v4852
        %v4854 = vrot.slane %v4853, 2
        %v4855 = vmax.f32 %v4853, %v4854
        %v4856 = vrot.slane %v4855, 1
        %v4857 = vmax.f32 %v4855, %v4856
        %v4858 = vsel %vm3275, %v2897, -inf
        %v4859 = vrot.slane %v4858, 4
        %v4860 = vmax.f32 %v4858, %v4859
        %v4861 = vrot.slane %v4860, 2
        %v4862 = vmax.f32 %v4860, %v4861
        %v4863 = vrot.slane %v4862, 1
        %v4864 = vmax.f32 %v4862, %v4863
        %v4865 = vsel %vm3275, %v2899, -inf
        %v4866 = vrot.slane %v4865, 4
        %v4867 = vmax.f32 %v4865, %v4866
        %v4868 = vrot.slane %v4867, 2
        %v4869 = vmax.f32 %v4867, %v4868
        %v4870 = vrot.slane %v4869, 1
        %v4871 = vmax.f32 %v4869, %v4870
        %v4872 = vsel %vm3275, %v2907, -inf
        %v4873 = vrot.slane %v4872, 4
        %v4874 = vmax.f32 %v4872, %v4873
        %v4875 = vrot.slane %v4874, 2
        %v4876 = vmax.f32 %v4874, %v4875
        %v4877 = vrot.slane %v4876, 1
        %v4878 = vmax.f32 %v4876, %v4877
        %v4879 = vsel %vm3275, %v2915, -inf
        %v4880 = vrot.slane %v4879, 4
        %v4881 = vmax.f32 %v4879, %v4880
        %v4882 = vrot.slane %v4881, 2
        %v4883 = vmax.f32 %v4881, %v4882
        %v4884 = vrot.slane %v4883, 1
        %v4885 = vmax.f32 %v4883, %v4884
        %v4886 = vsel %vm3275, %v2914, -inf
        %v4887 = vrot.slane %v4886, 4
        %v4888 = vmax.f32 %v4886, %v4887
        %v4889 = vrot.slane %v4888, 2
        %v4890 = vmax.f32 %v4888, %v4889
        %v4891 = vrot.slane %v4890, 1
        %v4892 = vmax.f32 %v4890, %v4891
        %v4893 = vsel %vm3275, %v2916, -inf
        %v4894 = vrot.slane %v4893, 4
        %v4895 = vmax.f32 %v4893, %v4894
        %v4896 = vrot.slane %v4895, 2
        %v4897 = vmax.f32 %v4895, %v4896
        %v4898 = vrot.slane %v4897, 1
        %v4899 = vmax.f32 %v4897, %v4898
        %v4900 = vsel %vm3275, %v2924, -inf
        %v4901 = vrot.slane %v4900, 4
        %v4902 = vmax.f32 %v4900, %v4901
        %v4903 = vrot.slane %v4902, 2
        %v4904 = vmax.f32 %v4902, %v4903
        %v4905 = vrot.slane %v4904, 1
        %v4906 = vmax.f32 %v4904, %v4905
        %v4907 = vsel %vm3275, %v2932, -inf
        %v4908 = vrot.slane %v4907, 4
        %v4909 = vmax.f32 %v4907, %v4908
        %v4910 = vrot.slane %v4909, 2
        %v4911 = vmax.f32 %v4909, %v4910
        %v4912 = vrot.slane %v4911, 1
        %v4913 = vmax.f32 %v4911, %v4912
        %v4914 = vsel %vm3275, %v2931, -inf
        %v4915 = vrot.slane %v4914, 4
        %v4916 = vmax.f32 %v4914, %v4915
        %v4917 = vrot.slane %v4916, 2
        %v4918 = vmax.f32 %v4916, %v4917
        %v4919 = vrot.slane %v4918, 1
        %v4920 = vmax.f32 %v4918, %v4919
        %v4921 = vsel %vm3275, %v2933, -inf
        %v4922 = vrot.slane %v4921, 4
        %v4923 = vmax.f32 %v4921, %v4922
        %v4924 = vrot.slane %v4923, 2
        %v4925 = vmax.f32 %v4923, %v4924
        %v4926 = vrot.slane %v4925, 1
        %v4927 = vmax.f32 %v4925, %v4926
        %v4928 = vsel %vm3275, %v2941, -inf
        %v4929 = vrot.slane %v4928, 4
        %v4930 = vmax.f32 %v4928, %v4929
        %v4931 = vrot.slane %v4930, 2
        %v4932 = vmax.f32 %v4930, %v4931
        %v4933 = vrot.slane %v4932, 1
        %v4934 = vmax.f32 %v4932, %v4933
        %v4935 = vsel %vm3275, %v2949, -inf
        %v4936 = vrot.slane %v4935, 4
        %v4937 = vmax.f32 %v4935, %v4936
        %v4938 = vrot.slane %v4937, 2
        %v4939 = vmax.f32 %v4937, %v4938
        %v4940 = vrot.slane %v4939, 1
        %v4941 = vmax.f32 %v4939, %v4940
        %v4942 = vsel %vm3275, %v2948, -inf
        %v4943 = vrot.slane %v4942, 4
        %v4944 = vmax.f32 %v4942, %v4943
        %v4945 = vrot.slane %v4944, 2
        %v4946 = vmax.f32 %v4944, %v4945
        %v4947 = vrot.slane %v4946, 1
        %v4948 = vmax.f32 %v4946, %v4947
        %v4949 = vsel %vm3275, %v2950, -inf
        %v4950 = vrot.slane %v4949, 4
        %v4951 = vmax.f32 %v4949, %v4950
        %v4952 = vrot.slane %v4951, 2
        %v4953 = vmax.f32 %v4951, %v4952
        %v4954 = vrot.slane %v4953, 1
        %v4955 = vmax.f32 %v4953, %v4954
        %v4956 = vsel %vm3275, %v2958, -inf
        %v4957 = vrot.slane %v4956, 4
        %v4958 = vmax.f32 %v4956, %v4957
        %v4959 = vrot.slane %v4958, 2
        %v4960 = vmax.f32 %v4958, %v4959
        %v4961 = vrot.slane %v4960, 1
        %v4962 = vmax.f32 %v4960, %v4961
        %v4963 = vsel %vm3275, %v2966, -inf
        %v4964 = vrot.slane %v4963, 4
        %v4965 = vmax.f32 %v4963, %v4964
        %v4966 = vrot.slane %v4965, 2
        %v4967 = vmax.f32 %v4965, %v4966
        %v4968 = vrot.slane %v4967, 1
        %v4969 = vmax.f32 %v4967, %v4968
        %v4970 = vsel %vm3275, %v2965, -inf
        %v4971 = vrot.slane %v4970, 4
        %v4972 = vmax.f32 %v4970, %v4971
        %v4973 = vrot.slane %v4972, 2
        %v4974 = vmax.f32 %v4972, %v4973
        %v4975 = vrot.slane %v4974, 1
        %v4976 = vmax.f32 %v4974, %v4975
        %v4977 = vsel %vm3275, %v2967, -inf
        %v4978 = vrot.slane %v4977, 4
        %v4979 = vmax.f32 %v4977, %v4978
        %v4980 = vrot.slane %v4979, 2
        %v4981 = vmax.f32 %v4979, %v4980
        %v4982 = vrot.slane %v4981, 1
        %v4983 = vmax.f32 %v4981, %v4982
        %v4984 = vsel %vm3275, %v2975, -inf
        %v4985 = vrot.slane %v4984, 4
        %v4986 = vmax.f32 %v4984, %v4985
        %v4987 = vrot.slane %v4986, 2
        %v4988 = vmax.f32 %v4986, %v4987
        %v4989 = vrot.slane %v4988, 1
        %v4990 = vmax.f32 %v4988, %v4989
        %v4991 = vsel %vm3275, %v2983, -inf
        %v4992 = vrot.slane %v4991, 4
        %v4993 = vmax.f32 %v4991, %v4992
        %v4994 = vrot.slane %v4993, 2
        %v4995 = vmax.f32 %v4993, %v4994
        %v4996 = vrot.slane %v4995, 1
        %v4997 = vmax.f32 %v4995, %v4996
        %v4998 = vsel %vm3275, %v2982, -inf
        %v4999 = vrot.slane %v4998, 4
        %v5000 = vmax.f32 %v4998, %v4999
        %v5001 = vrot.slane %v5000, 2
        %v5002 = vmax.f32 %v5000, %v5001
        %v5003 = vrot.slane %v5002, 1
        %v5004 = vmax.f32 %v5002, %v5003
        %v5005 = vsel %vm3275, %v2984, -inf
        %v5006 = vrot.slane %v5005, 4
        %v5007 = vmax.f32 %v5005, %v5006
        %v5008 = vrot.slane %v5007, 2
        %v5009 = vmax.f32 %v5007, %v5008
        %v5010 = vrot.slane %v5009, 1
        %v5011 = vmax.f32 %v5009, %v5010
        %v5012 = vsel %vm3275, %v2992, -inf
        %v5013 = vrot.slane %v5012, 4
        %v5014 = vmax.f32 %v5012, %v5013
        %v5015 = vrot.slane %v5014, 2
        %v5016 = vmax.f32 %v5014, %v5015
        %v5017 = vrot.slane %v5016, 1
        %v5018 = vmax.f32 %v5016, %v5017
        %v5019 = vsel %vm3275, %v3000, -inf
        %v5020 = vrot.slane %v5019, 4
        %v5021 = vmax.f32 %v5019, %v5020
        %v5022 = vrot.slane %v5021, 2
        %v5023 = vmax.f32 %v5021, %v5022
        %v5024 = vrot.slane %v5023, 1
        %v5025 = vmax.f32 %v5023, %v5024
        %v5026 = vsel %vm3275, %v2999, -inf
        %v5027 = vrot.slane %v5026, 4
        %v5028 = vmax.f32 %v5026, %v5027
        %v5029 = vrot.slane %v5028, 2
        %v5030 = vmax.f32 %v5028, %v5029
        %v5031 = vrot.slane %v5030, 1
        %v5032 = vmax.f32 %v5030, %v5031
        %v5033 = vsel %vm3275, %v3001, -inf
        %v5034 = vrot.slane %v5033, 4
        %v5035 = vmax.f32 %v5033, %v5034
        %v5036 = vrot.slane %v5035, 2
        %v5037 = vmax.f32 %v5035, %v5036
        %v5038 = vrot.slane %v5037, 1
        %v5039 = vmax.f32 %v5037, %v5038
        %v5040 = vsel %vm3275, %v3009, -inf
        %v5041 = vrot.slane %v5040, 4
        %v5042 = vmax.f32 %v5040, %v5041
        %v5043 = vrot.slane %v5042, 2
        %v5044 = vmax.f32 %v5042, %v5043
        %v5045 = vrot.slane %v5044, 1
        %v5046 = vmax.f32 %v5044, %v5045
        %v5047 = vsel %vm3275, %v3017, -inf
        %v5048 = vrot.slane %v5047, 4
        %v5049 = vmax.f32 %v5047, %v5048
        %v5050 = vrot.slane %v5049, 2
        %v5051 = vmax.f32 %v5049, %v5050
        %v5052 = vrot.slane %v5051, 1
        %v5053 = vmax.f32 %v5051, %v5052
        %v5054 = vsel %vm3275, %v3016, -inf
        %v5055 = vrot.slane %v5054, 4
        %v5056 = vmax.f32 %v5054, %v5055
        %v5057 = vrot.slane %v5056, 2
        %v5058 = vmax.f32 %v5056, %v5057
        %v5059 = vrot.slane %v5058, 1
        %v5060 = vmax.f32 %v5058, %v5059
        %v5061 = vsel %vm3275, %v3018, -inf
        %v5062 = vrot.slane %v5061, 4
        %v5063 = vmax.f32 %v5061, %v5062
        %v5064 = vrot.slane %v5063, 2
        %v5065 = vmax.f32 %v5063, %v5064
        %v5066 = vrot.slane %v5065, 1
        %v5067 = vmax.f32 %v5065, %v5066
        %5068 = vst.msk [vmem:[#allocation2] sm:$0xff] %vm1674, 0.0
        %5069 = vst.msk [vmem:[#allocation2 + $0x8] sm:$0x3] %vm3275, 0.0
        %5070 = vst.msk [vmem:[#allocation2 + $0xa0] sm:$0xff] %vm1674, 0.0
        %5071 = vst.msk [vmem:[#allocation2 + $0xa8] sm:$0x3] %vm3275, 0.0
        %5072 = vst.msk [vmem:[#allocation2 + $0x140] sm:$0xff] %vm1674, 0.0
        %5073 = vst.msk [vmem:[#allocation2 + $0x148] sm:$0x3] %vm3275, 0.0
        %5074 = vst.msk [vmem:[#allocation2 + $0x1e0] sm:$0xff] %vm1674, 0.0
        %5075 = vst.msk [vmem:[#allocation2 + $0x1e8] sm:$0x3] %vm3275, 0.0
        %s5076 = scalar_lea.vmem [#allocation2], 144
        %5077 = vst.msk [vmem:[%s5076] sm:$0xff] %vm1674, 0.0
        %5078 = vst.msk [vmem:[%s5076 + $0x8] sm:$0x3] %vm3275, 0.0
        %5079 = vst.msk [vmem:[%s5076 + $0xa0] sm:$0xff] %vm1674, 0.0
        %5080 = vst.msk [vmem:[%s5076 + $0xa8] sm:$0x3] %vm3275, 0.0
        %5081 = vst.msk [vmem:[%s5076 + $0x140] sm:$0xff] %vm1674, 0.0
        %5082 = vst.msk [vmem:[%s5076 + $0x148] sm:$0x3] %vm3275, 0.0
        %5083 = vst.msk [vmem:[%s5076 + $0x1e0] sm:$0xff] %vm1674, 0.0
        %5084 = vst.msk [vmem:[%s5076 + $0x1e8] sm:$0x3] %vm3275, 0.0
        %vm5085 = vcmask 516096
        %5086 = vst.msk [vmem:[#allocation2] sm:$0x1] %vm5085, 0.0
        %5087 = vst.msk [vmem:[#allocation2 + $0x10] sm:$0x1] %vm5085, 0.0
        %5088 = vst.msk [vmem:[#allocation2 + $0x20] sm:$0x1] %vm5085, 0.0
        %5089 = vst.msk [vmem:[#allocation2 + $0x30] sm:$0x1] %vm5085, 0.0
        %5090 = vst.msk [vmem:[#allocation2 + $0x40] sm:$0x1] %vm5085, 0.0
        %5091 = vst.msk [vmem:[#allocation2 + $0x50] sm:$0x1] %vm5085, 0.0
        %5092 = vst.msk [vmem:[#allocation2 + $0x60] sm:$0x1] %vm5085, 0.0
        %5093 = vst.msk [vmem:[#allocation2 + $0x70] sm:$0x1] %vm5085, 0.0
        %5094 = vst.msk [vmem:[#allocation2 + $0x80] sm:$0x1] %vm5085, 0.0
        %5095 = vst.msk [vmem:[#allocation2 + $0x90] sm:$0x1] %vm5085, 0.0
        %5096 = vst.msk [vmem:[#allocation2 + $0xa0] sm:$0x1] %vm5085, 0.0
        %5097 = vst.msk [vmem:[#allocation2 + $0xb0] sm:$0x1] %vm5085, 0.0
        %5098 = vst.msk [vmem:[#allocation2 + $0xc0] sm:$0x1] %vm5085, 0.0
        %5099 = vst.msk [vmem:[#allocation2 + $0xd0] sm:$0x1] %vm5085, 0.0
        %5100 = vst.msk [vmem:[#allocation2 + $0xe0] sm:$0x1] %vm5085, 0.0
        %5101 = vst.msk [vmem:[#allocation2 + $0xf0] sm:$0x1] %vm5085, 0.0
        %5102 = vst.msk [vmem:[#allocation2 + $0x100] sm:$0x1] %vm5085, 0.0
        %5103 = vst.msk [vmem:[#allocation2 + $0x110] sm:$0x1] %vm5085, 0.0
        %5104 = vst.msk [vmem:[#allocation2 + $0x120] sm:$0x1] %vm5085, 0.0
        %5105 = vst.msk [vmem:[#allocation2 + $0x130] sm:$0x1] %vm5085, 0.0
        %5106 = vst.msk [vmem:[#allocation2 + $0x140] sm:$0x1] %vm5085, 0.0
        %5107 = vst.msk [vmem:[#allocation2 + $0x150] sm:$0x1] %vm5085, 0.0
        %5108 = vst.msk [vmem:[#allocation2 + $0x160] sm:$0x1] %vm5085, 0.0
        %5109 = vst.msk [vmem:[#allocation2 + $0x170] sm:$0x1] %vm5085, 0.0
        %5110 = vst.msk [vmem:[#allocation2 + $0x180] sm:$0x1] %vm5085, 0.0
        %5111 = vst.msk [vmem:[#allocation2 + $0x190] sm:$0x1] %vm5085, 0.0
        %5112 = vst.msk [vmem:[#allocation2 + $0x1a0] sm:$0x1] %vm5085, 0.0
        %5113 = vst.msk [vmem:[#allocation2 + $0x1b0] sm:$0x1] %vm5085, 0.0
        %5114 = vst.msk [vmem:[#allocation2 + $0x1c0] sm:$0x1] %vm5085, 0.0
        %5115 = vst.msk [vmem:[#allocation2 + $0x1d0] sm:$0x1] %vm5085, 0.0
        %5116 = vst.msk [vmem:[#allocation2 + $0x1e0] sm:$0x1] %vm5085, 0.0
        %5117 = vst.msk [vmem:[#allocation2 + $0x1f0] sm:$0x1] %vm5085, 0.0
        %5118 = vst.msk [vmem:[#allocation2 + $0x200] sm:$0x1] %vm5085, 0.0
        %5119 = vst.msk [vmem:[#allocation2 + $0x210] sm:$0x1] %vm5085, 0.0
        %5120 = vst.msk [vmem:[#allocation2 + $0x220] sm:$0x1] %vm5085, 0.0
        %5121 = vst.msk [vmem:[#allocation2 + $0x230] sm:$0x1] %vm5085, 0.0
        %5122 = vst.msk [vmem:[#allocation2 + $0x240] sm:$0x1] %vm5085, 0.0
        %5123 = vst.msk [vmem:[#allocation2 + $0x250] sm:$0x1] %vm5085, 0.0
        %5124 = vst.msk [vmem:[#allocation2 + $0x260] sm:$0x1] %vm5085, 0.0
        %5125 = vst.msk [vmem:[#allocation2 + $0x270] sm:$0x1] %vm5085, 0.0
        %5126 = vst.msk [vmem:[#allocation2 + $0x9] sm:$0x1] %vm5085, 0.0
        %5127 = vst.msk [vmem:[#allocation2 + $0x19] sm:$0x1] %vm5085, 0.0
        %5128 = vst.msk [vmem:[#allocation2 + $0x29] sm:$0x1] %vm5085, 0.0
        %5129 = vst.msk [vmem:[#allocation2 + $0x39] sm:$0x1] %vm5085, 0.0
        %5130 = vst.msk [vmem:[#allocation2 + $0x49] sm:$0x1] %vm5085, 0.0
        %5131 = vst.msk [vmem:[#allocation2 + $0x59] sm:$0x1] %vm5085, 0.0
        %5132 = vst.msk [vmem:[#allocation2 + $0x69] sm:$0x1] %vm5085, 0.0
        %5133 = vst.msk [vmem:[#allocation2 + $0x79] sm:$0x1] %vm5085, 0.0
        %5134 = vst.msk [vmem:[#allocation2 + $0x89] sm:$0x1] %vm5085, 0.0
        %5135 = vst.msk [vmem:[#allocation2 + $0x99] sm:$0x1] %vm5085, 0.0
        %5136 = vst.msk [vmem:[#allocation2 + $0xa9] sm:$0x1] %vm5085, 0.0
        %5137 = vst.msk [vmem:[#allocation2 + $0xb9] sm:$0x1] %vm5085, 0.0
        %5138 = vst.msk [vmem:[#allocation2 + $0xc9] sm:$0x1] %vm5085, 0.0
        %5139 = vst.msk [vmem:[#allocation2 + $0xd9] sm:$0x1] %vm5085, 0.0
        %5140 = vst.msk [vmem:[#allocation2 + $0xe9] sm:$0x1] %vm5085, 0.0
        %5141 = vst.msk [vmem:[#allocation2 + $0xf9] sm:$0x1] %vm5085, 0.0
        %5142 = vst.msk [vmem:[#allocation2 + $0x109] sm:$0x1] %vm5085, 0.0
        %5143 = vst.msk [vmem:[#allocation2 + $0x119] sm:$0x1] %vm5085, 0.0
        %5144 = vst.msk [vmem:[#allocation2 + $0x129] sm:$0x1] %vm5085, 0.0
        %5145 = vst.msk [vmem:[#allocation2 + $0x139] sm:$0x1] %vm5085, 0.0
        %5146 = vst.msk [vmem:[#allocation2 + $0x149] sm:$0x1] %vm5085, 0.0
        %5147 = vst.msk [vmem:[#allocation2 + $0x159] sm:$0x1] %vm5085, 0.0
        %5148 = vst.msk [vmem:[#allocation2 + $0x169] sm:$0x1] %vm5085, 0.0
        %5149 = vst.msk [vmem:[#allocation2 + $0x179] sm:$0x1] %vm5085, 0.0
        %5150 = vst.msk [vmem:[#allocation2 + $0x189] sm:$0x1] %vm5085, 0.0
        %5151 = vst.msk [vmem:[#allocation2 + $0x199] sm:$0x1] %vm5085, 0.0
        %5152 = vst.msk [vmem:[#allocation2 + $0x1a9] sm:$0x1] %vm5085, 0.0
        %5153 = vst.msk [vmem:[#allocation2 + $0x1b9] sm:$0x1] %vm5085, 0.0
        %5154 = vst.msk [vmem:[#allocation2 + $0x1c9] sm:$0x1] %vm5085, 0.0
        %5155 = vst.msk [vmem:[#allocation2 + $0x1d9] sm:$0x1] %vm5085, 0.0
        %5156 = vst.msk [vmem:[#allocation2 + $0x1e9] sm:$0x1] %vm5085, 0.0
        %5157 = vst.msk [vmem:[#allocation2 + $0x1f9] sm:$0x1] %vm5085, 0.0
        %5158 = vst.msk [vmem:[#allocation2 + $0x209] sm:$0x1] %vm5085, 0.0
        %5159 = vst.msk [vmem:[#allocation2 + $0x219] sm:$0x1] %vm5085, 0.0
        %5160 = vst.msk [vmem:[#allocation2 + $0x229] sm:$0x1] %vm5085, 0.0
        %5161 = vst.msk [vmem:[#allocation2 + $0x239] sm:$0x1] %vm5085, 0.0
        %5162 = vst.msk [vmem:[#allocation2 + $0x249] sm:$0x1] %vm5085, 0.0
        %5163 = vst.msk [vmem:[#allocation2 + $0x259] sm:$0x1] %vm5085, 0.0
        %5164 = vst.msk [vmem:[#allocation2 + $0x269] sm:$0x1] %vm5085, 0.0
        %5165 = vst.msk [vmem:[#allocation2 + $0x279] sm:$0x1] %vm5085, 0.0
        %vm5422 = vcmask 1041409
        %v5423 = vsel %vm5422, %v3289, %v3282
        %vm5424 = vcmask 1042434
        %v5425 = vsel %vm5424, %v3296, %v5423
        %vm5426 = vcmask 1043459
        %v5427 = vsel %vm5426, %v3303, %v5425
        %vm5428 = vcmask 1044484
        %v5429 = vsel %vm5428, %v3310, %v5427
        %vm5430 = vcmask 1045509
        %v5431 = vsel %vm5430, %v3317, %v5429
        %vm5432 = vcmask 1046534
        %v5433 = vsel %vm5432, %v3324, %v5431
        %vm5434 = vcmask 1047559
        %v5435 = vsel %vm5434, %v3331, %v5433
        %v5436 = vsel %vm5422, %v3345, %v3338
        %v5437 = vsel %vm5424, %v3352, %v5436
        %v5438 = vsel %vm5426, %v3359, %v5437
        %v5439 = vsel %vm5428, %v3366, %v5438
        %v5440 = vsel %vm5430, %v3373, %v5439
        %v5441 = vsel %vm5432, %v3380, %v5440
        %v5442 = vsel %vm5434, %v3387, %v5441
        %v5443 = vsel %vm5422, %v3401, %v3394
        %v5444 = vsel %vm5424, %v3408, %v5443
        %v5445 = vsel %vm5426, %v3415, %v5444
        %v5446 = vsel %vm5428, %v3422, %v5445
        %v5447 = vsel %vm5430, %v3429, %v5446
        %v5448 = vsel %vm5432, %v3436, %v5447
        %v5449 = vsel %vm5434, %v3443, %v5448
        %v5450 = vsel %vm5422, %v3457, %v3450
        %v5451 = vsel %vm5424, %v3464, %v5450
        %v5452 = vsel %vm5426, %v3471, %v5451
        %v5453 = vsel %vm5428, %v3478, %v5452
        %v5454 = vsel %vm5430, %v3485, %v5453
        %v5455 = vsel %vm5432, %v3492, %v5454
        %v5456 = vsel %vm5434, %v3499, %v5455
        %v5457 = vsel %vm5422, %v3513, %v3506
        %v5458 = vsel %vm5424, %v3520, %v5457
        %v5459 = vsel %vm5426, %v3527, %v5458
        %v5460 = vsel %vm5428, %v3534, %v5459
        %v5461 = vsel %vm5430, %v3541, %v5460
        %v5462 = vsel %vm5432, %v3548, %v5461
        %v5463 = vsel %vm5434, %v3555, %v5462
        %v5464 = vsel %vm5422, %v3569, %v3562
        %v5465 = vsel %vm5424, %v3576, %v5464
        %v5466 = vsel %vm5426, %v3583, %v5465
        %v5467 = vsel %vm5428, %v3590, %v5466
        %v5468 = vsel %vm5430, %v3597, %v5467
        %v5469 = vsel %vm5432, %v3604, %v5468
        %v5470 = vsel %vm5434, %v3611, %v5469
        %v5471 = vsel %vm5422, %v3625, %v3618
        %v5472 = vsel %vm5424, %v3632, %v5471
        %v5473 = vsel %vm5426, %v3639, %v5472
        %v5474 = vsel %vm5428, %v3646, %v5473
        %v5475 = vsel %vm5430, %v3653, %v5474
        %v5476 = vsel %vm5432, %v3660, %v5475
        %v5477 = vsel %vm5434, %v3667, %v5476
        %v5478 = vsel %vm5422, %v3681, %v3674
        %v5479 = vsel %vm5424, %v3688, %v5478
        %v5480 = vsel %vm5426, %v3695, %v5479
        %v5481 = vsel %vm5428, %v3702, %v5480
        %v5482 = vsel %vm5430, %v3709, %v5481
        %v5483 = vsel %vm5432, %v3716, %v5482
        %v5484 = vsel %vm5434, %v3723, %v5483
        %v5485 = vsel %vm5422, %v3737, %v3730
        %v5486 = vsel %vm5424, %v3744, %v5485
        %v5487 = vsel %vm5426, %v3751, %v5486
        %v5488 = vsel %vm5428, %v3758, %v5487
        %v5489 = vsel %vm5430, %v3765, %v5488
        %v5490 = vsel %vm5432, %v3772, %v5489
        %v5491 = vsel %vm5434, %v3779, %v5490
        %v5492 = vsel %vm5422, %v3793, %v3786
        %v5493 = vsel %vm5424, %v3800, %v5492
        %v5494 = vsel %vm5426, %v3807, %v5493
        %v5495 = vsel %vm5428, %v3814, %v5494
        %v5496 = vsel %vm5430, %v3821, %v5495
        %v5497 = vsel %vm5432, %v3828, %v5496
        %v5498 = vsel %vm5434, %v3835, %v5497
        %v5499 = vsel %vm5422, %v3849, %v3842
        %v5500 = vsel %vm5424, %v3856, %v5499
        %v5501 = vsel %vm5426, %v3863, %v5500
        %v5502 = vsel %vm5428, %v3870, %v5501
        %v5503 = vsel %vm5430, %v3877, %v5502
        %v5504 = vsel %vm5432, %v3884, %v5503
        %v5505 = vsel %vm5434, %v3891, %v5504
        %v5506 = vsel %vm5422, %v3905, %v3898
        %v5507 = vsel %vm5424, %v3912, %v5506
        %v5508 = vsel %vm5426, %v3919, %v5507
        %v5509 = vsel %vm5428, %v3926, %v5508
        %v5510 = vsel %vm5430, %v3933, %v5509
        %v5511 = vsel %vm5432, %v3940, %v5510
        %v5512 = vsel %vm5434, %v3947, %v5511
        %v5513 = vsel %vm5422, %v3961, %v3954
        %v5514 = vsel %vm5424, %v3968, %v5513
        %v5515 = vsel %vm5426, %v3975, %v5514
        %v5516 = vsel %vm5428, %v3982, %v5515
        %v5517 = vsel %vm5430, %v3989, %v5516
        %v5518 = vsel %vm5432, %v3996, %v5517
        %v5519 = vsel %vm5434, %v4003, %v5518
        %v5520 = vsel %vm5422, %v4017, %v4010
        %v5521 = vsel %vm5424, %v4024, %v5520
        %v5522 = vsel %vm5426, %v4031, %v5521
        %v5523 = vsel %vm5428, %v4038, %v5522
        %v5524 = vsel %vm5430, %v4045, %v5523
        %v5525 = vsel %vm5432, %v4052, %v5524
        %v5526 = vsel %vm5434, %v4059, %v5525
        %v5527 = vsel %vm5422, %v4073, %v4066
        %v5528 = vsel %vm5424, %v4080, %v5527
        %v5529 = vsel %vm5426, %v4087, %v5528
        %v5530 = vsel %vm5428, %v4094, %v5529
        %v5531 = vsel %vm5430, %v4101, %v5530
        %v5532 = vsel %vm5432, %v4108, %v5531
        %v5533 = vsel %vm5434, %v4115, %v5532
        %v5534 = vsel %vm5422, %v4129, %v4122
        %v5535 = vsel %vm5424, %v4136, %v5534
        %v5536 = vsel %vm5426, %v4143, %v5535
        %v5537 = vsel %vm5428, %v4150, %v5536
        %v5538 = vsel %vm5430, %v4157, %v5537
        %v5539 = vsel %vm5432, %v4164, %v5538
        %v5540 = vsel %vm5434, %v4171, %v5539
        %v5541 = vsel %vm5422, %v4185, %v4178
        %v5542 = vsel %vm5424, %v4192, %v5541
        %v5543 = vsel %vm5426, %v4199, %v5542
        %v5544 = vsel %vm5428, %v4206, %v5543
        %v5545 = vsel %vm5430, %v4213, %v5544
        %v5546 = vsel %vm5432, %v4220, %v5545
        %v5547 = vsel %vm5434, %v4227, %v5546
        %v5548 = vsel %vm5422, %v4241, %v4234
        %v5549 = vsel %vm5424, %v4248, %v5548
        %v5550 = vsel %vm5426, %v4255, %v5549
        %v5551 = vsel %vm5428, %v4262, %v5550
        %v5552 = vsel %vm5430, %v4269, %v5551
        %v5553 = vsel %vm5432, %v4276, %v5552
        %v5554 = vsel %vm5434, %v4283, %v5553
        %v5555 = vsel %vm5422, %v4297, %v4290
        %v5556 = vsel %vm5424, %v4304, %v5555
        %v5557 = vsel %vm5426, %v4311, %v5556
        %v5558 = vsel %vm5428, %v4318, %v5557
        %v5559 = vsel %vm5430, %v4325, %v5558
        %v5560 = vsel %vm5432, %v4332, %v5559
        %v5561 = vsel %vm5434, %v4339, %v5560
        %v5562 = vsel %vm5422, %v4353, %v4346
        %v5563 = vsel %vm5424, %v4360, %v5562
        %v5564 = vsel %vm5426, %v4367, %v5563
        %v5565 = vsel %vm5428, %v4374, %v5564
        %v5566 = vsel %vm5430, %v4381, %v5565
        %v5567 = vsel %vm5432, %v4388, %v5566
        %v5568 = vsel %vm5434, %v4395, %v5567
        %v5569 = vsel %vm5422, %v4409, %v4402
        %v5570 = vsel %vm5424, %v4416, %v5569
        %v5571 = vsel %vm5426, %v4423, %v5570
        %v5572 = vsel %vm5428, %v4430, %v5571
        %v5573 = vsel %vm5430, %v4437, %v5572
        %v5574 = vsel %vm5432, %v4444, %v5573
        %v5575 = vsel %vm5434, %v4451, %v5574
        %v5576 = vsel %vm5422, %v4465, %v4458
        %v5577 = vsel %vm5424, %v4472, %v5576
        %v5578 = vsel %vm5426, %v4479, %v5577
        %v5579 = vsel %vm5428, %v4486, %v5578
        %v5580 = vsel %vm5430, %v4493, %v5579
        %v5581 = vsel %vm5432, %v4500, %v5580
        %v5582 = vsel %vm5434, %v4507, %v5581
        %v5583 = vsel %vm5422, %v4521, %v4514
        %v5584 = vsel %vm5424, %v4528, %v5583
        %v5585 = vsel %vm5426, %v4535, %v5584
        %v5586 = vsel %vm5428, %v4542, %v5585
        %v5587 = vsel %vm5430, %v4549, %v5586
        %v5588 = vsel %vm5432, %v4556, %v5587
        %v5589 = vsel %vm5434, %v4563, %v5588
        %v5590 = vsel %vm5422, %v4577, %v4570
        %v5591 = vsel %vm5424, %v4584, %v5590
        %v5592 = vsel %vm5426, %v4591, %v5591
        %v5593 = vsel %vm5428, %v4598, %v5592
        %v5594 = vsel %vm5430, %v4605, %v5593
        %v5595 = vsel %vm5432, %v4612, %v5594
        %v5596 = vsel %vm5434, %v4619, %v5595
        %v5597 = vsel %vm5422, %v4633, %v4626
        %v5598 = vsel %vm5424, %v4640, %v5597
        %v5599 = vsel %vm5426, %v4647, %v5598
        %v5600 = vsel %vm5428, %v4654, %v5599
        %v5601 = vsel %vm5430, %v4661, %v5600
        %v5602 = vsel %vm5432, %v4668, %v5601
        %v5603 = vsel %vm5434, %v4675, %v5602
        %v5604 = vsel %vm5422, %v4689, %v4682
        %v5605 = vsel %vm5424, %v4696, %v5604
        %v5606 = vsel %vm5426, %v4703, %v5605
        %v5607 = vsel %vm5428, %v4710, %v5606
        %v5608 = vsel %vm5430, %v4717, %v5607
        %v5609 = vsel %vm5432, %v4724, %v5608
        %v5610 = vsel %vm5434, %v4731, %v5609
        %v5611 = vsel %vm5422, %v4745, %v4738
        %v5612 = vsel %vm5424, %v4752, %v5611
        %v5613 = vsel %vm5426, %v4759, %v5612
        %v5614 = vsel %vm5428, %v4766, %v5613
        %v5615 = vsel %vm5430, %v4773, %v5614
        %v5616 = vsel %vm5432, %v4780, %v5615
        %v5617 = vsel %vm5434, %v4787, %v5616
        %v5618 = vsel %vm5422, %v4801, %v4794
        %v5619 = vsel %vm5424, %v4808, %v5618
        %v5620 = vsel %vm5426, %v4815, %v5619
        %v5621 = vsel %vm5428, %v4822, %v5620
        %v5622 = vsel %vm5430, %v4829, %v5621
        %v5623 = vsel %vm5432, %v4836, %v5622
        %v5624 = vsel %vm5434, %v4843, %v5623
        %v5625 = vsel %vm5422, %v4857, %v4850
        %v5626 = vsel %vm5424, %v4864, %v5625
        %v5627 = vsel %vm5426, %v4871, %v5626
        %v5628 = vsel %vm5428, %v4878, %v5627
        %v5629 = vsel %vm5430, %v4885, %v5628
        %v5630 = vsel %vm5432, %v4892, %v5629
        %v5631 = vsel %vm5434, %v4899, %v5630
        %v5632 = vsel %vm5422, %v4913, %v4906
        %v5633 = vsel %vm5424, %v4920, %v5632
        %v5634 = vsel %vm5426, %v4927, %v5633
        %v5635 = vsel %vm5428, %v4934, %v5634
        %v5636 = vsel %vm5430, %v4941, %v5635
        %v5637 = vsel %vm5432, %v4948, %v5636
        %v5638 = vsel %vm5434, %v4955, %v5637
        %v5639 = vsel %vm5422, %v4969, %v4962
        %v5640 = vsel %vm5424, %v4976, %v5639
        %v5641 = vsel %vm5426, %v4983, %v5640
        %v5642 = vsel %vm5428, %v4990, %v5641
        %v5643 = vsel %vm5430, %v4997, %v5642
        %v5644 = vsel %vm5432, %v5004, %v5643
        %v5645 = vsel %vm5434, %v5011, %v5644
        %v5646 = vsel %vm5422, %v5025, %v5018
        %v5647 = vsel %vm5424, %v5032, %v5646
        %v5648 = vsel %vm5426, %v5039, %v5647
        %v5649 = vsel %vm5428, %v5046, %v5648
        %v5650 = vsel %vm5430, %v5053, %v5649
        %v5651 = vsel %vm5432, %v5060, %v5650
        %v5652 = vsel %vm5434, %v5067, %v5651
        %s5685 = scalar_lea.vmem [#allocation2], 16
        %5686 = vst.msk [vmem:[%s5685 + $0x1] sm:$0xff] %vm1674, %v5435
        %5687 = vst.msk [vmem:[%s5685 + $0x11] sm:$0xff] %vm1674, %v5442
        %5688 = vst.msk [vmem:[%s5685 + $0x21] sm:$0xff] %vm1674, %v5449
        %5689 = vst.msk [vmem:[%s5685 + $0x31] sm:$0xff] %vm1674, %v5456
        %5690 = vst.msk [vmem:[%s5685 + $0x41] sm:$0xff] %vm1674, %v5463
        %5691 = vst.msk [vmem:[%s5685 + $0x51] sm:$0xff] %vm1674, %v5470
        %5692 = vst.msk [vmem:[%s5685 + $0x61] sm:$0xff] %vm1674, %v5477
        %5693 = vst.msk [vmem:[%s5685 + $0x71] sm:$0xff] %vm1674, %v5484
        %5694 = vst.msk [vmem:[%s5685 + $0xa1] sm:$0xff] %vm1674, %v5491
        %5695 = vst.msk [vmem:[%s5685 + $0xb1] sm:$0xff] %vm1674, %v5498
        %5696 = vst.msk [vmem:[%s5685 + $0xc1] sm:$0xff] %vm1674, %v5505
        %5697 = vst.msk [vmem:[%s5685 + $0xd1] sm:$0xff] %vm1674, %v5512
        %5698 = vst.msk [vmem:[%s5685 + $0xe1] sm:$0xff] %vm1674, %v5519
        %5699 = vst.msk [vmem:[%s5685 + $0xf1] sm:$0xff] %vm1674, %v5526
        %5700 = vst.msk [vmem:[%s5685 + $0x101] sm:$0xff] %vm1674, %v5533
        %5701 = vst.msk [vmem:[%s5685 + $0x111] sm:$0xff] %vm1674, %v5540
        %5702 = vst.msk [vmem:[%s5685 + $0x141] sm:$0xff] %vm1674, %v5547
        %5703 = vst.msk [vmem:[%s5685 + $0x151] sm:$0xff] %vm1674, %v5554
        %5704 = vst.msk [vmem:[%s5685 + $0x161] sm:$0xff] %vm1674, %v5561
        %5705 = vst.msk [vmem:[%s5685 + $0x171] sm:$0xff] %vm1674, %v5568
        %5706 = vst.msk [vmem:[%s5685 + $0x181] sm:$0xff] %vm1674, %v5575
        %5707 = vst.msk [vmem:[%s5685 + $0x191] sm:$0xff] %vm1674, %v5582
        %5708 = vst.msk [vmem:[%s5685 + $0x1a1] sm:$0xff] %vm1674, %v5589
        %5709 = vst.msk [vmem:[%s5685 + $0x1b1] sm:$0xff] %vm1674, %v5596
        %5710 = vst.msk [vmem:[%s5685 + $0x1e1] sm:$0xff] %vm1674, %v5603
        %5711 = vst.msk [vmem:[%s5685 + $0x1f1] sm:$0xff] %vm1674, %v5610
        %5712 = vst.msk [vmem:[%s5685 + $0x201] sm:$0xff] %vm1674, %v5617
        %5713 = vst.msk [vmem:[%s5685 + $0x211] sm:$0xff] %vm1674, %v5624
        %5714 = vst.msk [vmem:[%s5685 + $0x221] sm:$0xff] %vm1674, %v5631
        %5715 = vst.msk [vmem:[%s5685 + $0x231] sm:$0xff] %vm1674, %v5638
        %5716 = vst.msk [vmem:[%s5685 + $0x241] sm:$0xff] %vm1674, %v5645
        %5717 = vst.msk [vmem:[%s5685 + $0x251] sm:$0xff] %vm1674, %v5652
        %v5718 = vld [vmem:[#allocation2] sm:$0xff]
        %v5719 = vld [vmem:[#allocation2 + $0x10] sm:$0xff]
        %v5720 = vld [vmem:[#allocation2 + $0x20] sm:$0xff]
        %v5721 = vld [vmem:[#allocation2 + $0x30] sm:$0xff]
        %v5722 = vld [vmem:[#allocation2 + $0x40] sm:$0xff]
        %v5723 = vld [vmem:[#allocation2 + $0x50] sm:$0xff]
        %v5724 = vld [vmem:[#allocation2 + $0x60] sm:$0xff]
        %v5725 = vld [vmem:[#allocation2 + $0x70] sm:$0xff]
        %v5726 = vld [vmem:[#allocation2 + $0xa0] sm:$0xff]
        %v5727 = vld [vmem:[#allocation2 + $0xb0] sm:$0xff]
        %v5728 = vld [vmem:[#allocation2 + $0xc0] sm:$0xff]
        %v5729 = vld [vmem:[#allocation2 + $0xd0] sm:$0xff]
        %v5730 = vld [vmem:[#allocation2 + $0xe0] sm:$0xff]
        %v5731 = vld [vmem:[#allocation2 + $0xf0] sm:$0xff]
        %v5732 = vld [vmem:[#allocation2 + $0x100] sm:$0xff]
        %v5733 = vld [vmem:[#allocation2 + $0x110] sm:$0xff]
        %v5734 = vld [vmem:[#allocation2 + $0x140] sm:$0xff]
        %v5735 = vld [vmem:[#allocation2 + $0x150] sm:$0xff]
        %v5736 = vld [vmem:[#allocation2 + $0x160] sm:$0xff]
        %v5737 = vld [vmem:[#allocation2 + $0x170] sm:$0xff]
        %v5738 = vld [vmem:[#allocation2 + $0x180] sm:$0xff]
        %v5739 = vld [vmem:[#allocation2 + $0x190] sm:$0xff]
        %v5740 = vld [vmem:[#allocation2 + $0x1a0] sm:$0xff]
        %v5741 = vld [vmem:[#allocation2 + $0x1b0] sm:$0xff]
        %v5742 = vld [vmem:[#allocation2 + $0x1e0] sm:$0xff]
        %v5743 = vld [vmem:[#allocation2 + $0x1f0] sm:$0xff]
        %v5744 = vld [vmem:[#allocation2 + $0x200] sm:$0xff]
        %v5745 = vld [vmem:[#allocation2 + $0x210] sm:$0xff]
        %v5746 = vld [vmem:[#allocation2 + $0x220] sm:$0xff]
        %v5747 = vld [vmem:[#allocation2 + $0x230] sm:$0xff]
        %v5748 = vld [vmem:[#allocation2 + $0x240] sm:$0xff]
        %v5749 = vld [vmem:[#allocation2 + $0x250] sm:$0xff]
        %v5750 = vld [vmem:[#allocation2 + $0x1] sm:$0xff]
        %v5751 = vld [vmem:[#allocation2 + $0x11] sm:$0xff]
        %v5752 = vld [vmem:[#allocation2 + $0x21] sm:$0xff]
        %v5753 = vld [vmem:[#allocation2 + $0x31] sm:$0xff]
        %v5754 = vld [vmem:[#allocation2 + $0x41] sm:$0xff]
        %v5755 = vld [vmem:[#allocation2 + $0x51] sm:$0xff]
        %v5756 = vld [vmem:[#allocation2 + $0x61] sm:$0xff]
        %v5757 = vld [vmem:[#allocation2 + $0x71] sm:$0xff]
        %v5758 = vld [vmem:[#allocation2 + $0xa1] sm:$0xff]
        %v5759 = vld [vmem:[#allocation2 + $0xb1] sm:$0xff]
        %v5760 = vld [vmem:[#allocation2 + $0xc1] sm:$0xff]
        %v5761 = vld [vmem:[#allocation2 + $0xd1] sm:$0xff]
        %v5762 = vld [vmem:[#allocation2 + $0xe1] sm:$0xff]
        %v5763 = vld [vmem:[#allocation2 + $0xf1] sm:$0xff]
        %v5764 = vld [vmem:[#allocation2 + $0x101] sm:$0xff]
        %v5765 = vld [vmem:[#allocation2 + $0x111] sm:$0xff]
        %v5766 = vld [vmem:[#allocation2 + $0x141] sm:$0xff]
        %v5767 = vld [vmem:[#allocation2 + $0x151] sm:$0xff]
        %v5768 = vld [vmem:[#allocation2 + $0x161] sm:$0xff]
        %v5769 = vld [vmem:[#allocation2 + $0x171] sm:$0xff]
        %v5770 = vld [vmem:[#allocation2 + $0x181] sm:$0xff]
        %v5771 = vld [vmem:[#allocation2 + $0x191] sm:$0xff]
        %v5772 = vld [vmem:[#allocation2 + $0x1a1] sm:$0xff]
        %v5773 = vld [vmem:[#allocation2 + $0x1b1] sm:$0xff]
        %v5774 = vld [vmem:[#allocation2 + $0x1e1] sm:$0xff]
        %v5775 = vld [vmem:[#allocation2 + $0x1f1] sm:$0xff]
        %v5776 = vld [vmem:[#allocation2 + $0x201] sm:$0xff]
        %v5777 = vld [vmem:[#allocation2 + $0x211] sm:$0xff]
        %v5778 = vld [vmem:[#allocation2 + $0x221] sm:$0xff]
        %v5779 = vld [vmem:[#allocation2 + $0x231] sm:$0xff]
        %v5780 = vld [vmem:[#allocation2 + $0x241] sm:$0xff]
        %v5781 = vld [vmem:[#allocation2 + $0x251] sm:$0xff]
        %v5782 = vld [vmem:[#allocation2 + $0x2] sm:$0xff]
        %v5783 = vld [vmem:[#allocation2 + $0x12] sm:$0xff]
        %v5784 = vld [vmem:[#allocation2 + $0x22] sm:$0xff]
        %v5785 = vld [vmem:[#allocation2 + $0x32] sm:$0xff]
        %v5786 = vld [vmem:[#allocation2 + $0x42] sm:$0xff]
        %v5787 = vld [vmem:[#allocation2 + $0x52] sm:$0xff]
        %v5788 = vld [vmem:[#allocation2 + $0x62] sm:$0xff]
        %v5789 = vld [vmem:[#allocation2 + $0x72] sm:$0xff]
        %v5790 = vld [vmem:[#allocation2 + $0xa2] sm:$0xff]
        %v5791 = vld [vmem:[#allocation2 + $0xb2] sm:$0xff]
        %v5792 = vld [vmem:[#allocation2 + $0xc2] sm:$0xff]
        %v5793 = vld [vmem:[#allocation2 + $0xd2] sm:$0xff]
        %v5794 = vld [vmem:[#allocation2 + $0xe2] sm:$0xff]
        %v5795 = vld [vmem:[#allocation2 + $0xf2] sm:$0xff]
        %v5796 = vld [vmem:[#allocation2 + $0x102] sm:$0xff]
        %v5797 = vld [vmem:[#allocation2 + $0x112] sm:$0xff]
        %v5798 = vld [vmem:[#allocation2 + $0x142] sm:$0xff]
        %v5799 = vld [vmem:[#allocation2 + $0x152] sm:$0xff]
        %v5800 = vld [vmem:[#allocation2 + $0x162] sm:$0xff]
        %v5801 = vld [vmem:[#allocation2 + $0x172] sm:$0xff]
        %v5802 = vld [vmem:[#allocation2 + $0x182] sm:$0xff]
        %v5803 = vld [vmem:[#allocation2 + $0x192] sm:$0xff]
        %v5804 = vld [vmem:[#allocation2 + $0x1a2] sm:$0xff]
        %v5805 = vld [vmem:[#allocation2 + $0x1b2] sm:$0xff]
        %v5806 = vld [vmem:[#allocation2 + $0x1e2] sm:$0xff]
        %v5807 = vld [vmem:[#allocation2 + $0x1f2] sm:$0xff]
        %v5808 = vld [vmem:[#allocation2 + $0x202] sm:$0xff]
        %v5809 = vld [vmem:[#allocation2 + $0x212] sm:$0xff]
        %v5810 = vld [vmem:[#allocation2 + $0x222] sm:$0xff]
        %v5811 = vld [vmem:[#allocation2 + $0x232] sm:$0xff]
        %v5812 = vld [vmem:[#allocation2 + $0x242] sm:$0xff]
        %v5813 = vld [vmem:[#allocation2 + $0x252] sm:$0xff]
        %v5814 = vld [vmem:[%s5685] sm:$0xff]
        %v5815 = vld [vmem:[%s5685 + $0x10] sm:$0xff]
        %v5816 = vld [vmem:[%s5685 + $0x20] sm:$0xff]
        %v5817 = vld [vmem:[%s5685 + $0x30] sm:$0xff]
        %v5818 = vld [vmem:[%s5685 + $0x40] sm:$0xff]
        %v5819 = vld [vmem:[%s5685 + $0x50] sm:$0xff]
        %v5820 = vld [vmem:[%s5685 + $0x60] sm:$0xff]
        %v5821 = vld [vmem:[%s5685 + $0x70] sm:$0xff]
        %v5822 = vld [vmem:[%s5685 + $0xa0] sm:$0xff]
        %v5823 = vld [vmem:[%s5685 + $0xb0] sm:$0xff]
        %v5824 = vld [vmem:[%s5685 + $0xc0] sm:$0xff]
        %v5825 = vld [vmem:[%s5685 + $0xd0] sm:$0xff]
        %v5826 = vld [vmem:[%s5685 + $0xe0] sm:$0xff]
        %v5827 = vld [vmem:[%s5685 + $0xf0] sm:$0xff]
        %v5828 = vld [vmem:[%s5685 + $0x100] sm:$0xff]
        %v5829 = vld [vmem:[%s5685 + $0x110] sm:$0xff]
        %v5830 = vld [vmem:[%s5685 + $0x140] sm:$0xff]
        %v5831 = vld [vmem:[%s5685 + $0x150] sm:$0xff]
        %v5832 = vld [vmem:[%s5685 + $0x160] sm:$0xff]
        %v5833 = vld [vmem:[%s5685 + $0x170] sm:$0xff]
        %v5834 = vld [vmem:[%s5685 + $0x180] sm:$0xff]
        %v5835 = vld [vmem:[%s5685 + $0x190] sm:$0xff]
        %v5836 = vld [vmem:[%s5685 + $0x1a0] sm:$0xff]
        %v5837 = vld [vmem:[%s5685 + $0x1b0] sm:$0xff]
        %v5838 = vld [vmem:[%s5685 + $0x1e0] sm:$0xff]
        %v5839 = vld [vmem:[%s5685 + $0x1f0] sm:$0xff]
        %v5840 = vld [vmem:[%s5685 + $0x200] sm:$0xff]
        %v5841 = vld [vmem:[%s5685 + $0x210] sm:$0xff]
        %v5842 = vld [vmem:[%s5685 + $0x220] sm:$0xff]
        %v5843 = vld [vmem:[%s5685 + $0x230] sm:$0xff]
        %v5844 = vld [vmem:[%s5685 + $0x240] sm:$0xff]
        %v5845 = vld [vmem:[%s5685 + $0x250] sm:$0xff]
        %v5846 = vld [vmem:[%s5685 + $0x1] sm:$0xff]
        %v5847 = vld [vmem:[%s5685 + $0x11] sm:$0xff]
        %v5848 = vld [vmem:[%s5685 + $0x21] sm:$0xff]
        %v5849 = vld [vmem:[%s5685 + $0x31] sm:$0xff]
        %v5850 = vld [vmem:[%s5685 + $0x41] sm:$0xff]
        %v5851 = vld [vmem:[%s5685 + $0x51] sm:$0xff]
        %v5852 = vld [vmem:[%s5685 + $0x61] sm:$0xff]
        %v5853 = vld [vmem:[%s5685 + $0x71] sm:$0xff]
        %v5854 = vld [vmem:[%s5685 + $0xa1] sm:$0xff]
        %v5855 = vld [vmem:[%s5685 + $0xb1] sm:$0xff]
        %v5856 = vld [vmem:[%s5685 + $0xc1] sm:$0xff]
        %v5857 = vld [vmem:[%s5685 + $0xd1] sm:$0xff]
        %v5858 = vld [vmem:[%s5685 + $0xe1] sm:$0xff]
        %v5859 = vld [vmem:[%s5685 + $0xf1] sm:$0xff]
        %v5860 = vld [vmem:[%s5685 + $0x101] sm:$0xff]
        %v5861 = vld [vmem:[%s5685 + $0x111] sm:$0xff]
        %v5862 = vld [vmem:[%s5685 + $0x141] sm:$0xff]
        %v5863 = vld [vmem:[%s5685 + $0x151] sm:$0xff]
        %v5864 = vld [vmem:[%s5685 + $0x161] sm:$0xff]
        %v5865 = vld [vmem:[%s5685 + $0x171] sm:$0xff]
        %v5866 = vld [vmem:[%s5685 + $0x181] sm:$0xff]
        %v5867 = vld [vmem:[%s5685 + $0x191] sm:$0xff]
        %v5868 = vld [vmem:[%s5685 + $0x1a1] sm:$0xff]
        %v5869 = vld [vmem:[%s5685 + $0x1b1] sm:$0xff]
        %v5870 = vld [vmem:[%s5685 + $0x1e1] sm:$0xff]
        %v5871 = vld [vmem:[%s5685 + $0x1f1] sm:$0xff]
        %v5872 = vld [vmem:[%s5685 + $0x201] sm:$0xff]
        %v5873 = vld [vmem:[%s5685 + $0x211] sm:$0xff]
        %v5874 = vld [vmem:[%s5685 + $0x221] sm:$0xff]
        %v5875 = vld [vmem:[%s5685 + $0x231] sm:$0xff]
        %v5876 = vld [vmem:[%s5685 + $0x241] sm:$0xff]
        %v5877 = vld [vmem:[%s5685 + $0x251] sm:$0xff]
        %v5878 = vld [vmem:[%s5685 + $0x2] sm:$0xff]
        %v5879 = vld [vmem:[%s5685 + $0x12] sm:$0xff]
        %v5880 = vld [vmem:[%s5685 + $0x22] sm:$0xff]
        %v5881 = vld [vmem:[%s5685 + $0x32] sm:$0xff]
        %v5882 = vld [vmem:[%s5685 + $0x42] sm:$0xff]
        %v5883 = vld [vmem:[%s5685 + $0x52] sm:$0xff]
        %v5884 = vld [vmem:[%s5685 + $0x62] sm:$0xff]
        %v5885 = vld [vmem:[%s5685 + $0x72] sm:$0xff]
        %v5886 = vld [vmem:[%s5685 + $0xa2] sm:$0xff]
        %v5887 = vld [vmem:[%s5685 + $0xb2] sm:$0xff]
        %v5888 = vld [vmem:[%s5685 + $0xc2] sm:$0xff]
        %v5889 = vld [vmem:[%s5685 + $0xd2] sm:$0xff]
        %v5890 = vld [vmem:[%s5685 + $0xe2] sm:$0xff]
        %v5891 = vld [vmem:[%s5685 + $0xf2] sm:$0xff]
        %v5892 = vld [vmem:[%s5685 + $0x102] sm:$0xff]
        %v5893 = vld [vmem:[%s5685 + $0x112] sm:$0xff]
        %v5894 = vld [vmem:[%s5685 + $0x142] sm:$0xff]
        %v5895 = vld [vmem:[%s5685 + $0x152] sm:$0xff]
        %v5896 = vld [vmem:[%s5685 + $0x162] sm:$0xff]
        %v5897 = vld [vmem:[%s5685 + $0x172] sm:$0xff]
        %v5898 = vld [vmem:[%s5685 + $0x182] sm:$0xff]
        %v5899 = vld [vmem:[%s5685 + $0x192] sm:$0xff]
        %v5900 = vld [vmem:[%s5685 + $0x1a2] sm:$0xff]
        %v5901 = vld [vmem:[%s5685 + $0x1b2] sm:$0xff]
        %v5902 = vld [vmem:[%s5685 + $0x1e2] sm:$0xff]
        %v5903 = vld [vmem:[%s5685 + $0x1f2] sm:$0xff]
        %v5904 = vld [vmem:[%s5685 + $0x202] sm:$0xff]
        %v5905 = vld [vmem:[%s5685 + $0x212] sm:$0xff]
        %v5906 = vld [vmem:[%s5685 + $0x222] sm:$0xff]
        %v5907 = vld [vmem:[%s5685 + $0x232] sm:$0xff]
        %v5908 = vld [vmem:[%s5685 + $0x242] sm:$0xff]
        %v5909 = vld [vmem:[%s5685 + $0x252] sm:$0xff]
        %s5910 = scalar_lea.vmem [#allocation2], 32
        %v5911 = vld [vmem:[%s5910] sm:$0xff]
        %v5912 = vld [vmem:[%s5910 + $0x10] sm:$0xff]
        %v5913 = vld [vmem:[%s5910 + $0x20] sm:$0xff]
        %v5914 = vld [vmem:[%s5910 + $0x30] sm:$0xff]
        %v5915 = vld [vmem:[%s5910 + $0x40] sm:$0xff]
        %v5916 = vld [vmem:[%s5910 + $0x50] sm:$0xff]
        %v5917 = vld [vmem:[%s5910 + $0x60] sm:$0xff]
        %v5918 = vld [vmem:[%s5910 + $0x70] sm:$0xff]
        %v5919 = vld [vmem:[%s5910 + $0xa0] sm:$0xff]
        %v5920 = vld [vmem:[%s5910 + $0xb0] sm:$0xff]
        %v5921 = vld [vmem:[%s5910 + $0xc0] sm:$0xff]
        %v5922 = vld [vmem:[%s5910 + $0xd0] sm:$0xff]
        %v5923 = vld [vmem:[%s5910 + $0xe0] sm:$0xff]
        %v5924 = vld [vmem:[%s5910 + $0xf0] sm:$0xff]
        %v5925 = vld [vmem:[%s5910 + $0x100] sm:$0xff]
        %v5926 = vld [vmem:[%s5910 + $0x110] sm:$0xff]
        %v5927 = vld [vmem:[%s5910 + $0x140] sm:$0xff]
        %v5928 = vld [vmem:[%s5910 + $0x150] sm:$0xff]
        %v5929 = vld [vmem:[%s5910 + $0x160] sm:$0xff]
        %v5930 = vld [vmem:[%s5910 + $0x170] sm:$0xff]
        %v5931 = vld [vmem:[%s5910 + $0x180] sm:$0xff]
        %v5932 = vld [vmem:[%s5910 + $0x190] sm:$0xff]
        %v5933 = vld [vmem:[%s5910 + $0x1a0] sm:$0xff]
        %v5934 = vld [vmem:[%s5910 + $0x1b0] sm:$0xff]
        %v5935 = vld [vmem:[%s5910 + $0x1e0] sm:$0xff]
        %v5936 = vld [vmem:[%s5910 + $0x1f0] sm:$0xff]
        %v5937 = vld [vmem:[%s5910 + $0x200] sm:$0xff]
        %v5938 = vld [vmem:[%s5910 + $0x210] sm:$0xff]
        %v5939 = vld [vmem:[%s5910 + $0x220] sm:$0xff]
        %v5940 = vld [vmem:[%s5910 + $0x230] sm:$0xff]
        %v5941 = vld [vmem:[%s5910 + $0x240] sm:$0xff]
        %v5942 = vld [vmem:[%s5910 + $0x250] sm:$0xff]
        %v5943 = vld [vmem:[%s5910 + $0x1] sm:$0xff]
        %v5944 = vld [vmem:[%s5910 + $0x11] sm:$0xff]
        %v5945 = vld [vmem:[%s5910 + $0x21] sm:$0xff]
        %v5946 = vld [vmem:[%s5910 + $0x31] sm:$0xff]
        %v5947 = vld [vmem:[%s5910 + $0x41] sm:$0xff]
        %v5948 = vld [vmem:[%s5910 + $0x51] sm:$0xff]
        %v5949 = vld [vmem:[%s5910 + $0x61] sm:$0xff]
        %v5950 = vld [vmem:[%s5910 + $0x71] sm:$0xff]
        %v5951 = vld [vmem:[%s5910 + $0xa1] sm:$0xff]
        %v5952 = vld [vmem:[%s5910 + $0xb1] sm:$0xff]
        %v5953 = vld [vmem:[%s5910 + $0xc1] sm:$0xff]
        %v5954 = vld [vmem:[%s5910 + $0xd1] sm:$0xff]
        %v5955 = vld [vmem:[%s5910 + $0xe1] sm:$0xff]
        %v5956 = vld [vmem:[%s5910 + $0xf1] sm:$0xff]
        %v5957 = vld [vmem:[%s5910 + $0x101] sm:$0xff]
        %v5958 = vld [vmem:[%s5910 + $0x111] sm:$0xff]
        %v5959 = vld [vmem:[%s5910 + $0x141] sm:$0xff]
        %v5960 = vld [vmem:[%s5910 + $0x151] sm:$0xff]
        %v5961 = vld [vmem:[%s5910 + $0x161] sm:$0xff]
        %v5962 = vld [vmem:[%s5910 + $0x171] sm:$0xff]
        %v5963 = vld [vmem:[%s5910 + $0x181] sm:$0xff]
        %v5964 = vld [vmem:[%s5910 + $0x191] sm:$0xff]
        %v5965 = vld [vmem:[%s5910 + $0x1a1] sm:$0xff]
        %v5966 = vld [vmem:[%s5910 + $0x1b1] sm:$0xff]
        %v5967 = vld [vmem:[%s5910 + $0x1e1] sm:$0xff]
        %v5968 = vld [vmem:[%s5910 + $0x1f1] sm:$0xff]
        %v5969 = vld [vmem:[%s5910 + $0x201] sm:$0xff]
        %v5970 = vld [vmem:[%s5910 + $0x211] sm:$0xff]
        %v5971 = vld [vmem:[%s5910 + $0x221] sm:$0xff]
        %v5972 = vld [vmem:[%s5910 + $0x231] sm:$0xff]
        %v5973 = vld [vmem:[%s5910 + $0x241] sm:$0xff]
        %v5974 = vld [vmem:[%s5910 + $0x251] sm:$0xff]
        %v5975 = vld [vmem:[%s5910 + $0x2] sm:$0xff]
        %v5976 = vld [vmem:[%s5910 + $0x12] sm:$0xff]
        %v5977 = vld [vmem:[%s5910 + $0x22] sm:$0xff]
        %v5978 = vld [vmem:[%s5910 + $0x32] sm:$0xff]
        %v5979 = vld [vmem:[%s5910 + $0x42] sm:$0xff]
        %v5980 = vld [vmem:[%s5910 + $0x52] sm:$0xff]
        %v5981 = vld [vmem:[%s5910 + $0x62] sm:$0xff]
        %v5982 = vld [vmem:[%s5910 + $0x72] sm:$0xff]
        %v5983 = vld [vmem:[%s5910 + $0xa2] sm:$0xff]
        %v5984 = vld [vmem:[%s5910 + $0xb2] sm:$0xff]
        %v5985 = vld [vmem:[%s5910 + $0xc2] sm:$0xff]
        %v5986 = vld [vmem:[%s5910 + $0xd2] sm:$0xff]
        %v5987 = vld [vmem:[%s5910 + $0xe2] sm:$0xff]
        %v5988 = vld [vmem:[%s5910 + $0xf2] sm:$0xff]
        %v5989 = vld [vmem:[%s5910 + $0x102] sm:$0xff]
        %v5990 = vld [vmem:[%s5910 + $0x112] sm:$0xff]
        %v5991 = vld [vmem:[%s5910 + $0x142] sm:$0xff]
        %v5992 = vld [vmem:[%s5910 + $0x152] sm:$0xff]
        %v5993 = vld [vmem:[%s5910 + $0x162] sm:$0xff]
        %v5994 = vld [vmem:[%s5910 + $0x172] sm:$0xff]
        %v5995 = vld [vmem:[%s5910 + $0x182] sm:$0xff]
        %v5996 = vld [vmem:[%s5910 + $0x192] sm:$0xff]
        %v5997 = vld [vmem:[%s5910 + $0x1a2] sm:$0xff]
        %v5998 = vld [vmem:[%s5910 + $0x1b2] sm:$0xff]
        %v5999 = vld [vmem:[%s5910 + $0x1e2] sm:$0xff]
        %v6000 = vld [vmem:[%s5910 + $0x1f2] sm:$0xff]
        %v6001 = vld [vmem:[%s5910 + $0x202] sm:$0xff]
        %v6002 = vld [vmem:[%s5910 + $0x212] sm:$0xff]
        %v6003 = vld [vmem:[%s5910 + $0x222] sm:$0xff]
        %v6004 = vld [vmem:[%s5910 + $0x232] sm:$0xff]
        %v6005 = vld [vmem:[%s5910 + $0x242] sm:$0xff]
        %v6006 = vld [vmem:[%s5910 + $0x252] sm:$0xff]
        %6039 = vrot.lane.b32.xlu0 %v5750, 64
        %v6040 = vpop.permute.xlu0 %6039
        %6041 = vrot.lane.b32.xlu0 %v5751, 64
        %v6042 = vpop.permute.xlu0 %6041
        %6043 = vrot.lane.b32.xlu0 %v5752, 64
        %v6044 = vpop.permute.xlu0 %6043
        %6045 = vrot.lane.b32.xlu0 %v5753, 64
        %v6046 = vpop.permute.xlu0 %6045
        %6047 = vrot.lane.b32.xlu0 %v5754, 64
        %v6048 = vpop.permute.xlu0 %6047
        %6049 = vrot.lane.b32.xlu0 %v5755, 64
        %v6050 = vpop.permute.xlu0 %6049
        %6051 = vrot.lane.b32.xlu0 %v5756, 64
        %v6052 = vpop.permute.xlu0 %6051
        %6053 = vrot.lane.b32.xlu0 %v5757, 64
        %v6054 = vpop.permute.xlu0 %6053
        %6055 = vrot.lane.b32.xlu0 %v5758, 64
        %v6056 = vpop.permute.xlu0 %6055
        %6057 = vrot.lane.b32.xlu0 %v5759, 64
        %v6058 = vpop.permute.xlu0 %6057
        %6059 = vrot.lane.b32.xlu0 %v5760, 64
        %v6060 = vpop.permute.xlu0 %6059
        %6061 = vrot.lane.b32.xlu0 %v5761, 64
        %v6062 = vpop.permute.xlu0 %6061
        %6063 = vrot.lane.b32.xlu0 %v5762, 64
        %v6064 = vpop.permute.xlu0 %6063
        %6065 = vrot.lane.b32.xlu0 %v5763, 64
        %v6066 = vpop.permute.xlu0 %6065
        %6067 = vrot.lane.b32.xlu0 %v5764, 64
        %v6068 = vpop.permute.xlu0 %6067
        %6069 = vrot.lane.b32.xlu0 %v5765, 64
        %v6070 = vpop.permute.xlu0 %6069
        %6071 = vrot.lane.b32.xlu0 %v5766, 64
        %v6072 = vpop.permute.xlu0 %6071
        %6073 = vrot.lane.b32.xlu0 %v5767, 64
        %v6074 = vpop.permute.xlu0 %6073
        %6075 = vrot.lane.b32.xlu0 %v5768, 64
        %v6076 = vpop.permute.xlu0 %6075
        %6077 = vrot.lane.b32.xlu0 %v5769, 64
        %v6078 = vpop.permute.xlu0 %6077
        %6079 = vrot.lane.b32.xlu0 %v5770, 64
        %v6080 = vpop.permute.xlu0 %6079
        %6081 = vrot.lane.b32.xlu0 %v5771, 64
        %v6082 = vpop.permute.xlu0 %6081
        %6083 = vrot.lane.b32.xlu0 %v5772, 64
        %v6084 = vpop.permute.xlu0 %6083
        %6085 = vrot.lane.b32.xlu0 %v5773, 64
        %v6086 = vpop.permute.xlu0 %6085
        %6087 = vrot.lane.b32.xlu0 %v5774, 64
        %v6088 = vpop.permute.xlu0 %6087
        %6089 = vrot.lane.b32.xlu0 %v5775, 64
        %v6090 = vpop.permute.xlu0 %6089
        %6091 = vrot.lane.b32.xlu0 %v5776, 64
        %v6092 = vpop.permute.xlu0 %6091
        %6093 = vrot.lane.b32.xlu0 %v5777, 64
        %v6094 = vpop.permute.xlu0 %6093
        %6095 = vrot.lane.b32.xlu0 %v5778, 64
        %v6096 = vpop.permute.xlu0 %6095
        %6097 = vrot.lane.b32.xlu0 %v5779, 64
        %v6098 = vpop.permute.xlu0 %6097
        %6099 = vrot.lane.b32.xlu0 %v5780, 64
        %v6100 = vpop.permute.xlu0 %6099
        %6101 = vrot.lane.b32.xlu0 %v5781, 64
        %v6102 = vpop.permute.xlu0 %6101
        %v6135 = vsel %vm1674, %v5718, %v6040
        %v6136 = vsel %vm1674, %v5719, %v6042
        %v6137 = vsel %vm1674, %v5720, %v6044
        %v6138 = vsel %vm1674, %v5721, %v6046
        %v6139 = vsel %vm1674, %v5722, %v6048
        %v6140 = vsel %vm1674, %v5723, %v6050
        %v6141 = vsel %vm1674, %v5724, %v6052
        %v6142 = vsel %vm1674, %v5725, %v6054
        %v6143 = vsel %vm1674, %v5726, %v6056
        %v6144 = vsel %vm1674, %v5727, %v6058
        %v6145 = vsel %vm1674, %v5728, %v6060
        %v6146 = vsel %vm1674, %v5729, %v6062
        %v6147 = vsel %vm1674, %v5730, %v6064
        %v6148 = vsel %vm1674, %v5731, %v6066
        %v6149 = vsel %vm1674, %v5732, %v6068
        %v6150 = vsel %vm1674, %v5733, %v6070
        %v6151 = vsel %vm1674, %v5734, %v6072
        %v6152 = vsel %vm1674, %v5735, %v6074
        %v6153 = vsel %vm1674, %v5736, %v6076
        %v6154 = vsel %vm1674, %v5737, %v6078
        %v6155 = vsel %vm1674, %v5738, %v6080
        %v6156 = vsel %vm1674, %v5739, %v6082
        %v6157 = vsel %vm1674, %v5740, %v6084
        %v6158 = vsel %vm1674, %v5741, %v6086
        %v6159 = vsel %vm1674, %v5742, %v6088
        %v6160 = vsel %vm1674, %v5743, %v6090
        %v6161 = vsel %vm1674, %v5744, %v6092
        %v6162 = vsel %vm1674, %v5745, %v6094
        %v6163 = vsel %vm1674, %v5746, %v6096
        %v6164 = vsel %vm1674, %v5747, %v6098
        %v6165 = vsel %vm1674, %v5748, %v6100
        %v6166 = vsel %vm1674, %v5749, %v6102
        %v6167 = vpack.c.bf16 %v6136, %v6135
        %v6168 = vpack.c.bf16 %v6138, %v6137
        %v6169 = vpack.c.bf16 %v6140, %v6139
        %v6170 = vpack.c.bf16 %v6142, %v6141
        %v6171 = vpack.c.bf16 %v6144, %v6143
        %v6172 = vpack.c.bf16 %v6146, %v6145
        %v6173 = vpack.c.bf16 %v6148, %v6147
        %v6174 = vpack.c.bf16 %v6150, %v6149
        %v6175 = vpack.c.bf16 %v6152, %v6151
        %v6176 = vpack.c.bf16 %v6154, %v6153
        %v6177 = vpack.c.bf16 %v6156, %v6155
        %v6178 = vpack.c.bf16 %v6158, %v6157
        %v6179 = vpack.c.bf16 %v6160, %v6159
        %v6180 = vpack.c.bf16 %v6162, %v6161
        %v6181 = vpack.c.bf16 %v6164, %v6163
        %v6182 = vpack.c.bf16 %v6166, %v6165
        %v6199 = vunpack.c.l.b16 %v6167
        %v6200 = vunpack.c.h.b16 %v6167
        %v6201 = vunpack.c.l.b16 %v6168
        %v6202 = vunpack.c.h.b16 %v6168
        %v6203 = vunpack.c.l.b16 %v6169
        %v6204 = vunpack.c.h.b16 %v6169
        %v6205 = vunpack.c.l.b16 %v6170
        %v6206 = vunpack.c.h.b16 %v6170
        %v6207 = vunpack.c.l.b16 %v6171
        %v6208 = vunpack.c.h.b16 %v6171
        %v6209 = vunpack.c.l.b16 %v6172
        %v6210 = vunpack.c.h.b16 %v6172
        %v6211 = vunpack.c.l.b16 %v6173
        %v6212 = vunpack.c.h.b16 %v6173
        %v6213 = vunpack.c.l.b16 %v6174
        %v6214 = vunpack.c.h.b16 %v6174
        %v6215 = vunpack.c.l.b16 %v6175
        %v6216 = vunpack.c.h.b16 %v6175
        %v6217 = vunpack.c.l.b16 %v6176
        %v6218 = vunpack.c.h.b16 %v6176
        %v6219 = vunpack.c.l.b16 %v6177
        %v6220 = vunpack.c.h.b16 %v6177
        %v6221 = vunpack.c.l.b16 %v6178
        %v6222 = vunpack.c.h.b16 %v6178
        %v6223 = vunpack.c.l.b16 %v6179
        %v6224 = vunpack.c.h.b16 %v6179
        %v6225 = vunpack.c.l.b16 %v6180
        %v6226 = vunpack.c.h.b16 %v6180
        %v6227 = vunpack.c.l.b16 %v6181
        %v6228 = vunpack.c.h.b16 %v6181
        %v6229 = vunpack.c.l.b16 %v6182
        %v6230 = vunpack.c.h.b16 %v6182
        %v6231 = vpack.c.b16 %v6199, %v6199
        %v6232 = vpack.c.b16 %v6200, %v6200
        %v6233 = vpack.c.b16 %v6201, %v6201
        %v6234 = vpack.c.b16 %v6202, %v6202
        %v6235 = vpack.c.b16 %v6203, %v6203
        %v6236 = vpack.c.b16 %v6204, %v6204
        %v6237 = vpack.c.b16 %v6205, %v6205
        %v6238 = vpack.c.b16 %v6206, %v6206
        %v6239 = vpack.c.b16 %v6207, %v6207
        %v6240 = vpack.c.b16 %v6208, %v6208
        %v6241 = vpack.c.b16 %v6209, %v6209
        %v6242 = vpack.c.b16 %v6210, %v6210
        %v6243 = vpack.c.b16 %v6211, %v6211
        %v6244 = vpack.c.b16 %v6212, %v6212
        %v6245 = vpack.c.b16 %v6213, %v6213
        %v6246 = vpack.c.b16 %v6214, %v6214
        %v6247 = vpack.c.b16 %v6215, %v6215
        %v6248 = vpack.c.b16 %v6216, %v6216
        %v6249 = vpack.c.b16 %v6217, %v6217
        %v6250 = vpack.c.b16 %v6218, %v6218
        %v6251 = vpack.c.b16 %v6219, %v6219
        %v6252 = vpack.c.b16 %v6220, %v6220
        %v6253 = vpack.c.b16 %v6221, %v6221
        %v6254 = vpack.c.b16 %v6222, %v6222
        %v6255 = vpack.c.b16 %v6223, %v6223
        %v6256 = vpack.c.b16 %v6224, %v6224
        %v6257 = vpack.c.b16 %v6225, %v6225
        %v6258 = vpack.c.b16 %v6226, %v6226
        %v6259 = vpack.c.b16 %v6227, %v6227
        %v6260 = vpack.c.b16 %v6228, %v6228
        %v6261 = vpack.c.b16 %v6229, %v6229
        %v6262 = vpack.c.b16 %v6230, %v6230
        %6295 = vst [vmem:[#allocation5] sm:$0xf] %v6231
        %6296 = vst [vmem:[#allocation5 + $0x14] sm:$0xf] %v6232
        %6297 = vst [vmem:[#allocation5 + $0x28] sm:$0xf] %v6233
        %6298 = vst [vmem:[#allocation5 + $0x3c] sm:$0xf] %v6234
        %6299 = vst [vmem:[#allocation5 + $0x50] sm:$0xf] %v6235
        %6300 = vst [vmem:[#allocation5 + $0x64] sm:$0xf] %v6236
        %6301 = vst [vmem:[#allocation5 + $0x78] sm:$0xf] %v6237
        %6302 = vst [vmem:[#allocation5 + $0x8c] sm:$0xf] %v6238
        %6303 = vst [vmem:[#allocation5 + $0xa0] sm:$0xf] %v6239
        %6304 = vst [vmem:[#allocation5 + $0xb4] sm:$0xf] %v6240
        %6305 = vst [vmem:[#allocation5 + $0xc8] sm:$0xf] %v6241
        %6306 = vst [vmem:[#allocation5 + $0xdc] sm:$0xf] %v6242
        %6307 = vst [vmem:[#allocation5 + $0xf0] sm:$0xf] %v6243
        %6308 = vst [vmem:[#allocation5 + $0x104] sm:$0xf] %v6244
        %6309 = vst [vmem:[#allocation5 + $0x118] sm:$0xf] %v6245
        %6310 = vst [vmem:[#allocation5 + $0x12c] sm:$0xf] %v6246
        %6311 = vst [vmem:[#allocation5 + $0x140] sm:$0xf] %v6247
        %6312 = vst [vmem:[#allocation5 + $0x154] sm:$0xf] %v6248
        %6313 = vst [vmem:[#allocation5 + $0x168] sm:$0xf] %v6249
        %6314 = vst [vmem:[#allocation5 + $0x17c] sm:$0xf] %v6250
        %6315 = vst [vmem:[#allocation5 + $0x190] sm:$0xf] %v6251
        %6316 = vst [vmem:[#allocation5 + $0x1a4] sm:$0xf] %v6252
        %6317 = vst [vmem:[#allocation5 + $0x1b8] sm:$0xf] %v6253
        %6318 = vst [vmem:[#allocation5 + $0x1cc] sm:$0xf] %v6254
        %6319 = vst [vmem:[#allocation5 + $0x1e0] sm:$0xf] %v6255
        %6320 = vst [vmem:[#allocation5 + $0x1f4] sm:$0xf] %v6256
        %6321 = vst [vmem:[#allocation5 + $0x208] sm:$0xf] %v6257
        %6322 = vst [vmem:[#allocation5 + $0x21c] sm:$0xf] %v6258
        %6323 = vst [vmem:[#allocation5 + $0x230] sm:$0xf] %v6259
        %6324 = vst [vmem:[#allocation5 + $0x244] sm:$0xf] %v6260
        %6325 = vst [vmem:[#allocation5 + $0x258] sm:$0xf] %v6261
        %6326 = vst [vmem:[#allocation5 + $0x26c] sm:$0xf] %v6262
        %6359 = vrot.lane.b32.xlu0 %v5814, 64
        %v6360 = vpop.permute.xlu0 %6359
        %6361 = vrot.lane.b32.xlu0 %v5815, 64
        %v6362 = vpop.permute.xlu0 %6361
        %6363 = vrot.lane.b32.xlu0 %v5816, 64
        %v6364 = vpop.permute.xlu0 %6363
        %6365 = vrot.lane.b32.xlu0 %v5817, 64
        %v6366 = vpop.permute.xlu0 %6365
        %6367 = vrot.lane.b32.xlu0 %v5818, 64
        %v6368 = vpop.permute.xlu0 %6367
        %6369 = vrot.lane.b32.xlu0 %v5819, 64
        %v6370 = vpop.permute.xlu0 %6369
        %6371 = vrot.lane.b32.xlu0 %v5820, 64
        %v6372 = vpop.permute.xlu0 %6371
        %6373 = vrot.lane.b32.xlu0 %v5821, 64
        %v6374 = vpop.permute.xlu0 %6373
        %6375 = vrot.lane.b32.xlu0 %v5822, 64
        %v6376 = vpop.permute.xlu0 %6375
        %6377 = vrot.lane.b32.xlu0 %v5823, 64
        %v6378 = vpop.permute.xlu0 %6377
        %6379 = vrot.lane.b32.xlu0 %v5824, 64
        %v6380 = vpop.permute.xlu0 %6379
        %6381 = vrot.lane.b32.xlu0 %v5825, 64
        %v6382 = vpop.permute.xlu0 %6381
        %6383 = vrot.lane.b32.xlu0 %v5826, 64
        %v6384 = vpop.permute.xlu0 %6383
        %6385 = vrot.lane.b32.xlu0 %v5827, 64
        %v6386 = vpop.permute.xlu0 %6385
        %6387 = vrot.lane.b32.xlu0 %v5828, 64
        %v6388 = vpop.permute.xlu0 %6387
        %6389 = vrot.lane.b32.xlu0 %v5829, 64
        %v6390 = vpop.permute.xlu0 %6389
        %6391 = vrot.lane.b32.xlu0 %v5830, 64
        %v6392 = vpop.permute.xlu0 %6391
        %6393 = vrot.lane.b32.xlu0 %v5831, 64
        %v6394 = vpop.permute.xlu0 %6393
        %6395 = vrot.lane.b32.xlu0 %v5832, 64
        %v6396 = vpop.permute.xlu0 %6395
        %6397 = vrot.lane.b32.xlu0 %v5833, 64
        %v6398 = vpop.permute.xlu0 %6397
        %6399 = vrot.lane.b32.xlu0 %v5834, 64
        %v6400 = vpop.permute.xlu0 %6399
        %6401 = vrot.lane.b32.xlu0 %v5835, 64
        %v6402 = vpop.permute.xlu0 %6401
        %6403 = vrot.lane.b32.xlu0 %v5836, 64
        %v6404 = vpop.permute.xlu0 %6403
        %6405 = vrot.lane.b32.xlu0 %v5837, 64
        %v6406 = vpop.permute.xlu0 %6405
        %6407 = vrot.lane.b32.xlu0 %v5838, 64
        %v6408 = vpop.permute.xlu0 %6407
        %6409 = vrot.lane.b32.xlu0 %v5839, 64
        %v6410 = vpop.permute.xlu0 %6409
        %6411 = vrot.lane.b32.xlu0 %v5840, 64
        %v6412 = vpop.permute.xlu0 %6411
        %6413 = vrot.lane.b32.xlu0 %v5841, 64
        %v6414 = vpop.permute.xlu0 %6413
        %6415 = vrot.lane.b32.xlu0 %v5842, 64
        %v6416 = vpop.permute.xlu0 %6415
        %6417 = vrot.lane.b32.xlu0 %v5843, 64
        %v6418 = vpop.permute.xlu0 %6417
        %6419 = vrot.lane.b32.xlu0 %v5844, 64
        %v6420 = vpop.permute.xlu0 %6419
        %6421 = vrot.lane.b32.xlu0 %v5845, 64
        %v6422 = vpop.permute.xlu0 %6421
        %v6455 = vsel %vm1674, %v5782, %v6360
        %v6456 = vsel %vm1674, %v5783, %v6362
        %v6457 = vsel %vm1674, %v5784, %v6364
        %v6458 = vsel %vm1674, %v5785, %v6366
        %v6459 = vsel %vm1674, %v5786, %v6368
        %v6460 = vsel %vm1674, %v5787, %v6370
        %v6461 = vsel %vm1674, %v5788, %v6372
        %v6462 = vsel %vm1674, %v5789, %v6374
        %v6463 = vsel %vm1674, %v5790, %v6376
        %v6464 = vsel %vm1674, %v5791, %v6378
        %v6465 = vsel %vm1674, %v5792, %v6380
        %v6466 = vsel %vm1674, %v5793, %v6382
        %v6467 = vsel %vm1674, %v5794, %v6384
        %v6468 = vsel %vm1674, %v5795, %v6386
        %v6469 = vsel %vm1674, %v5796, %v6388
        %v6470 = vsel %vm1674, %v5797, %v6390
        %v6471 = vsel %vm1674, %v5798, %v6392
        %v6472 = vsel %vm1674, %v5799, %v6394
        %v6473 = vsel %vm1674, %v5800, %v6396
        %v6474 = vsel %vm1674, %v5801, %v6398
        %v6475 = vsel %vm1674, %v5802, %v6400
        %v6476 = vsel %vm1674, %v5803, %v6402
        %v6477 = vsel %vm1674, %v5804, %v6404
        %v6478 = vsel %vm1674, %v5805, %v6406
        %v6479 = vsel %vm1674, %v5806, %v6408
        %v6480 = vsel %vm1674, %v5807, %v6410
        %v6481 = vsel %vm1674, %v5808, %v6412
        %v6482 = vsel %vm1674, %v5809, %v6414
        %v6483 = vsel %vm1674, %v5810, %v6416
        %v6484 = vsel %vm1674, %v5811, %v6418
        %v6485 = vsel %vm1674, %v5812, %v6420
        %v6486 = vsel %vm1674, %v5813, %v6422
        %v6487 = vpack.c.bf16 %v6456, %v6455
        %v6488 = vpack.c.bf16 %v6458, %v6457
        %v6489 = vpack.c.bf16 %v6460, %v6459
        %v6490 = vpack.c.bf16 %v6462, %v6461
        %v6491 = vpack.c.bf16 %v6464, %v6463
        %v6492 = vpack.c.bf16 %v6466, %v6465
        %v6493 = vpack.c.bf16 %v6468, %v6467
        %v6494 = vpack.c.bf16 %v6470, %v6469
        %v6495 = vpack.c.bf16 %v6472, %v6471
        %v6496 = vpack.c.bf16 %v6474, %v6473
        %v6497 = vpack.c.bf16 %v6476, %v6475
        %v6498 = vpack.c.bf16 %v6478, %v6477
        %v6499 = vpack.c.bf16 %v6480, %v6479
        %v6500 = vpack.c.bf16 %v6482, %v6481
        %v6501 = vpack.c.bf16 %v6484, %v6483
        %v6502 = vpack.c.bf16 %v6486, %v6485
        %v6519 = vunpack.c.l.b16 %v6487
        %v6520 = vunpack.c.h.b16 %v6487
        %v6521 = vunpack.c.l.b16 %v6488
        %v6522 = vunpack.c.h.b16 %v6488
        %v6523 = vunpack.c.l.b16 %v6489
        %v6524 = vunpack.c.h.b16 %v6489
        %v6525 = vunpack.c.l.b16 %v6490
        %v6526 = vunpack.c.h.b16 %v6490
        %v6527 = vunpack.c.l.b16 %v6491
        %v6528 = vunpack.c.h.b16 %v6491
        %v6529 = vunpack.c.l.b16 %v6492
        %v6530 = vunpack.c.h.b16 %v6492
        %v6531 = vunpack.c.l.b16 %v6493
        %v6532 = vunpack.c.h.b16 %v6493
        %v6533 = vunpack.c.l.b16 %v6494
        %v6534 = vunpack.c.h.b16 %v6494
        %v6535 = vunpack.c.l.b16 %v6495
        %v6536 = vunpack.c.h.b16 %v6495
        %v6537 = vunpack.c.l.b16 %v6496
        %v6538 = vunpack.c.h.b16 %v6496
        %v6539 = vunpack.c.l.b16 %v6497
        %v6540 = vunpack.c.h.b16 %v6497
        %v6541 = vunpack.c.l.b16 %v6498
        %v6542 = vunpack.c.h.b16 %v6498
        %v6543 = vunpack.c.l.b16 %v6499
        %v6544 = vunpack.c.h.b16 %v6499
        %v6545 = vunpack.c.l.b16 %v6500
        %v6546 = vunpack.c.h.b16 %v6500
        %v6547 = vunpack.c.l.b16 %v6501
        %v6548 = vunpack.c.h.b16 %v6501
        %v6549 = vunpack.c.l.b16 %v6502
        %v6550 = vunpack.c.h.b16 %v6502
        %v6551 = vpack.c.b16 %v6519, %v6519
        %v6552 = vpack.c.b16 %v6520, %v6520
        %v6553 = vpack.c.b16 %v6521, %v6521
        %v6554 = vpack.c.b16 %v6522, %v6522
        %v6555 = vpack.c.b16 %v6523, %v6523
        %v6556 = vpack.c.b16 %v6524, %v6524
        %v6557 = vpack.c.b16 %v6525, %v6525
        %v6558 = vpack.c.b16 %v6526, %v6526
        %v6559 = vpack.c.b16 %v6527, %v6527
        %v6560 = vpack.c.b16 %v6528, %v6528
        %v6561 = vpack.c.b16 %v6529, %v6529
        %v6562 = vpack.c.b16 %v6530, %v6530
        %v6563 = vpack.c.b16 %v6531, %v6531
        %v6564 = vpack.c.b16 %v6532, %v6532
        %v6565 = vpack.c.b16 %v6533, %v6533
        %v6566 = vpack.c.b16 %v6534, %v6534
        %v6567 = vpack.c.b16 %v6535, %v6535
        %v6568 = vpack.c.b16 %v6536, %v6536
        %v6569 = vpack.c.b16 %v6537, %v6537
        %v6570 = vpack.c.b16 %v6538, %v6538
        %v6571 = vpack.c.b16 %v6539, %v6539
        %v6572 = vpack.c.b16 %v6540, %v6540
        %v6573 = vpack.c.b16 %v6541, %v6541
        %v6574 = vpack.c.b16 %v6542, %v6542
        %v6575 = vpack.c.b16 %v6543, %v6543
        %v6576 = vpack.c.b16 %v6544, %v6544
        %v6577 = vpack.c.b16 %v6545, %v6545
        %v6578 = vpack.c.b16 %v6546, %v6546
        %v6579 = vpack.c.b16 %v6547, %v6547
        %v6580 = vpack.c.b16 %v6548, %v6548
        %v6581 = vpack.c.b16 %v6549, %v6549
        %v6582 = vpack.c.b16 %v6550, %v6550
        %6615 = vst [vmem:[#allocation5 + $0x4] sm:$0xf] %v6551
        %6616 = vst [vmem:[#allocation5 + $0x18] sm:$0xf] %v6552
        %6617 = vst [vmem:[#allocation5 + $0x2c] sm:$0xf] %v6553
        %6618 = vst [vmem:[#allocation5 + $0x40] sm:$0xf] %v6554
        %6619 = vst [vmem:[#allocation5 + $0x54] sm:$0xf] %v6555
        %6620 = vst [vmem:[#allocation5 + $0x68] sm:$0xf] %v6556
        %6621 = vst [vmem:[#allocation5 + $0x7c] sm:$0xf] %v6557
        %6622 = vst [vmem:[#allocation5 + $0x90] sm:$0xf] %v6558
        %6623 = vst [vmem:[#allocation5 + $0xa4] sm:$0xf] %v6559
        %6624 = vst [vmem:[#allocation5 + $0xb8] sm:$0xf] %v6560
        %6625 = vst [vmem:[#allocation5 + $0xcc] sm:$0xf] %v6561
        %6626 = vst [vmem:[#allocation5 + $0xe0] sm:$0xf] %v6562
        %6627 = vst [vmem:[#allocation5 + $0xf4] sm:$0xf] %v6563
        %6628 = vst [vmem:[#allocation5 + $0x108] sm:$0xf] %v6564
        %6629 = vst [vmem:[#allocation5 + $0x11c] sm:$0xf] %v6565
        %6630 = vst [vmem:[#allocation5 + $0x130] sm:$0xf] %v6566
        %6631 = vst [vmem:[#allocation5 + $0x144] sm:$0xf] %v6567
        %6632 = vst [vmem:[#allocation5 + $0x158] sm:$0xf] %v6568
        %6633 = vst [vmem:[#allocation5 + $0x16c] sm:$0xf] %v6569
        %6634 = vst [vmem:[#allocation5 + $0x180] sm:$0xf] %v6570
        %6635 = vst [vmem:[#allocation5 + $0x194] sm:$0xf] %v6571
        %6636 = vst [vmem:[#allocation5 + $0x1a8] sm:$0xf] %v6572
        %6637 = vst [vmem:[#allocation5 + $0x1bc] sm:$0xf] %v6573
        %6638 = vst [vmem:[#allocation5 + $0x1d0] sm:$0xf] %v6574
        %6639 = vst [vmem:[#allocation5 + $0x1e4] sm:$0xf] %v6575
        %6640 = vst [vmem:[#allocation5 + $0x1f8] sm:$0xf] %v6576
        %6641 = vst [vmem:[#allocation5 + $0x20c] sm:$0xf] %v6577
        %6642 = vst [vmem:[#allocation5 + $0x220] sm:$0xf] %v6578
        %6643 = vst [vmem:[#allocation5 + $0x234] sm:$0xf] %v6579
        %6644 = vst [vmem:[#allocation5 + $0x248] sm:$0xf] %v6580
        %6645 = vst [vmem:[#allocation5 + $0x25c] sm:$0xf] %v6581
        %6646 = vst [vmem:[#allocation5 + $0x270] sm:$0xf] %v6582
        %6679 = vrot.lane.b32.xlu0 %v5878, 64
        %v6680 = vpop.permute.xlu0 %6679
        %6681 = vrot.lane.b32.xlu0 %v5879, 64
        %v6682 = vpop.permute.xlu0 %6681
        %6683 = vrot.lane.b32.xlu0 %v5880, 64
        %v6684 = vpop.permute.xlu0 %6683
        %6685 = vrot.lane.b32.xlu0 %v5881, 64
        %v6686 = vpop.permute.xlu0 %6685
        %6687 = vrot.lane.b32.xlu0 %v5882, 64
        %v6688 = vpop.permute.xlu0 %6687
        %6689 = vrot.lane.b32.xlu0 %v5883, 64
        %v6690 = vpop.permute.xlu0 %6689
        %6691 = vrot.lane.b32.xlu0 %v5884, 64
        %v6692 = vpop.permute.xlu0 %6691
        %6693 = vrot.lane.b32.xlu0 %v5885, 64
        %v6694 = vpop.permute.xlu0 %6693
        %6695 = vrot.lane.b32.xlu0 %v5886, 64
        %v6696 = vpop.permute.xlu0 %6695
        %6697 = vrot.lane.b32.xlu0 %v5887, 64
        %v6698 = vpop.permute.xlu0 %6697
        %6699 = vrot.lane.b32.xlu0 %v5888, 64
        %v6700 = vpop.permute.xlu0 %6699
        %6701 = vrot.lane.b32.xlu0 %v5889, 64
        %v6702 = vpop.permute.xlu0 %6701
        %6703 = vrot.lane.b32.xlu0 %v5890, 64
        %v6704 = vpop.permute.xlu0 %6703
        %6705 = vrot.lane.b32.xlu0 %v5891, 64
        %v6706 = vpop.permute.xlu0 %6705
        %6707 = vrot.lane.b32.xlu0 %v5892, 64
        %v6708 = vpop.permute.xlu0 %6707
        %6709 = vrot.lane.b32.xlu0 %v5893, 64
        %v6710 = vpop.permute.xlu0 %6709
        %6711 = vrot.lane.b32.xlu0 %v5894, 64
        %v6712 = vpop.permute.xlu0 %6711
        %6713 = vrot.lane.b32.xlu0 %v5895, 64
        %v6714 = vpop.permute.xlu0 %6713
        %6715 = vrot.lane.b32.xlu0 %v5896, 64
        %v6716 = vpop.permute.xlu0 %6715
        %6717 = vrot.lane.b32.xlu0 %v5897, 64
        %v6718 = vpop.permute.xlu0 %6717
        %6719 = vrot.lane.b32.xlu0 %v5898, 64
        %v6720 = vpop.permute.xlu0 %6719
        %6721 = vrot.lane.b32.xlu0 %v5899, 64
        %v6722 = vpop.permute.xlu0 %6721
        %6723 = vrot.lane.b32.xlu0 %v5900, 64
        %v6724 = vpop.permute.xlu0 %6723
        %6725 = vrot.lane.b32.xlu0 %v5901, 64
        %v6726 = vpop.permute.xlu0 %6725
        %6727 = vrot.lane.b32.xlu0 %v5902, 64
        %v6728 = vpop.permute.xlu0 %6727
        %6729 = vrot.lane.b32.xlu0 %v5903, 64
        %v6730 = vpop.permute.xlu0 %6729
        %6731 = vrot.lane.b32.xlu0 %v5904, 64
        %v6732 = vpop.permute.xlu0 %6731
        %6733 = vrot.lane.b32.xlu0 %v5905, 64
        %v6734 = vpop.permute.xlu0 %6733
        %6735 = vrot.lane.b32.xlu0 %v5906, 64
        %v6736 = vpop.permute.xlu0 %6735
        %6737 = vrot.lane.b32.xlu0 %v5907, 64
        %v6738 = vpop.permute.xlu0 %6737
        %6739 = vrot.lane.b32.xlu0 %v5908, 64
        %v6740 = vpop.permute.xlu0 %6739
        %6741 = vrot.lane.b32.xlu0 %v5909, 64
        %v6742 = vpop.permute.xlu0 %6741
        %v6775 = vsel %vm1674, %v5846, %v6680
        %v6776 = vsel %vm1674, %v5847, %v6682
        %v6777 = vsel %vm1674, %v5848, %v6684
        %v6778 = vsel %vm1674, %v5849, %v6686
        %v6779 = vsel %vm1674, %v5850, %v6688
        %v6780 = vsel %vm1674, %v5851, %v6690
        %v6781 = vsel %vm1674, %v5852, %v6692
        %v6782 = vsel %vm1674, %v5853, %v6694
        %v6783 = vsel %vm1674, %v5854, %v6696
        %v6784 = vsel %vm1674, %v5855, %v6698
        %v6785 = vsel %vm1674, %v5856, %v6700
        %v6786 = vsel %vm1674, %v5857, %v6702
        %v6787 = vsel %vm1674, %v5858, %v6704
        %v6788 = vsel %vm1674, %v5859, %v6706
        %v6789 = vsel %vm1674, %v5860, %v6708
        %v6790 = vsel %vm1674, %v5861, %v6710
        %v6791 = vsel %vm1674, %v5862, %v6712
        %v6792 = vsel %vm1674, %v5863, %v6714
        %v6793 = vsel %vm1674, %v5864, %v6716
        %v6794 = vsel %vm1674, %v5865, %v6718
        %v6795 = vsel %vm1674, %v5866, %v6720
        %v6796 = vsel %vm1674, %v5867, %v6722
        %v6797 = vsel %vm1674, %v5868, %v6724
        %v6798 = vsel %vm1674, %v5869, %v6726
        %v6799 = vsel %vm1674, %v5870, %v6728
        %v6800 = vsel %vm1674, %v5871, %v6730
        %v6801 = vsel %vm1674, %v5872, %v6732
        %v6802 = vsel %vm1674, %v5873, %v6734
        %v6803 = vsel %vm1674, %v5874, %v6736
        %v6804 = vsel %vm1674, %v5875, %v6738
        %v6805 = vsel %vm1674, %v5876, %v6740
        %v6806 = vsel %vm1674, %v5877, %v6742
        %v6807 = vpack.c.bf16 %v6776, %v6775
        %v6808 = vpack.c.bf16 %v6778, %v6777
        %v6809 = vpack.c.bf16 %v6780, %v6779
        %v6810 = vpack.c.bf16 %v6782, %v6781
        %v6811 = vpack.c.bf16 %v6784, %v6783
        %v6812 = vpack.c.bf16 %v6786, %v6785
        %v6813 = vpack.c.bf16 %v6788, %v6787
        %v6814 = vpack.c.bf16 %v6790, %v6789
        %v6815 = vpack.c.bf16 %v6792, %v6791
        %v6816 = vpack.c.bf16 %v6794, %v6793
        %v6817 = vpack.c.bf16 %v6796, %v6795
        %v6818 = vpack.c.bf16 %v6798, %v6797
        %v6819 = vpack.c.bf16 %v6800, %v6799
        %v6820 = vpack.c.bf16 %v6802, %v6801
        %v6821 = vpack.c.bf16 %v6804, %v6803
        %v6822 = vpack.c.bf16 %v6806, %v6805
        %v6839 = vunpack.c.l.b16 %v6807
        %v6840 = vunpack.c.h.b16 %v6807
        %v6841 = vunpack.c.l.b16 %v6808
        %v6842 = vunpack.c.h.b16 %v6808
        %v6843 = vunpack.c.l.b16 %v6809
        %v6844 = vunpack.c.h.b16 %v6809
        %v6845 = vunpack.c.l.b16 %v6810
        %v6846 = vunpack.c.h.b16 %v6810
        %v6847 = vunpack.c.l.b16 %v6811
        %v6848 = vunpack.c.h.b16 %v6811
        %v6849 = vunpack.c.l.b16 %v6812
        %v6850 = vunpack.c.h.b16 %v6812
        %v6851 = vunpack.c.l.b16 %v6813
        %v6852 = vunpack.c.h.b16 %v6813
        %v6853 = vunpack.c.l.b16 %v6814
        %v6854 = vunpack.c.h.b16 %v6814
        %v6855 = vunpack.c.l.b16 %v6815
        %v6856 = vunpack.c.h.b16 %v6815
        %v6857 = vunpack.c.l.b16 %v6816
        %v6858 = vunpack.c.h.b16 %v6816
        %v6859 = vunpack.c.l.b16 %v6817
        %v6860 = vunpack.c.h.b16 %v6817
        %v6861 = vunpack.c.l.b16 %v6818
        %v6862 = vunpack.c.h.b16 %v6818
        %v6863 = vunpack.c.l.b16 %v6819
        %v6864 = vunpack.c.h.b16 %v6819
        %v6865 = vunpack.c.l.b16 %v6820
        %v6866 = vunpack.c.h.b16 %v6820
        %v6867 = vunpack.c.l.b16 %v6821
        %v6868 = vunpack.c.h.b16 %v6821
        %v6869 = vunpack.c.l.b16 %v6822
        %v6870 = vunpack.c.h.b16 %v6822
        %v6871 = vpack.c.b16 %v6839, %v6839
        %v6872 = vpack.c.b16 %v6840, %v6840
        %v6873 = vpack.c.b16 %v6841, %v6841
        %v6874 = vpack.c.b16 %v6842, %v6842
        %v6875 = vpack.c.b16 %v6843, %v6843
        %v6876 = vpack.c.b16 %v6844, %v6844
        %v6877 = vpack.c.b16 %v6845, %v6845
        %v6878 = vpack.c.b16 %v6846, %v6846
        %v6879 = vpack.c.b16 %v6847, %v6847
        %v6880 = vpack.c.b16 %v6848, %v6848
        %v6881 = vpack.c.b16 %v6849, %v6849
        %v6882 = vpack.c.b16 %v6850, %v6850
        %v6883 = vpack.c.b16 %v6851, %v6851
        %v6884 = vpack.c.b16 %v6852, %v6852
        %v6885 = vpack.c.b16 %v6853, %v6853
        %v6886 = vpack.c.b16 %v6854, %v6854
        %v6887 = vpack.c.b16 %v6855, %v6855
        %v6888 = vpack.c.b16 %v6856, %v6856
        %v6889 = vpack.c.b16 %v6857, %v6857
        %v6890 = vpack.c.b16 %v6858, %v6858
        %v6891 = vpack.c.b16 %v6859, %v6859
        %v6892 = vpack.c.b16 %v6860, %v6860
        %v6893 = vpack.c.b16 %v6861, %v6861
        %v6894 = vpack.c.b16 %v6862, %v6862
        %v6895 = vpack.c.b16 %v6863, %v6863
        %v6896 = vpack.c.b16 %v6864, %v6864
        %v6897 = vpack.c.b16 %v6865, %v6865
        %v6898 = vpack.c.b16 %v6866, %v6866
        %v6899 = vpack.c.b16 %v6867, %v6867
        %v6900 = vpack.c.b16 %v6868, %v6868
        %v6901 = vpack.c.b16 %v6869, %v6869
        %v6902 = vpack.c.b16 %v6870, %v6870
        %6935 = vst [vmem:[#allocation5 + $0x8] sm:$0xf] %v6871
        %6936 = vst [vmem:[#allocation5 + $0x1c] sm:$0xf] %v6872
        %6937 = vst [vmem:[#allocation5 + $0x30] sm:$0xf] %v6873
        %6938 = vst [vmem:[#allocation5 + $0x44] sm:$0xf] %v6874
        %6939 = vst [vmem:[#allocation5 + $0x58] sm:$0xf] %v6875
        %6940 = vst [vmem:[#allocation5 + $0x6c] sm:$0xf] %v6876
        %6941 = vst [vmem:[#allocation5 + $0x80] sm:$0xf] %v6877
        %6942 = vst [vmem:[#allocation5 + $0x94] sm:$0xf] %v6878
        %6943 = vst [vmem:[#allocation5 + $0xa8] sm:$0xf] %v6879
        %6944 = vst [vmem:[#allocation5 + $0xbc] sm:$0xf] %v6880
        %6945 = vst [vmem:[#allocation5 + $0xd0] sm:$0xf] %v6881
        %6946 = vst [vmem:[#allocation5 + $0xe4] sm:$0xf] %v6882
        %6947 = vst [vmem:[#allocation5 + $0xf8] sm:$0xf] %v6883
        %6948 = vst [vmem:[#allocation5 + $0x10c] sm:$0xf] %v6884
        %6949 = vst [vmem:[#allocation5 + $0x120] sm:$0xf] %v6885
        %6950 = vst [vmem:[#allocation5 + $0x134] sm:$0xf] %v6886
        %6951 = vst [vmem:[#allocation5 + $0x148] sm:$0xf] %v6887
        %6952 = vst [vmem:[#allocation5 + $0x15c] sm:$0xf] %v6888
        %6953 = vst [vmem:[#allocation5 + $0x170] sm:$0xf] %v6889
        %6954 = vst [vmem:[#allocation5 + $0x184] sm:$0xf] %v6890
        %6955 = vst [vmem:[#allocation5 + $0x198] sm:$0xf] %v6891
        %6956 = vst [vmem:[#allocation5 + $0x1ac] sm:$0xf] %v6892
        %6957 = vst [vmem:[#allocation5 + $0x1c0] sm:$0xf] %v6893
        %6958 = vst [vmem:[#allocation5 + $0x1d4] sm:$0xf] %v6894
        %6959 = vst [vmem:[#allocation5 + $0x1e8] sm:$0xf] %v6895
        %6960 = vst [vmem:[#allocation5 + $0x1fc] sm:$0xf] %v6896
        %6961 = vst [vmem:[#allocation5 + $0x210] sm:$0xf] %v6897
        %6962 = vst [vmem:[#allocation5 + $0x224] sm:$0xf] %v6898
        %6963 = vst [vmem:[#allocation5 + $0x238] sm:$0xf] %v6899
        %6964 = vst [vmem:[#allocation5 + $0x24c] sm:$0xf] %v6900
        %6965 = vst [vmem:[#allocation5 + $0x260] sm:$0xf] %v6901
        %6966 = vst [vmem:[#allocation5 + $0x274] sm:$0xf] %v6902
        %6999 = vrot.lane.b32.xlu0 %v5943, 64
        %v7000 = vpop.permute.xlu0 %6999
        %7001 = vrot.lane.b32.xlu0 %v5944, 64
        %v7002 = vpop.permute.xlu0 %7001
        %7003 = vrot.lane.b32.xlu0 %v5945, 64
        %v7004 = vpop.permute.xlu0 %7003
        %7005 = vrot.lane.b32.xlu0 %v5946, 64
        %v7006 = vpop.permute.xlu0 %7005
        %7007 = vrot.lane.b32.xlu0 %v5947, 64
        %v7008 = vpop.permute.xlu0 %7007
        %7009 = vrot.lane.b32.xlu0 %v5948, 64
        %v7010 = vpop.permute.xlu0 %7009
        %7011 = vrot.lane.b32.xlu0 %v5949, 64
        %v7012 = vpop.permute.xlu0 %7011
        %7013 = vrot.lane.b32.xlu0 %v5950, 64
        %v7014 = vpop.permute.xlu0 %7013
        %7015 = vrot.lane.b32.xlu0 %v5951, 64
        %v7016 = vpop.permute.xlu0 %7015
        %7017 = vrot.lane.b32.xlu0 %v5952, 64
        %v7018 = vpop.permute.xlu0 %7017
        %7019 = vrot.lane.b32.xlu0 %v5953, 64
        %v7020 = vpop.permute.xlu0 %7019
        %7021 = vrot.lane.b32.xlu0 %v5954, 64
        %v7022 = vpop.permute.xlu0 %7021
        %7023 = vrot.lane.b32.xlu0 %v5955, 64
        %v7024 = vpop.permute.xlu0 %7023
        %7025 = vrot.lane.b32.xlu0 %v5956, 64
        %v7026 = vpop.permute.xlu0 %7025
        %7027 = vrot.lane.b32.xlu0 %v5957, 64
        %v7028 = vpop.permute.xlu0 %7027
        %7029 = vrot.lane.b32.xlu0 %v5958, 64
        %v7030 = vpop.permute.xlu0 %7029
        %7031 = vrot.lane.b32.xlu0 %v5959, 64
        %v7032 = vpop.permute.xlu0 %7031
        %7033 = vrot.lane.b32.xlu0 %v5960, 64
        %v7034 = vpop.permute.xlu0 %7033
        %7035 = vrot.lane.b32.xlu0 %v5961, 64
        %v7036 = vpop.permute.xlu0 %7035
        %7037 = vrot.lane.b32.xlu0 %v5962, 64
        %v7038 = vpop.permute.xlu0 %7037
        %7039 = vrot.lane.b32.xlu0 %v5963, 64
        %v7040 = vpop.permute.xlu0 %7039
        %7041 = vrot.lane.b32.xlu0 %v5964, 64
        %v7042 = vpop.permute.xlu0 %7041
        %7043 = vrot.lane.b32.xlu0 %v5965, 64
        %v7044 = vpop.permute.xlu0 %7043
        %7045 = vrot.lane.b32.xlu0 %v5966, 64
        %v7046 = vpop.permute.xlu0 %7045
        %7047 = vrot.lane.b32.xlu0 %v5967, 64
        %v7048 = vpop.permute.xlu0 %7047
        %7049 = vrot.lane.b32.xlu0 %v5968, 64
        %v7050 = vpop.permute.xlu0 %7049
        %7051 = vrot.lane.b32.xlu0 %v5969, 64
        %v7052 = vpop.permute.xlu0 %7051
        %7053 = vrot.lane.b32.xlu0 %v5970, 64
        %v7054 = vpop.permute.xlu0 %7053
        %7055 = vrot.lane.b32.xlu0 %v5971, 64
        %v7056 = vpop.permute.xlu0 %7055
        %7057 = vrot.lane.b32.xlu0 %v5972, 64
        %v7058 = vpop.permute.xlu0 %7057
        %7059 = vrot.lane.b32.xlu0 %v5973, 64
        %v7060 = vpop.permute.xlu0 %7059
        %7061 = vrot.lane.b32.xlu0 %v5974, 64
        %v7062 = vpop.permute.xlu0 %7061
        %v7095 = vsel %vm1674, %v5911, %v7000
        %v7096 = vsel %vm1674, %v5912, %v7002
        %v7097 = vsel %vm1674, %v5913, %v7004
        %v7098 = vsel %vm1674, %v5914, %v7006
        %v7099 = vsel %vm1674, %v5915, %v7008
        %v7100 = vsel %vm1674, %v5916, %v7010
        %v7101 = vsel %vm1674, %v5917, %v7012
        %v7102 = vsel %vm1674, %v5918, %v7014
        %v7103 = vsel %vm1674, %v5919, %v7016
        %v7104 = vsel %vm1674, %v5920, %v7018
        %v7105 = vsel %vm1674, %v5921, %v7020
        %v7106 = vsel %vm1674, %v5922, %v7022
        %v7107 = vsel %vm1674, %v5923, %v7024
        %v7108 = vsel %vm1674, %v5924, %v7026
        %v7109 = vsel %vm1674, %v5925, %v7028
        %v7110 = vsel %vm1674, %v5926, %v7030
        %v7111 = vsel %vm1674, %v5927, %v7032
        %v7112 = vsel %vm1674, %v5928, %v7034
        %v7113 = vsel %vm1674, %v5929, %v7036
        %v7114 = vsel %vm1674, %v5930, %v7038
        %v7115 = vsel %vm1674, %v5931, %v7040
        %v7116 = vsel %vm1674, %v5932, %v7042
        %v7117 = vsel %vm1674, %v5933, %v7044
        %v7118 = vsel %vm1674, %v5934, %v7046
        %v7119 = vsel %vm1674, %v5935, %v7048
        %v7120 = vsel %vm1674, %v5936, %v7050
        %v7121 = vsel %vm1674, %v5937, %v7052
        %v7122 = vsel %vm1674, %v5938, %v7054
        %v7123 = vsel %vm1674, %v5939, %v7056
        %v7124 = vsel %vm1674, %v5940, %v7058
        %v7125 = vsel %vm1674, %v5941, %v7060
        %v7126 = vsel %vm1674, %v5942, %v7062
        %v7127 = vpack.c.bf16 %v7096, %v7095
        %v7128 = vpack.c.bf16 %v7098, %v7097
        %v7129 = vpack.c.bf16 %v7100, %v7099
        %v7130 = vpack.c.bf16 %v7102, %v7101
        %v7131 = vpack.c.bf16 %v7104, %v7103
        %v7132 = vpack.c.bf16 %v7106, %v7105
        %v7133 = vpack.c.bf16 %v7108, %v7107
        %v7134 = vpack.c.bf16 %v7110, %v7109
        %v7135 = vpack.c.bf16 %v7112, %v7111
        %v7136 = vpack.c.bf16 %v7114, %v7113
        %v7137 = vpack.c.bf16 %v7116, %v7115
        %v7138 = vpack.c.bf16 %v7118, %v7117
        %v7139 = vpack.c.bf16 %v7120, %v7119
        %v7140 = vpack.c.bf16 %v7122, %v7121
        %v7141 = vpack.c.bf16 %v7124, %v7123
        %v7142 = vpack.c.bf16 %v7126, %v7125
        %v7159 = vunpack.c.l.b16 %v7127
        %v7160 = vunpack.c.h.b16 %v7127
        %v7161 = vunpack.c.l.b16 %v7128
        %v7162 = vunpack.c.h.b16 %v7128
        %v7163 = vunpack.c.l.b16 %v7129
        %v7164 = vunpack.c.h.b16 %v7129
        %v7165 = vunpack.c.l.b16 %v7130
        %v7166 = vunpack.c.h.b16 %v7130
        %v7167 = vunpack.c.l.b16 %v7131
        %v7168 = vunpack.c.h.b16 %v7131
        %v7169 = vunpack.c.l.b16 %v7132
        %v7170 = vunpack.c.h.b16 %v7132
        %v7171 = vunpack.c.l.b16 %v7133
        %v7172 = vunpack.c.h.b16 %v7133
        %v7173 = vunpack.c.l.b16 %v7134
        %v7174 = vunpack.c.h.b16 %v7134
        %v7175 = vunpack.c.l.b16 %v7135
        %v7176 = vunpack.c.h.b16 %v7135
        %v7177 = vunpack.c.l.b16 %v7136
        %v7178 = vunpack.c.h.b16 %v7136
        %v7179 = vunpack.c.l.b16 %v7137
        %v7180 = vunpack.c.h.b16 %v7137
        %v7181 = vunpack.c.l.b16 %v7138
        %v7182 = vunpack.c.h.b16 %v7138
        %v7183 = vunpack.c.l.b16 %v7139
        %v7184 = vunpack.c.h.b16 %v7139
        %v7185 = vunpack.c.l.b16 %v7140
        %v7186 = vunpack.c.h.b16 %v7140
        %v7187 = vunpack.c.l.b16 %v7141
        %v7188 = vunpack.c.h.b16 %v7141
        %v7189 = vunpack.c.l.b16 %v7142
        %v7190 = vunpack.c.h.b16 %v7142
        %v7191 = vpack.c.b16 %v7159, %v7159
        %v7192 = vpack.c.b16 %v7160, %v7160
        %v7193 = vpack.c.b16 %v7161, %v7161
        %v7194 = vpack.c.b16 %v7162, %v7162
        %v7195 = vpack.c.b16 %v7163, %v7163
        %v7196 = vpack.c.b16 %v7164, %v7164
        %v7197 = vpack.c.b16 %v7165, %v7165
        %v7198 = vpack.c.b16 %v7166, %v7166
        %v7199 = vpack.c.b16 %v7167, %v7167
        %v7200 = vpack.c.b16 %v7168, %v7168
        %v7201 = vpack.c.b16 %v7169, %v7169
        %v7202 = vpack.c.b16 %v7170, %v7170
        %v7203 = vpack.c.b16 %v7171, %v7171
        %v7204 = vpack.c.b16 %v7172, %v7172
        %v7205 = vpack.c.b16 %v7173, %v7173
        %v7206 = vpack.c.b16 %v7174, %v7174
        %v7207 = vpack.c.b16 %v7175, %v7175
        %v7208 = vpack.c.b16 %v7176, %v7176
        %v7209 = vpack.c.b16 %v7177, %v7177
        %v7210 = vpack.c.b16 %v7178, %v7178
        %v7211 = vpack.c.b16 %v7179, %v7179
        %v7212 = vpack.c.b16 %v7180, %v7180
        %v7213 = vpack.c.b16 %v7181, %v7181
        %v7214 = vpack.c.b16 %v7182, %v7182
        %v7215 = vpack.c.b16 %v7183, %v7183
        %v7216 = vpack.c.b16 %v7184, %v7184
        %v7217 = vpack.c.b16 %v7185, %v7185
        %v7218 = vpack.c.b16 %v7186, %v7186
        %v7219 = vpack.c.b16 %v7187, %v7187
        %v7220 = vpack.c.b16 %v7188, %v7188
        %v7221 = vpack.c.b16 %v7189, %v7189
        %v7222 = vpack.c.b16 %v7190, %v7190
        %7255 = vst [vmem:[#allocation5 + $0xc] sm:$0xf] %v7191
        %7256 = vst [vmem:[#allocation5 + $0x20] sm:$0xf] %v7192
        %7257 = vst [vmem:[#allocation5 + $0x34] sm:$0xf] %v7193
        %7258 = vst [vmem:[#allocation5 + $0x48] sm:$0xf] %v7194
        %7259 = vst [vmem:[#allocation5 + $0x5c] sm:$0xf] %v7195
        %7260 = vst [vmem:[#allocation5 + $0x70] sm:$0xf] %v7196
        %7261 = vst [vmem:[#allocation5 + $0x84] sm:$0xf] %v7197
        %7262 = vst [vmem:[#allocation5 + $0x98] sm:$0xf] %v7198
        %7263 = vst [vmem:[#allocation5 + $0xac] sm:$0xf] %v7199
        %7264 = vst [vmem:[#allocation5 + $0xc0] sm:$0xf] %v7200
        %7265 = vst [vmem:[#allocation5 + $0xd4] sm:$0xf] %v7201
        %7266 = vst [vmem:[#allocation5 + $0xe8] sm:$0xf] %v7202
        %7267 = vst [vmem:[#allocation5 + $0xfc] sm:$0xf] %v7203
        %7268 = vst [vmem:[#allocation5 + $0x110] sm:$0xf] %v7204
        %7269 = vst [vmem:[#allocation5 + $0x124] sm:$0xf] %v7205
        %7270 = vst [vmem:[#allocation5 + $0x138] sm:$0xf] %v7206
        %7271 = vst [vmem:[#allocation5 + $0x14c] sm:$0xf] %v7207
        %7272 = vst [vmem:[#allocation5 + $0x160] sm:$0xf] %v7208
        %7273 = vst [vmem:[#allocation5 + $0x174] sm:$0xf] %v7209
        %7274 = vst [vmem:[#allocation5 + $0x188] sm:$0xf] %v7210
        %7275 = vst [vmem:[#allocation5 + $0x19c] sm:$0xf] %v7211
        %7276 = vst [vmem:[#allocation5 + $0x1b0] sm:$0xf] %v7212
        %7277 = vst [vmem:[#allocation5 + $0x1c4] sm:$0xf] %v7213
        %7278 = vst [vmem:[#allocation5 + $0x1d8] sm:$0xf] %v7214
        %7279 = vst [vmem:[#allocation5 + $0x1ec] sm:$0xf] %v7215
        %7280 = vst [vmem:[#allocation5 + $0x200] sm:$0xf] %v7216
        %7281 = vst [vmem:[#allocation5 + $0x214] sm:$0xf] %v7217
        %7282 = vst [vmem:[#allocation5 + $0x228] sm:$0xf] %v7218
        %7283 = vst [vmem:[#allocation5 + $0x23c] sm:$0xf] %v7219
        %7284 = vst [vmem:[#allocation5 + $0x250] sm:$0xf] %v7220
        %7285 = vst [vmem:[#allocation5 + $0x264] sm:$0xf] %v7221
        %7286 = vst [vmem:[#allocation5 + $0x278] sm:$0xf] %v7222
        %v7287 = vpack.c.bf16 %v5976, %v5975
        %v7288 = vpack.c.bf16 %v5978, %v5977
        %v7289 = vpack.c.bf16 %v5980, %v5979
        %v7290 = vpack.c.bf16 %v5982, %v5981
        %v7291 = vpack.c.bf16 %v5984, %v5983
        %v7292 = vpack.c.bf16 %v5986, %v5985
        %v7293 = vpack.c.bf16 %v5988, %v5987
        %v7294 = vpack.c.bf16 %v5990, %v5989
        %v7295 = vpack.c.bf16 %v5992, %v5991
        %v7296 = vpack.c.bf16 %v5994, %v5993
        %v7297 = vpack.c.bf16 %v5996, %v5995
        %v7298 = vpack.c.bf16 %v5998, %v5997
        %v7299 = vpack.c.bf16 %v6000, %v5999
        %v7300 = vpack.c.bf16 %v6002, %v6001
        %v7301 = vpack.c.bf16 %v6004, %v6003
        %v7302 = vpack.c.bf16 %v6006, %v6005
        %v7319 = vunpack.c.l.b16 %v7287
        %v7320 = vunpack.c.h.b16 %v7287
        %v7321 = vunpack.c.l.b16 %v7288
        %v7322 = vunpack.c.h.b16 %v7288
        %v7323 = vunpack.c.l.b16 %v7289
        %v7324 = vunpack.c.h.b16 %v7289
        %v7325 = vunpack.c.l.b16 %v7290
        %v7326 = vunpack.c.h.b16 %v7290
        %v7327 = vunpack.c.l.b16 %v7291
        %v7328 = vunpack.c.h.b16 %v7291
        %v7329 = vunpack.c.l.b16 %v7292
        %v7330 = vunpack.c.h.b16 %v7292
        %v7331 = vunpack.c.l.b16 %v7293
        %v7332 = vunpack.c.h.b16 %v7293
        %v7333 = vunpack.c.l.b16 %v7294
        %v7334 = vunpack.c.h.b16 %v7294
        %v7335 = vunpack.c.l.b16 %v7295
        %v7336 = vunpack.c.h.b16 %v7295
        %v7337 = vunpack.c.l.b16 %v7296
        %v7338 = vunpack.c.h.b16 %v7296
        %v7339 = vunpack.c.l.b16 %v7297
        %v7340 = vunpack.c.h.b16 %v7297
        %v7341 = vunpack.c.l.b16 %v7298
        %v7342 = vunpack.c.h.b16 %v7298
        %v7343 = vunpack.c.l.b16 %v7299
        %v7344 = vunpack.c.h.b16 %v7299
        %v7345 = vunpack.c.l.b16 %v7300
        %v7346 = vunpack.c.h.b16 %v7300
        %v7347 = vunpack.c.l.b16 %v7301
        %v7348 = vunpack.c.h.b16 %v7301
        %v7349 = vunpack.c.l.b16 %v7302
        %v7350 = vunpack.c.h.b16 %v7302
        %v7351 = vpack.c.b16 %v7319, %v7319
        %v7352 = vpack.c.b16 %v7320, %v7320
        %v7353 = vpack.c.b16 %v7321, %v7321
        %v7354 = vpack.c.b16 %v7322, %v7322
        %v7355 = vpack.c.b16 %v7323, %v7323
        %v7356 = vpack.c.b16 %v7324, %v7324
        %v7357 = vpack.c.b16 %v7325, %v7325
        %v7358 = vpack.c.b16 %v7326, %v7326
        %v7359 = vpack.c.b16 %v7327, %v7327
        %v7360 = vpack.c.b16 %v7328, %v7328
        %v7361 = vpack.c.b16 %v7329, %v7329
        %v7362 = vpack.c.b16 %v7330, %v7330
        %v7363 = vpack.c.b16 %v7331, %v7331
        %v7364 = vpack.c.b16 %v7332, %v7332
        %v7365 = vpack.c.b16 %v7333, %v7333
        %v7366 = vpack.c.b16 %v7334, %v7334
        %v7367 = vpack.c.b16 %v7335, %v7335
        %v7368 = vpack.c.b16 %v7336, %v7336
        %v7369 = vpack.c.b16 %v7337, %v7337
        %v7370 = vpack.c.b16 %v7338, %v7338
        %v7371 = vpack.c.b16 %v7339, %v7339
        %v7372 = vpack.c.b16 %v7340, %v7340
        %v7373 = vpack.c.b16 %v7341, %v7341
        %v7374 = vpack.c.b16 %v7342, %v7342
        %v7375 = vpack.c.b16 %v7343, %v7343
        %v7376 = vpack.c.b16 %v7344, %v7344
        %v7377 = vpack.c.b16 %v7345, %v7345
        %v7378 = vpack.c.b16 %v7346, %v7346
        %v7379 = vpack.c.b16 %v7347, %v7347
        %v7380 = vpack.c.b16 %v7348, %v7348
        %v7381 = vpack.c.b16 %v7349, %v7349
        %v7382 = vpack.c.b16 %v7350, %v7350
        %vm7415 = vcmask 519168
        %7416 = vst.msk [vmem:[#allocation5 + $0x10] sm:$0xf] %vm7415, %v7351
        %7417 = vst.msk [vmem:[#allocation5 + $0x24] sm:$0xf] %vm7415, %v7352
        %7418 = vst.msk [vmem:[#allocation5 + $0x38] sm:$0xf] %vm7415, %v7353
        %7419 = vst.msk [vmem:[#allocation5 + $0x4c] sm:$0xf] %vm7415, %v7354
        %7420 = vst.msk [vmem:[#allocation5 + $0x60] sm:$0xf] %vm7415, %v7355
        %7421 = vst.msk [vmem:[#allocation5 + $0x74] sm:$0xf] %vm7415, %v7356
        %7422 = vst.msk [vmem:[#allocation5 + $0x88] sm:$0xf] %vm7415, %v7357
        %7423 = vst.msk [vmem:[#allocation5 + $0x9c] sm:$0xf] %vm7415, %v7358
        %7424 = vst.msk [vmem:[#allocation5 + $0xb0] sm:$0xf] %vm7415, %v7359
        %7425 = vst.msk [vmem:[#allocation5 + $0xc4] sm:$0xf] %vm7415, %v7360
        %7426 = vst.msk [vmem:[#allocation5 + $0xd8] sm:$0xf] %vm7415, %v7361
        %7427 = vst.msk [vmem:[#allocation5 + $0xec] sm:$0xf] %vm7415, %v7362
        %7428 = vst.msk [vmem:[#allocation5 + $0x100] sm:$0xf] %vm7415, %v7363
        %7429 = vst.msk [vmem:[#allocation5 + $0x114] sm:$0xf] %vm7415, %v7364
        %7430 = vst.msk [vmem:[#allocation5 + $0x128] sm:$0xf] %vm7415, %v7365
        %7431 = vst.msk [vmem:[#allocation5 + $0x13c] sm:$0xf] %vm7415, %v7366
        %7432 = vst.msk [vmem:[#allocation5 + $0x150] sm:$0xf] %vm7415, %v7367
        %7433 = vst.msk [vmem:[#allocation5 + $0x164] sm:$0xf] %vm7415, %v7368
        %7434 = vst.msk [vmem:[#allocation5 + $0x178] sm:$0xf] %vm7415, %v7369
        %7435 = vst.msk [vmem:[#allocation5 + $0x18c] sm:$0xf] %vm7415, %v7370
        %7436 = vst.msk [vmem:[#allocation5 + $0x1a0] sm:$0xf] %vm7415, %v7371
        %7437 = vst.msk [vmem:[#allocation5 + $0x1b4] sm:$0xf] %vm7415, %v7372
        %7438 = vst.msk [vmem:[#allocation5 + $0x1c8] sm:$0xf] %vm7415, %v7373
        %7439 = vst.msk [vmem:[#allocation5 + $0x1dc] sm:$0xf] %vm7415, %v7374
        %7440 = vst.msk [vmem:[#allocation5 + $0x1f0] sm:$0xf] %vm7415, %v7375
        %7441 = vst.msk [vmem:[#allocation5 + $0x204] sm:$0xf] %vm7415, %v7376
        %7442 = vst.msk [vmem:[#allocation5 + $0x218] sm:$0xf] %vm7415, %v7377
        %7443 = vst.msk [vmem:[#allocation5 + $0x22c] sm:$0xf] %vm7415, %v7378
        %7444 = vst.msk [vmem:[#allocation5 + $0x240] sm:$0xf] %vm7415, %v7379
        %7445 = vst.msk [vmem:[#allocation5 + $0x254] sm:$0xf] %vm7415, %v7380
        %7446 = vst.msk [vmem:[#allocation5 + $0x268] sm:$0xf] %vm7415, %v7381
        %7447 = vst.msk [vmem:[#allocation5 + $0x27c] sm:$0xf] %vm7415, %v7382
        %v7448 = vld [vmem:[#allocation5] sm:$0xff]
        %v7449 = vld [vmem:[#allocation5 + $0x8] sm:$0xff]
        %v7450 = vld [vmem:[#allocation5 + $0x10] sm:$0xf]
        %v7451 = vld [vmem:[#allocation5 + $0x14] sm:$0xff]
        %v7452 = vld [vmem:[#allocation5 + $0x1c] sm:$0xff]
        %v7453 = vld [vmem:[#allocation5 + $0x24] sm:$0xf]
        %v7454 = vld [vmem:[#allocation5 + $0x28] sm:$0xff]
        %v7455 = vld [vmem:[#allocation5 + $0x30] sm:$0xff]
        %v7456 = vld [vmem:[#allocation5 + $0x38] sm:$0xf]
        %v7457 = vld [vmem:[#allocation5 + $0x3c] sm:$0xff]
        %v7458 = vld [vmem:[#allocation5 + $0x44] sm:$0xff]
        %v7459 = vld [vmem:[#allocation5 + $0x4c] sm:$0xf]
        %v7460 = vld [vmem:[#allocation5 + $0x50] sm:$0xff]
        %v7461 = vld [vmem:[#allocation5 + $0x58] sm:$0xff]
        %v7462 = vld [vmem:[#allocation5 + $0x60] sm:$0xf]
        %v7463 = vld [vmem:[#allocation5 + $0x64] sm:$0xff]
        %v7464 = vld [vmem:[#allocation5 + $0x6c] sm:$0xff]
        %v7465 = vld [vmem:[#allocation5 + $0x74] sm:$0xf]
        %v7466 = vld [vmem:[#allocation5 + $0x78] sm:$0xff]
        %v7467 = vld [vmem:[#allocation5 + $0x80] sm:$0xff]
        %v7468 = vld [vmem:[#allocation5 + $0x88] sm:$0xf]
        %v7469 = vld [vmem:[#allocation5 + $0x8c] sm:$0xff]
        %v7470 = vld [vmem:[#allocation5 + $0x94] sm:$0xff]
        %v7471 = vld [vmem:[#allocation5 + $0x9c] sm:$0xf]
        %v7472 = vld [vmem:[#allocation5 + $0xa0] sm:$0xff]
        %v7473 = vld [vmem:[#allocation5 + $0xa8] sm:$0xff]
        %v7474 = vld [vmem:[#allocation5 + $0xb0] sm:$0xf]
        %v7475 = vld [vmem:[#allocation5 + $0xb4] sm:$0xff]
        %v7476 = vld [vmem:[#allocation5 + $0xbc] sm:$0xff]
        %v7477 = vld [vmem:[#allocation5 + $0xc4] sm:$0xf]
        %v7478 = vld [vmem:[#allocation5 + $0xc8] sm:$0xff]
        %v7479 = vld [vmem:[#allocation5 + $0xd0] sm:$0xff]
        %v7480 = vld [vmem:[#allocation5 + $0xd8] sm:$0xf]
        %v7481 = vld [vmem:[#allocation5 + $0xdc] sm:$0xff]
        %v7482 = vld [vmem:[#allocation5 + $0xe4] sm:$0xff]
        %v7483 = vld [vmem:[#allocation5 + $0xec] sm:$0xf]
        %v7484 = vld [vmem:[#allocation5 + $0xf0] sm:$0xff]
        %v7485 = vld [vmem:[#allocation5 + $0xf8] sm:$0xff]
        %v7486 = vld [vmem:[#allocation5 + $0x100] sm:$0xf]
        %v7487 = vld [vmem:[#allocation5 + $0x104] sm:$0xff]
        %v7488 = vld [vmem:[#allocation5 + $0x10c] sm:$0xff]
        %v7489 = vld [vmem:[#allocation5 + $0x114] sm:$0xf]
        %v7490 = vld [vmem:[#allocation5 + $0x118] sm:$0xff]
        %v7491 = vld [vmem:[#allocation5 + $0x120] sm:$0xff]
        %v7492 = vld [vmem:[#allocation5 + $0x128] sm:$0xf]
        %v7493 = vld [vmem:[#allocation5 + $0x12c] sm:$0xff]
        %v7494 = vld [vmem:[#allocation5 + $0x134] sm:$0xff]
        %v7495 = vld [vmem:[#allocation5 + $0x13c] sm:$0xf]
        %v7496 = vld [vmem:[#allocation5 + $0x140] sm:$0xff]
        %v7497 = vld [vmem:[#allocation5 + $0x148] sm:$0xff]
        %v7498 = vld [vmem:[#allocation5 + $0x150] sm:$0xf]
        %v7499 = vld [vmem:[#allocation5 + $0x154] sm:$0xff]
        %v7500 = vld [vmem:[#allocation5 + $0x15c] sm:$0xff]
        %v7501 = vld [vmem:[#allocation5 + $0x164] sm:$0xf]
        %v7502 = vld [vmem:[#allocation5 + $0x168] sm:$0xff]
        %v7503 = vld [vmem:[#allocation5 + $0x170] sm:$0xff]
        %v7504 = vld [vmem:[#allocation5 + $0x178] sm:$0xf]
        %v7505 = vld [vmem:[#allocation5 + $0x17c] sm:$0xff]
        %v7506 = vld [vmem:[#allocation5 + $0x184] sm:$0xff]
        %v7507 = vld [vmem:[#allocation5 + $0x18c] sm:$0xf]
        %v7508 = vld [vmem:[#allocation5 + $0x190] sm:$0xff]
        %v7509 = vld [vmem:[#allocation5 + $0x198] sm:$0xff]
        %v7510 = vld [vmem:[#allocation5 + $0x1a0] sm:$0xf]
        %v7511 = vld [vmem:[#allocation5 + $0x1a4] sm:$0xff]
        %v7512 = vld [vmem:[#allocation5 + $0x1ac] sm:$0xff]
        %v7513 = vld [vmem:[#allocation5 + $0x1b4] sm:$0xf]
        %v7514 = vld [vmem:[#allocation5 + $0x1b8] sm:$0xff]
        %v7515 = vld [vmem:[#allocation5 + $0x1c0] sm:$0xff]
        %v7516 = vld [vmem:[#allocation5 + $0x1c8] sm:$0xf]
        %v7517 = vld [vmem:[#allocation5 + $0x1cc] sm:$0xff]
        %v7518 = vld [vmem:[#allocation5 + $0x1d4] sm:$0xff]
        %v7519 = vld [vmem:[#allocation5 + $0x1dc] sm:$0xf]
        %v7520 = vld [vmem:[#allocation5 + $0x1e0] sm:$0xff]
        %v7521 = vld [vmem:[#allocation5 + $0x1e8] sm:$0xff]
        %v7522 = vld [vmem:[#allocation5 + $0x1f0] sm:$0xf]
        %v7523 = vld [vmem:[#allocation5 + $0x1f4] sm:$0xff]
        %v7524 = vld [vmem:[#allocation5 + $0x1fc] sm:$0xff]
        %v7525 = vld [vmem:[#allocation5 + $0x204] sm:$0xf]
        %v7526 = vld [vmem:[#allocation5 + $0x208] sm:$0xff]
        %v7527 = vld [vmem:[#allocation5 + $0x210] sm:$0xff]
        %v7528 = vld [vmem:[#allocation5 + $0x218] sm:$0xf]
        %v7529 = vld [vmem:[#allocation5 + $0x21c] sm:$0xff]
        %v7530 = vld [vmem:[#allocation5 + $0x224] sm:$0xff]
        %v7531 = vld [vmem:[#allocation5 + $0x22c] sm:$0xf]
        %v7532 = vld [vmem:[#allocation5 + $0x230] sm:$0xff]
        %v7533 = vld [vmem:[#allocation5 + $0x238] sm:$0xff]
        %v7534 = vld [vmem:[#allocation5 + $0x240] sm:$0xf]
        %v7535 = vld [vmem:[#allocation5 + $0x244] sm:$0xff]
        %v7536 = vld [vmem:[#allocation5 + $0x24c] sm:$0xff]
        %v7537 = vld [vmem:[#allocation5 + $0x254] sm:$0xf]
        %v7538 = vld [vmem:[#allocation5 + $0x258] sm:$0xff]
        %v7539 = vld [vmem:[#allocation5 + $0x260] sm:$0xff]
        %v7540 = vld [vmem:[#allocation5 + $0x268] sm:$0xf]
        %v7541 = vld [vmem:[#allocation5 + $0x26c] sm:$0xff]
        %v7542 = vld [vmem:[#allocation5 + $0x274] sm:$0xff]
        %v7543 = vld [vmem:[#allocation5 + $0x27c] sm:$0xf]
        %v7544 = vld [vmem:[%s3] sm:$0xf]
        %v7545 = vld [vmem:[%s3 + $0x4] sm:$0xf]
        %v7546 = vld [vmem:[%s3 + $0x8] sm:$0xf]
        %v7547 = vld [vmem:[%s3 + $0xc] sm:$0xf]
        %v7548 = vld [vmem:[%s3 + $0x10] sm:$0xf]
        %v7549 = vld [vmem:[%s3 + $0x14] sm:$0xf]
        %v7550 = vld [vmem:[%s3 + $0x18] sm:$0xf]
        %v7551 = vld [vmem:[%s3 + $0x1c] sm:$0xf]
        %v7552 = vld [vmem:[%s3 + $0x20] sm:$0xf]
        %v7553 = vld [vmem:[%s3 + $0x24] sm:$0xf]
        %v7554 = vld [vmem:[%s3 + $0x28] sm:$0xf]
        %v7555 = vld [vmem:[%s3 + $0x2c] sm:$0xf]
        %v7556 = vld [vmem:[%s3 + $0x30] sm:$0xf]
        %v7557 = vld [vmem:[%s3 + $0x34] sm:$0xf]
        %v7558 = vld [vmem:[%s3 + $0x38] sm:$0xf]
        %v7559 = vld [vmem:[%s3 + $0x3c] sm:$0xf]
        %v7560 = vld [vmem:[%s3 + $0x40] sm:$0xf]
        %v7561 = vld [vmem:[%s3 + $0x44] sm:$0xf]
        %v7562 = vld [vmem:[%s3 + $0x48] sm:$0xf]
        %v7563 = vld [vmem:[%s3 + $0x4c] sm:$0xf]
        %v7564 = vld [vmem:[%s3 + $0x50] sm:$0xf]
        %v7565 = vld [vmem:[%s3 + $0x54] sm:$0xf]
        %v7566 = vld [vmem:[%s3 + $0x58] sm:$0xf]
        %v7567 = vld [vmem:[%s3 + $0x5c] sm:$0xf]
        %v7568 = vld [vmem:[%s3 + $0x60] sm:$0xf]
        %v7569 = vld [vmem:[%s3 + $0x64] sm:$0xf]
        %v7570 = vld [vmem:[%s3 + $0x68] sm:$0xf]
        %v7571 = vld [vmem:[%s3 + $0x6c] sm:$0xf]
        %v7572 = vld [vmem:[%s3 + $0x70] sm:$0xf]
        %v7573 = vld [vmem:[%s3 + $0x74] sm:$0xf]
        %v7574 = vld [vmem:[%s3 + $0x78] sm:$0xf]
        %v7575 = vld [vmem:[%s3 + $0x7c] sm:$0xf]
        %v7576 = vld [vmem:[%s3 + $0x80] sm:$0xf]
        %v7577 = vld [vmem:[%s3 + $0x84] sm:$0xf]
        %v7578 = vld [vmem:[%s3 + $0x88] sm:$0xf]
        %v7579 = vld [vmem:[%s3 + $0x8c] sm:$0xf]
        %v7580 = vld [vmem:[%s3 + $0x90] sm:$0xf]
        %v7581 = vld [vmem:[%s3 + $0x94] sm:$0xf]
        %v7582 = vld [vmem:[%s3 + $0x98] sm:$0xf]
        %v7583 = vld [vmem:[%s3 + $0x9c] sm:$0xf]
        %v7584 = vld [vmem:[%s3 + $0xa0] sm:$0xf]
        %v7585 = vld [vmem:[%s3 + $0xa4] sm:$0xf]
        %v7586 = vld [vmem:[%s3 + $0xa8] sm:$0xf]
        %v7587 = vld [vmem:[%s3 + $0xac] sm:$0xf]
        %v7588 = vld [vmem:[%s3 + $0xb0] sm:$0xf]
        %v7589 = vld [vmem:[%s3 + $0xb4] sm:$0xf]
        %v7590 = vld [vmem:[%s3 + $0xb8] sm:$0xf]
        %v7591 = vld [vmem:[%s3 + $0xbc] sm:$0xf]
        %v7592 = vld [vmem:[%s3 + $0xc0] sm:$0xf]
        %v7593 = vld [vmem:[%s3 + $0xc4] sm:$0xf]
        %v7594 = vld [vmem:[%s3 + $0xc8] sm:$0xf]
        %v7595 = vld [vmem:[%s3 + $0xcc] sm:$0xf]
        %v7596 = vld [vmem:[%s3 + $0xd0] sm:$0xf]
        %v7597 = vld [vmem:[%s3 + $0xd4] sm:$0xf]
        %v7598 = vld [vmem:[%s3 + $0xd8] sm:$0xf]
        %v7599 = vld [vmem:[%s3 + $0xdc] sm:$0xf]
        %v7600 = vld [vmem:[%s3 + $0xe0] sm:$0xf]
        %v7601 = vld [vmem:[%s3 + $0xe4] sm:$0xf]
        %v7602 = vld [vmem:[%s3 + $0xe8] sm:$0xf]
        %v7603 = vld [vmem:[%s3 + $0xec] sm:$0xf]
        %v7604 = vld [vmem:[%s3 + $0xf0] sm:$0xf]
        %v7605 = vld [vmem:[%s3 + $0xf4] sm:$0xf]
        %v7606 = vld [vmem:[%s3 + $0xf8] sm:$0xf]
        %v7607 = vld [vmem:[%s3 + $0xfc] sm:$0xf]
        %v7608 = vld [vmem:[%s3 + $0x100] sm:$0xf]
        %v7609 = vld [vmem:[%s3 + $0x104] sm:$0xf]
        %v7610 = vld [vmem:[%s3 + $0x108] sm:$0xf]
        %v7611 = vld [vmem:[%s3 + $0x10c] sm:$0xf]
        %v7612 = vld [vmem:[%s3 + $0x110] sm:$0xf]
        %v7613 = vld [vmem:[%s3 + $0x114] sm:$0xf]
        %v7614 = vld [vmem:[%s3 + $0x118] sm:$0xf]
        %v7615 = vld [vmem:[%s3 + $0x11c] sm:$0xf]
        %v7616 = vld [vmem:[%s4] sm:$0x1]
        %v7618 = vlaneseq
        %v7619 = vshrl.u32 %v7618, 7
        %v7620 = vsub.s32 0, %v7619
        %v7621 = vrot.slane %v7616, %v7620
        %v7719 = vunpack.c.l.b16 %v7448
        %v7720 = vunpack.c.h.b16 %v7448
        %v7721 = vunpack.c.l.b16 %v7449
        %v7722 = vunpack.c.h.b16 %v7449
        %v7723 = vunpack.c.l.b16 %v7450
        %v7724 = vunpack.c.l.b16 %v7451
        %v7725 = vunpack.c.h.b16 %v7451
        %v7726 = vunpack.c.l.b16 %v7452
        %v7727 = vunpack.c.h.b16 %v7452
        %v7728 = vunpack.c.l.b16 %v7453
        %v7729 = vunpack.c.l.b16 %v7454
        %v7730 = vunpack.c.h.b16 %v7454
        %v7731 = vunpack.c.l.b16 %v7455
        %v7732 = vunpack.c.h.b16 %v7455
        %v7733 = vunpack.c.l.b16 %v7456
        %v7734 = vunpack.c.l.b16 %v7457
        %v7735 = vunpack.c.h.b16 %v7457
        %v7736 = vunpack.c.l.b16 %v7458
        %v7737 = vunpack.c.h.b16 %v7458
        %v7738 = vunpack.c.l.b16 %v7459
        %v7739 = vunpack.c.l.b16 %v7460
        %v7740 = vunpack.c.h.b16 %v7460
        %v7741 = vunpack.c.l.b16 %v7461
        %v7742 = vunpack.c.h.b16 %v7461
        %v7743 = vunpack.c.l.b16 %v7462
        %v7744 = vunpack.c.l.b16 %v7463
        %v7745 = vunpack.c.h.b16 %v7463
        %v7746 = vunpack.c.l.b16 %v7464
        %v7747 = vunpack.c.h.b16 %v7464
        %v7748 = vunpack.c.l.b16 %v7465
        %v7749 = vunpack.c.l.b16 %v7466
        %v7750 = vunpack.c.h.b16 %v7466
        %v7751 = vunpack.c.l.b16 %v7467
        %v7752 = vunpack.c.h.b16 %v7467
        %v7753 = vunpack.c.l.b16 %v7468
        %v7754 = vunpack.c.l.b16 %v7469
        %v7755 = vunpack.c.h.b16 %v7469
        %v7756 = vunpack.c.l.b16 %v7470
        %v7757 = vunpack.c.h.b16 %v7470
        %v7758 = vunpack.c.l.b16 %v7471
        %v7759 = vunpack.c.l.b16 %v7472
        %v7760 = vunpack.c.h.b16 %v7472
        %v7761 = vunpack.c.l.b16 %v7473
        %v7762 = vunpack.c.h.b16 %v7473
        %v7763 = vunpack.c.l.b16 %v7474
        %v7764 = vunpack.c.l.b16 %v7475
        %v7765 = vunpack.c.h.b16 %v7475
        %v7766 = vunpack.c.l.b16 %v7476
        %v7767 = vunpack.c.h.b16 %v7476
        %v7768 = vunpack.c.l.b16 %v7477
        %v7769 = vunpack.c.l.b16 %v7478
        %v7770 = vunpack.c.h.b16 %v7478
        %v7771 = vunpack.c.l.b16 %v7479
        %v7772 = vunpack.c.h.b16 %v7479
        %v7773 = vunpack.c.l.b16 %v7480
        %v7774 = vunpack.c.l.b16 %v7481
        %v7775 = vunpack.c.h.b16 %v7481
        %v7776 = vunpack.c.l.b16 %v7482
        %v7777 = vunpack.c.h.b16 %v7482
        %v7778 = vunpack.c.l.b16 %v7483
        %v7779 = vunpack.c.l.b16 %v7484
        %v7780 = vunpack.c.h.b16 %v7484
        %v7781 = vunpack.c.l.b16 %v7485
        %v7782 = vunpack.c.h.b16 %v7485
        %v7783 = vunpack.c.l.b16 %v7486
        %v7784 = vunpack.c.l.b16 %v7487
        %v7785 = vunpack.c.h.b16 %v7487
        %v7786 = vunpack.c.l.b16 %v7488
        %v7787 = vunpack.c.h.b16 %v7488
        %v7788 = vunpack.c.l.b16 %v7489
        %v7789 = vunpack.c.l.b16 %v7490
        %v7790 = vunpack.c.h.b16 %v7490
        %v7791 = vunpack.c.l.b16 %v7491
        %v7792 = vunpack.c.h.b16 %v7491
        %v7793 = vunpack.c.l.b16 %v7492
        %v7794 = vunpack.c.l.b16 %v7493
        %v7795 = vunpack.c.h.b16 %v7493
        %v7796 = vunpack.c.l.b16 %v7494
        %v7797 = vunpack.c.h.b16 %v7494
        %v7798 = vunpack.c.l.b16 %v7495
        %v7799 = vunpack.c.l.b16 %v7496
        %v7800 = vunpack.c.h.b16 %v7496
        %v7801 = vunpack.c.l.b16 %v7497
        %v7802 = vunpack.c.h.b16 %v7497
        %v7803 = vunpack.c.l.b16 %v7498
        %v7804 = vunpack.c.l.b16 %v7499
        %v7805 = vunpack.c.h.b16 %v7499
        %v7806 = vunpack.c.l.b16 %v7500
        %v7807 = vunpack.c.h.b16 %v7500
        %v7808 = vunpack.c.l.b16 %v7501
        %v7809 = vunpack.c.l.b16 %v7502
        %v7810 = vunpack.c.h.b16 %v7502
        %v7811 = vunpack.c.l.b16 %v7503
        %v7812 = vunpack.c.h.b16 %v7503
        %v7813 = vunpack.c.l.b16 %v7504
        %v7814 = vunpack.c.l.b16 %v7505
        %v7815 = vunpack.c.h.b16 %v7505
        %v7816 = vunpack.c.l.b16 %v7506
        %v7817 = vunpack.c.h.b16 %v7506
        %v7818 = vunpack.c.l.b16 %v7507
        %v7819 = vunpack.c.l.b16 %v7508
        %v7820 = vunpack.c.h.b16 %v7508
        %v7821 = vunpack.c.l.b16 %v7509
        %v7822 = vunpack.c.h.b16 %v7509
        %v7823 = vunpack.c.l.b16 %v7510
        %v7824 = vunpack.c.l.b16 %v7511
        %v7825 = vunpack.c.h.b16 %v7511
        %v7826 = vunpack.c.l.b16 %v7512
        %v7827 = vunpack.c.h.b16 %v7512
        %v7828 = vunpack.c.l.b16 %v7513
        %v7829 = vunpack.c.l.b16 %v7514
        %v7830 = vunpack.c.h.b16 %v7514
        %v7831 = vunpack.c.l.b16 %v7515
        %v7832 = vunpack.c.h.b16 %v7515
        %v7833 = vunpack.c.l.b16 %v7516
        %v7834 = vunpack.c.l.b16 %v7517
        %v7835 = vunpack.c.h.b16 %v7517
        %v7836 = vunpack.c.l.b16 %v7518
        %v7837 = vunpack.c.h.b16 %v7518
        %v7838 = vunpack.c.l.b16 %v7519
        %v7839 = vunpack.c.l.b16 %v7520
        %v7840 = vunpack.c.h.b16 %v7520
        %v7841 = vunpack.c.l.b16 %v7521
        %v7842 = vunpack.c.h.b16 %v7521
        %v7843 = vunpack.c.l.b16 %v7522
        %v7844 = vunpack.c.l.b16 %v7523
        %v7845 = vunpack.c.h.b16 %v7523
        %v7846 = vunpack.c.l.b16 %v7524
        %v7847 = vunpack.c.h.b16 %v7524
        %v7848 = vunpack.c.l.b16 %v7525
        %v7849 = vunpack.c.l.b16 %v7526
        %v7850 = vunpack.c.h.b16 %v7526
        %v7851 = vunpack.c.l.b16 %v7527
        %v7852 = vunpack.c.h.b16 %v7527
        %v7853 = vunpack.c.l.b16 %v7528
        %v7854 = vunpack.c.l.b16 %v7529
        %v7855 = vunpack.c.h.b16 %v7529
        %v7856 = vunpack.c.l.b16 %v7530
        %v7857 = vunpack.c.h.b16 %v7530
        %v7858 = vunpack.c.l.b16 %v7531
        %v7859 = vunpack.c.l.b16 %v7532
        %v7860 = vunpack.c.h.b16 %v7532
        %v7861 = vunpack.c.l.b16 %v7533
        %v7862 = vunpack.c.h.b16 %v7533
        %v7863 = vunpack.c.l.b16 %v7534
        %v7864 = vunpack.c.l.b16 %v7535
        %v7865 = vunpack.c.h.b16 %v7535
        %v7866 = vunpack.c.l.b16 %v7536
        %v7867 = vunpack.c.h.b16 %v7536
        %v7868 = vunpack.c.l.b16 %v7537
        %v7869 = vunpack.c.l.b16 %v7538
        %v7870 = vunpack.c.h.b16 %v7538
        %v7871 = vunpack.c.l.b16 %v7539
        %v7872 = vunpack.c.h.b16 %v7539
        %v7873 = vunpack.c.l.b16 %v7540
        %v7874 = vunpack.c.l.b16 %v7541
        %v7875 = vunpack.c.h.b16 %v7541
        %v7876 = vunpack.c.l.b16 %v7542
        %v7877 = vunpack.c.h.b16 %v7542
        %v7878 = vunpack.c.l.b16 %v7543
        %v7879 = vpack.c.b16 %v7724, %v7719
        %v7880 = vpack.c.b16 %v7725, %v7720
        %v7881 = vpack.c.b16 %v7726, %v7721
        %v7882 = vpack.c.b16 %v7727, %v7722
        %v7883 = vpack.c.b16 %v7728, %v7723
        %v7884 = vpack.c.b16 %v7734, %v7729
        %v7885 = vpack.c.b16 %v7735, %v7730
        %v7886 = vpack.c.b16 %v7736, %v7731
        %v7887 = vpack.c.b16 %v7737, %v7732
        %v7888 = vpack.c.b16 %v7738, %v7733
        %v7889 = vpack.c.b16 %v7744, %v7739
        %v7890 = vpack.c.b16 %v7745, %v7740
        %v7891 = vpack.c.b16 %v7746, %v7741
        %v7892 = vpack.c.b16 %v7747, %v7742
        %v7893 = vpack.c.b16 %v7748, %v7743
        %v7894 = vpack.c.b16 %v7754, %v7749
        %v7895 = vpack.c.b16 %v7755, %v7750
        %v7896 = vpack.c.b16 %v7756, %v7751
        %v7897 = vpack.c.b16 %v7757, %v7752
        %v7898 = vpack.c.b16 %v7758, %v7753
        %v7899 = vpack.c.b16 %v7764, %v7759
        %v7900 = vpack.c.b16 %v7765, %v7760
        %v7901 = vpack.c.b16 %v7766, %v7761
        %v7902 = vpack.c.b16 %v7767, %v7762
        %v7903 = vpack.c.b16 %v7768, %v7763
        %v7904 = vpack.c.b16 %v7774, %v7769
        %v7905 = vpack.c.b16 %v7775, %v7770
        %v7906 = vpack.c.b16 %v7776, %v7771
        %v7907 = vpack.c.b16 %v7777, %v7772
        %v7908 = vpack.c.b16 %v7778, %v7773
        %v7909 = vpack.c.b16 %v7784, %v7779
        %v7910 = vpack.c.b16 %v7785, %v7780
        %v7911 = vpack.c.b16 %v7786, %v7781
        %v7912 = vpack.c.b16 %v7787, %v7782
        %v7913 = vpack.c.b16 %v7788, %v7783
        %v7914 = vpack.c.b16 %v7794, %v7789
        %v7915 = vpack.c.b16 %v7795, %v7790
        %v7916 = vpack.c.b16 %v7796, %v7791
        %v7917 = vpack.c.b16 %v7797, %v7792
        %v7918 = vpack.c.b16 %v7798, %v7793
        %v7919 = vpack.c.b16 %v7804, %v7799
        %v7920 = vpack.c.b16 %v7805, %v7800
        %v7921 = vpack.c.b16 %v7806, %v7801
        %v7922 = vpack.c.b16 %v7807, %v7802
        %v7923 = vpack.c.b16 %v7808, %v7803
        %v7924 = vpack.c.b16 %v7814, %v7809
        %v7925 = vpack.c.b16 %v7815, %v7810
        %v7926 = vpack.c.b16 %v7816, %v7811
        %v7927 = vpack.c.b16 %v7817, %v7812
        %v7928 = vpack.c.b16 %v7818, %v7813
        %v7929 = vpack.c.b16 %v7824, %v7819
        %v7930 = vpack.c.b16 %v7825, %v7820
        %v7931 = vpack.c.b16 %v7826, %v7821
        %v7932 = vpack.c.b16 %v7827, %v7822
        %v7933 = vpack.c.b16 %v7828, %v7823
        %v7934 = vpack.c.b16 %v7834, %v7829
        %v7935 = vpack.c.b16 %v7835, %v7830
        %v7936 = vpack.c.b16 %v7836, %v7831
        %v7937 = vpack.c.b16 %v7837, %v7832
        %v7938 = vpack.c.b16 %v7838, %v7833
        %v7939 = vpack.c.b16 %v7844, %v7839
        %v7940 = vpack.c.b16 %v7845, %v7840
        %v7941 = vpack.c.b16 %v7846, %v7841
        %v7942 = vpack.c.b16 %v7847, %v7842
        %v7943 = vpack.c.b16 %v7848, %v7843
        %v7944 = vpack.c.b16 %v7854, %v7849
        %v7945 = vpack.c.b16 %v7855, %v7850
        %v7946 = vpack.c.b16 %v7856, %v7851
        %v7947 = vpack.c.b16 %v7857, %v7852
        %v7948 = vpack.c.b16 %v7858, %v7853
        %v7949 = vpack.c.b16 %v7864, %v7859
        %v7950 = vpack.c.b16 %v7865, %v7860
        %v7951 = vpack.c.b16 %v7866, %v7861
        %v7952 = vpack.c.b16 %v7867, %v7862
        %v7953 = vpack.c.b16 %v7868, %v7863
        %v7954 = vpack.c.b16 %v7874, %v7869
        %v7955 = vpack.c.b16 %v7875, %v7870
        %v7956 = vpack.c.b16 %v7876, %v7871
        %v7957 = vpack.c.b16 %v7877, %v7872
        %v7958 = vpack.c.b16 %v7878, %v7873
        %v8095 = vunpack.c.l.b16 %v7544
        %v8096 = vunpack.c.l.b16 %v7545
        %v8097 = vunpack.c.l.b16 %v7546
        %v8098 = vunpack.c.l.b16 %v7547
        %v8099 = vunpack.c.l.b16 %v7548
        %v8100 = vunpack.c.l.b16 %v7549
        %v8101 = vunpack.c.l.b16 %v7550
        %v8102 = vunpack.c.l.b16 %v7551
        %v8103 = vunpack.c.l.b16 %v7552
        %v8104 = vunpack.c.l.b16 %v7553
        %v8105 = vunpack.c.l.b16 %v7554
        %v8106 = vunpack.c.l.b16 %v7555
        %v8107 = vunpack.c.l.b16 %v7556
        %v8108 = vunpack.c.l.b16 %v7557
        %v8109 = vunpack.c.l.b16 %v7558
        %v8110 = vunpack.c.l.b16 %v7559
        %v8111 = vunpack.c.l.b16 %v7560
        %v8112 = vunpack.c.l.b16 %v7561
        %v8113 = vunpack.c.l.b16 %v7562
        %v8114 = vunpack.c.l.b16 %v7563
        %v8115 = vunpack.c.l.b16 %v7564
        %v8116 = vunpack.c.l.b16 %v7565
        %v8117 = vunpack.c.l.b16 %v7566
        %v8118 = vunpack.c.l.b16 %v7567
        %v8119 = vunpack.c.l.b16 %v7568
        %v8120 = vunpack.c.l.b16 %v7569
        %v8121 = vunpack.c.l.b16 %v7570
        %v8122 = vunpack.c.l.b16 %v7571
        %v8123 = vunpack.c.l.b16 %v7572
        %v8124 = vunpack.c.l.b16 %v7573
        %v8125 = vunpack.c.l.b16 %v7574
        %v8126 = vunpack.c.l.b16 %v7575
        %v8127 = vunpack.c.l.b16 %v7576
        %v8128 = vunpack.c.l.b16 %v7577
        %v8129 = vunpack.c.l.b16 %v7578
        %v8130 = vunpack.c.l.b16 %v7579
        %v8131 = vunpack.c.l.b16 %v7580
        %v8132 = vunpack.c.l.b16 %v7581
        %v8133 = vunpack.c.l.b16 %v7582
        %v8134 = vunpack.c.l.b16 %v7583
        %v8135 = vunpack.c.l.b16 %v7584
        %v8136 = vunpack.c.l.b16 %v7585
        %v8137 = vunpack.c.l.b16 %v7586
        %v8138 = vunpack.c.l.b16 %v7587
        %v8139 = vunpack.c.l.b16 %v7588
        %v8140 = vunpack.c.l.b16 %v7589
        %v8141 = vunpack.c.l.b16 %v7590
        %v8142 = vunpack.c.l.b16 %v7591
        %v8143 = vunpack.c.l.b16 %v7592
        %v8144 = vunpack.c.l.b16 %v7593
        %v8145 = vunpack.c.l.b16 %v7594
        %v8146 = vunpack.c.l.b16 %v7595
        %v8147 = vunpack.c.l.b16 %v7596
        %v8148 = vunpack.c.l.b16 %v7597
        %v8149 = vunpack.c.l.b16 %v7598
        %v8150 = vunpack.c.l.b16 %v7599
        %v8151 = vunpack.c.l.b16 %v7600
        %v8152 = vunpack.c.l.b16 %v7601
        %v8153 = vunpack.c.l.b16 %v7602
        %v8154 = vunpack.c.l.b16 %v7603
        %v8155 = vunpack.c.l.b16 %v7604
        %v8156 = vunpack.c.l.b16 %v7605
        %v8157 = vunpack.c.l.b16 %v7606
        %v8158 = vunpack.c.l.b16 %v7607
        %v8159 = vunpack.c.l.b16 %v7608
        %v8160 = vunpack.c.l.b16 %v7609
        %v8161 = vunpack.c.l.b16 %v7610
        %v8162 = vunpack.c.l.b16 %v7611
        %v8163 = vunpack.c.l.b16 %v7612
        %v8164 = vunpack.c.l.b16 %v7613
        %v8165 = vunpack.c.l.b16 %v7614
        %v8166 = vunpack.c.l.b16 %v7615
        %v8167 = vpack.c.b16 %v8096, %v8095
        %v8168 = vpack.c.b16 %v8098, %v8097
        %v8169 = vpack.c.b16 %v8100, %v8099
        %v8170 = vpack.c.b16 %v8102, %v8101
        %v8171 = vpack.c.b16 %v8104, %v8103
        %v8172 = vpack.c.b16 %v8106, %v8105
        %v8173 = vpack.c.b16 %v8108, %v8107
        %v8174 = vpack.c.b16 %v8110, %v8109
        %v8175 = vpack.c.b16 %v8112, %v8111
        %v8176 = vpack.c.b16 %v8114, %v8113
        %v8177 = vpack.c.b16 %v8116, %v8115
        %v8178 = vpack.c.b16 %v8118, %v8117
        %v8179 = vpack.c.b16 %v8120, %v8119
        %v8180 = vpack.c.b16 %v8122, %v8121
        %v8181 = vpack.c.b16 %v8124, %v8123
        %v8182 = vpack.c.b16 %v8126, %v8125
        %v8183 = vpack.c.b16 %v8128, %v8127
        %v8184 = vpack.c.b16 %v8130, %v8129
        %v8185 = vpack.c.b16 %v8132, %v8131
        %v8186 = vpack.c.b16 %v8134, %v8133
        %v8187 = vpack.c.b16 %v8136, %v8135
        %v8188 = vpack.c.b16 %v8138, %v8137
        %v8189 = vpack.c.b16 %v8140, %v8139
        %v8190 = vpack.c.b16 %v8142, %v8141
        %v8191 = vpack.c.b16 %v8144, %v8143
        %v8192 = vpack.c.b16 %v8146, %v8145
        %v8193 = vpack.c.b16 %v8148, %v8147
        %v8194 = vpack.c.b16 %v8150, %v8149
        %v8195 = vpack.c.b16 %v8152, %v8151
        %v8196 = vpack.c.b16 %v8154, %v8153
        %v8197 = vpack.c.b16 %v8156, %v8155
        %v8198 = vpack.c.b16 %v8158, %v8157
        %v8199 = vpack.c.b16 %v8160, %v8159
        %v8200 = vpack.c.b16 %v8162, %v8161
        %v8201 = vpack.c.b16 %v8164, %v8163
        %v8202 = vpack.c.b16 %v8166, %v8165
        %v8240 = vsel %vm1674, %v7883, 0
        %v8243 = vsel %vm1674, %v7888, 0
        %v8246 = vsel %vm1674, %v7893, 0
        %v8249 = vsel %vm1674, %v7898, 0
        %v8252 = vsel %vm1674, %v7903, 0
        %v8255 = vsel %vm1674, %v7908, 0
        %v8258 = vsel %vm1674, %v7913, 0
        %v8261 = vsel %vm1674, %v7918, 0
        %v8264 = vsel %vm1674, %v7923, 0
        %v8267 = vsel %vm1674, %v7928, 0
        %v8270 = vsel %vm1674, %v7933, 0
        %v8273 = vsel %vm1674, %v7938, 0
        %v8276 = vsel %vm1674, %v7943, 0
        %v8279 = vsel %vm1674, %v7948, 0
        %v8282 = vsel %vm1674, %v7953, 0
        %v8285 = vsel %vm1674, %v7958, 0
        %8287 = vmatprep.subr.bf16.mxu0 0
        %8288 = vmatpush1.bf16.msra.mxu0 %v8174
        %8289 = vmatprep.subr.bf16.mxu0 0
        %8290 = vmatpush1.bf16.msra.mxu0 %v8173
        %8291 = vmatprep.subr.bf16.mxu0 0
        %8292 = vmatpush1.bf16.msra.mxu0 %v8172
        %8293 = vmatprep.subr.bf16.mxu0 0
        %8294 = vmatpush1.bf16.msra.mxu0 %v8171
        %8295 = vmatprep.subr.bf16.mxu0 0
        %8296 = vmatpush1.bf16.msra.mxu0 %v8170
        %8297 = vmatprep.subr.bf16.mxu0 0
        %8298 = vmatpush1.bf16.msra.mxu0 %v8169
        %8299 = vmatprep.subr.bf16.mxu0 0
        %8300 = vmatpush1.bf16.msra.mxu0 %v8168
        %8301 = vmatprep.subr.bf16.mxu0 0
        %8302 = vmatpush1.bf16.msra.mxu0 %v8167
        %8303 = vmatprep.subr.bf16.mxu0 0
        %8304 = vmatpush2.bf16.msra.mxu0 %v8182
        %8305 = vmatprep.subr.bf16.mxu0 0
        %8306 = vmatpush2.bf16.msra.mxu0 %v8181
        %8307 = vmatprep.subr.bf16.mxu0 0
        %8308 = vmatpush2.bf16.msra.mxu0 %v8180
        %8309 = vmatprep.subr.bf16.mxu0 0
        %8310 = vmatpush2.bf16.msra.mxu0 %v8179
        %8311 = vmatprep.subr.bf16.mxu0 0
        %8312 = vmatpush2.bf16.msra.mxu0 %v8178
        %8313 = vmatprep.subr.bf16.mxu0 0
        %8314 = vmatpush2.bf16.msra.mxu0 %v8177
        %8315 = vmatprep.subr.bf16.mxu0 0
        %8316 = vmatpush2.bf16.msra.mxu0 %v8176
        %8317 = vmatprep.subr.bf16.mxu0 0
        %8318 = vmatpush2.bf16.msra.mxu0 %v8175
        %8319 = vmatprep.mubr.bf16.mxu0 %v7880
        %8320 = vmatmul.mubr.bf16.gmra.mxu0 %v7879
        %v8321 = vpop.f32.mrf.mxu0
        %v8322 = vadd.f32 %v7621, %v8321
        %v8323 = vpop.f32.mrf.mxu0
        %v8324 = vpop.f32.mrf.mxu0
        %v8325 = vadd.f32 %v7621, %v8324
        %v8326 = vpop.f32.mrf.mxu0
        %8327 = vmatprep.mubr.bf16.mxu0 %v7885
        %8328 = vmatmul.mubr.bf16.gmra.mxu0 %v7884
        %v8329 = vpop.f32.mrf.mxu0
        %v8330 = vadd.f32 %v7621, %v8329
        %v8331 = vpop.f32.mrf.mxu0
        %v8332 = vpop.f32.mrf.mxu0
        %v8333 = vadd.f32 %v7621, %v8332
        %v8334 = vpop.f32.mrf.mxu0
        %8335 = vmatprep.mubr.bf16.mxu0 %v7890
        %8336 = vmatmul.mubr.bf16.gmra.mxu0 %v7889
        %v8337 = vpop.f32.mrf.mxu0
        %v8338 = vadd.f32 %v7621, %v8337
        %v8339 = vpop.f32.mrf.mxu0
        %v8340 = vpop.f32.mrf.mxu0
        %v8341 = vadd.f32 %v7621, %v8340
        %v8342 = vpop.f32.mrf.mxu0
        %8343 = vmatprep.mubr.bf16.mxu0 %v7895
        %8344 = vmatmul.mubr.bf16.gmra.mxu0 %v7894
        %v8345 = vpop.f32.mrf.mxu0
        %v8346 = vadd.f32 %v7621, %v8345
        %v8347 = vpop.f32.mrf.mxu0
        %v8348 = vpop.f32.mrf.mxu0
        %v8349 = vadd.f32 %v7621, %v8348
        %v8350 = vpop.f32.mrf.mxu0
        %8351 = vmatprep.mubr.bf16.mxu0 %v7900
        %8352 = vmatmul.mubr.bf16.gmra.mxu0 %v7899
        %v8353 = vpop.f32.mrf.mxu0
        %v8354 = vadd.f32 %v7621, %v8353
        %v8355 = vpop.f32.mrf.mxu0
        %v8356 = vpop.f32.mrf.mxu0
        %v8357 = vadd.f32 %v7621, %v8356
        %v8358 = vpop.f32.mrf.mxu0
        %8359 = vmatprep.mubr.bf16.mxu0 %v7905
        %8360 = vmatmul.mubr.bf16.gmra.mxu0 %v7904
        %v8361 = vpop.f32.mrf.mxu0
        %v8362 = vadd.f32 %v7621, %v8361
        %v8363 = vpop.f32.mrf.mxu0
        %v8364 = vpop.f32.mrf.mxu0
        %v8365 = vadd.f32 %v7621, %v8364
        %v8366 = vpop.f32.mrf.mxu0
        %8367 = vmatprep.mubr.bf16.mxu0 %v7910
        %8368 = vmatmul.mubr.bf16.gmra.mxu0 %v7909
        %v8369 = vpop.f32.mrf.mxu0
        %v8370 = vadd.f32 %v7621, %v8369
        %v8371 = vpop.f32.mrf.mxu0
        %v8372 = vpop.f32.mrf.mxu0
        %v8373 = vadd.f32 %v7621, %v8372
        %v8374 = vpop.f32.mrf.mxu0
        %8375 = vmatprep.mubr.bf16.mxu0 %v7915
        %8376 = vmatmul.mubr.bf16.gmra.mxu0 %v7914
        %v8377 = vpop.f32.mrf.mxu0
        %v8378 = vadd.f32 %v7621, %v8377
        %v8379 = vpop.f32.mrf.mxu0
        %v8380 = vpop.f32.mrf.mxu0
        %v8381 = vadd.f32 %v7621, %v8380
        %v8382 = vpop.f32.mrf.mxu0
        %8383 = vmatprep.mubr.bf16.mxu0 %v7920
        %8384 = vmatmul.mubr.bf16.gmra.mxu0 %v7919
        %v8385 = vpop.f32.mrf.mxu0
        %v8386 = vadd.f32 %v7621, %v8385
        %v8387 = vpop.f32.mrf.mxu0
        %v8388 = vpop.f32.mrf.mxu0
        %v8389 = vadd.f32 %v7621, %v8388
        %v8390 = vpop.f32.mrf.mxu0
        %8391 = vmatprep.mubr.bf16.mxu0 %v7925
        %8392 = vmatmul.mubr.bf16.gmra.mxu0 %v7924
        %v8393 = vpop.f32.mrf.mxu0
        %v8394 = vadd.f32 %v7621, %v8393
        %v8395 = vpop.f32.mrf.mxu0
        %v8396 = vpop.f32.mrf.mxu0
        %v8397 = vadd.f32 %v7621, %v8396
        %v8398 = vpop.f32.mrf.mxu0
        %8399 = vmatprep.mubr.bf16.mxu0 %v7930
        %8400 = vmatmul.mubr.bf16.gmra.mxu0 %v7929
        %v8401 = vpop.f32.mrf.mxu0
        %v8402 = vadd.f32 %v7621, %v8401
        %v8403 = vpop.f32.mrf.mxu0
        %v8404 = vpop.f32.mrf.mxu0
        %v8405 = vadd.f32 %v7621, %v8404
        %v8406 = vpop.f32.mrf.mxu0
        %8407 = vmatprep.mubr.bf16.mxu0 %v7935
        %8408 = vmatmul.mubr.bf16.gmra.mxu0 %v7934
        %v8409 = vpop.f32.mrf.mxu0
        %v8410 = vadd.f32 %v7621, %v8409
        %v8411 = vpop.f32.mrf.mxu0
        %v8412 = vpop.f32.mrf.mxu0
        %v8413 = vadd.f32 %v7621, %v8412
        %v8414 = vpop.f32.mrf.mxu0
        %8415 = vmatprep.mubr.bf16.mxu0 %v7940
        %8416 = vmatmul.mubr.bf16.gmra.mxu0 %v7939
        %v8417 = vpop.f32.mrf.mxu0
        %v8418 = vadd.f32 %v7621, %v8417
        %v8419 = vpop.f32.mrf.mxu0
        %v8420 = vpop.f32.mrf.mxu0
        %v8421 = vadd.f32 %v7621, %v8420
        %v8422 = vpop.f32.mrf.mxu0
        %8423 = vmatprep.mubr.bf16.mxu0 %v7945
        %8424 = vmatmul.mubr.bf16.gmra.mxu0 %v7944
        %v8425 = vpop.f32.mrf.mxu0
        %v8426 = vadd.f32 %v7621, %v8425
        %v8427 = vpop.f32.mrf.mxu0
        %v8428 = vpop.f32.mrf.mxu0
        %v8429 = vadd.f32 %v7621, %v8428
        %v8430 = vpop.f32.mrf.mxu0
        %8431 = vmatprep.mubr.bf16.mxu0 %v7950
        %8432 = vmatmul.mubr.bf16.gmra.mxu0 %v7949
        %v8433 = vpop.f32.mrf.mxu0
        %v8434 = vadd.f32 %v7621, %v8433
        %v8435 = vpop.f32.mrf.mxu0
        %v8436 = vpop.f32.mrf.mxu0
        %v8437 = vadd.f32 %v7621, %v8436
        %v8438 = vpop.f32.mrf.mxu0
        %8439 = vmatprep.mubr.bf16.mxu0 %v7955
        %8440 = vmatmul.mubr.bf16.gmra.mxu0 %v7954
        %v8441 = vpop.f32.mrf.mxu0
        %v8442 = vadd.f32 %v7621, %v8441
        %v8443 = vpop.f32.mrf.mxu0
        %v8444 = vpop.f32.mrf.mxu0
        %v8445 = vadd.f32 %v7621, %v8444
        %v8446 = vpop.f32.mrf.mxu0
        %8447 = vdwg.mxu0
        %8448 = vmatprep.subr.bf16.mxu0 0
        %8449 = vmatpush1.bf16.msra.mxu0 %v8190
        %8450 = vmatprep.subr.bf16.mxu0 0
        %8451 = vmatpush1.bf16.msra.mxu0 %v8189
        %8452 = vmatprep.subr.bf16.mxu0 0
        %8453 = vmatpush1.bf16.msra.mxu0 %v8188
        %8454 = vmatprep.subr.bf16.mxu0 0
        %8455 = vmatpush1.bf16.msra.mxu0 %v8187
        %8456 = vmatprep.subr.bf16.mxu0 0
        %8457 = vmatpush1.bf16.msra.mxu0 %v8186
        %8458 = vmatprep.subr.bf16.mxu0 0
        %8459 = vmatpush1.bf16.msra.mxu0 %v8185
        %8460 = vmatprep.subr.bf16.mxu0 0
        %8461 = vmatpush1.bf16.msra.mxu0 %v8184
        %8462 = vmatprep.subr.bf16.mxu0 0
        %8463 = vmatpush1.bf16.msra.mxu0 %v8183
        %8464 = vmatprep.subr.bf16.mxu0 0
        %8465 = vmatpush2.bf16.msra.mxu0 %v8198
        %8466 = vmatprep.subr.bf16.mxu0 0
        %8467 = vmatpush2.bf16.msra.mxu0 %v8197
        %8468 = vmatprep.subr.bf16.mxu0 0
        %8469 = vmatpush2.bf16.msra.mxu0 %v8196
        %8470 = vmatprep.subr.bf16.mxu0 0
        %8471 = vmatpush2.bf16.msra.mxu0 %v8195
        %8472 = vmatprep.subr.bf16.mxu0 0
        %8473 = vmatpush2.bf16.msra.mxu0 %v8194
        %8474 = vmatprep.subr.bf16.mxu0 0
        %8475 = vmatpush2.bf16.msra.mxu0 %v8193
        %8476 = vmatprep.subr.bf16.mxu0 0
        %8477 = vmatpush2.bf16.msra.mxu0 %v8192
        %8478 = vmatprep.subr.bf16.mxu0 0
        %8479 = vmatpush2.bf16.msra.mxu0 %v8191
        %8480 = vmatprep.mubr.bf16.mxu0 %v7882
        %8481 = vmatmul.mubr.bf16.gmra.mxu0 %v7881
        %v8482 = vpop.f32.mrf.mxu0
        %v8483 = vadd.f32 %v8322, %v8482
        %v8484 = vpop.f32.mrf.mxu0
        %v8485 = vpop.f32.mrf.mxu0
        %v8486 = vadd.f32 %v8325, %v8485
        %v8487 = vpop.f32.mrf.mxu0
        %8488 = vmatprep.mubr.bf16.mxu0 %v7887
        %8489 = vmatmul.mubr.bf16.gmra.mxu0 %v7886
        %v8490 = vpop.f32.mrf.mxu0
        %v8491 = vadd.f32 %v8330, %v8490
        %v8492 = vpop.f32.mrf.mxu0
        %v8493 = vpop.f32.mrf.mxu0
        %v8494 = vadd.f32 %v8333, %v8493
        %v8495 = vpop.f32.mrf.mxu0
        %8496 = vmatprep.mubr.bf16.mxu0 %v7892
        %8497 = vmatmul.mubr.bf16.gmra.mxu0 %v7891
        %v8498 = vpop.f32.mrf.mxu0
        %v8499 = vadd.f32 %v8338, %v8498
        %v8500 = vpop.f32.mrf.mxu0
        %v8501 = vpop.f32.mrf.mxu0
        %v8502 = vadd.f32 %v8341, %v8501
        %v8503 = vpop.f32.mrf.mxu0
        %8504 = vmatprep.mubr.bf16.mxu0 %v7897
        %8505 = vmatmul.mubr.bf16.gmra.mxu0 %v7896
        %v8506 = vpop.f32.mrf.mxu0
        %v8507 = vadd.f32 %v8346, %v8506
        %v8508 = vpop.f32.mrf.mxu0
        %v8509 = vpop.f32.mrf.mxu0
        %v8510 = vadd.f32 %v8349, %v8509
        %v8511 = vpop.f32.mrf.mxu0
        %8512 = vmatprep.mubr.bf16.mxu0 %v7902
        %8513 = vmatmul.mubr.bf16.gmra.mxu0 %v7901
        %v8514 = vpop.f32.mrf.mxu0
        %v8515 = vadd.f32 %v8354, %v8514
        %v8516 = vpop.f32.mrf.mxu0
        %v8517 = vpop.f32.mrf.mxu0
        %v8518 = vadd.f32 %v8357, %v8517
        %v8519 = vpop.f32.mrf.mxu0
        %8520 = vmatprep.mubr.bf16.mxu0 %v7907
        %8521 = vmatmul.mubr.bf16.gmra.mxu0 %v7906
        %v8522 = vpop.f32.mrf.mxu0
        %v8523 = vadd.f32 %v8362, %v8522
        %v8524 = vpop.f32.mrf.mxu0
        %v8525 = vpop.f32.mrf.mxu0
        %v8526 = vadd.f32 %v8365, %v8525
        %v8527 = vpop.f32.mrf.mxu0
        %8528 = vmatprep.mubr.bf16.mxu0 %v7912
        %8529 = vmatmul.mubr.bf16.gmra.mxu0 %v7911
        %v8530 = vpop.f32.mrf.mxu0
        %v8531 = vadd.f32 %v8370, %v8530
        %v8532 = vpop.f32.mrf.mxu0
        %v8533 = vpop.f32.mrf.mxu0
        %v8534 = vadd.f32 %v8373, %v8533
        %v8535 = vpop.f32.mrf.mxu0
        %8536 = vmatprep.mubr.bf16.mxu0 %v7917
        %8537 = vmatmul.mubr.bf16.gmra.mxu0 %v7916
        %v8538 = vpop.f32.mrf.mxu0
        %v8539 = vadd.f32 %v8378, %v8538
        %v8540 = vpop.f32.mrf.mxu0
        %v8541 = vpop.f32.mrf.mxu0
        %v8542 = vadd.f32 %v8381, %v8541
        %v8543 = vpop.f32.mrf.mxu0
        %8544 = vmatprep.mubr.bf16.mxu0 %v7922
        %8545 = vmatmul.mubr.bf16.gmra.mxu0 %v7921
        %v8546 = vpop.f32.mrf.mxu0
        %v8547 = vadd.f32 %v8386, %v8546
        %v8548 = vpop.f32.mrf.mxu0
        %v8549 = vpop.f32.mrf.mxu0
        %v8550 = vadd.f32 %v8389, %v8549
        %v8551 = vpop.f32.mrf.mxu0
        %8552 = vmatprep.mubr.bf16.mxu0 %v7927
        %8553 = vmatmul.mubr.bf16.gmra.mxu0 %v7926
        %v8554 = vpop.f32.mrf.mxu0
        %v8555 = vadd.f32 %v8394, %v8554
        %v8556 = vpop.f32.mrf.mxu0
        %v8557 = vpop.f32.mrf.mxu0
        %v8558 = vadd.f32 %v8397, %v8557
        %v8559 = vpop.f32.mrf.mxu0
        %8560 = vmatprep.mubr.bf16.mxu0 %v7932
        %8561 = vmatmul.mubr.bf16.gmra.mxu0 %v7931
        %v8562 = vpop.f32.mrf.mxu0
        %v8563 = vadd.f32 %v8402, %v8562
        %v8564 = vpop.f32.mrf.mxu0
        %v8565 = vpop.f32.mrf.mxu0
        %v8566 = vadd.f32 %v8405, %v8565
        %v8567 = vpop.f32.mrf.mxu0
        %8568 = vmatprep.mubr.bf16.mxu0 %v7937
        %8569 = vmatmul.mubr.bf16.gmra.mxu0 %v7936
        %v8570 = vpop.f32.mrf.mxu0
        %v8571 = vadd.f32 %v8410, %v8570
        %v8572 = vpop.f32.mrf.mxu0
        %v8573 = vpop.f32.mrf.mxu0
        %v8574 = vadd.f32 %v8413, %v8573
        %v8575 = vpop.f32.mrf.mxu0
        %8576 = vmatprep.mubr.bf16.mxu0 %v7942
        %8577 = vmatmul.mubr.bf16.gmra.mxu0 %v7941
        %v8578 = vpop.f32.mrf.mxu0
        %v8579 = vadd.f32 %v8418, %v8578
        %v8580 = vpop.f32.mrf.mxu0
        %v8581 = vpop.f32.mrf.mxu0
        %v8582 = vadd.f32 %v8421, %v8581
        %v8583 = vpop.f32.mrf.mxu0
        %8584 = vmatprep.mubr.bf16.mxu0 %v7947
        %8585 = vmatmul.mubr.bf16.gmra.mxu0 %v7946
        %v8586 = vpop.f32.mrf.mxu0
        %v8587 = vadd.f32 %v8426, %v8586
        %v8588 = vpop.f32.mrf.mxu0
        %v8589 = vpop.f32.mrf.mxu0
        %v8590 = vadd.f32 %v8429, %v8589
        %v8591 = vpop.f32.mrf.mxu0
        %8592 = vmatprep.mubr.bf16.mxu0 %v7952
        %8593 = vmatmul.mubr.bf16.gmra.mxu0 %v7951
        %v8594 = vpop.f32.mrf.mxu0
        %v8595 = vadd.f32 %v8434, %v8594
        %v8596 = vpop.f32.mrf.mxu0
        %v8597 = vpop.f32.mrf.mxu0
        %v8598 = vadd.f32 %v8437, %v8597
        %v8599 = vpop.f32.mrf.mxu0
        %8600 = vmatprep.mubr.bf16.mxu0 %v7957
        %8601 = vmatmul.mubr.bf16.gmra.mxu0 %v7956
        %v8602 = vpop.f32.mrf.mxu0
        %v8603 = vadd.f32 %v8442, %v8602
        %v8604 = vpop.f32.mrf.mxu0
        %v8605 = vpop.f32.mrf.mxu0
        %v8606 = vadd.f32 %v8445, %v8605
        %v8607 = vpop.f32.mrf.mxu0
        %8608 = vdwg.mxu0
        %8609 = vmatprep.subr.bf16.mxu0 0
        %8610 = vmatpush1.bf16.msra.mxu0 0
        %8611 = vmatprep.subr.bf16.mxu0 0
        %8612 = vmatpush1.bf16.msra.mxu0 0
        %8613 = vmatprep.subr.bf16.mxu0 0
        %8614 = vmatpush1.bf16.msra.mxu0 0
        %8615 = vmatprep.subr.bf16.mxu0 0
        %8616 = vmatpush1.bf16.msra.mxu0 0
        %8617 = vmatprep.subr.bf16.mxu0 0
        %8618 = vmatpush1.bf16.msra.mxu0 %v8202
        %8619 = vmatprep.subr.bf16.mxu0 0
        %8620 = vmatpush1.bf16.msra.mxu0 %v8201
        %8621 = vmatprep.subr.bf16.mxu0 0
        %8622 = vmatpush1.bf16.msra.mxu0 %v8200
        %8623 = vmatprep.subr.bf16.mxu0 0
        %8624 = vmatpush1.bf16.msra.mxu0 %v8199
        %8625 = vmatprep.subr.bf16.mxu0 0
        %8626 = vmatpush2.bf16.msra.mxu0 0
        %8627 = vmatprep.subr.bf16.mxu0 0
        %8628 = vmatpush2.bf16.msra.mxu0 0
        %8629 = vmatprep.subr.bf16.mxu0 0
        %8630 = vmatpush2.bf16.msra.mxu0 0
        %8631 = vmatprep.subr.bf16.mxu0 0
        %8632 = vmatpush2.bf16.msra.mxu0 0
        %8633 = vmatprep.subr.bf16.mxu0 0
        %8634 = vmatpush2.bf16.msra.mxu0 0
        %8635 = vmatprep.subr.bf16.mxu0 0
        %8636 = vmatpush2.bf16.msra.mxu0 0
        %8637 = vmatprep.subr.bf16.mxu0 0
        %8638 = vmatpush2.bf16.msra.mxu0 0
        %8639 = vmatprep.subr.bf16.mxu0 0
        %8640 = vmatpush2.bf16.msra.mxu0 0
        %8641 = vmatprep.mubr.bf16.mxu0 0
        %8642 = vmatmul.mubr.bf16.gmra.mxu0 %v8240
        %v8643 = vpop.f32.mrf.mxu0
        %v8644 = vadd.f32 %v8483, %v8643
        %v8645 = vpop.f32.mrf.mxu0
        %v8646 = vpop.f32.mrf.mxu0
        %v8647 = vadd.f32 %v8486, %v8646
        %v8648 = vpop.f32.mrf.mxu0
        %8649 = vmatprep.mubr.bf16.mxu0 0
        %8650 = vmatmul.mubr.bf16.gmra.mxu0 %v8243
        %v8651 = vpop.f32.mrf.mxu0
        %v8652 = vadd.f32 %v8491, %v8651
        %v8653 = vpop.f32.mrf.mxu0
        %v8654 = vpop.f32.mrf.mxu0
        %v8655 = vadd.f32 %v8494, %v8654
        %v8656 = vpop.f32.mrf.mxu0
        %8657 = vmatprep.mubr.bf16.mxu0 0
        %8658 = vmatmul.mubr.bf16.gmra.mxu0 %v8246
        %v8659 = vpop.f32.mrf.mxu0
        %v8660 = vadd.f32 %v8499, %v8659
        %v8661 = vpop.f32.mrf.mxu0
        %v8662 = vpop.f32.mrf.mxu0
        %v8663 = vadd.f32 %v8502, %v8662
        %v8664 = vpop.f32.mrf.mxu0
        %8665 = vmatprep.mubr.bf16.mxu0 0
        %8666 = vmatmul.mubr.bf16.gmra.mxu0 %v8249
        %v8667 = vpop.f32.mrf.mxu0
        %v8668 = vadd.f32 %v8507, %v8667
        %v8669 = vpop.f32.mrf.mxu0
        %v8670 = vpop.f32.mrf.mxu0
        %v8671 = vadd.f32 %v8510, %v8670
        %v8672 = vpop.f32.mrf.mxu0
        %8673 = vmatprep.mubr.bf16.mxu0 0
        %8674 = vmatmul.mubr.bf16.gmra.mxu0 %v8252
        %v8675 = vpop.f32.mrf.mxu0
        %v8676 = vadd.f32 %v8515, %v8675
        %v8677 = vpop.f32.mrf.mxu0
        %v8678 = vpop.f32.mrf.mxu0
        %v8679 = vadd.f32 %v8518, %v8678
        %v8680 = vpop.f32.mrf.mxu0
        %8681 = vmatprep.mubr.bf16.mxu0 0
        %8682 = vmatmul.mubr.bf16.gmra.mxu0 %v8255
        %v8683 = vpop.f32.mrf.mxu0
        %v8684 = vadd.f32 %v8523, %v8683
        %v8685 = vpop.f32.mrf.mxu0
        %v8686 = vpop.f32.mrf.mxu0
        %v8687 = vadd.f32 %v8526, %v8686
        %v8688 = vpop.f32.mrf.mxu0
        %8689 = vmatprep.mubr.bf16.mxu0 0
        %8690 = vmatmul.mubr.bf16.gmra.mxu0 %v8258
        %v8691 = vpop.f32.mrf.mxu0
        %v8692 = vadd.f32 %v8531, %v8691
        %v8693 = vpop.f32.mrf.mxu0
        %v8694 = vpop.f32.mrf.mxu0
        %v8695 = vadd.f32 %v8534, %v8694
        %v8696 = vpop.f32.mrf.mxu0
        %8697 = vmatprep.mubr.bf16.mxu0 0
        %8698 = vmatmul.mubr.bf16.gmra.mxu0 %v8261
        %v8699 = vpop.f32.mrf.mxu0
        %v8700 = vadd.f32 %v8539, %v8699
        %v8701 = vpop.f32.mrf.mxu0
        %v8702 = vpop.f32.mrf.mxu0
        %v8703 = vadd.f32 %v8542, %v8702
        %v8704 = vpop.f32.mrf.mxu0
        %8705 = vmatprep.mubr.bf16.mxu0 0
        %8706 = vmatmul.mubr.bf16.gmra.mxu0 %v8264
        %v8707 = vpop.f32.mrf.mxu0
        %v8708 = vadd.f32 %v8547, %v8707
        %v8709 = vpop.f32.mrf.mxu0
        %v8710 = vpop.f32.mrf.mxu0
        %v8711 = vadd.f32 %v8550, %v8710
        %v8712 = vpop.f32.mrf.mxu0
        %8713 = vmatprep.mubr.bf16.mxu0 0
        %8714 = vmatmul.mubr.bf16.gmra.mxu0 %v8267
        %v8715 = vpop.f32.mrf.mxu0
        %v8716 = vadd.f32 %v8555, %v8715
        %v8717 = vpop.f32.mrf.mxu0
        %v8718 = vpop.f32.mrf.mxu0
        %v8719 = vadd.f32 %v8558, %v8718
        %v8720 = vpop.f32.mrf.mxu0
        %8721 = vmatprep.mubr.bf16.mxu0 0
        %8722 = vmatmul.mubr.bf16.gmra.mxu0 %v8270
        %v8723 = vpop.f32.mrf.mxu0
        %v8724 = vadd.f32 %v8563, %v8723
        %v8725 = vpop.f32.mrf.mxu0
        %v8726 = vpop.f32.mrf.mxu0
        %v8727 = vadd.f32 %v8566, %v8726
        %v8728 = vpop.f32.mrf.mxu0
        %8729 = vmatprep.mubr.bf16.mxu0 0
        %8730 = vmatmul.mubr.bf16.gmra.mxu0 %v8273
        %v8731 = vpop.f32.mrf.mxu0
        %v8732 = vadd.f32 %v8571, %v8731
        %v8733 = vpop.f32.mrf.mxu0
        %v8734 = vpop.f32.mrf.mxu0
        %v8735 = vadd.f32 %v8574, %v8734
        %v8736 = vpop.f32.mrf.mxu0
        %8737 = vmatprep.mubr.bf16.mxu0 0
        %8738 = vmatmul.mubr.bf16.gmra.mxu0 %v8276
        %v8739 = vpop.f32.mrf.mxu0
        %v8740 = vadd.f32 %v8579, %v8739
        %v8741 = vpop.f32.mrf.mxu0
        %v8742 = vpop.f32.mrf.mxu0
        %v8743 = vadd.f32 %v8582, %v8742
        %v8744 = vpop.f32.mrf.mxu0
        %8745 = vmatprep.mubr.bf16.mxu0 0
        %8746 = vmatmul.mubr.bf16.gmra.mxu0 %v8279
        %v8747 = vpop.f32.mrf.mxu0
        %v8748 = vadd.f32 %v8587, %v8747
        %v8749 = vpop.f32.mrf.mxu0
        %v8750 = vpop.f32.mrf.mxu0
        %v8751 = vadd.f32 %v8590, %v8750
        %v8752 = vpop.f32.mrf.mxu0
        %8753 = vmatprep.mubr.bf16.mxu0 0
        %8754 = vmatmul.mubr.bf16.gmra.mxu0 %v8282
        %v8755 = vpop.f32.mrf.mxu0
        %v8756 = vadd.f32 %v8595, %v8755
        %v8757 = vpop.f32.mrf.mxu0
        %v8758 = vpop.f32.mrf.mxu0
        %v8759 = vadd.f32 %v8598, %v8758
        %v8760 = vpop.f32.mrf.mxu0
        %8761 = vmatprep.mubr.bf16.mxu0 0
        %8762 = vmatmul.mubr.bf16.gmra.mxu0 %v8285
        %v8763 = vpop.f32.mrf.mxu0
        %v8764 = vadd.f32 %v8603, %v8763
        %v8765 = vpop.f32.mrf.mxu0
        %v8766 = vpop.f32.mrf.mxu0
        %v8767 = vadd.f32 %v8606, %v8766
        %v8768 = vpop.f32.mrf.mxu0
        %8769 = vdwg.mxu0
        %v8770 = vmax.f32 %v8644, 0.0
        %v8771 = vmax.f32 %v8647, 0.0
        %v8772 = vmax.f32 %v8652, 0.0
        %v8773 = vmax.f32 %v8655, 0.0
        %v8774 = vmax.f32 %v8660, 0.0
        %v8775 = vmax.f32 %v8663, 0.0
        %v8776 = vmax.f32 %v8668, 0.0
        %v8777 = vmax.f32 %v8671, 0.0
        %v8778 = vmax.f32 %v8676, 0.0
        %v8779 = vmax.f32 %v8679, 0.0
        %v8780 = vmax.f32 %v8684, 0.0
        %v8781 = vmax.f32 %v8687, 0.0
        %v8782 = vmax.f32 %v8692, 0.0
        %v8783 = vmax.f32 %v8695, 0.0
        %v8784 = vmax.f32 %v8700, 0.0
        %v8785 = vmax.f32 %v8703, 0.0
        %v8786 = vmax.f32 %v8708, 0.0
        %v8787 = vmax.f32 %v8711, 0.0
        %v8788 = vmax.f32 %v8716, 0.0
        %v8789 = vmax.f32 %v8719, 0.0
        %v8790 = vmax.f32 %v8724, 0.0
        %v8791 = vmax.f32 %v8727, 0.0
        %v8792 = vmax.f32 %v8732, 0.0
        %v8793 = vmax.f32 %v8735, 0.0
        %v8794 = vmax.f32 %v8740, 0.0
        %v8795 = vmax.f32 %v8743, 0.0
        %v8796 = vmax.f32 %v8748, 0.0
        %v8797 = vmax.f32 %v8751, 0.0
        %v8798 = vmax.f32 %v8756, 0.0
        %v8799 = vmax.f32 %v8759, 0.0
        %v8800 = vmax.f32 %v8764, 0.0
        %v8801 = vmax.f32 %v8767, 0.0
        %v8802 = vsel %vm1674, %v8770, -inf
        %v8803 = vsel %vm1674, %v8771, -inf
        %v8804 = vmax.f32 %v8802, %v8803
        %v8805 = vsel %vm1674, %v8772, -inf
        %v8806 = vsel %vm1674, %v8773, -inf
        %v8807 = vmax.f32 %v8805, %v8806
        %v8808 = vsel %vm1674, %v8774, -inf
        %v8809 = vsel %vm1674, %v8775, -inf
        %v8810 = vmax.f32 %v8808, %v8809
        %v8811 = vsel %vm1674, %v8776, -inf
        %v8812 = vsel %vm1674, %v8777, -inf
        %v8813 = vmax.f32 %v8811, %v8812
        %v8814 = vsel %vm1674, %v8778, -inf
        %v8815 = vsel %vm1674, %v8779, -inf
        %v8816 = vmax.f32 %v8814, %v8815
        %v8817 = vsel %vm1674, %v8780, -inf
        %v8818 = vsel %vm1674, %v8781, -inf
        %v8819 = vmax.f32 %v8817, %v8818
        %v8820 = vsel %vm1674, %v8782, -inf
        %v8821 = vsel %vm1674, %v8783, -inf
        %v8822 = vmax.f32 %v8820, %v8821
        %v8823 = vsel %vm1674, %v8784, -inf
        %v8824 = vsel %vm1674, %v8785, -inf
        %v8825 = vmax.f32 %v8823, %v8824
        %v8826 = vsel %vm1674, %v8786, -inf
        %v8827 = vsel %vm1674, %v8787, -inf
        %v8828 = vmax.f32 %v8826, %v8827
        %v8829 = vsel %vm1674, %v8788, -inf
        %v8830 = vsel %vm1674, %v8789, -inf
        %v8831 = vmax.f32 %v8829, %v8830
        %v8832 = vsel %vm1674, %v8790, -inf
        %v8833 = vsel %vm1674, %v8791, -inf
        %v8834 = vmax.f32 %v8832, %v8833
        %v8835 = vsel %vm1674, %v8792, -inf
        %v8836 = vsel %vm1674, %v8793, -inf
        %v8837 = vmax.f32 %v8835, %v8836
        %v8838 = vsel %vm1674, %v8794, -inf
        %v8839 = vsel %vm1674, %v8795, -inf
        %v8840 = vmax.f32 %v8838, %v8839
        %v8841 = vsel %vm1674, %v8796, -inf
        %v8842 = vsel %vm1674, %v8797, -inf
        %v8843 = vmax.f32 %v8841, %v8842
        %v8844 = vsel %vm1674, %v8798, -inf
        %v8845 = vsel %vm1674, %v8799, -inf
        %v8846 = vmax.f32 %v8844, %v8845
        %v8847 = vsel %vm1674, %v8800, -inf
        %v8848 = vsel %vm1674, %v8801, -inf
        %v8849 = vmax.f32 %v8847, %v8848
        %v8866 = vcombine.high %v8804, %v8804
        %v8868 = vunpack.c.l.s4 1983009808
        %v8869 = vunpack.c.0.s8 %v8868
        %v8870 = vlaneseq
        %v8871 = vshrl.u32 %v8870, 7
        %v8872 = vsub.s32 %v8869, %v8871
        %v8873 = vrot.slane %v8804, %v8872
        %v8875 = vunpack.c.l.s4 1983009808
        %v8876 = vunpack.c.0.s8 %v8875
        %v8877 = vlaneseq
        %v8878 = vshrl.u32 %v8877, 7
        %v8879 = vsub.s32 %v8876, %v8878
        %v8880 = vrot.slane %v8866, %v8879
        %v8881 = vcombine.high %v8873, %v8873
        %v8882 = vcombine.high %v8880, %v8880
        %v8883 = vcombine.high %v8807, %v8807
        %v8885 = vunpack.c.l.s4 1983009808
        %v8886 = vunpack.c.0.s8 %v8885
        %v8887 = vlaneseq
        %v8888 = vshrl.u32 %v8887, 7
        %v8889 = vsub.s32 %v8886, %v8888
        %v8890 = vrot.slane %v8807, %v8889
        %v8892 = vunpack.c.l.s4 1983009808
        %v8893 = vunpack.c.0.s8 %v8892
        %v8894 = vlaneseq
        %v8895 = vshrl.u32 %v8894, 7
        %v8896 = vsub.s32 %v8893, %v8895
        %v8897 = vrot.slane %v8883, %v8896
        %v8898 = vcombine.high %v8890, %v8890
        %v8899 = vcombine.high %v8897, %v8897
        %v8900 = vcombine.high %v8810, %v8810
        %v8902 = vunpack.c.l.s4 1983009808
        %v8903 = vunpack.c.0.s8 %v8902
        %v8904 = vlaneseq
        %v8905 = vshrl.u32 %v8904, 7
        %v8906 = vsub.s32 %v8903, %v8905
        %v8907 = vrot.slane %v8810, %v8906
        %v8909 = vunpack.c.l.s4 1983009808
        %v8910 = vunpack.c.0.s8 %v8909
        %v8911 = vlaneseq
        %v8912 = vshrl.u32 %v8911, 7
        %v8913 = vsub.s32 %v8910, %v8912
        %v8914 = vrot.slane %v8900, %v8913
        %v8915 = vcombine.high %v8907, %v8907
        %v8916 = vcombine.high %v8914, %v8914
        %v8917 = vcombine.high %v8813, %v8813
        %v8919 = vunpack.c.l.s4 1983009808
        %v8920 = vunpack.c.0.s8 %v8919
        %v8921 = vlaneseq
        %v8922 = vshrl.u32 %v8921, 7
        %v8923 = vsub.s32 %v8920, %v8922
        %v8924 = vrot.slane %v8813, %v8923
        %v8926 = vunpack.c.l.s4 1983009808
        %v8927 = vunpack.c.0.s8 %v8926
        %v8928 = vlaneseq
        %v8929 = vshrl.u32 %v8928, 7
        %v8930 = vsub.s32 %v8927, %v8929
        %v8931 = vrot.slane %v8917, %v8930
        %v8932 = vcombine.high %v8924, %v8924
        %v8933 = vcombine.high %v8931, %v8931
        %v8934 = vcombine.high %v8816, %v8816
        %v8936 = vunpack.c.l.s4 1983009808
        %v8937 = vunpack.c.0.s8 %v8936
        %v8938 = vlaneseq
        %v8939 = vshrl.u32 %v8938, 7
        %v8940 = vsub.s32 %v8937, %v8939
        %v8941 = vrot.slane %v8816, %v8940
        %v8943 = vunpack.c.l.s4 1983009808
        %v8944 = vunpack.c.0.s8 %v8943
        %v8945 = vlaneseq
        %v8946 = vshrl.u32 %v8945, 7
        %v8947 = vsub.s32 %v8944, %v8946
        %v8948 = vrot.slane %v8934, %v8947
        %v8949 = vcombine.high %v8941, %v8941
        %v8950 = vcombine.high %v8948, %v8948
        %v8951 = vcombine.high %v8819, %v8819
        %v8953 = vunpack.c.l.s4 1983009808
        %v8954 = vunpack.c.0.s8 %v8953
        %v8955 = vlaneseq
        %v8956 = vshrl.u32 %v8955, 7
        %v8957 = vsub.s32 %v8954, %v8956
        %v8958 = vrot.slane %v8819, %v8957
        %v8960 = vunpack.c.l.s4 1983009808
        %v8961 = vunpack.c.0.s8 %v8960
        %v8962 = vlaneseq
        %v8963 = vshrl.u32 %v8962, 7
        %v8964 = vsub.s32 %v8961, %v8963
        %v8965 = vrot.slane %v8951, %v8964
        %v8966 = vcombine.high %v8958, %v8958
        %v8967 = vcombine.high %v8965, %v8965
        %v8968 = vcombine.high %v8822, %v8822
        %v8970 = vunpack.c.l.s4 1983009808
        %v8971 = vunpack.c.0.s8 %v8970
        %v8972 = vlaneseq
        %v8973 = vshrl.u32 %v8972, 7
        %v8974 = vsub.s32 %v8971, %v8973
        %v8975 = vrot.slane %v8822, %v8974
        %v8977 = vunpack.c.l.s4 1983009808
        %v8978 = vunpack.c.0.s8 %v8977
        %v8979 = vlaneseq
        %v8980 = vshrl.u32 %v8979, 7
        %v8981 = vsub.s32 %v8978, %v8980
        %v8982 = vrot.slane %v8968, %v8981
        %v8983 = vcombine.high %v8975, %v8975
        %v8984 = vcombine.high %v8982, %v8982
        %v8985 = vcombine.high %v8825, %v8825
        %v8987 = vunpack.c.l.s4 1983009808
        %v8988 = vunpack.c.0.s8 %v8987
        %v8989 = vlaneseq
        %v8990 = vshrl.u32 %v8989, 7
        %v8991 = vsub.s32 %v8988, %v8990
        %v8992 = vrot.slane %v8825, %v8991
        %v8994 = vunpack.c.l.s4 1983009808
        %v8995 = vunpack.c.0.s8 %v8994
        %v8996 = vlaneseq
        %v8997 = vshrl.u32 %v8996, 7
        %v8998 = vsub.s32 %v8995, %v8997
        %v8999 = vrot.slane %v8985, %v8998
        %v9000 = vcombine.high %v8992, %v8992
        %v9001 = vcombine.high %v8999, %v8999
        %v9002 = vcombine.high %v8828, %v8828
        %v9004 = vunpack.c.l.s4 1983009808
        %v9005 = vunpack.c.0.s8 %v9004
        %v9006 = vlaneseq
        %v9007 = vshrl.u32 %v9006, 7
        %v9008 = vsub.s32 %v9005, %v9007
        %v9009 = vrot.slane %v8828, %v9008
        %v9011 = vunpack.c.l.s4 1983009808
        %v9012 = vunpack.c.0.s8 %v9011
        %v9013 = vlaneseq
        %v9014 = vshrl.u32 %v9013, 7
        %v9015 = vsub.s32 %v9012, %v9014
        %v9016 = vrot.slane %v9002, %v9015
        %v9017 = vcombine.high %v9009, %v9009
        %v9018 = vcombine.high %v9016, %v9016
        %v9019 = vcombine.high %v8831, %v8831
        %v9021 = vunpack.c.l.s4 1983009808
        %v9022 = vunpack.c.0.s8 %v9021
        %v9023 = vlaneseq
        %v9024 = vshrl.u32 %v9023, 7
        %v9025 = vsub.s32 %v9022, %v9024
        %v9026 = vrot.slane %v8831, %v9025
        %v9028 = vunpack.c.l.s4 1983009808
        %v9029 = vunpack.c.0.s8 %v9028
        %v9030 = vlaneseq
        %v9031 = vshrl.u32 %v9030, 7
        %v9032 = vsub.s32 %v9029, %v9031
        %v9033 = vrot.slane %v9019, %v9032
        %v9034 = vcombine.high %v9026, %v9026
        %v9035 = vcombine.high %v9033, %v9033
        %v9036 = vcombine.high %v8834, %v8834
        %v9038 = vunpack.c.l.s4 1983009808
        %v9039 = vunpack.c.0.s8 %v9038
        %v9040 = vlaneseq
        %v9041 = vshrl.u32 %v9040, 7
        %v9042 = vsub.s32 %v9039, %v9041
        %v9043 = vrot.slane %v8834, %v9042
        %v9045 = vunpack.c.l.s4 1983009808
        %v9046 = vunpack.c.0.s8 %v9045
        %v9047 = vlaneseq
        %v9048 = vshrl.u32 %v9047, 7
        %v9049 = vsub.s32 %v9046, %v9048
        %v9050 = vrot.slane %v9036, %v9049
        %v9051 = vcombine.high %v9043, %v9043
        %v9052 = vcombine.high %v9050, %v9050
        %v9053 = vcombine.high %v8837, %v8837
        %v9055 = vunpack.c.l.s4 1983009808
        %v9056 = vunpack.c.0.s8 %v9055
        %v9057 = vlaneseq
        %v9058 = vshrl.u32 %v9057, 7
        %v9059 = vsub.s32 %v9056, %v9058
        %v9060 = vrot.slane %v8837, %v9059
        %v9062 = vunpack.c.l.s4 1983009808
        %v9063 = vunpack.c.0.s8 %v9062
        %v9064 = vlaneseq
        %v9065 = vshrl.u32 %v9064, 7
        %v9066 = vsub.s32 %v9063, %v9065
        %v9067 = vrot.slane %v9053, %v9066
        %v9068 = vcombine.high %v9060, %v9060
        %v9069 = vcombine.high %v9067, %v9067
        %v9070 = vcombine.high %v8840, %v8840
        %v9072 = vunpack.c.l.s4 1983009808
        %v9073 = vunpack.c.0.s8 %v9072
        %v9074 = vlaneseq
        %v9075 = vshrl.u32 %v9074, 7
        %v9076 = vsub.s32 %v9073, %v9075
        %v9077 = vrot.slane %v8840, %v9076
        %v9079 = vunpack.c.l.s4 1983009808
        %v9080 = vunpack.c.0.s8 %v9079
        %v9081 = vlaneseq
        %v9082 = vshrl.u32 %v9081, 7
        %v9083 = vsub.s32 %v9080, %v9082
        %v9084 = vrot.slane %v9070, %v9083
        %v9085 = vcombine.high %v9077, %v9077
        %v9086 = vcombine.high %v9084, %v9084
        %v9087 = vcombine.high %v8843, %v8843
        %v9089 = vunpack.c.l.s4 1983009808
        %v9090 = vunpack.c.0.s8 %v9089
        %v9091 = vlaneseq
        %v9092 = vshrl.u32 %v9091, 7
        %v9093 = vsub.s32 %v9090, %v9092
        %v9094 = vrot.slane %v8843, %v9093
        %v9096 = vunpack.c.l.s4 1983009808
        %v9097 = vunpack.c.0.s8 %v9096
        %v9098 = vlaneseq
        %v9099 = vshrl.u32 %v9098, 7
        %v9100 = vsub.s32 %v9097, %v9099
        %v9101 = vrot.slane %v9087, %v9100
        %v9102 = vcombine.high %v9094, %v9094
        %v9103 = vcombine.high %v9101, %v9101
        %v9104 = vcombine.high %v8846, %v8846
        %v9106 = vunpack.c.l.s4 1983009808
        %v9107 = vunpack.c.0.s8 %v9106
        %v9108 = vlaneseq
        %v9109 = vshrl.u32 %v9108, 7
        %v9110 = vsub.s32 %v9107, %v9109
        %v9111 = vrot.slane %v8846, %v9110
        %v9113 = vunpack.c.l.s4 1983009808
        %v9114 = vunpack.c.0.s8 %v9113
        %v9115 = vlaneseq
        %v9116 = vshrl.u32 %v9115, 7
        %v9117 = vsub.s32 %v9114, %v9116
        %v9118 = vrot.slane %v9104, %v9117
        %v9119 = vcombine.high %v9111, %v9111
        %v9120 = vcombine.high %v9118, %v9118
        %v9121 = vcombine.high %v8849, %v8849
        %v9123 = vunpack.c.l.s4 1983009808
        %v9124 = vunpack.c.0.s8 %v9123
        %v9125 = vlaneseq
        %v9126 = vshrl.u32 %v9125, 7
        %v9127 = vsub.s32 %v9124, %v9126
        %v9128 = vrot.slane %v8849, %v9127
        %v9130 = vunpack.c.l.s4 1983009808
        %v9131 = vunpack.c.0.s8 %v9130
        %v9132 = vlaneseq
        %v9133 = vshrl.u32 %v9132, 7
        %v9134 = vsub.s32 %v9131, %v9133
        %v9135 = vrot.slane %v9121, %v9134
        %v9136 = vcombine.high %v9128, %v9128
        %v9137 = vcombine.high %v9135, %v9135
        %v9202 = vsel %vm3275, %v8873, -inf
        %v9203 = vrot.slane %v9202, 4
        %v9204 = vmax.f32 %v9202, %v9203
        %v9205 = vrot.slane %v9204, 2
        %v9206 = vmax.f32 %v9204, %v9205
        %v9207 = vrot.slane %v9206, 1
        %v9208 = vmax.f32 %v9206, %v9207
        %v9209 = vsel %vm3275, %v8881, -inf
        %v9210 = vrot.slane %v9209, 4
        %v9211 = vmax.f32 %v9209, %v9210
        %v9212 = vrot.slane %v9211, 2
        %v9213 = vmax.f32 %v9211, %v9212
        %v9214 = vrot.slane %v9213, 1
        %v9215 = vmax.f32 %v9213, %v9214
        %v9216 = vsel %vm3275, %v8880, -inf
        %v9217 = vrot.slane %v9216, 4
        %v9218 = vmax.f32 %v9216, %v9217
        %v9219 = vrot.slane %v9218, 2
        %v9220 = vmax.f32 %v9218, %v9219
        %v9221 = vrot.slane %v9220, 1
        %v9222 = vmax.f32 %v9220, %v9221
        %v9223 = vsel %vm3275, %v8882, -inf
        %v9224 = vrot.slane %v9223, 4
        %v9225 = vmax.f32 %v9223, %v9224
        %v9226 = vrot.slane %v9225, 2
        %v9227 = vmax.f32 %v9225, %v9226
        %v9228 = vrot.slane %v9227, 1
        %v9229 = vmax.f32 %v9227, %v9228
        %v9230 = vsel %vm3275, %v8890, -inf
        %v9231 = vrot.slane %v9230, 4
        %v9232 = vmax.f32 %v9230, %v9231
        %v9233 = vrot.slane %v9232, 2
        %v9234 = vmax.f32 %v9232, %v9233
        %v9235 = vrot.slane %v9234, 1
        %v9236 = vmax.f32 %v9234, %v9235
        %v9237 = vsel %vm3275, %v8898, -inf
        %v9238 = vrot.slane %v9237, 4
        %v9239 = vmax.f32 %v9237, %v9238
        %v9240 = vrot.slane %v9239, 2
        %v9241 = vmax.f32 %v9239, %v9240
        %v9242 = vrot.slane %v9241, 1
        %v9243 = vmax.f32 %v9241, %v9242
        %v9244 = vsel %vm3275, %v8897, -inf
        %v9245 = vrot.slane %v9244, 4
        %v9246 = vmax.f32 %v9244, %v9245
        %v9247 = vrot.slane %v9246, 2
        %v9248 = vmax.f32 %v9246, %v9247
        %v9249 = vrot.slane %v9248, 1
        %v9250 = vmax.f32 %v9248, %v9249
        %v9251 = vsel %vm3275, %v8899, -inf
        %v9252 = vrot.slane %v9251, 4
        %v9253 = vmax.f32 %v9251, %v9252
        %v9254 = vrot.slane %v9253, 2
        %v9255 = vmax.f32 %v9253, %v9254
        %v9256 = vrot.slane %v9255, 1
        %v9257 = vmax.f32 %v9255, %v9256
        %v9258 = vsel %vm3275, %v8907, -inf
        %v9259 = vrot.slane %v9258, 4
        %v9260 = vmax.f32 %v9258, %v9259
        %v9261 = vrot.slane %v9260, 2
        %v9262 = vmax.f32 %v9260, %v9261
        %v9263 = vrot.slane %v9262, 1
        %v9264 = vmax.f32 %v9262, %v9263
        %v9265 = vsel %vm3275, %v8915, -inf
        %v9266 = vrot.slane %v9265, 4
        %v9267 = vmax.f32 %v9265, %v9266
        %v9268 = vrot.slane %v9267, 2
        %v9269 = vmax.f32 %v9267, %v9268
        %v9270 = vrot.slane %v9269, 1
        %v9271 = vmax.f32 %v9269, %v9270
        %v9272 = vsel %vm3275, %v8914, -inf
        %v9273 = vrot.slane %v9272, 4
        %v9274 = vmax.f32 %v9272, %v9273
        %v9275 = vrot.slane %v9274, 2
        %v9276 = vmax.f32 %v9274, %v9275
        %v9277 = vrot.slane %v9276, 1
        %v9278 = vmax.f32 %v9276, %v9277
        %v9279 = vsel %vm3275, %v8916, -inf
        %v9280 = vrot.slane %v9279, 4
        %v9281 = vmax.f32 %v9279, %v9280
        %v9282 = vrot.slane %v9281, 2
        %v9283 = vmax.f32 %v9281, %v9282
        %v9284 = vrot.slane %v9283, 1
        %v9285 = vmax.f32 %v9283, %v9284
        %v9286 = vsel %vm3275, %v8924, -inf
        %v9287 = vrot.slane %v9286, 4
        %v9288 = vmax.f32 %v9286, %v9287
        %v9289 = vrot.slane %v9288, 2
        %v9290 = vmax.f32 %v9288, %v9289
        %v9291 = vrot.slane %v9290, 1
        %v9292 = vmax.f32 %v9290, %v9291
        %v9293 = vsel %vm3275, %v8932, -inf
        %v9294 = vrot.slane %v9293, 4
        %v9295 = vmax.f32 %v9293, %v9294
        %v9296 = vrot.slane %v9295, 2
        %v9297 = vmax.f32 %v9295, %v9296
        %v9298 = vrot.slane %v9297, 1
        %v9299 = vmax.f32 %v9297, %v9298
        %v9300 = vsel %vm3275, %v8931, -inf
        %v9301 = vrot.slane %v9300, 4
        %v9302 = vmax.f32 %v9300, %v9301
        %v9303 = vrot.slane %v9302, 2
        %v9304 = vmax.f32 %v9302, %v9303
        %v9305 = vrot.slane %v9304, 1
        %v9306 = vmax.f32 %v9304, %v9305
        %v9307 = vsel %vm3275, %v8933, -inf
        %v9308 = vrot.slane %v9307, 4
        %v9309 = vmax.f32 %v9307, %v9308
        %v9310 = vrot.slane %v9309, 2
        %v9311 = vmax.f32 %v9309, %v9310
        %v9312 = vrot.slane %v9311, 1
        %v9313 = vmax.f32 %v9311, %v9312
        %v9314 = vsel %vm3275, %v8941, -inf
        %v9315 = vrot.slane %v9314, 4
        %v9316 = vmax.f32 %v9314, %v9315
        %v9317 = vrot.slane %v9316, 2
        %v9318 = vmax.f32 %v9316, %v9317
        %v9319 = vrot.slane %v9318, 1
        %v9320 = vmax.f32 %v9318, %v9319
        %v9321 = vsel %vm3275, %v8949, -inf
        %v9322 = vrot.slane %v9321, 4
        %v9323 = vmax.f32 %v9321, %v9322
        %v9324 = vrot.slane %v9323, 2
        %v9325 = vmax.f32 %v9323, %v9324
        %v9326 = vrot.slane %v9325, 1
        %v9327 = vmax.f32 %v9325, %v9326
        %v9328 = vsel %vm3275, %v8948, -inf
        %v9329 = vrot.slane %v9328, 4
        %v9330 = vmax.f32 %v9328, %v9329
        %v9331 = vrot.slane %v9330, 2
        %v9332 = vmax.f32 %v9330, %v9331
        %v9333 = vrot.slane %v9332, 1
        %v9334 = vmax.f32 %v9332, %v9333
        %v9335 = vsel %vm3275, %v8950, -inf
        %v9336 = vrot.slane %v9335, 4
        %v9337 = vmax.f32 %v9335, %v9336
        %v9338 = vrot.slane %v9337, 2
        %v9339 = vmax.f32 %v9337, %v9338
        %v9340 = vrot.slane %v9339, 1
        %v9341 = vmax.f32 %v9339, %v9340
        %v9342 = vsel %vm3275, %v8958, -inf
        %v9343 = vrot.slane %v9342, 4
        %v9344 = vmax.f32 %v9342, %v9343
        %v9345 = vrot.slane %v9344, 2
        %v9346 = vmax.f32 %v9344, %v9345
        %v9347 = vrot.slane %v9346, 1
        %v9348 = vmax.f32 %v9346, %v9347
        %v9349 = vsel %vm3275, %v8966, -inf
        %v9350 = vrot.slane %v9349, 4
        %v9351 = vmax.f32 %v9349, %v9350
        %v9352 = vrot.slane %v9351, 2
        %v9353 = vmax.f32 %v9351, %v9352
        %v9354 = vrot.slane %v9353, 1
        %v9355 = vmax.f32 %v9353, %v9354
        %v9356 = vsel %vm3275, %v8965, -inf
        %v9357 = vrot.slane %v9356, 4
        %v9358 = vmax.f32 %v9356, %v9357
        %v9359 = vrot.slane %v9358, 2
        %v9360 = vmax.f32 %v9358, %v9359
        %v9361 = vrot.slane %v9360, 1
        %v9362 = vmax.f32 %v9360, %v9361
        %v9363 = vsel %vm3275, %v8967, -inf
        %v9364 = vrot.slane %v9363, 4
        %v9365 = vmax.f32 %v9363, %v9364
        %v9366 = vrot.slane %v9365, 2
        %v9367 = vmax.f32 %v9365, %v9366
        %v9368 = vrot.slane %v9367, 1
        %v9369 = vmax.f32 %v9367, %v9368
        %v9370 = vsel %vm3275, %v8975, -inf
        %v9371 = vrot.slane %v9370, 4
        %v9372 = vmax.f32 %v9370, %v9371
        %v9373 = vrot.slane %v9372, 2
        %v9374 = vmax.f32 %v9372, %v9373
        %v9375 = vrot.slane %v9374, 1
        %v9376 = vmax.f32 %v9374, %v9375
        %v9377 = vsel %vm3275, %v8983, -inf
        %v9378 = vrot.slane %v9377, 4
        %v9379 = vmax.f32 %v9377, %v9378
        %v9380 = vrot.slane %v9379, 2
        %v9381 = vmax.f32 %v9379, %v9380
        %v9382 = vrot.slane %v9381, 1
        %v9383 = vmax.f32 %v9381, %v9382
        %v9384 = vsel %vm3275, %v8982, -inf
        %v9385 = vrot.slane %v9384, 4
        %v9386 = vmax.f32 %v9384, %v9385
        %v9387 = vrot.slane %v9386, 2
        %v9388 = vmax.f32 %v9386, %v9387
        %v9389 = vrot.slane %v9388, 1
        %v9390 = vmax.f32 %v9388, %v9389
        %v9391 = vsel %vm3275, %v8984, -inf
        %v9392 = vrot.slane %v9391, 4
        %v9393 = vmax.f32 %v9391, %v9392
        %v9394 = vrot.slane %v9393, 2
        %v9395 = vmax.f32 %v9393, %v9394
        %v9396 = vrot.slane %v9395, 1
        %v9397 = vmax.f32 %v9395, %v9396
        %v9398 = vsel %vm3275, %v8992, -inf
        %v9399 = vrot.slane %v9398, 4
        %v9400 = vmax.f32 %v9398, %v9399
        %v9401 = vrot.slane %v9400, 2
        %v9402 = vmax.f32 %v9400, %v9401
        %v9403 = vrot.slane %v9402, 1
        %v9404 = vmax.f32 %v9402, %v9403
        %v9405 = vsel %vm3275, %v9000, -inf
        %v9406 = vrot.slane %v9405, 4
        %v9407 = vmax.f32 %v9405, %v9406
        %v9408 = vrot.slane %v9407, 2
        %v9409 = vmax.f32 %v9407, %v9408
        %v9410 = vrot.slane %v9409, 1
        %v9411 = vmax.f32 %v9409, %v9410
        %v9412 = vsel %vm3275, %v8999, -inf
        %v9413 = vrot.slane %v9412, 4
        %v9414 = vmax.f32 %v9412, %v9413
        %v9415 = vrot.slane %v9414, 2
        %v9416 = vmax.f32 %v9414, %v9415
        %v9417 = vrot.slane %v9416, 1
        %v9418 = vmax.f32 %v9416, %v9417
        %v9419 = vsel %vm3275, %v9001, -inf
        %v9420 = vrot.slane %v9419, 4
        %v9421 = vmax.f32 %v9419, %v9420
        %v9422 = vrot.slane %v9421, 2
        %v9423 = vmax.f32 %v9421, %v9422
        %v9424 = vrot.slane %v9423, 1
        %v9425 = vmax.f32 %v9423, %v9424
        %v9426 = vsel %vm3275, %v9009, -inf
        %v9427 = vrot.slane %v9426, 4
        %v9428 = vmax.f32 %v9426, %v9427
        %v9429 = vrot.slane %v9428, 2
        %v9430 = vmax.f32 %v9428, %v9429
        %v9431 = vrot.slane %v9430, 1
        %v9432 = vmax.f32 %v9430, %v9431
        %v9433 = vsel %vm3275, %v9017, -inf
        %v9434 = vrot.slane %v9433, 4
        %v9435 = vmax.f32 %v9433, %v9434
        %v9436 = vrot.slane %v9435, 2
        %v9437 = vmax.f32 %v9435, %v9436
        %v9438 = vrot.slane %v9437, 1
        %v9439 = vmax.f32 %v9437, %v9438
        %v9440 = vsel %vm3275, %v9016, -inf
        %v9441 = vrot.slane %v9440, 4
        %v9442 = vmax.f32 %v9440, %v9441
        %v9443 = vrot.slane %v9442, 2
        %v9444 = vmax.f32 %v9442, %v9443
        %v9445 = vrot.slane %v9444, 1
        %v9446 = vmax.f32 %v9444, %v9445
        %v9447 = vsel %vm3275, %v9018, -inf
        %v9448 = vrot.slane %v9447, 4
        %v9449 = vmax.f32 %v9447, %v9448
        %v9450 = vrot.slane %v9449, 2
        %v9451 = vmax.f32 %v9449, %v9450
        %v9452 = vrot.slane %v9451, 1
        %v9453 = vmax.f32 %v9451, %v9452
        %v9454 = vsel %vm3275, %v9026, -inf
        %v9455 = vrot.slane %v9454, 4
        %v9456 = vmax.f32 %v9454, %v9455
        %v9457 = vrot.slane %v9456, 2
        %v9458 = vmax.f32 %v9456, %v9457
        %v9459 = vrot.slane %v9458, 1
        %v9460 = vmax.f32 %v9458, %v9459
        %v9461 = vsel %vm3275, %v9034, -inf
        %v9462 = vrot.slane %v9461, 4
        %v9463 = vmax.f32 %v9461, %v9462
        %v9464 = vrot.slane %v9463, 2
        %v9465 = vmax.f32 %v9463, %v9464
        %v9466 = vrot.slane %v9465, 1
        %v9467 = vmax.f32 %v9465, %v9466
        %v9468 = vsel %vm3275, %v9033, -inf
        %v9469 = vrot.slane %v9468, 4
        %v9470 = vmax.f32 %v9468, %v9469
        %v9471 = vrot.slane %v9470, 2
        %v9472 = vmax.f32 %v9470, %v9471
        %v9473 = vrot.slane %v9472, 1
        %v9474 = vmax.f32 %v9472, %v9473
        %v9475 = vsel %vm3275, %v9035, -inf
        %v9476 = vrot.slane %v9475, 4
        %v9477 = vmax.f32 %v9475, %v9476
        %v9478 = vrot.slane %v9477, 2
        %v9479 = vmax.f32 %v9477, %v9478
        %v9480 = vrot.slane %v9479, 1
        %v9481 = vmax.f32 %v9479, %v9480
        %v9482 = vsel %vm3275, %v9043, -inf
        %v9483 = vrot.slane %v9482, 4
        %v9484 = vmax.f32 %v9482, %v9483
        %v9485 = vrot.slane %v9484, 2
        %v9486 = vmax.f32 %v9484, %v9485
        %v9487 = vrot.slane %v9486, 1
        %v9488 = vmax.f32 %v9486, %v9487
        %v9489 = vsel %vm3275, %v9051, -inf
        %v9490 = vrot.slane %v9489, 4
        %v9491 = vmax.f32 %v9489, %v9490
        %v9492 = vrot.slane %v9491, 2
        %v9493 = vmax.f32 %v9491, %v9492
        %v9494 = vrot.slane %v9493, 1
        %v9495 = vmax.f32 %v9493, %v9494
        %v9496 = vsel %vm3275, %v9050, -inf
        %v9497 = vrot.slane %v9496, 4
        %v9498 = vmax.f32 %v9496, %v9497
        %v9499 = vrot.slane %v9498, 2
        %v9500 = vmax.f32 %v9498, %v9499
        %v9501 = vrot.slane %v9500, 1
        %v9502 = vmax.f32 %v9500, %v9501
        %v9503 = vsel %vm3275, %v9052, -inf
        %v9504 = vrot.slane %v9503, 4
        %v9505 = vmax.f32 %v9503, %v9504
        %v9506 = vrot.slane %v9505, 2
        %v9507 = vmax.f32 %v9505, %v9506
        %v9508 = vrot.slane %v9507, 1
        %v9509 = vmax.f32 %v9507, %v9508
        %v9510 = vsel %vm3275, %v9060, -inf
        %v9511 = vrot.slane %v9510, 4
        %v9512 = vmax.f32 %v9510, %v9511
        %v9513 = vrot.slane %v9512, 2
        %v9514 = vmax.f32 %v9512, %v9513
        %v9515 = vrot.slane %v9514, 1
        %v9516 = vmax.f32 %v9514, %v9515
        %v9517 = vsel %vm3275, %v9068, -inf
        %v9518 = vrot.slane %v9517, 4
        %v9519 = vmax.f32 %v9517, %v9518
        %v9520 = vrot.slane %v9519, 2
        %v9521 = vmax.f32 %v9519, %v9520
        %v9522 = vrot.slane %v9521, 1
        %v9523 = vmax.f32 %v9521, %v9522
        %v9524 = vsel %vm3275, %v9067, -inf
        %v9525 = vrot.slane %v9524, 4
        %v9526 = vmax.f32 %v9524, %v9525
        %v9527 = vrot.slane %v9526, 2
        %v9528 = vmax.f32 %v9526, %v9527
        %v9529 = vrot.slane %v9528, 1
        %v9530 = vmax.f32 %v9528, %v9529
        %v9531 = vsel %vm3275, %v9069, -inf
        %v9532 = vrot.slane %v9531, 4
        %v9533 = vmax.f32 %v9531, %v9532
        %v9534 = vrot.slane %v9533, 2
        %v9535 = vmax.f32 %v9533, %v9534
        %v9536 = vrot.slane %v9535, 1
        %v9537 = vmax.f32 %v9535, %v9536
        %v9538 = vsel %vm3275, %v9077, -inf
        %v9539 = vrot.slane %v9538, 4
        %v9540 = vmax.f32 %v9538, %v9539
        %v9541 = vrot.slane %v9540, 2
        %v9542 = vmax.f32 %v9540, %v9541
        %v9543 = vrot.slane %v9542, 1
        %v9544 = vmax.f32 %v9542, %v9543
        %v9545 = vsel %vm3275, %v9085, -inf
        %v9546 = vrot.slane %v9545, 4
        %v9547 = vmax.f32 %v9545, %v9546
        %v9548 = vrot.slane %v9547, 2
        %v9549 = vmax.f32 %v9547, %v9548
        %v9550 = vrot.slane %v9549, 1
        %v9551 = vmax.f32 %v9549, %v9550
        %v9552 = vsel %vm3275, %v9084, -inf
        %v9553 = vrot.slane %v9552, 4
        %v9554 = vmax.f32 %v9552, %v9553
        %v9555 = vrot.slane %v9554, 2
        %v9556 = vmax.f32 %v9554, %v9555
        %v9557 = vrot.slane %v9556, 1
        %v9558 = vmax.f32 %v9556, %v9557
        %v9559 = vsel %vm3275, %v9086, -inf
        %v9560 = vrot.slane %v9559, 4
        %v9561 = vmax.f32 %v9559, %v9560
        %v9562 = vrot.slane %v9561, 2
        %v9563 = vmax.f32 %v9561, %v9562
        %v9564 = vrot.slane %v9563, 1
        %v9565 = vmax.f32 %v9563, %v9564
        %v9566 = vsel %vm3275, %v9094, -inf
        %v9567 = vrot.slane %v9566, 4
        %v9568 = vmax.f32 %v9566, %v9567
        %v9569 = vrot.slane %v9568, 2
        %v9570 = vmax.f32 %v9568, %v9569
        %v9571 = vrot.slane %v9570, 1
        %v9572 = vmax.f32 %v9570, %v9571
        %v9573 = vsel %vm3275, %v9102, -inf
        %v9574 = vrot.slane %v9573, 4
        %v9575 = vmax.f32 %v9573, %v9574
        %v9576 = vrot.slane %v9575, 2
        %v9577 = vmax.f32 %v9575, %v9576
        %v9578 = vrot.slane %v9577, 1
        %v9579 = vmax.f32 %v9577, %v9578
        %v9580 = vsel %vm3275, %v9101, -inf
        %v9581 = vrot.slane %v9580, 4
        %v9582 = vmax.f32 %v9580, %v9581
        %v9583 = vrot.slane %v9582, 2
        %v9584 = vmax.f32 %v9582, %v9583
        %v9585 = vrot.slane %v9584, 1
        %v9586 = vmax.f32 %v9584, %v9585
        %v9587 = vsel %vm3275, %v9103, -inf
        %v9588 = vrot.slane %v9587, 4
        %v9589 = vmax.f32 %v9587, %v9588
        %v9590 = vrot.slane %v9589, 2
        %v9591 = vmax.f32 %v9589, %v9590
        %v9592 = vrot.slane %v9591, 1
        %v9593 = vmax.f32 %v9591, %v9592
        %v9594 = vsel %vm3275, %v9111, -inf
        %v9595 = vrot.slane %v9594, 4
        %v9596 = vmax.f32 %v9594, %v9595
        %v9597 = vrot.slane %v9596, 2
        %v9598 = vmax.f32 %v9596, %v9597
        %v9599 = vrot.slane %v9598, 1
        %v9600 = vmax.f32 %v9598, %v9599
        %v9601 = vsel %vm3275, %v9119, -inf
        %v9602 = vrot.slane %v9601, 4
        %v9603 = vmax.f32 %v9601, %v9602
        %v9604 = vrot.slane %v9603, 2
        %v9605 = vmax.f32 %v9603, %v9604
        %v9606 = vrot.slane %v9605, 1
        %v9607 = vmax.f32 %v9605, %v9606
        %v9608 = vsel %vm3275, %v9118, -inf
        %v9609 = vrot.slane %v9608, 4
        %v9610 = vmax.f32 %v9608, %v9609
        %v9611 = vrot.slane %v9610, 2
        %v9612 = vmax.f32 %v9610, %v9611
        %v9613 = vrot.slane %v9612, 1
        %v9614 = vmax.f32 %v9612, %v9613
        %v9615 = vsel %vm3275, %v9120, -inf
        %v9616 = vrot.slane %v9615, 4
        %v9617 = vmax.f32 %v9615, %v9616
        %v9618 = vrot.slane %v9617, 2
        %v9619 = vmax.f32 %v9617, %v9618
        %v9620 = vrot.slane %v9619, 1
        %v9621 = vmax.f32 %v9619, %v9620
        %v9622 = vsel %vm3275, %v9128, -inf
        %v9623 = vrot.slane %v9622, 4
        %v9624 = vmax.f32 %v9622, %v9623
        %v9625 = vrot.slane %v9624, 2
        %v9626 = vmax.f32 %v9624, %v9625
        %v9627 = vrot.slane %v9626, 1
        %v9628 = vmax.f32 %v9626, %v9627
        %v9629 = vsel %vm3275, %v9136, -inf
        %v9630 = vrot.slane %v9629, 4
        %v9631 = vmax.f32 %v9629, %v9630
        %v9632 = vrot.slane %v9631, 2
        %v9633 = vmax.f32 %v9631, %v9632
        %v9634 = vrot.slane %v9633, 1
        %v9635 = vmax.f32 %v9633, %v9634
        %v9636 = vsel %vm3275, %v9135, -inf
        %v9637 = vrot.slane %v9636, 4
        %v9638 = vmax.f32 %v9636, %v9637
        %v9639 = vrot.slane %v9638, 2
        %v9640 = vmax.f32 %v9638, %v9639
        %v9641 = vrot.slane %v9640, 1
        %v9642 = vmax.f32 %v9640, %v9641
        %v9643 = vsel %vm3275, %v9137, -inf
        %v9644 = vrot.slane %v9643, 4
        %v9645 = vmax.f32 %v9643, %v9644
        %v9646 = vrot.slane %v9645, 2
        %v9647 = vmax.f32 %v9645, %v9646
        %v9648 = vrot.slane %v9647, 1
        %v9649 = vmax.f32 %v9647, %v9648
        %vm9650 = vcmask 521216
        %9651 = vst.msk [vmem:[#allocation3] sm:$0x3f] %vm9650, 0.0
        %9652 = vst.msk [vmem:[#allocation3 + $0x30] sm:$0x3f] %vm9650, 0.0
        %9653 = vst.msk [vmem:[#allocation3 + $0x60] sm:$0x3f] %vm9650, 0.0
        %9654 = vst.msk [vmem:[#allocation3 + $0x90] sm:$0x3f] %vm9650, 0.0
        %s9655 = scalar_lea.vmem [#allocation3], 40
        %9656 = vst.msk [vmem:[%s9655] sm:$0x3f] %vm9650, 0.0
        %9657 = vst.msk [vmem:[%s9655 + $0x30] sm:$0x3f] %vm9650, 0.0
        %9658 = vst.msk [vmem:[%s9655 + $0x60] sm:$0x3f] %vm9650, 0.0
        %9659 = vst.msk [vmem:[%s9655 + $0x90] sm:$0x3f] %vm9650, 0.0
        %9660 = vst.msk [vmem:[#allocation3] sm:$0x1] %vm5085, 0.0
        %9661 = vst.msk [vmem:[#allocation3 + $0x8] sm:$0x1] %vm5085, 0.0
        %9662 = vst.msk [vmem:[#allocation3 + $0x10] sm:$0x1] %vm5085, 0.0
        %9663 = vst.msk [vmem:[#allocation3 + $0x18] sm:$0x1] %vm5085, 0.0
        %9664 = vst.msk [vmem:[#allocation3 + $0x20] sm:$0x1] %vm5085, 0.0
        %9665 = vst.msk [vmem:[#allocation3 + $0x28] sm:$0x1] %vm5085, 0.0
        %9666 = vst.msk [vmem:[#allocation3 + $0x30] sm:$0x1] %vm5085, 0.0
        %9667 = vst.msk [vmem:[#allocation3 + $0x38] sm:$0x1] %vm5085, 0.0
        %9668 = vst.msk [vmem:[#allocation3 + $0x40] sm:$0x1] %vm5085, 0.0
        %9669 = vst.msk [vmem:[#allocation3 + $0x48] sm:$0x1] %vm5085, 0.0
        %9670 = vst.msk [vmem:[#allocation3 + $0x50] sm:$0x1] %vm5085, 0.0
        %9671 = vst.msk [vmem:[#allocation3 + $0x58] sm:$0x1] %vm5085, 0.0
        %9672 = vst.msk [vmem:[#allocation3 + $0x60] sm:$0x1] %vm5085, 0.0
        %9673 = vst.msk [vmem:[#allocation3 + $0x68] sm:$0x1] %vm5085, 0.0
        %9674 = vst.msk [vmem:[#allocation3 + $0x70] sm:$0x1] %vm5085, 0.0
        %9675 = vst.msk [vmem:[#allocation3 + $0x78] sm:$0x1] %vm5085, 0.0
        %9676 = vst.msk [vmem:[#allocation3 + $0x80] sm:$0x1] %vm5085, 0.0
        %9677 = vst.msk [vmem:[#allocation3 + $0x88] sm:$0x1] %vm5085, 0.0
        %9678 = vst.msk [vmem:[#allocation3 + $0x90] sm:$0x1] %vm5085, 0.0
        %9679 = vst.msk [vmem:[#allocation3 + $0x98] sm:$0x1] %vm5085, 0.0
        %9680 = vst.msk [vmem:[#allocation3 + $0xa0] sm:$0x1] %vm5085, 0.0
        %9681 = vst.msk [vmem:[#allocation3 + $0xa8] sm:$0x1] %vm5085, 0.0
        %9682 = vst.msk [vmem:[#allocation3 + $0xb0] sm:$0x1] %vm5085, 0.0
        %9683 = vst.msk [vmem:[#allocation3 + $0xb8] sm:$0x1] %vm5085, 0.0
        %9684 = vst.msk [vmem:[#allocation3 + $0x5] sm:$0x1] %vm5085, 0.0
        %9685 = vst.msk [vmem:[#allocation3 + $0xd] sm:$0x1] %vm5085, 0.0
        %9686 = vst.msk [vmem:[#allocation3 + $0x15] sm:$0x1] %vm5085, 0.0
        %9687 = vst.msk [vmem:[#allocation3 + $0x1d] sm:$0x1] %vm5085, 0.0
        %9688 = vst.msk [vmem:[#allocation3 + $0x25] sm:$0x1] %vm5085, 0.0
        %9689 = vst.msk [vmem:[#allocation3 + $0x2d] sm:$0x1] %vm5085, 0.0
        %9690 = vst.msk [vmem:[#allocation3 + $0x35] sm:$0x1] %vm5085, 0.0
        %9691 = vst.msk [vmem:[#allocation3 + $0x3d] sm:$0x1] %vm5085, 0.0
        %9692 = vst.msk [vmem:[#allocation3 + $0x45] sm:$0x1] %vm5085, 0.0
        %9693 = vst.msk [vmem:[#allocation3 + $0x4d] sm:$0x1] %vm5085, 0.0
        %9694 = vst.msk [vmem:[#allocation3 + $0x55] sm:$0x1] %vm5085, 0.0
        %9695 = vst.msk [vmem:[#allocation3 + $0x5d] sm:$0x1] %vm5085, 0.0
        %9696 = vst.msk [vmem:[#allocation3 + $0x65] sm:$0x1] %vm5085, 0.0
        %9697 = vst.msk [vmem:[#allocation3 + $0x6d] sm:$0x1] %vm5085, 0.0
        %9698 = vst.msk [vmem:[#allocation3 + $0x75] sm:$0x1] %vm5085, 0.0
        %9699 = vst.msk [vmem:[#allocation3 + $0x7d] sm:$0x1] %vm5085, 0.0
        %9700 = vst.msk [vmem:[#allocation3 + $0x85] sm:$0x1] %vm5085, 0.0
        %9701 = vst.msk [vmem:[#allocation3 + $0x8d] sm:$0x1] %vm5085, 0.0
        %9702 = vst.msk [vmem:[#allocation3 + $0x95] sm:$0x1] %vm5085, 0.0
        %9703 = vst.msk [vmem:[#allocation3 + $0x9d] sm:$0x1] %vm5085, 0.0
        %9704 = vst.msk [vmem:[#allocation3 + $0xa5] sm:$0x1] %vm5085, 0.0
        %9705 = vst.msk [vmem:[#allocation3 + $0xad] sm:$0x1] %vm5085, 0.0
        %9706 = vst.msk [vmem:[#allocation3 + $0xb5] sm:$0x1] %vm5085, 0.0
        %9707 = vst.msk [vmem:[#allocation3 + $0xbd] sm:$0x1] %vm5085, 0.0
        %v9772 = vsel %vm5422, %v9215, %v9208
        %v9773 = vsel %vm5424, %v9222, %v9772
        %v9774 = vsel %vm5426, %v9229, %v9773
        %v9775 = vsel %vm5422, %v9243, %v9236
        %v9776 = vsel %vm5424, %v9250, %v9775
        %v9777 = vsel %vm5426, %v9257, %v9776
        %v9778 = vsel %vm5422, %v9271, %v9264
        %v9779 = vsel %vm5424, %v9278, %v9778
        %v9780 = vsel %vm5426, %v9285, %v9779
        %v9781 = vsel %vm5422, %v9299, %v9292
        %v9782 = vsel %vm5424, %v9306, %v9781
        %v9783 = vsel %vm5426, %v9313, %v9782
        %v9784 = vsel %vm5422, %v9327, %v9320
        %v9785 = vsel %vm5424, %v9334, %v9784
        %v9786 = vsel %vm5426, %v9341, %v9785
        %v9787 = vsel %vm5422, %v9355, %v9348
        %v9788 = vsel %vm5424, %v9362, %v9787
        %v9789 = vsel %vm5426, %v9369, %v9788
        %v9790 = vsel %vm5422, %v9383, %v9376
        %v9791 = vsel %vm5424, %v9390, %v9790
        %v9792 = vsel %vm5426, %v9397, %v9791
        %v9793 = vsel %vm5422, %v9411, %v9404
        %v9794 = vsel %vm5424, %v9418, %v9793
        %v9795 = vsel %vm5426, %v9425, %v9794
        %v9796 = vsel %vm5422, %v9439, %v9432
        %v9797 = vsel %vm5424, %v9446, %v9796
        %v9798 = vsel %vm5426, %v9453, %v9797
        %v9799 = vsel %vm5422, %v9467, %v9460
        %v9800 = vsel %vm5424, %v9474, %v9799
        %v9801 = vsel %vm5426, %v9481, %v9800
        %v9802 = vsel %vm5422, %v9495, %v9488
        %v9803 = vsel %vm5424, %v9502, %v9802
        %v9804 = vsel %vm5426, %v9509, %v9803
        %v9805 = vsel %vm5422, %v9523, %v9516
        %v9806 = vsel %vm5424, %v9530, %v9805
        %v9807 = vsel %vm5426, %v9537, %v9806
        %v9808 = vsel %vm5422, %v9551, %v9544
        %v9809 = vsel %vm5424, %v9558, %v9808
        %v9810 = vsel %vm5426, %v9565, %v9809
        %v9811 = vsel %vm5422, %v9579, %v9572
        %v9812 = vsel %vm5424, %v9586, %v9811
        %v9813 = vsel %vm5426, %v9593, %v9812
        %v9814 = vsel %vm5422, %v9607, %v9600
        %v9815 = vsel %vm5424, %v9614, %v9814
        %v9816 = vsel %vm5426, %v9621, %v9815
        %v9817 = vsel %vm5422, %v9635, %v9628
        %v9818 = vsel %vm5424, %v9642, %v9817
        %v9819 = vsel %vm5426, %v9649, %v9818
        %s9836 = scalar_lea.vmem [#allocation3], 8
        %9837 = vst.msk [vmem:[%s9836 + $0x1] sm:$0xf] %vm7415, %v9774
        %9838 = vst.msk [vmem:[%s9836 + $0x9] sm:$0xf] %vm7415, %v9777
        %9839 = vst.msk [vmem:[%s9836 + $0x11] sm:$0xf] %vm7415, %v9780
        %9840 = vst.msk [vmem:[%s9836 + $0x19] sm:$0xf] %vm7415, %v9783
        %9841 = vst.msk [vmem:[%s9836 + $0x31] sm:$0xf] %vm7415, %v9786
        %9842 = vst.msk [vmem:[%s9836 + $0x39] sm:$0xf] %vm7415, %v9789
        %9843 = vst.msk [vmem:[%s9836 + $0x41] sm:$0xf] %vm7415, %v9792
        %9844 = vst.msk [vmem:[%s9836 + $0x49] sm:$0xf] %vm7415, %v9795
        %9845 = vst.msk [vmem:[%s9836 + $0x61] sm:$0xf] %vm7415, %v9798
        %9846 = vst.msk [vmem:[%s9836 + $0x69] sm:$0xf] %vm7415, %v9801
        %9847 = vst.msk [vmem:[%s9836 + $0x71] sm:$0xf] %vm7415, %v9804
        %9848 = vst.msk [vmem:[%s9836 + $0x79] sm:$0xf] %vm7415, %v9807
        %9849 = vst.msk [vmem:[%s9836 + $0x91] sm:$0xf] %vm7415, %v9810
        %9850 = vst.msk [vmem:[%s9836 + $0x99] sm:$0xf] %vm7415, %v9813
        %9851 = vst.msk [vmem:[%s9836 + $0xa1] sm:$0xf] %vm7415, %v9816
        %9852 = vst.msk [vmem:[%s9836 + $0xa9] sm:$0xf] %vm7415, %v9819
        %v9853 = vld [vmem:[#allocation3] sm:$0xf]
        %v9854 = vld [vmem:[#allocation3 + $0x8] sm:$0xf]
        %v9855 = vld [vmem:[#allocation3 + $0x10] sm:$0xf]
        %v9856 = vld [vmem:[#allocation3 + $0x18] sm:$0xf]
        %v9857 = vld [vmem:[#allocation3 + $0x30] sm:$0xf]
        %v9858 = vld [vmem:[#allocation3 + $0x38] sm:$0xf]
        %v9859 = vld [vmem:[#allocation3 + $0x40] sm:$0xf]
        %v9860 = vld [vmem:[#allocation3 + $0x48] sm:$0xf]
        %v9861 = vld [vmem:[#allocation3 + $0x60] sm:$0xf]
        %v9862 = vld [vmem:[#allocation3 + $0x68] sm:$0xf]
        %v9863 = vld [vmem:[#allocation3 + $0x70] sm:$0xf]
        %v9864 = vld [vmem:[#allocation3 + $0x78] sm:$0xf]
        %v9865 = vld [vmem:[#allocation3 + $0x90] sm:$0xf]
        %v9866 = vld [vmem:[#allocation3 + $0x98] sm:$0xf]
        %v9867 = vld [vmem:[#allocation3 + $0xa0] sm:$0xf]
        %v9868 = vld [vmem:[#allocation3 + $0xa8] sm:$0xf]
        %v9869 = vld [vmem:[#allocation3 + $0x1] sm:$0xf]
        %v9870 = vld [vmem:[#allocation3 + $0x9] sm:$0xf]
        %v9871 = vld [vmem:[#allocation3 + $0x11] sm:$0xf]
        %v9872 = vld [vmem:[#allocation3 + $0x19] sm:$0xf]
        %v9873 = vld [vmem:[#allocation3 + $0x31] sm:$0xf]
        %v9874 = vld [vmem:[#allocation3 + $0x39] sm:$0xf]
        %v9875 = vld [vmem:[#allocation3 + $0x41] sm:$0xf]
        %v9876 = vld [vmem:[#allocation3 + $0x49] sm:$0xf]
        %v9877 = vld [vmem:[#allocation3 + $0x61] sm:$0xf]
        %v9878 = vld [vmem:[#allocation3 + $0x69] sm:$0xf]
        %v9879 = vld [vmem:[#allocation3 + $0x71] sm:$0xf]
        %v9880 = vld [vmem:[#allocation3 + $0x79] sm:$0xf]
        %v9881 = vld [vmem:[#allocation3 + $0x91] sm:$0xf]
        %v9882 = vld [vmem:[#allocation3 + $0x99] sm:$0xf]
        %v9883 = vld [vmem:[#allocation3 + $0xa1] sm:$0xf]
        %v9884 = vld [vmem:[#allocation3 + $0xa9] sm:$0xf]
        %v9885 = vld [vmem:[#allocation3 + $0x2] sm:$0xf]
        %v9886 = vld [vmem:[#allocation3 + $0xa] sm:$0xf]
        %v9887 = vld [vmem:[#allocation3 + $0x12] sm:$0xf]
        %v9888 = vld [vmem:[#allocation3 + $0x1a] sm:$0xf]
        %v9889 = vld [vmem:[#allocation3 + $0x32] sm:$0xf]
        %v9890 = vld [vmem:[#allocation3 + $0x3a] sm:$0xf]
        %v9891 = vld [vmem:[#allocation3 + $0x42] sm:$0xf]
        %v9892 = vld [vmem:[#allocation3 + $0x4a] sm:$0xf]
        %v9893 = vld [vmem:[#allocation3 + $0x62] sm:$0xf]
        %v9894 = vld [vmem:[#allocation3 + $0x6a] sm:$0xf]
        %v9895 = vld [vmem:[#allocation3 + $0x72] sm:$0xf]
        %v9896 = vld [vmem:[#allocation3 + $0x7a] sm:$0xf]
        %v9897 = vld [vmem:[#allocation3 + $0x92] sm:$0xf]
        %v9898 = vld [vmem:[#allocation3 + $0x9a] sm:$0xf]
        %v9899 = vld [vmem:[#allocation3 + $0xa2] sm:$0xf]
        %v9900 = vld [vmem:[#allocation3 + $0xaa] sm:$0xf]
        %v9901 = vld [vmem:[%s9836] sm:$0xf]
        %v9902 = vld [vmem:[%s9836 + $0x8] sm:$0xf]
        %v9903 = vld [vmem:[%s9836 + $0x10] sm:$0xf]
        %v9904 = vld [vmem:[%s9836 + $0x18] sm:$0xf]
        %v9905 = vld [vmem:[%s9836 + $0x30] sm:$0xf]
        %v9906 = vld [vmem:[%s9836 + $0x38] sm:$0xf]
        %v9907 = vld [vmem:[%s9836 + $0x40] sm:$0xf]
        %v9908 = vld [vmem:[%s9836 + $0x48] sm:$0xf]
        %v9909 = vld [vmem:[%s9836 + $0x60] sm:$0xf]
        %v9910 = vld [vmem:[%s9836 + $0x68] sm:$0xf]
        %v9911 = vld [vmem:[%s9836 + $0x70] sm:$0xf]
        %v9912 = vld [vmem:[%s9836 + $0x78] sm:$0xf]
        %v9913 = vld [vmem:[%s9836 + $0x90] sm:$0xf]
        %v9914 = vld [vmem:[%s9836 + $0x98] sm:$0xf]
        %v9915 = vld [vmem:[%s9836 + $0xa0] sm:$0xf]
        %v9916 = vld [vmem:[%s9836 + $0xa8] sm:$0xf]
        %v9917 = vld [vmem:[%s9836 + $0x1] sm:$0xf]
        %v9918 = vld [vmem:[%s9836 + $0x9] sm:$0xf]
        %v9919 = vld [vmem:[%s9836 + $0x11] sm:$0xf]
        %v9920 = vld [vmem:[%s9836 + $0x19] sm:$0xf]
        %v9921 = vld [vmem:[%s9836 + $0x31] sm:$0xf]
        %v9922 = vld [vmem:[%s9836 + $0x39] sm:$0xf]
        %v9923 = vld [vmem:[%s9836 + $0x41] sm:$0xf]
        %v9924 = vld [vmem:[%s9836 + $0x49] sm:$0xf]
        %v9925 = vld [vmem:[%s9836 + $0x61] sm:$0xf]
        %v9926 = vld [vmem:[%s9836 + $0x69] sm:$0xf]
        %v9927 = vld [vmem:[%s9836 + $0x71] sm:$0xf]
        %v9928 = vld [vmem:[%s9836 + $0x79] sm:$0xf]
        %v9929 = vld [vmem:[%s9836 + $0x91] sm:$0xf]
        %v9930 = vld [vmem:[%s9836 + $0x99] sm:$0xf]
        %v9931 = vld [vmem:[%s9836 + $0xa1] sm:$0xf]
        %v9932 = vld [vmem:[%s9836 + $0xa9] sm:$0xf]
        %v9933 = vld [vmem:[%s9836 + $0x2] sm:$0xf]
        %v9934 = vld [vmem:[%s9836 + $0xa] sm:$0xf]
        %v9935 = vld [vmem:[%s9836 + $0x12] sm:$0xf]
        %v9936 = vld [vmem:[%s9836 + $0x1a] sm:$0xf]
        %v9937 = vld [vmem:[%s9836 + $0x32] sm:$0xf]
        %v9938 = vld [vmem:[%s9836 + $0x3a] sm:$0xf]
        %v9939 = vld [vmem:[%s9836 + $0x42] sm:$0xf]
        %v9940 = vld [vmem:[%s9836 + $0x4a] sm:$0xf]
        %v9941 = vld [vmem:[%s9836 + $0x62] sm:$0xf]
        %v9942 = vld [vmem:[%s9836 + $0x6a] sm:$0xf]
        %v9943 = vld [vmem:[%s9836 + $0x72] sm:$0xf]
        %v9944 = vld [vmem:[%s9836 + $0x7a] sm:$0xf]
        %v9945 = vld [vmem:[%s9836 + $0x92] sm:$0xf]
        %v9946 = vld [vmem:[%s9836 + $0x9a] sm:$0xf]
        %v9947 = vld [vmem:[%s9836 + $0xa2] sm:$0xf]
        %v9948 = vld [vmem:[%s9836 + $0xaa] sm:$0xf]
        %s9949 = scalar_lea.vmem [#allocation3], 16
        %v9950 = vld [vmem:[%s9949] sm:$0xf]
        %v9951 = vld [vmem:[%s9949 + $0x8] sm:$0xf]
        %v9952 = vld [vmem:[%s9949 + $0x10] sm:$0xf]
        %v9953 = vld [vmem:[%s9949 + $0x18] sm:$0xf]
        %v9954 = vld [vmem:[%s9949 + $0x30] sm:$0xf]
        %v9955 = vld [vmem:[%s9949 + $0x38] sm:$0xf]
        %v9956 = vld [vmem:[%s9949 + $0x40] sm:$0xf]
        %v9957 = vld [vmem:[%s9949 + $0x48] sm:$0xf]
        %v9958 = vld [vmem:[%s9949 + $0x60] sm:$0xf]
        %v9959 = vld [vmem:[%s9949 + $0x68] sm:$0xf]
        %v9960 = vld [vmem:[%s9949 + $0x70] sm:$0xf]
        %v9961 = vld [vmem:[%s9949 + $0x78] sm:$0xf]
        %v9962 = vld [vmem:[%s9949 + $0x90] sm:$0xf]
        %v9963 = vld [vmem:[%s9949 + $0x98] sm:$0xf]
        %v9964 = vld [vmem:[%s9949 + $0xa0] sm:$0xf]
        %v9965 = vld [vmem:[%s9949 + $0xa8] sm:$0xf]
        %v9966 = vld [vmem:[%s9949 + $0x1] sm:$0xf]
        %v9967 = vld [vmem:[%s9949 + $0x9] sm:$0xf]
        %v9968 = vld [vmem:[%s9949 + $0x11] sm:$0xf]
        %v9969 = vld [vmem:[%s9949 + $0x19] sm:$0xf]
        %v9970 = vld [vmem:[%s9949 + $0x31] sm:$0xf]
        %v9971 = vld [vmem:[%s9949 + $0x39] sm:$0xf]
        %v9972 = vld [vmem:[%s9949 + $0x41] sm:$0xf]
        %v9973 = vld [vmem:[%s9949 + $0x49] sm:$0xf]
        %v9974 = vld [vmem:[%s9949 + $0x61] sm:$0xf]
        %v9975 = vld [vmem:[%s9949 + $0x69] sm:$0xf]
        %v9976 = vld [vmem:[%s9949 + $0x71] sm:$0xf]
        %v9977 = vld [vmem:[%s9949 + $0x79] sm:$0xf]
        %v9978 = vld [vmem:[%s9949 + $0x91] sm:$0xf]
        %v9979 = vld [vmem:[%s9949 + $0x99] sm:$0xf]
        %v9980 = vld [vmem:[%s9949 + $0xa1] sm:$0xf]
        %v9981 = vld [vmem:[%s9949 + $0xa9] sm:$0xf]
        %v9982 = vld [vmem:[%s9949 + $0x2] sm:$0xf]
        %v9983 = vld [vmem:[%s9949 + $0xa] sm:$0xf]
        %v9984 = vld [vmem:[%s9949 + $0x12] sm:$0xf]
        %v9985 = vld [vmem:[%s9949 + $0x1a] sm:$0xf]
        %v9986 = vld [vmem:[%s9949 + $0x32] sm:$0xf]
        %v9987 = vld [vmem:[%s9949 + $0x3a] sm:$0xf]
        %v9988 = vld [vmem:[%s9949 + $0x42] sm:$0xf]
        %v9989 = vld [vmem:[%s9949 + $0x4a] sm:$0xf]
        %v9990 = vld [vmem:[%s9949 + $0x62] sm:$0xf]
        %v9991 = vld [vmem:[%s9949 + $0x6a] sm:$0xf]
        %v9992 = vld [vmem:[%s9949 + $0x72] sm:$0xf]
        %v9993 = vld [vmem:[%s9949 + $0x7a] sm:$0xf]
        %v9994 = vld [vmem:[%s9949 + $0x92] sm:$0xf]
        %v9995 = vld [vmem:[%s9949 + $0x9a] sm:$0xf]
        %v9996 = vld [vmem:[%s9949 + $0xa2] sm:$0xf]
        %v9997 = vld [vmem:[%s9949 + $0xaa] sm:$0xf]
        %v10014 = vcombine.low %v9853, %v9854
        %v10015 = vcombine.low %v9855, %v9856
        %v10016 = vcombine.low %v9857, %v9858
        %v10017 = vcombine.low %v9859, %v9860
        %v10018 = vcombine.low %v9861, %v9862
        %v10019 = vcombine.low %v9863, %v9864
        %v10020 = vcombine.low %v9865, %v9866
        %v10021 = vcombine.low %v9867, %v9868
        %v10046 = vcombine.low %v9869, %v9870
        %v10047 = vcombine.low %v9871, %v9872
        %v10048 = vcombine.low %v9873, %v9874
        %v10049 = vcombine.low %v9875, %v9876
        %v10050 = vcombine.low %v9877, %v9878
        %v10051 = vcombine.low %v9879, %v9880
        %v10052 = vcombine.low %v9881, %v9882
        %v10053 = vcombine.low %v9883, %v9884
        %10054 = vrot.lane.b32.xlu0 %v10046, 64
        %v10055 = vpop.permute.xlu0 %10054
        %10056 = vrot.lane.b32.xlu0 %v10047, 64
        %v10057 = vpop.permute.xlu0 %10056
        %10058 = vrot.lane.b32.xlu0 %v10048, 64
        %v10059 = vpop.permute.xlu0 %10058
        %10060 = vrot.lane.b32.xlu0 %v10049, 64
        %v10061 = vpop.permute.xlu0 %10060
        %10062 = vrot.lane.b32.xlu0 %v10050, 64
        %v10063 = vpop.permute.xlu0 %10062
        %10064 = vrot.lane.b32.xlu0 %v10051, 64
        %v10065 = vpop.permute.xlu0 %10064
        %10066 = vrot.lane.b32.xlu0 %v10052, 64
        %v10067 = vpop.permute.xlu0 %10066
        %10068 = vrot.lane.b32.xlu0 %v10053, 64
        %v10069 = vpop.permute.xlu0 %10068
        %v10078 = vsel %vm1674, %v10014, %v10055
        %v10079 = vsel %vm1674, %v10015, %v10057
        %v10080 = vsel %vm1674, %v10016, %v10059
        %v10081 = vsel %vm1674, %v10017, %v10061
        %v10082 = vsel %vm1674, %v10018, %v10063
        %v10083 = vsel %vm1674, %v10019, %v10065
        %v10084 = vsel %vm1674, %v10020, %v10067
        %v10085 = vsel %vm1674, %v10021, %v10069
        %v10086 = vpack.c.bf16 %v10079, %v10078
        %v10087 = vpack.c.bf16 %v10081, %v10080
        %v10088 = vpack.c.bf16 %v10083, %v10082
        %v10089 = vpack.c.bf16 %v10085, %v10084
        %v10094 = vunpack.c.l.b16 %v10086
        %v10095 = vunpack.c.h.b16 %v10086
        %v10096 = vunpack.c.l.b16 %v10087
        %v10097 = vunpack.c.h.b16 %v10087
        %v10098 = vunpack.c.l.b16 %v10088
        %v10099 = vunpack.c.h.b16 %v10088
        %v10100 = vunpack.c.l.b16 %v10089
        %v10101 = vunpack.c.h.b16 %v10089
        %v10102 = vpack.c.b16 %v10094, %v10094
        %v10103 = vpack.c.b16 %v10095, %v10095
        %v10104 = vpack.c.b16 %v10096, %v10096
        %v10105 = vpack.c.b16 %v10097, %v10097
        %v10106 = vpack.c.b16 %v10098, %v10098
        %v10107 = vpack.c.b16 %v10099, %v10099
        %v10108 = vpack.c.b16 %v10100, %v10100
        %v10109 = vpack.c.b16 %v10101, %v10101
        %10118 = vst [vmem:[#allocation5] sm:$0xf] %v10102
        %10119 = vst [vmem:[#allocation5 + $0x14] sm:$0xf] %v10103
        %10120 = vst [vmem:[#allocation5 + $0x28] sm:$0xf] %v10104
        %10121 = vst [vmem:[#allocation5 + $0x3c] sm:$0xf] %v10105
        %10122 = vst [vmem:[#allocation5 + $0x50] sm:$0xf] %v10106
        %10123 = vst [vmem:[#allocation5 + $0x64] sm:$0xf] %v10107
        %10124 = vst [vmem:[#allocation5 + $0x78] sm:$0xf] %v10108
        %10125 = vst [vmem:[#allocation5 + $0x8c] sm:$0xf] %v10109
        %v10142 = vcombine.low %v9885, %v9886
        %v10143 = vcombine.low %v9887, %v9888
        %v10144 = vcombine.low %v9889, %v9890
        %v10145 = vcombine.low %v9891, %v9892
        %v10146 = vcombine.low %v9893, %v9894
        %v10147 = vcombine.low %v9895, %v9896
        %v10148 = vcombine.low %v9897, %v9898
        %v10149 = vcombine.low %v9899, %v9900
        %v10174 = vcombine.low %v9901, %v9902
        %v10175 = vcombine.low %v9903, %v9904
        %v10176 = vcombine.low %v9905, %v9906
        %v10177 = vcombine.low %v9907, %v9908
        %v10178 = vcombine.low %v9909, %v9910
        %v10179 = vcombine.low %v9911, %v9912
        %v10180 = vcombine.low %v9913, %v9914
        %v10181 = vcombine.low %v9915, %v9916
        %10182 = vrot.lane.b32.xlu0 %v10174, 64
        %v10183 = vpop.permute.xlu0 %10182
        %10184 = vrot.lane.b32.xlu0 %v10175, 64
        %v10185 = vpop.permute.xlu0 %10184
        %10186 = vrot.lane.b32.xlu0 %v10176, 64
        %v10187 = vpop.permute.xlu0 %10186
        %10188 = vrot.lane.b32.xlu0 %v10177, 64
        %v10189 = vpop.permute.xlu0 %10188
        %10190 = vrot.lane.b32.xlu0 %v10178, 64
        %v10191 = vpop.permute.xlu0 %10190
        %10192 = vrot.lane.b32.xlu0 %v10179, 64
        %v10193 = vpop.permute.xlu0 %10192
        %10194 = vrot.lane.b32.xlu0 %v10180, 64
        %v10195 = vpop.permute.xlu0 %10194
        %10196 = vrot.lane.b32.xlu0 %v10181, 64
        %v10197 = vpop.permute.xlu0 %10196
        %v10206 = vsel %vm1674, %v10142, %v10183
        %v10207 = vsel %vm1674, %v10143, %v10185
        %v10208 = vsel %vm1674, %v10144, %v10187
        %v10209 = vsel %vm1674, %v10145, %v10189
        %v10210 = vsel %vm1674, %v10146, %v10191
        %v10211 = vsel %vm1674, %v10147, %v10193
        %v10212 = vsel %vm1674, %v10148, %v10195
        %v10213 = vsel %vm1674, %v10149, %v10197
        %v10214 = vpack.c.bf16 %v10207, %v10206
        %v10215 = vpack.c.bf16 %v10209, %v10208
        %v10216 = vpack.c.bf16 %v10211, %v10210
        %v10217 = vpack.c.bf16 %v10213, %v10212
        %v10222 = vunpack.c.l.b16 %v10214
        %v10223 = vunpack.c.h.b16 %v10214
        %v10224 = vunpack.c.l.b16 %v10215
        %v10225 = vunpack.c.h.b16 %v10215
        %v10226 = vunpack.c.l.b16 %v10216
        %v10227 = vunpack.c.h.b16 %v10216
        %v10228 = vunpack.c.l.b16 %v10217
        %v10229 = vunpack.c.h.b16 %v10217
        %v10230 = vpack.c.b16 %v10222, %v10222
        %v10231 = vpack.c.b16 %v10223, %v10223
        %v10232 = vpack.c.b16 %v10224, %v10224
        %v10233 = vpack.c.b16 %v10225, %v10225
        %v10234 = vpack.c.b16 %v10226, %v10226
        %v10235 = vpack.c.b16 %v10227, %v10227
        %v10236 = vpack.c.b16 %v10228, %v10228
        %v10237 = vpack.c.b16 %v10229, %v10229
        %10246 = vst [vmem:[#allocation5 + $0x4] sm:$0xf] %v10230
        %10247 = vst [vmem:[#allocation5 + $0x18] sm:$0xf] %v10231
        %10248 = vst [vmem:[#allocation5 + $0x2c] sm:$0xf] %v10232
        %10249 = vst [vmem:[#allocation5 + $0x40] sm:$0xf] %v10233
        %10250 = vst [vmem:[#allocation5 + $0x54] sm:$0xf] %v10234
        %10251 = vst [vmem:[#allocation5 + $0x68] sm:$0xf] %v10235
        %10252 = vst [vmem:[#allocation5 + $0x7c] sm:$0xf] %v10236
        %10253 = vst [vmem:[#allocation5 + $0x90] sm:$0xf] %v10237
        %v10270 = vcombine.low %v9917, %v9918
        %v10271 = vcombine.low %v9919, %v9920
        %v10272 = vcombine.low %v9921, %v9922
        %v10273 = vcombine.low %v9923, %v9924
        %v10274 = vcombine.low %v9925, %v9926
        %v10275 = vcombine.low %v9927, %v9928
        %v10276 = vcombine.low %v9929, %v9930
        %v10277 = vcombine.low %v9931, %v9932
        %v10302 = vcombine.low %v9933, %v9934
        %v10303 = vcombine.low %v9935, %v9936
        %v10304 = vcombine.low %v9937, %v9938
        %v10305 = vcombine.low %v9939, %v9940
        %v10306 = vcombine.low %v9941, %v9942
        %v10307 = vcombine.low %v9943, %v9944
        %v10308 = vcombine.low %v9945, %v9946
        %v10309 = vcombine.low %v9947, %v9948
        %10310 = vrot.lane.b32.xlu0 %v10302, 64
        %v10311 = vpop.permute.xlu0 %10310
        %10312 = vrot.lane.b32.xlu0 %v10303, 64
        %v10313 = vpop.permute.xlu0 %10312
        %10314 = vrot.lane.b32.xlu0 %v10304, 64
        %v10315 = vpop.permute.xlu0 %10314
        %10316 = vrot.lane.b32.xlu0 %v10305, 64
        %v10317 = vpop.permute.xlu0 %10316
        %10318 = vrot.lane.b32.xlu0 %v10306, 64
        %v10319 = vpop.permute.xlu0 %10318
        %10320 = vrot.lane.b32.xlu0 %v10307, 64
        %v10321 = vpop.permute.xlu0 %10320
        %10322 = vrot.lane.b32.xlu0 %v10308, 64
        %v10323 = vpop.permute.xlu0 %10322
        %10324 = vrot.lane.b32.xlu0 %v10309, 64
        %v10325 = vpop.permute.xlu0 %10324
        %v10334 = vsel %vm1674, %v10270, %v10311
        %v10335 = vsel %vm1674, %v10271, %v10313
        %v10336 = vsel %vm1674, %v10272, %v10315
        %v10337 = vsel %vm1674, %v10273, %v10317
        %v10338 = vsel %vm1674, %v10274, %v10319
        %v10339 = vsel %vm1674, %v10275, %v10321
        %v10340 = vsel %vm1674, %v10276, %v10323
        %v10341 = vsel %vm1674, %v10277, %v10325
        %v10342 = vpack.c.bf16 %v10335, %v10334
        %v10343 = vpack.c.bf16 %v10337, %v10336
        %v10344 = vpack.c.bf16 %v10339, %v10338
        %v10345 = vpack.c.bf16 %v10341, %v10340
        %v10350 = vunpack.c.l.b16 %v10342
        %v10351 = vunpack.c.h.b16 %v10342
        %v10352 = vunpack.c.l.b16 %v10343
        %v10353 = vunpack.c.h.b16 %v10343
        %v10354 = vunpack.c.l.b16 %v10344
        %v10355 = vunpack.c.h.b16 %v10344
        %v10356 = vunpack.c.l.b16 %v10345
        %v10357 = vunpack.c.h.b16 %v10345
        %v10358 = vpack.c.b16 %v10350, %v10350
        %v10359 = vpack.c.b16 %v10351, %v10351
        %v10360 = vpack.c.b16 %v10352, %v10352
        %v10361 = vpack.c.b16 %v10353, %v10353
        %v10362 = vpack.c.b16 %v10354, %v10354
        %v10363 = vpack.c.b16 %v10355, %v10355
        %v10364 = vpack.c.b16 %v10356, %v10356
        %v10365 = vpack.c.b16 %v10357, %v10357
        %10374 = vst [vmem:[#allocation5 + $0x8] sm:$0xf] %v10358
        %10375 = vst [vmem:[#allocation5 + $0x1c] sm:$0xf] %v10359
        %10376 = vst [vmem:[#allocation5 + $0x30] sm:$0xf] %v10360
        %10377 = vst [vmem:[#allocation5 + $0x44] sm:$0xf] %v10361
        %10378 = vst [vmem:[#allocation5 + $0x58] sm:$0xf] %v10362
        %10379 = vst [vmem:[#allocation5 + $0x6c] sm:$0xf] %v10363
        %10380 = vst [vmem:[#allocation5 + $0x80] sm:$0xf] %v10364
        %10381 = vst [vmem:[#allocation5 + $0x94] sm:$0xf] %v10365
        %v10398 = vcombine.low %v9950, %v9951
        %v10399 = vcombine.low %v9952, %v9953
        %v10400 = vcombine.low %v9954, %v9955
        %v10401 = vcombine.low %v9956, %v9957
        %v10402 = vcombine.low %v9958, %v9959
        %v10403 = vcombine.low %v9960, %v9961
        %v10404 = vcombine.low %v9962, %v9963
        %v10405 = vcombine.low %v9964, %v9965
        %v10430 = vcombine.low %v9966, %v9967
        %v10431 = vcombine.low %v9968, %v9969
        %v10432 = vcombine.low %v9970, %v9971
        %v10433 = vcombine.low %v9972, %v9973
        %v10434 = vcombine.low %v9974, %v9975
        %v10435 = vcombine.low %v9976, %v9977
        %v10436 = vcombine.low %v9978, %v9979
        %v10437 = vcombine.low %v9980, %v9981
        %10438 = vrot.lane.b32.xlu0 %v10430, 64
        %v10439 = vpop.permute.xlu0 %10438
        %10440 = vrot.lane.b32.xlu0 %v10431, 64
        %v10441 = vpop.permute.xlu0 %10440
        %10442 = vrot.lane.b32.xlu0 %v10432, 64
        %v10443 = vpop.permute.xlu0 %10442
        %10444 = vrot.lane.b32.xlu0 %v10433, 64
        %v10445 = vpop.permute.xlu0 %10444
        %10446 = vrot.lane.b32.xlu0 %v10434, 64
        %v10447 = vpop.permute.xlu0 %10446
        %10448 = vrot.lane.b32.xlu0 %v10435, 64
        %v10449 = vpop.permute.xlu0 %10448
        %10450 = vrot.lane.b32.xlu0 %v10436, 64
        %v10451 = vpop.permute.xlu0 %10450
        %10452 = vrot.lane.b32.xlu0 %v10437, 64
        %v10453 = vpop.permute.xlu0 %10452
        %v10462 = vsel %vm1674, %v10398, %v10439
        %v10463 = vsel %vm1674, %v10399, %v10441
        %v10464 = vsel %vm1674, %v10400, %v10443
        %v10465 = vsel %vm1674, %v10401, %v10445
        %v10466 = vsel %vm1674, %v10402, %v10447
        %v10467 = vsel %vm1674, %v10403, %v10449
        %v10468 = vsel %vm1674, %v10404, %v10451
        %v10469 = vsel %vm1674, %v10405, %v10453
        %v10470 = vpack.c.bf16 %v10463, %v10462
        %v10471 = vpack.c.bf16 %v10465, %v10464
        %v10472 = vpack.c.bf16 %v10467, %v10466
        %v10473 = vpack.c.bf16 %v10469, %v10468
        %v10478 = vunpack.c.l.b16 %v10470
        %v10479 = vunpack.c.h.b16 %v10470
        %v10480 = vunpack.c.l.b16 %v10471
        %v10481 = vunpack.c.h.b16 %v10471
        %v10482 = vunpack.c.l.b16 %v10472
        %v10483 = vunpack.c.h.b16 %v10472
        %v10484 = vunpack.c.l.b16 %v10473
        %v10485 = vunpack.c.h.b16 %v10473
        %v10486 = vpack.c.b16 %v10478, %v10478
        %v10487 = vpack.c.b16 %v10479, %v10479
        %v10488 = vpack.c.b16 %v10480, %v10480
        %v10489 = vpack.c.b16 %v10481, %v10481
        %v10490 = vpack.c.b16 %v10482, %v10482
        %v10491 = vpack.c.b16 %v10483, %v10483
        %v10492 = vpack.c.b16 %v10484, %v10484
        %v10493 = vpack.c.b16 %v10485, %v10485
        %10502 = vst [vmem:[#allocation5 + $0xc] sm:$0xf] %v10486
        %10503 = vst [vmem:[#allocation5 + $0x20] sm:$0xf] %v10487
        %10504 = vst [vmem:[#allocation5 + $0x34] sm:$0xf] %v10488
        %10505 = vst [vmem:[#allocation5 + $0x48] sm:$0xf] %v10489
        %10506 = vst [vmem:[#allocation5 + $0x5c] sm:$0xf] %v10490
        %10507 = vst [vmem:[#allocation5 + $0x70] sm:$0xf] %v10491
        %10508 = vst [vmem:[#allocation5 + $0x84] sm:$0xf] %v10492
        %10509 = vst [vmem:[#allocation5 + $0x98] sm:$0xf] %v10493
        %v10526 = vcombine.low %v9982, %v9983
        %v10527 = vcombine.low %v9984, %v9985
        %v10528 = vcombine.low %v9986, %v9987
        %v10529 = vcombine.low %v9988, %v9989
        %v10530 = vcombine.low %v9990, %v9991
        %v10531 = vcombine.low %v9992, %v9993
        %v10532 = vcombine.low %v9994, %v9995
        %v10533 = vcombine.low %v9996, %v9997
        %v10542 = vpack.c.bf16 %v10527, %v10526
        %v10543 = vpack.c.bf16 %v10529, %v10528
        %v10544 = vpack.c.bf16 %v10531, %v10530
        %v10545 = vpack.c.bf16 %v10533, %v10532
        %v10550 = vunpack.c.l.b16 %v10542
        %v10551 = vunpack.c.h.b16 %v10542
        %v10552 = vunpack.c.l.b16 %v10543
        %v10553 = vunpack.c.h.b16 %v10543
        %v10554 = vunpack.c.l.b16 %v10544
        %v10555 = vunpack.c.h.b16 %v10544
        %v10556 = vunpack.c.l.b16 %v10545
        %v10557 = vunpack.c.h.b16 %v10545
        %v10558 = vpack.c.b16 %v10550, %v10550
        %v10559 = vpack.c.b16 %v10551, %v10551
        %v10560 = vpack.c.b16 %v10552, %v10552
        %v10561 = vpack.c.b16 %v10553, %v10553
        %v10562 = vpack.c.b16 %v10554, %v10554
        %v10563 = vpack.c.b16 %v10555, %v10555
        %v10564 = vpack.c.b16 %v10556, %v10556
        %v10565 = vpack.c.b16 %v10557, %v10557
        %10574 = vst.msk [vmem:[#allocation5 + $0x10] sm:$0xf] %vm7415, %v10558
        %10575 = vst.msk [vmem:[#allocation5 + $0x24] sm:$0xf] %vm7415, %v10559
        %10576 = vst.msk [vmem:[#allocation5 + $0x38] sm:$0xf] %vm7415, %v10560
        %10577 = vst.msk [vmem:[#allocation5 + $0x4c] sm:$0xf] %vm7415, %v10561
        %10578 = vst.msk [vmem:[#allocation5 + $0x60] sm:$0xf] %vm7415, %v10562
        %10579 = vst.msk [vmem:[#allocation5 + $0x74] sm:$0xf] %vm7415, %v10563
        %10580 = vst.msk [vmem:[#allocation5 + $0x88] sm:$0xf] %vm7415, %v10564
        %10581 = vst.msk [vmem:[#allocation5 + $0x9c] sm:$0xf] %vm7415, %v10565
        %v10582 = vld [vmem:[#allocation5] sm:$0xff]
        %v10583 = vld [vmem:[#allocation5 + $0x8] sm:$0xff]
        %v10584 = vld [vmem:[#allocation5 + $0x10] sm:$0xf]
        %v10585 = vld [vmem:[#allocation5 + $0x14] sm:$0xff]
        %v10586 = vld [vmem:[#allocation5 + $0x1c] sm:$0xff]
        %v10587 = vld [vmem:[#allocation5 + $0x24] sm:$0xf]
        %v10588 = vld [vmem:[#allocation5 + $0x28] sm:$0xff]
        %v10589 = vld [vmem:[#allocation5 + $0x30] sm:$0xff]
        %v10590 = vld [vmem:[#allocation5 + $0x38] sm:$0xf]
        %v10591 = vld [vmem:[#allocation5 + $0x3c] sm:$0xff]
        %v10592 = vld [vmem:[#allocation5 + $0x44] sm:$0xff]
        %v10593 = vld [vmem:[#allocation5 + $0x4c] sm:$0xf]
        %v10594 = vld [vmem:[#allocation5 + $0x50] sm:$0xff]
        %v10595 = vld [vmem:[#allocation5 + $0x58] sm:$0xff]
        %v10596 = vld [vmem:[#allocation5 + $0x60] sm:$0xf]
        %v10597 = vld [vmem:[#allocation5 + $0x64] sm:$0xff]
        %v10598 = vld [vmem:[#allocation5 + $0x6c] sm:$0xff]
        %v10599 = vld [vmem:[#allocation5 + $0x74] sm:$0xf]
        %v10600 = vld [vmem:[#allocation5 + $0x78] sm:$0xff]
        %v10601 = vld [vmem:[#allocation5 + $0x80] sm:$0xff]
        %v10602 = vld [vmem:[#allocation5 + $0x88] sm:$0xf]
        %v10603 = vld [vmem:[#allocation5 + $0x8c] sm:$0xff]
        %v10604 = vld [vmem:[#allocation5 + $0x94] sm:$0xff]
        %v10605 = vld [vmem:[#allocation5 + $0x9c] sm:$0xf]
        %v10606 = vld [vmem:[%s5] sm:$0xf]
        %v10607 = vld [vmem:[%s5 + $0x4] sm:$0xf]
        %v10608 = vld [vmem:[%s5 + $0x8] sm:$0xf]
        %v10609 = vld [vmem:[%s5 + $0xc] sm:$0xf]
        %v10610 = vld [vmem:[%s5 + $0x10] sm:$0xf]
        %v10611 = vld [vmem:[%s5 + $0x14] sm:$0xf]
        %v10612 = vld [vmem:[%s5 + $0x18] sm:$0xf]
        %v10613 = vld [vmem:[%s5 + $0x1c] sm:$0xf]
        %v10614 = vld [vmem:[%s5 + $0x20] sm:$0xf]
        %v10615 = vld [vmem:[%s5 + $0x24] sm:$0xf]
        %v10616 = vld [vmem:[%s5 + $0x28] sm:$0xf]
        %v10617 = vld [vmem:[%s5 + $0x2c] sm:$0xf]
        %v10618 = vld [vmem:[%s5 + $0x30] sm:$0xf]
        %v10619 = vld [vmem:[%s5 + $0x34] sm:$0xf]
        %v10620 = vld [vmem:[%s5 + $0x38] sm:$0xf]
        %v10621 = vld [vmem:[%s5 + $0x3c] sm:$0xf]
        %v10622 = vld [vmem:[%s5 + $0x40] sm:$0xf]
        %v10623 = vld [vmem:[%s5 + $0x44] sm:$0xf]
        %v10624 = vld [vmem:[%s5 + $0x48] sm:$0xf]
        %v10625 = vld [vmem:[%s5 + $0x4c] sm:$0xf]
        %v10626 = vld [vmem:[%s5 + $0x50] sm:$0xf]
        %v10627 = vld [vmem:[%s5 + $0x54] sm:$0xf]
        %v10628 = vld [vmem:[%s5 + $0x58] sm:$0xf]
        %v10629 = vld [vmem:[%s5 + $0x5c] sm:$0xf]
        %v10630 = vld [vmem:[%s5 + $0x60] sm:$0xf]
        %v10631 = vld [vmem:[%s5 + $0x64] sm:$0xf]
        %v10632 = vld [vmem:[%s5 + $0x68] sm:$0xf]
        %v10633 = vld [vmem:[%s5 + $0x6c] sm:$0xf]
        %v10634 = vld [vmem:[%s5 + $0x70] sm:$0xf]
        %v10635 = vld [vmem:[%s5 + $0x74] sm:$0xf]
        %v10636 = vld [vmem:[%s5 + $0x78] sm:$0xf]
        %v10637 = vld [vmem:[%s5 + $0x7c] sm:$0xf]
        %v10638 = vld [vmem:[%s5 + $0x80] sm:$0xf]
        %v10639 = vld [vmem:[%s5 + $0x84] sm:$0xf]
        %v10640 = vld [vmem:[%s5 + $0x88] sm:$0xf]
        %v10641 = vld [vmem:[%s5 + $0x8c] sm:$0xf]
        %v10642 = vld [vmem:[%s5 + $0x90] sm:$0xf]
        %v10643 = vld [vmem:[%s5 + $0x94] sm:$0xf]
        %v10644 = vld [vmem:[%s5 + $0x98] sm:$0xf]
        %v10645 = vld [vmem:[%s5 + $0x9c] sm:$0xf]
        %v10646 = vld [vmem:[%s5 + $0xa0] sm:$0xf]
        %v10647 = vld [vmem:[%s5 + $0xa4] sm:$0xf]
        %v10648 = vld [vmem:[%s5 + $0xa8] sm:$0xf]
        %v10649 = vld [vmem:[%s5 + $0xac] sm:$0xf]
        %v10650 = vld [vmem:[%s5 + $0xb0] sm:$0xf]
        %v10651 = vld [vmem:[%s5 + $0xb4] sm:$0xf]
        %v10652 = vld [vmem:[%s5 + $0xb8] sm:$0xf]
        %v10653 = vld [vmem:[%s5 + $0xbc] sm:$0xf]
        %v10654 = vld [vmem:[%s5 + $0xc0] sm:$0xf]
        %v10655 = vld [vmem:[%s5 + $0xc4] sm:$0xf]
        %v10656 = vld [vmem:[%s5 + $0xc8] sm:$0xf]
        %v10657 = vld [vmem:[%s5 + $0xcc] sm:$0xf]
        %v10658 = vld [vmem:[%s5 + $0xd0] sm:$0xf]
        %v10659 = vld [vmem:[%s5 + $0xd4] sm:$0xf]
        %v10660 = vld [vmem:[%s5 + $0xd8] sm:$0xf]
        %v10661 = vld [vmem:[%s5 + $0xdc] sm:$0xf]
        %v10662 = vld [vmem:[%s5 + $0xe0] sm:$0xf]
        %v10663 = vld [vmem:[%s5 + $0xe4] sm:$0xf]
        %v10664 = vld [vmem:[%s5 + $0xe8] sm:$0xf]
        %v10665 = vld [vmem:[%s5 + $0xec] sm:$0xf]
        %v10666 = vld [vmem:[%s5 + $0xf0] sm:$0xf]
        %v10667 = vld [vmem:[%s5 + $0xf4] sm:$0xf]
        %v10668 = vld [vmem:[%s5 + $0xf8] sm:$0xf]
        %v10669 = vld [vmem:[%s5 + $0xfc] sm:$0xf]
        %v10670 = vld [vmem:[%s5 + $0x100] sm:$0xf]
        %v10671 = vld [vmem:[%s5 + $0x104] sm:$0xf]
        %v10672 = vld [vmem:[%s5 + $0x108] sm:$0xf]
        %v10673 = vld [vmem:[%s5 + $0x10c] sm:$0xf]
        %v10674 = vld [vmem:[%s5 + $0x110] sm:$0xf]
        %v10675 = vld [vmem:[%s5 + $0x114] sm:$0xf]
        %v10676 = vld [vmem:[%s5 + $0x118] sm:$0xf]
        %v10677 = vld [vmem:[%s5 + $0x11c] sm:$0xf]
        %v10678 = vld [vmem:[%s6] sm:$0x1]
        %v10680 = vlaneseq
        %v10681 = vshrl.u32 %v10680, 7
        %v10682 = vsub.s32 0, %v10681
        %v10683 = vrot.slane %v10678, %v10682
        %v10709 = vunpack.c.l.b16 %v10582
        %v10710 = vunpack.c.h.b16 %v10582
        %v10711 = vunpack.c.l.b16 %v10583
        %v10712 = vunpack.c.h.b16 %v10583
        %v10713 = vunpack.c.l.b16 %v10584
        %v10714 = vunpack.c.l.b16 %v10585
        %v10715 = vunpack.c.h.b16 %v10585
        %v10716 = vunpack.c.l.b16 %v10586
        %v10717 = vunpack.c.h.b16 %v10586
        %v10718 = vunpack.c.l.b16 %v10587
        %v10719 = vunpack.c.l.b16 %v10588
        %v10720 = vunpack.c.h.b16 %v10588
        %v10721 = vunpack.c.l.b16 %v10589
        %v10722 = vunpack.c.h.b16 %v10589
        %v10723 = vunpack.c.l.b16 %v10590
        %v10724 = vunpack.c.l.b16 %v10591
        %v10725 = vunpack.c.h.b16 %v10591
        %v10726 = vunpack.c.l.b16 %v10592
        %v10727 = vunpack.c.h.b16 %v10592
        %v10728 = vunpack.c.l.b16 %v10593
        %v10729 = vunpack.c.l.b16 %v10594
        %v10730 = vunpack.c.h.b16 %v10594
        %v10731 = vunpack.c.l.b16 %v10595
        %v10732 = vunpack.c.h.b16 %v10595
        %v10733 = vunpack.c.l.b16 %v10596
        %v10734 = vunpack.c.l.b16 %v10597
        %v10735 = vunpack.c.h.b16 %v10597
        %v10736 = vunpack.c.l.b16 %v10598
        %v10737 = vunpack.c.h.b16 %v10598
        %v10738 = vunpack.c.l.b16 %v10599
        %v10739 = vunpack.c.l.b16 %v10600
        %v10740 = vunpack.c.h.b16 %v10600
        %v10741 = vunpack.c.l.b16 %v10601
        %v10742 = vunpack.c.h.b16 %v10601
        %v10743 = vunpack.c.l.b16 %v10602
        %v10744 = vunpack.c.l.b16 %v10603
        %v10745 = vunpack.c.h.b16 %v10603
        %v10746 = vunpack.c.l.b16 %v10604
        %v10747 = vunpack.c.h.b16 %v10604
        %v10748 = vunpack.c.l.b16 %v10605
        %v10749 = vpack.c.b16 %v10714, %v10709
        %v10750 = vpack.c.b16 %v10715, %v10710
        %v10751 = vpack.c.b16 %v10716, %v10711
        %v10752 = vpack.c.b16 %v10717, %v10712
        %v10753 = vpack.c.b16 %v10718, %v10713
        %v10754 = vpack.c.b16 %v10724, %v10719
        %v10755 = vpack.c.b16 %v10725, %v10720
        %v10756 = vpack.c.b16 %v10726, %v10721
        %v10757 = vpack.c.b16 %v10727, %v10722
        %v10758 = vpack.c.b16 %v10728, %v10723
        %v10759 = vpack.c.b16 %v10734, %v10729
        %v10760 = vpack.c.b16 %v10735, %v10730
        %v10761 = vpack.c.b16 %v10736, %v10731
        %v10762 = vpack.c.b16 %v10737, %v10732
        %v10763 = vpack.c.b16 %v10738, %v10733
        %v10764 = vpack.c.b16 %v10744, %v10739
        %v10765 = vpack.c.b16 %v10745, %v10740
        %v10766 = vpack.c.b16 %v10746, %v10741
        %v10767 = vpack.c.b16 %v10747, %v10742
        %v10768 = vpack.c.b16 %v10748, %v10743
        %v10857 = vunpack.c.l.b16 %v10606
        %v10858 = vunpack.c.l.b16 %v10607
        %v10859 = vunpack.c.l.b16 %v10608
        %v10860 = vunpack.c.l.b16 %v10609
        %v10861 = vunpack.c.l.b16 %v10610
        %v10862 = vunpack.c.l.b16 %v10611
        %v10863 = vunpack.c.l.b16 %v10612
        %v10864 = vunpack.c.l.b16 %v10613
        %v10865 = vunpack.c.l.b16 %v10614
        %v10866 = vunpack.c.l.b16 %v10615
        %v10867 = vunpack.c.l.b16 %v10616
        %v10868 = vunpack.c.l.b16 %v10617
        %v10869 = vunpack.c.l.b16 %v10618
        %v10870 = vunpack.c.l.b16 %v10619
        %v10871 = vunpack.c.l.b16 %v10620
        %v10872 = vunpack.c.l.b16 %v10621
        %v10873 = vunpack.c.l.b16 %v10622
        %v10874 = vunpack.c.l.b16 %v10623
        %v10875 = vunpack.c.l.b16 %v10624
        %v10876 = vunpack.c.l.b16 %v10625
        %v10877 = vunpack.c.l.b16 %v10626
        %v10878 = vunpack.c.l.b16 %v10627
        %v10879 = vunpack.c.l.b16 %v10628
        %v10880 = vunpack.c.l.b16 %v10629
        %v10881 = vunpack.c.l.b16 %v10630
        %v10882 = vunpack.c.l.b16 %v10631
        %v10883 = vunpack.c.l.b16 %v10632
        %v10884 = vunpack.c.l.b16 %v10633
        %v10885 = vunpack.c.l.b16 %v10634
        %v10886 = vunpack.c.l.b16 %v10635
        %v10887 = vunpack.c.l.b16 %v10636
        %v10888 = vunpack.c.l.b16 %v10637
        %v10889 = vunpack.c.l.b16 %v10638
        %v10890 = vunpack.c.l.b16 %v10639
        %v10891 = vunpack.c.l.b16 %v10640
        %v10892 = vunpack.c.l.b16 %v10641
        %v10893 = vunpack.c.l.b16 %v10642
        %v10894 = vunpack.c.l.b16 %v10643
        %v10895 = vunpack.c.l.b16 %v10644
        %v10896 = vunpack.c.l.b16 %v10645
        %v10897 = vunpack.c.l.b16 %v10646
        %v10898 = vunpack.c.l.b16 %v10647
        %v10899 = vunpack.c.l.b16 %v10648
        %v10900 = vunpack.c.l.b16 %v10649
        %v10901 = vunpack.c.l.b16 %v10650
        %v10902 = vunpack.c.l.b16 %v10651
        %v10903 = vunpack.c.l.b16 %v10652
        %v10904 = vunpack.c.l.b16 %v10653
        %v10905 = vunpack.c.l.b16 %v10654
        %v10906 = vunpack.c.l.b16 %v10655
        %v10907 = vunpack.c.l.b16 %v10656
        %v10908 = vunpack.c.l.b16 %v10657
        %v10909 = vunpack.c.l.b16 %v10658
        %v10910 = vunpack.c.l.b16 %v10659
        %v10911 = vunpack.c.l.b16 %v10660
        %v10912 = vunpack.c.l.b16 %v10661
        %v10913 = vunpack.c.l.b16 %v10662
        %v10914 = vunpack.c.l.b16 %v10663
        %v10915 = vunpack.c.l.b16 %v10664
        %v10916 = vunpack.c.l.b16 %v10665
        %v10917 = vunpack.c.l.b16 %v10666
        %v10918 = vunpack.c.l.b16 %v10667
        %v10919 = vunpack.c.l.b16 %v10668
        %v10920 = vunpack.c.l.b16 %v10669
        %v10921 = vunpack.c.l.b16 %v10670
        %v10922 = vunpack.c.l.b16 %v10671
        %v10923 = vunpack.c.l.b16 %v10672
        %v10924 = vunpack.c.l.b16 %v10673
        %v10925 = vunpack.c.l.b16 %v10674
        %v10926 = vunpack.c.l.b16 %v10675
        %v10927 = vunpack.c.l.b16 %v10676
        %v10928 = vunpack.c.l.b16 %v10677
        %v10929 = vpack.c.b16 %v10858, %v10857
        %v10930 = vpack.c.b16 %v10860, %v10859
        %v10931 = vpack.c.b16 %v10862, %v10861
        %v10932 = vpack.c.b16 %v10864, %v10863
        %v10933 = vpack.c.b16 %v10866, %v10865
        %v10934 = vpack.c.b16 %v10868, %v10867
        %v10935 = vpack.c.b16 %v10870, %v10869
        %v10936 = vpack.c.b16 %v10872, %v10871
        %v10937 = vpack.c.b16 %v10874, %v10873
        %v10938 = vpack.c.b16 %v10876, %v10875
        %v10939 = vpack.c.b16 %v10878, %v10877
        %v10940 = vpack.c.b16 %v10880, %v10879
        %v10941 = vpack.c.b16 %v10882, %v10881
        %v10942 = vpack.c.b16 %v10884, %v10883
        %v10943 = vpack.c.b16 %v10886, %v10885
        %v10944 = vpack.c.b16 %v10888, %v10887
        %v10945 = vpack.c.b16 %v10890, %v10889
        %v10946 = vpack.c.b16 %v10892, %v10891
        %v10947 = vpack.c.b16 %v10894, %v10893
        %v10948 = vpack.c.b16 %v10896, %v10895
        %v10949 = vpack.c.b16 %v10898, %v10897
        %v10950 = vpack.c.b16 %v10900, %v10899
        %v10951 = vpack.c.b16 %v10902, %v10901
        %v10952 = vpack.c.b16 %v10904, %v10903
        %v10953 = vpack.c.b16 %v10906, %v10905
        %v10954 = vpack.c.b16 %v10908, %v10907
        %v10955 = vpack.c.b16 %v10910, %v10909
        %v10956 = vpack.c.b16 %v10912, %v10911
        %v10957 = vpack.c.b16 %v10914, %v10913
        %v10958 = vpack.c.b16 %v10916, %v10915
        %v10959 = vpack.c.b16 %v10918, %v10917
        %v10960 = vpack.c.b16 %v10920, %v10919
        %v10961 = vpack.c.b16 %v10922, %v10921
        %v10962 = vpack.c.b16 %v10924, %v10923
        %v10963 = vpack.c.b16 %v10926, %v10925
        %v10964 = vpack.c.b16 %v10928, %v10927
        %v11002 = vsel %vm1674, %v10753, 0
        %v11005 = vsel %vm1674, %v10758, 0
        %v11008 = vsel %vm1674, %v10763, 0
        %v11011 = vsel %vm1674, %v10768, 0
        %11013 = vmatprep.subr.bf16.mxu0 0
        %11014 = vmatpush1.bf16.msra.mxu0 %v10936
        %11015 = vmatprep.subr.bf16.mxu0 0
        %11016 = vmatpush1.bf16.msra.mxu0 %v10935
        %11017 = vmatprep.subr.bf16.mxu0 0
        %11018 = vmatpush1.bf16.msra.mxu0 %v10934
        %11019 = vmatprep.subr.bf16.mxu0 0
        %11020 = vmatpush1.bf16.msra.mxu0 %v10933
        %11021 = vmatprep.subr.bf16.mxu0 0
        %11022 = vmatpush1.bf16.msra.mxu0 %v10932
        %11023 = vmatprep.subr.bf16.mxu0 0
        %11024 = vmatpush1.bf16.msra.mxu0 %v10931
        %11025 = vmatprep.subr.bf16.mxu0 0
        %11026 = vmatpush1.bf16.msra.mxu0 %v10930
        %11027 = vmatprep.subr.bf16.mxu0 0
        %11028 = vmatpush1.bf16.msra.mxu0 %v10929
        %11029 = vmatprep.subr.bf16.mxu0 0
        %11030 = vmatpush2.bf16.msra.mxu0 %v10944
        %11031 = vmatprep.subr.bf16.mxu0 0
        %11032 = vmatpush2.bf16.msra.mxu0 %v10943
        %11033 = vmatprep.subr.bf16.mxu0 0
        %11034 = vmatpush2.bf16.msra.mxu0 %v10942
        %11035 = vmatprep.subr.bf16.mxu0 0
        %11036 = vmatpush2.bf16.msra.mxu0 %v10941
        %11037 = vmatprep.subr.bf16.mxu0 0
        %11038 = vmatpush2.bf16.msra.mxu0 %v10940
        %11039 = vmatprep.subr.bf16.mxu0 0
        %11040 = vmatpush2.bf16.msra.mxu0 %v10939
        %11041 = vmatprep.subr.bf16.mxu0 0
        %11042 = vmatpush2.bf16.msra.mxu0 %v10938
        %11043 = vmatprep.subr.bf16.mxu0 0
        %11044 = vmatpush2.bf16.msra.mxu0 %v10937
        %11045 = vmatprep.mubr.bf16.mxu0 %v10750
        %11046 = vmatmul.mubr.bf16.gmra.mxu0 %v10749
        %v11047 = vpop.f32.mrf.mxu0
        %v11048 = vadd.f32 %v10683, %v11047
        %v11049 = vpop.f32.mrf.mxu0
        %v11050 = vpop.f32.mrf.mxu0
        %v11051 = vadd.f32 %v10683, %v11050
        %v11052 = vpop.f32.mrf.mxu0
        %11053 = vmatprep.mubr.bf16.mxu0 %v10755
        %11054 = vmatmul.mubr.bf16.gmra.mxu0 %v10754
        %v11055 = vpop.f32.mrf.mxu0
        %v11056 = vadd.f32 %v10683, %v11055
        %v11057 = vpop.f32.mrf.mxu0
        %v11058 = vpop.f32.mrf.mxu0
        %v11059 = vadd.f32 %v10683, %v11058
        %v11060 = vpop.f32.mrf.mxu0
        %11061 = vmatprep.mubr.bf16.mxu0 %v10760
        %11062 = vmatmul.mubr.bf16.gmra.mxu0 %v10759
        %v11063 = vpop.f32.mrf.mxu0
        %v11064 = vadd.f32 %v10683, %v11063
        %v11065 = vpop.f32.mrf.mxu0
        %v11066 = vpop.f32.mrf.mxu0
        %v11067 = vadd.f32 %v10683, %v11066
        %v11068 = vpop.f32.mrf.mxu0
        %11069 = vmatprep.mubr.bf16.mxu0 %v10765
        %11070 = vmatmul.mubr.bf16.gmra.mxu0 %v10764
        %v11071 = vpop.f32.mrf.mxu0
        %v11072 = vadd.f32 %v10683, %v11071
        %v11073 = vpop.f32.mrf.mxu0
        %v11074 = vpop.f32.mrf.mxu0
        %v11075 = vadd.f32 %v10683, %v11074
        %v11076 = vpop.f32.mrf.mxu0
        %11077 = vdwg.mxu0
        %11078 = vmatprep.subr.bf16.mxu0 0
        %11079 = vmatpush1.bf16.msra.mxu0 %v10952
        %11080 = vmatprep.subr.bf16.mxu0 0
        %11081 = vmatpush1.bf16.msra.mxu0 %v10951
        %11082 = vmatprep.subr.bf16.mxu0 0
        %11083 = vmatpush1.bf16.msra.mxu0 %v10950
        %11084 = vmatprep.subr.bf16.mxu0 0
        %11085 = vmatpush1.bf16.msra.mxu0 %v10949
        %11086 = vmatprep.subr.bf16.mxu0 0
        %11087 = vmatpush1.bf16.msra.mxu0 %v10948
        %11088 = vmatprep.subr.bf16.mxu0 0
        %11089 = vmatpush1.bf16.msra.mxu0 %v10947
        %11090 = vmatprep.subr.bf16.mxu0 0
        %11091 = vmatpush1.bf16.msra.mxu0 %v10946
        %11092 = vmatprep.subr.bf16.mxu0 0
        %11093 = vmatpush1.bf16.msra.mxu0 %v10945
        %11094 = vmatprep.subr.bf16.mxu0 0
        %11095 = vmatpush2.bf16.msra.mxu0 %v10960
        %11096 = vmatprep.subr.bf16.mxu0 0
        %11097 = vmatpush2.bf16.msra.mxu0 %v10959
        %11098 = vmatprep.subr.bf16.mxu0 0
        %11099 = vmatpush2.bf16.msra.mxu0 %v10958
        %11100 = vmatprep.subr.bf16.mxu0 0
        %11101 = vmatpush2.bf16.msra.mxu0 %v10957
        %11102 = vmatprep.subr.bf16.mxu0 0
        %11103 = vmatpush2.bf16.msra.mxu0 %v10956
        %11104 = vmatprep.subr.bf16.mxu0 0
        %11105 = vmatpush2.bf16.msra.mxu0 %v10955
        %11106 = vmatprep.subr.bf16.mxu0 0
        %11107 = vmatpush2.bf16.msra.mxu0 %v10954
        %11108 = vmatprep.subr.bf16.mxu0 0
        %11109 = vmatpush2.bf16.msra.mxu0 %v10953
        %11110 = vmatprep.mubr.bf16.mxu0 %v10752
        %11111 = vmatmul.mubr.bf16.gmra.mxu0 %v10751
        %v11112 = vpop.f32.mrf.mxu0
        %v11113 = vadd.f32 %v11048, %v11112
        %v11114 = vpop.f32.mrf.mxu0
        %v11115 = vpop.f32.mrf.mxu0
        %v11116 = vadd.f32 %v11051, %v11115
        %v11117 = vpop.f32.mrf.mxu0
        %11118 = vmatprep.mubr.bf16.mxu0 %v10757
        %11119 = vmatmul.mubr.bf16.gmra.mxu0 %v10756
        %v11120 = vpop.f32.mrf.mxu0
        %v11121 = vadd.f32 %v11056, %v11120
        %v11122 = vpop.f32.mrf.mxu0
        %v11123 = vpop.f32.mrf.mxu0
        %v11124 = vadd.f32 %v11059, %v11123
        %v11125 = vpop.f32.mrf.mxu0
        %11126 = vmatprep.mubr.bf16.mxu0 %v10762
        %11127 = vmatmul.mubr.bf16.gmra.mxu0 %v10761
        %v11128 = vpop.f32.mrf.mxu0
        %v11129 = vadd.f32 %v11064, %v11128
        %v11130 = vpop.f32.mrf.mxu0
        %v11131 = vpop.f32.mrf.mxu0
        %v11132 = vadd.f32 %v11067, %v11131
        %v11133 = vpop.f32.mrf.mxu0
        %11134 = vmatprep.mubr.bf16.mxu0 %v10767
        %11135 = vmatmul.mubr.bf16.gmra.mxu0 %v10766
        %v11136 = vpop.f32.mrf.mxu0
        %v11137 = vadd.f32 %v11072, %v11136
        %v11138 = vpop.f32.mrf.mxu0
        %v11139 = vpop.f32.mrf.mxu0
        %v11140 = vadd.f32 %v11075, %v11139
        %v11141 = vpop.f32.mrf.mxu0
        %11142 = vdwg.mxu0
        %11143 = vmatprep.subr.bf16.mxu0 0
        %11144 = vmatpush1.bf16.msra.mxu0 0
        %11145 = vmatprep.subr.bf16.mxu0 0
        %11146 = vmatpush1.bf16.msra.mxu0 0
        %11147 = vmatprep.subr.bf16.mxu0 0
        %11148 = vmatpush1.bf16.msra.mxu0 0
        %11149 = vmatprep.subr.bf16.mxu0 0
        %11150 = vmatpush1.bf16.msra.mxu0 0
        %11151 = vmatprep.subr.bf16.mxu0 0
        %11152 = vmatpush1.bf16.msra.mxu0 %v10964
        %11153 = vmatprep.subr.bf16.mxu0 0
        %11154 = vmatpush1.bf16.msra.mxu0 %v10963
        %11155 = vmatprep.subr.bf16.mxu0 0
        %11156 = vmatpush1.bf16.msra.mxu0 %v10962
        %11157 = vmatprep.subr.bf16.mxu0 0
        %11158 = vmatpush1.bf16.msra.mxu0 %v10961
        %11159 = vmatprep.subr.bf16.mxu0 0
        %11160 = vmatpush2.bf16.msra.mxu0 0
        %11161 = vmatprep.subr.bf16.mxu0 0
        %11162 = vmatpush2.bf16.msra.mxu0 0
        %11163 = vmatprep.subr.bf16.mxu0 0
        %11164 = vmatpush2.bf16.msra.mxu0 0
        %11165 = vmatprep.subr.bf16.mxu0 0
        %11166 = vmatpush2.bf16.msra.mxu0 0
        %11167 = vmatprep.subr.bf16.mxu0 0
        %11168 = vmatpush2.bf16.msra.mxu0 0
        %11169 = vmatprep.subr.bf16.mxu0 0
        %11170 = vmatpush2.bf16.msra.mxu0 0
        %11171 = vmatprep.subr.bf16.mxu0 0
        %11172 = vmatpush2.bf16.msra.mxu0 0
        %11173 = vmatprep.subr.bf16.mxu0 0
        %11174 = vmatpush2.bf16.msra.mxu0 0
        %11175 = vmatprep.mubr.bf16.mxu0 0
        %11176 = vmatmul.mubr.bf16.gmra.mxu0 %v11002
        %v11177 = vpop.f32.mrf.mxu0
        %v11178 = vadd.f32 %v11113, %v11177
        %v11179 = vpop.f32.mrf.mxu0
        %v11180 = vpop.f32.mrf.mxu0
        %v11181 = vadd.f32 %v11116, %v11180
        %v11182 = vpop.f32.mrf.mxu0
        %11183 = vmatprep.mubr.bf16.mxu0 0
        %11184 = vmatmul.mubr.bf16.gmra.mxu0 %v11005
        %v11185 = vpop.f32.mrf.mxu0
        %v11186 = vadd.f32 %v11121, %v11185
        %v11187 = vpop.f32.mrf.mxu0
        %v11188 = vpop.f32.mrf.mxu0
        %v11189 = vadd.f32 %v11124, %v11188
        %v11190 = vpop.f32.mrf.mxu0
        %11191 = vmatprep.mubr.bf16.mxu0 0
        %11192 = vmatmul.mubr.bf16.gmra.mxu0 %v11008
        %v11193 = vpop.f32.mrf.mxu0
        %v11194 = vadd.f32 %v11129, %v11193
        %v11195 = vpop.f32.mrf.mxu0
        %v11196 = vpop.f32.mrf.mxu0
        %v11197 = vadd.f32 %v11132, %v11196
        %v11198 = vpop.f32.mrf.mxu0
        %11199 = vmatprep.mubr.bf16.mxu0 0
        %11200 = vmatmul.mubr.bf16.gmra.mxu0 %v11011
        %v11201 = vpop.f32.mrf.mxu0
        %v11202 = vadd.f32 %v11137, %v11201
        %v11203 = vpop.f32.mrf.mxu0
        %v11204 = vpop.f32.mrf.mxu0
        %v11205 = vadd.f32 %v11140, %v11204
        %v11206 = vpop.f32.mrf.mxu0
        %11207 = vdwg.mxu0
        %v11208 = vmax.f32 %v11178, 0.0
        %v11209 = vmax.f32 %v11181, 0.0
        %v11210 = vmax.f32 %v11186, 0.0
        %v11211 = vmax.f32 %v11189, 0.0
        %v11212 = vmax.f32 %v11194, 0.0
        %v11213 = vmax.f32 %v11197, 0.0
        %v11214 = vmax.f32 %v11202, 0.0
        %v11215 = vmax.f32 %v11205, 0.0
        %v11224 = vcombine.high %v11208, %v11208
        %v11225 = vcombine.high %v11209, %v11209
        %v11226 = vcombine.high %v11210, %v11210
        %v11227 = vcombine.high %v11211, %v11211
        %v11228 = vcombine.high %v11212, %v11212
        %v11229 = vcombine.high %v11213, %v11213
        %v11230 = vcombine.high %v11214, %v11214
        %v11231 = vcombine.high %v11215, %v11215
        %v11240 = vsel %vm7415, %v11208, -inf
        %v11241 = vsel %vm7415, %v11224, -inf
        %v11242 = vmax.f32 %v11240, %v11241
        %v11243 = vsel %vm7415, %v11209, -inf
        %v11244 = vsel %vm7415, %v11225, -inf
        %v11245 = vmax.f32 %v11243, %v11244
        %v11246 = vsel %vm7415, %v11210, -inf
        %v11247 = vsel %vm7415, %v11226, -inf
        %v11248 = vmax.f32 %v11246, %v11247
        %v11249 = vsel %vm7415, %v11211, -inf
        %v11250 = vsel %vm7415, %v11227, -inf
        %v11251 = vmax.f32 %v11249, %v11250
        %v11252 = vsel %vm7415, %v11212, -inf
        %v11253 = vsel %vm7415, %v11228, -inf
        %v11254 = vmax.f32 %v11252, %v11253
        %v11255 = vsel %vm7415, %v11213, -inf
        %v11256 = vsel %vm7415, %v11229, -inf
        %v11257 = vmax.f32 %v11255, %v11256
        %v11258 = vsel %vm7415, %v11214, -inf
        %v11259 = vsel %vm7415, %v11230, -inf
        %v11260 = vmax.f32 %v11258, %v11259
        %v11261 = vsel %vm7415, %v11215, -inf
        %v11262 = vsel %vm7415, %v11231, -inf
        %v11263 = vmax.f32 %v11261, %v11262
        %v11273 = vunpack.c.l.s4 1983009808
        %v11274 = vunpack.c.0.s8 %v11273
        %v11275 = vlaneseq
        %v11276 = vshrl.u32 %v11275, 7
        %v11277 = vsub.s32 %v11274, %v11276
        %v11278 = vrot.slane %v11242, %v11277
        %v11279 = vcombine.high %v11278, %v11278
        %v11281 = vunpack.c.l.s4 1983009808
        %v11282 = vunpack.c.0.s8 %v11281
        %v11283 = vlaneseq
        %v11284 = vshrl.u32 %v11283, 7
        %v11285 = vsub.s32 %v11282, %v11284
        %v11286 = vrot.slane %v11245, %v11285
        %v11287 = vcombine.high %v11286, %v11286
        %v11289 = vunpack.c.l.s4 1983009808
        %v11290 = vunpack.c.0.s8 %v11289
        %v11291 = vlaneseq
        %v11292 = vshrl.u32 %v11291, 7
        %v11293 = vsub.s32 %v11290, %v11292
        %v11294 = vrot.slane %v11248, %v11293
        %v11295 = vcombine.high %v11294, %v11294
        %v11297 = vunpack.c.l.s4 1983009808
        %v11298 = vunpack.c.0.s8 %v11297
        %v11299 = vlaneseq
        %v11300 = vshrl.u32 %v11299, 7
        %v11301 = vsub.s32 %v11298, %v11300
        %v11302 = vrot.slane %v11251, %v11301
        %v11303 = vcombine.high %v11302, %v11302
        %v11305 = vunpack.c.l.s4 1983009808
        %v11306 = vunpack.c.0.s8 %v11305
        %v11307 = vlaneseq
        %v11308 = vshrl.u32 %v11307, 7
        %v11309 = vsub.s32 %v11306, %v11308
        %v11310 = vrot.slane %v11254, %v11309
        %v11311 = vcombine.high %v11310, %v11310
        %v11313 = vunpack.c.l.s4 1983009808
        %v11314 = vunpack.c.0.s8 %v11313
        %v11315 = vlaneseq
        %v11316 = vshrl.u32 %v11315, 7
        %v11317 = vsub.s32 %v11314, %v11316
        %v11318 = vrot.slane %v11257, %v11317
        %v11319 = vcombine.high %v11318, %v11318
        %v11321 = vunpack.c.l.s4 1983009808
        %v11322 = vunpack.c.0.s8 %v11321
        %v11323 = vlaneseq
        %v11324 = vshrl.u32 %v11323, 7
        %v11325 = vsub.s32 %v11322, %v11324
        %v11326 = vrot.slane %v11260, %v11325
        %v11327 = vcombine.high %v11326, %v11326
        %v11329 = vunpack.c.l.s4 1983009808
        %v11330 = vunpack.c.0.s8 %v11329
        %v11331 = vlaneseq
        %v11332 = vshrl.u32 %v11331, 7
        %v11333 = vsub.s32 %v11330, %v11332
        %v11334 = vrot.slane %v11263, %v11333
        %v11335 = vcombine.high %v11334, %v11334
        %v11352 = vsel %vm3275, %v11278, -inf
        %v11353 = vrot.slane %v11352, 4
        %v11354 = vmax.f32 %v11352, %v11353
        %v11355 = vrot.slane %v11354, 2
        %v11356 = vmax.f32 %v11354, %v11355
        %v11357 = vrot.slane %v11356, 1
        %v11358 = vmax.f32 %v11356, %v11357
        %v11359 = vsel %vm3275, %v11279, -inf
        %v11360 = vrot.slane %v11359, 4
        %v11361 = vmax.f32 %v11359, %v11360
        %v11362 = vrot.slane %v11361, 2
        %v11363 = vmax.f32 %v11361, %v11362
        %v11364 = vrot.slane %v11363, 1
        %v11365 = vmax.f32 %v11363, %v11364
        %v11366 = vsel %vm3275, %v11286, -inf
        %v11367 = vrot.slane %v11366, 4
        %v11368 = vmax.f32 %v11366, %v11367
        %v11369 = vrot.slane %v11368, 2
        %v11370 = vmax.f32 %v11368, %v11369
        %v11371 = vrot.slane %v11370, 1
        %v11372 = vmax.f32 %v11370, %v11371
        %v11373 = vsel %vm3275, %v11287, -inf
        %v11374 = vrot.slane %v11373, 4
        %v11375 = vmax.f32 %v11373, %v11374
        %v11376 = vrot.slane %v11375, 2
        %v11377 = vmax.f32 %v11375, %v11376
        %v11378 = vrot.slane %v11377, 1
        %v11379 = vmax.f32 %v11377, %v11378
        %v11380 = vsel %vm3275, %v11294, -inf
        %v11381 = vrot.slane %v11380, 4
        %v11382 = vmax.f32 %v11380, %v11381
        %v11383 = vrot.slane %v11382, 2
        %v11384 = vmax.f32 %v11382, %v11383
        %v11385 = vrot.slane %v11384, 1
        %v11386 = vmax.f32 %v11384, %v11385
        %v11387 = vsel %vm3275, %v11295, -inf
        %v11388 = vrot.slane %v11387, 4
        %v11389 = vmax.f32 %v11387, %v11388
        %v11390 = vrot.slane %v11389, 2
        %v11391 = vmax.f32 %v11389, %v11390
        %v11392 = vrot.slane %v11391, 1
        %v11393 = vmax.f32 %v11391, %v11392
        %v11394 = vsel %vm3275, %v11302, -inf
        %v11395 = vrot.slane %v11394, 4
        %v11396 = vmax.f32 %v11394, %v11395
        %v11397 = vrot.slane %v11396, 2
        %v11398 = vmax.f32 %v11396, %v11397
        %v11399 = vrot.slane %v11398, 1
        %v11400 = vmax.f32 %v11398, %v11399
        %v11401 = vsel %vm3275, %v11303, -inf
        %v11402 = vrot.slane %v11401, 4
        %v11403 = vmax.f32 %v11401, %v11402
        %v11404 = vrot.slane %v11403, 2
        %v11405 = vmax.f32 %v11403, %v11404
        %v11406 = vrot.slane %v11405, 1
        %v11407 = vmax.f32 %v11405, %v11406
        %v11408 = vsel %vm3275, %v11310, -inf
        %v11409 = vrot.slane %v11408, 4
        %v11410 = vmax.f32 %v11408, %v11409
        %v11411 = vrot.slane %v11410, 2
        %v11412 = vmax.f32 %v11410, %v11411
        %v11413 = vrot.slane %v11412, 1
        %v11414 = vmax.f32 %v11412, %v11413
        %v11415 = vsel %vm3275, %v11311, -inf
        %v11416 = vrot.slane %v11415, 4
        %v11417 = vmax.f32 %v11415, %v11416
        %v11418 = vrot.slane %v11417, 2
        %v11419 = vmax.f32 %v11417, %v11418
        %v11420 = vrot.slane %v11419, 1
        %v11421 = vmax.f32 %v11419, %v11420
        %v11422 = vsel %vm3275, %v11318, -inf
        %v11423 = vrot.slane %v11422, 4
        %v11424 = vmax.f32 %v11422, %v11423
        %v11425 = vrot.slane %v11424, 2
        %v11426 = vmax.f32 %v11424, %v11425
        %v11427 = vrot.slane %v11426, 1
        %v11428 = vmax.f32 %v11426, %v11427
        %v11429 = vsel %vm3275, %v11319, -inf
        %v11430 = vrot.slane %v11429, 4
        %v11431 = vmax.f32 %v11429, %v11430
        %v11432 = vrot.slane %v11431, 2
        %v11433 = vmax.f32 %v11431, %v11432
        %v11434 = vrot.slane %v11433, 1
        %v11435 = vmax.f32 %v11433, %v11434
        %v11436 = vsel %vm3275, %v11326, -inf
        %v11437 = vrot.slane %v11436, 4
        %v11438 = vmax.f32 %v11436, %v11437
        %v11439 = vrot.slane %v11438, 2
        %v11440 = vmax.f32 %v11438, %v11439
        %v11441 = vrot.slane %v11440, 1
        %v11442 = vmax.f32 %v11440, %v11441
        %v11443 = vsel %vm3275, %v11327, -inf
        %v11444 = vrot.slane %v11443, 4
        %v11445 = vmax.f32 %v11443, %v11444
        %v11446 = vrot.slane %v11445, 2
        %v11447 = vmax.f32 %v11445, %v11446
        %v11448 = vrot.slane %v11447, 1
        %v11449 = vmax.f32 %v11447, %v11448
        %v11450 = vsel %vm3275, %v11334, -inf
        %v11451 = vrot.slane %v11450, 4
        %v11452 = vmax.f32 %v11450, %v11451
        %v11453 = vrot.slane %v11452, 2
        %v11454 = vmax.f32 %v11452, %v11453
        %v11455 = vrot.slane %v11454, 1
        %v11456 = vmax.f32 %v11454, %v11455
        %v11457 = vsel %vm3275, %v11335, -inf
        %v11458 = vrot.slane %v11457, 4
        %v11459 = vmax.f32 %v11457, %v11458
        %v11460 = vrot.slane %v11459, 2
        %v11461 = vmax.f32 %v11459, %v11460
        %v11462 = vrot.slane %v11461, 1
        %v11463 = vmax.f32 %v11461, %v11462
        %11464 = vst.msk [vmem:[#allocation4] sm:$0xf] %vm7415, 0.0
        %11465 = vst.msk [vmem:[#allocation4 + $0x10] sm:$0xf] %vm7415, 0.0
        %11466 = vst.msk [vmem:[#allocation4 + $0x20] sm:$0xf] %vm7415, 0.0
        %11467 = vst.msk [vmem:[#allocation4 + $0x30] sm:$0xf] %vm7415, 0.0
        %s11468 = scalar_lea.vmem [#allocation4], 12
        %11469 = vst.msk [vmem:[%s11468] sm:$0xf] %vm7415, 0.0
        %11470 = vst.msk [vmem:[%s11468 + $0x10] sm:$0xf] %vm7415, 0.0
        %11471 = vst.msk [vmem:[%s11468 + $0x20] sm:$0xf] %vm7415, 0.0
        %11472 = vst.msk [vmem:[%s11468 + $0x30] sm:$0xf] %vm7415, 0.0
        %11473 = vst.msk [vmem:[#allocation4] sm:$0x1] %vm5085, 0.0
        %11474 = vst.msk [vmem:[#allocation4 + $0x4] sm:$0x1] %vm5085, 0.0
        %11475 = vst.msk [vmem:[#allocation4 + $0x8] sm:$0x1] %vm5085, 0.0
        %11476 = vst.msk [vmem:[#allocation4 + $0xc] sm:$0x1] %vm5085, 0.0
        %11477 = vst.msk [vmem:[#allocation4 + $0x10] sm:$0x1] %vm5085, 0.0
        %11478 = vst.msk [vmem:[#allocation4 + $0x14] sm:$0x1] %vm5085, 0.0
        %11479 = vst.msk [vmem:[#allocation4 + $0x18] sm:$0x1] %vm5085, 0.0
        %11480 = vst.msk [vmem:[#allocation4 + $0x1c] sm:$0x1] %vm5085, 0.0
        %11481 = vst.msk [vmem:[#allocation4 + $0x20] sm:$0x1] %vm5085, 0.0
        %11482 = vst.msk [vmem:[#allocation4 + $0x24] sm:$0x1] %vm5085, 0.0
        %11483 = vst.msk [vmem:[#allocation4 + $0x28] sm:$0x1] %vm5085, 0.0
        %11484 = vst.msk [vmem:[#allocation4 + $0x2c] sm:$0x1] %vm5085, 0.0
        %11485 = vst.msk [vmem:[#allocation4 + $0x30] sm:$0x1] %vm5085, 0.0
        %11486 = vst.msk [vmem:[#allocation4 + $0x34] sm:$0x1] %vm5085, 0.0
        %11487 = vst.msk [vmem:[#allocation4 + $0x38] sm:$0x1] %vm5085, 0.0
        %11488 = vst.msk [vmem:[#allocation4 + $0x3c] sm:$0x1] %vm5085, 0.0
        %11489 = vst.msk [vmem:[#allocation4 + $0x3] sm:$0x1] %vm5085, 0.0
        %11490 = vst.msk [vmem:[#allocation4 + $0x7] sm:$0x1] %vm5085, 0.0
        %11491 = vst.msk [vmem:[#allocation4 + $0xb] sm:$0x1] %vm5085, 0.0
        %11492 = vst.msk [vmem:[#allocation4 + $0xf] sm:$0x1] %vm5085, 0.0
        %11493 = vst.msk [vmem:[#allocation4 + $0x13] sm:$0x1] %vm5085, 0.0
        %11494 = vst.msk [vmem:[#allocation4 + $0x17] sm:$0x1] %vm5085, 0.0
        %11495 = vst.msk [vmem:[#allocation4 + $0x1b] sm:$0x1] %vm5085, 0.0
        %11496 = vst.msk [vmem:[#allocation4 + $0x1f] sm:$0x1] %vm5085, 0.0
        %11497 = vst.msk [vmem:[#allocation4 + $0x23] sm:$0x1] %vm5085, 0.0
        %11498 = vst.msk [vmem:[#allocation4 + $0x27] sm:$0x1] %vm5085, 0.0
        %11499 = vst.msk [vmem:[#allocation4 + $0x2b] sm:$0x1] %vm5085, 0.0
        %11500 = vst.msk [vmem:[#allocation4 + $0x2f] sm:$0x1] %vm5085, 0.0
        %11501 = vst.msk [vmem:[#allocation4 + $0x33] sm:$0x1] %vm5085, 0.0
        %11502 = vst.msk [vmem:[#allocation4 + $0x37] sm:$0x1] %vm5085, 0.0
        %11503 = vst.msk [vmem:[#allocation4 + $0x3b] sm:$0x1] %vm5085, 0.0
        %11504 = vst.msk [vmem:[#allocation4 + $0x3f] sm:$0x1] %vm5085, 0.0
        %v11521 = vsel %vm5422, %v11365, %v11358
        %v11522 = vsel %vm5422, %v11379, %v11372
        %v11523 = vsel %vm5422, %v11393, %v11386
        %v11524 = vsel %vm5422, %v11407, %v11400
        %v11525 = vsel %vm5422, %v11421, %v11414
        %v11526 = vsel %vm5422, %v11435, %v11428
        %v11527 = vsel %vm5422, %v11449, %v11442
        %v11528 = vsel %vm5422, %v11463, %v11456
        %s11537 = scalar_lea.vmem [#allocation4], 4
        %11538 = vst.msk [vmem:[%s11537 + $0x1] sm:$0x3] %vm3275, %v11521
        %11539 = vst.msk [vmem:[%s11537 + $0x5] sm:$0x3] %vm3275, %v11522
        %11540 = vst.msk [vmem:[%s11537 + $0x11] sm:$0x3] %vm3275, %v11523
        %11541 = vst.msk [vmem:[%s11537 + $0x15] sm:$0x3] %vm3275, %v11524
        %11542 = vst.msk [vmem:[%s11537 + $0x21] sm:$0x3] %vm3275, %v11525
        %11543 = vst.msk [vmem:[%s11537 + $0x25] sm:$0x3] %vm3275, %v11526
        %11544 = vst.msk [vmem:[%s11537 + $0x31] sm:$0x3] %vm3275, %v11527
        %11545 = vst.msk [vmem:[%s11537 + $0x35] sm:$0x3] %vm3275, %v11528
        %v11546 = vld [vmem:[#allocation4] sm:$0x3]
        %v11547 = vld [vmem:[#allocation4 + $0x4] sm:$0x3]
        %v11548 = vld [vmem:[#allocation4 + $0x10] sm:$0x3]
        %v11549 = vld [vmem:[#allocation4 + $0x14] sm:$0x3]
        %v11550 = vld [vmem:[#allocation4 + $0x20] sm:$0x3]
        %v11551 = vld [vmem:[#allocation4 + $0x24] sm:$0x3]
        %v11552 = vld [vmem:[#allocation4 + $0x30] sm:$0x3]
        %v11553 = vld [vmem:[#allocation4 + $0x34] sm:$0x3]
        %v11554 = vld [vmem:[#allocation4 + $0x1] sm:$0x3]
        %v11555 = vld [vmem:[#allocation4 + $0x5] sm:$0x3]
        %v11556 = vld [vmem:[#allocation4 + $0x11] sm:$0x3]
        %v11557 = vld [vmem:[#allocation4 + $0x15] sm:$0x3]
        %v11558 = vld [vmem:[#allocation4 + $0x21] sm:$0x3]
        %v11559 = vld [vmem:[#allocation4 + $0x25] sm:$0x3]
        %v11560 = vld [vmem:[#allocation4 + $0x31] sm:$0x3]
        %v11561 = vld [vmem:[#allocation4 + $0x35] sm:$0x3]
        %v11562 = vld [vmem:[#allocation4 + $0x2] sm:$0x3]
        %v11563 = vld [vmem:[#allocation4 + $0x6] sm:$0x3]
        %v11564 = vld [vmem:[#allocation4 + $0x12] sm:$0x3]
        %v11565 = vld [vmem:[#allocation4 + $0x16] sm:$0x3]
        %v11566 = vld [vmem:[#allocation4 + $0x22] sm:$0x3]
        %v11567 = vld [vmem:[#allocation4 + $0x26] sm:$0x3]
        %v11568 = vld [vmem:[#allocation4 + $0x32] sm:$0x3]
        %v11569 = vld [vmem:[#allocation4 + $0x36] sm:$0x3]
        %v11570 = vld [vmem:[%s11537] sm:$0x3]
        %v11571 = vld [vmem:[%s11537 + $0x4] sm:$0x3]
        %v11572 = vld [vmem:[%s11537 + $0x10] sm:$0x3]
        %v11573 = vld [vmem:[%s11537 + $0x14] sm:$0x3]
        %v11574 = vld [vmem:[%s11537 + $0x20] sm:$0x3]
        %v11575 = vld [vmem:[%s11537 + $0x24] sm:$0x3]
        %v11576 = vld [vmem:[%s11537 + $0x30] sm:$0x3]
        %v11577 = vld [vmem:[%s11537 + $0x34] sm:$0x3]
        %v11578 = vld [vmem:[%s11537 + $0x1] sm:$0x3]
        %v11579 = vld [vmem:[%s11537 + $0x5] sm:$0x3]
        %v11580 = vld [vmem:[%s11537 + $0x11] sm:$0x3]
        %v11581 = vld [vmem:[%s11537 + $0x15] sm:$0x3]
        %v11582 = vld [vmem:[%s11537 + $0x21] sm:$0x3]
        %v11583 = vld [vmem:[%s11537 + $0x25] sm:$0x3]
        %v11584 = vld [vmem:[%s11537 + $0x31] sm:$0x3]
        %v11585 = vld [vmem:[%s11537 + $0x35] sm:$0x3]
        %v11586 = vld [vmem:[%s11537 + $0x2] sm:$0x3]
        %v11587 = vld [vmem:[%s11537 + $0x6] sm:$0x3]
        %v11588 = vld [vmem:[%s11537 + $0x12] sm:$0x3]
        %v11589 = vld [vmem:[%s11537 + $0x16] sm:$0x3]
        %v11590 = vld [vmem:[%s11537 + $0x22] sm:$0x3]
        %v11591 = vld [vmem:[%s11537 + $0x26] sm:$0x3]
        %v11592 = vld [vmem:[%s11537 + $0x32] sm:$0x3]
        %v11593 = vld [vmem:[%s11537 + $0x36] sm:$0x3]
        %s11594 = scalar_lea.vmem [#allocation4], 8
        %v11595 = vld [vmem:[%s11594] sm:$0x3]
        %v11596 = vld [vmem:[%s11594 + $0x4] sm:$0x3]
        %v11597 = vld [vmem:[%s11594 + $0x10] sm:$0x3]
        %v11598 = vld [vmem:[%s11594 + $0x14] sm:$0x3]
        %v11599 = vld [vmem:[%s11594 + $0x20] sm:$0x3]
        %v11600 = vld [vmem:[%s11594 + $0x24] sm:$0x3]
        %v11601 = vld [vmem:[%s11594 + $0x30] sm:$0x3]
        %v11602 = vld [vmem:[%s11594 + $0x34] sm:$0x3]
        %v11603 = vld [vmem:[%s11594 + $0x1] sm:$0x3]
        %v11604 = vld [vmem:[%s11594 + $0x5] sm:$0x3]
        %v11605 = vld [vmem:[%s11594 + $0x11] sm:$0x3]
        %v11606 = vld [vmem:[%s11594 + $0x15] sm:$0x3]
        %v11607 = vld [vmem:[%s11594 + $0x21] sm:$0x3]
        %v11608 = vld [vmem:[%s11594 + $0x25] sm:$0x3]
        %v11609 = vld [vmem:[%s11594 + $0x31] sm:$0x3]
        %v11610 = vld [vmem:[%s11594 + $0x35] sm:$0x3]
        %v11611 = vld [vmem:[%s11594 + $0x2] sm:$0x3]
        %v11612 = vld [vmem:[%s11594 + $0x6] sm:$0x3]
        %v11613 = vld [vmem:[%s11594 + $0x12] sm:$0x3]
        %v11614 = vld [vmem:[%s11594 + $0x16] sm:$0x3]
        %v11615 = vld [vmem:[%s11594 + $0x22] sm:$0x3]
        %v11616 = vld [vmem:[%s11594 + $0x26] sm:$0x3]
        %v11617 = vld [vmem:[%s11594 + $0x32] sm:$0x3]
        %v11618 = vld [vmem:[%s11594 + $0x36] sm:$0x3]
        %v11627 = vcombine.low %v11546, %v11547
        %v11628 = vcombine.low %v11548, %v11549
        %v11630 = vunpack.c.l.s4 1983009808
        %v11631 = vunpack.c.0.s8 %v11630
        %v11632 = vlaneseq
        %v11633 = vshrl.u32 %v11632, 7
        %v11634 = vsub.s32 %v11631, %v11633
        %v11635 = vrot.slane %v11627, %v11634
        %v11637 = vunpack.c.l.s4 1983009808
        %v11638 = vunpack.c.0.s8 %v11637
        %v11639 = vlaneseq
        %v11640 = vshrl.u32 %v11639, 7
        %v11641 = vsub.s32 %v11638, %v11640
        %v11642 = vrot.slane %v11628, %v11641
        %v11643 = vcombine.low %v11635, %v11642
        %v11644 = vcombine.low %v11550, %v11551
        %v11645 = vcombine.low %v11552, %v11553
        %v11647 = vunpack.c.l.s4 1983009808
        %v11648 = vunpack.c.0.s8 %v11647
        %v11649 = vlaneseq
        %v11650 = vshrl.u32 %v11649, 7
        %v11651 = vsub.s32 %v11648, %v11650
        %v11652 = vrot.slane %v11644, %v11651
        %v11654 = vunpack.c.l.s4 1983009808
        %v11655 = vunpack.c.0.s8 %v11654
        %v11656 = vlaneseq
        %v11657 = vshrl.u32 %v11656, 7
        %v11658 = vsub.s32 %v11655, %v11657
        %v11659 = vrot.slane %v11645, %v11658
        %v11660 = vcombine.low %v11652, %v11659
        %v11671 = vcombine.low %v11554, %v11555
        %v11672 = vcombine.low %v11556, %v11557
        %v11674 = vunpack.c.l.s4 1983009808
        %v11675 = vunpack.c.0.s8 %v11674
        %v11676 = vlaneseq
        %v11677 = vshrl.u32 %v11676, 7
        %v11678 = vsub.s32 %v11675, %v11677
        %v11679 = vrot.slane %v11671, %v11678
        %v11681 = vunpack.c.l.s4 1983009808
        %v11682 = vunpack.c.0.s8 %v11681
        %v11683 = vlaneseq
        %v11684 = vshrl.u32 %v11683, 7
        %v11685 = vsub.s32 %v11682, %v11684
        %v11686 = vrot.slane %v11672, %v11685
        %v11687 = vcombine.low %v11679, %v11686
        %v11688 = vcombine.low %v11558, %v11559
        %v11689 = vcombine.low %v11560, %v11561
        %v11691 = vunpack.c.l.s4 1983009808
        %v11692 = vunpack.c.0.s8 %v11691
        %v11693 = vlaneseq
        %v11694 = vshrl.u32 %v11693, 7
        %v11695 = vsub.s32 %v11692, %v11694
        %v11696 = vrot.slane %v11688, %v11695
        %v11698 = vunpack.c.l.s4 1983009808
        %v11699 = vunpack.c.0.s8 %v11698
        %v11700 = vlaneseq
        %v11701 = vshrl.u32 %v11700, 7
        %v11702 = vsub.s32 %v11699, %v11701
        %v11703 = vrot.slane %v11689, %v11702
        %v11704 = vcombine.low %v11696, %v11703
        %11705 = vrot.lane.b32.xlu0 %v11687, 64
        %v11706 = vpop.permute.xlu0 %11705
        %11707 = vrot.lane.b32.xlu0 %v11704, 64
        %v11708 = vpop.permute.xlu0 %11707
        %v11711 = vsel %vm1674, %v11643, %v11706
        %v11712 = vsel %vm1674, %v11660, %v11708
        %v11713 = vpack.c.bf16 %v11712, %v11711
        %v11715 = vunpack.c.l.b16 %v11713
        %v11716 = vunpack.c.h.b16 %v11713
        %v11717 = vpack.c.b16 %v11715, %v11715
        %v11718 = vpack.c.b16 %v11716, %v11716
        %11721 = vst [vmem:[#allocation5] sm:$0xf] %v11717
        %11722 = vst [vmem:[#allocation5 + $0x14] sm:$0xf] %v11718
        %v11731 = vcombine.low %v11562, %v11563
        %v11732 = vcombine.low %v11564, %v11565
        %v11734 = vunpack.c.l.s4 1983009808
        %v11735 = vunpack.c.0.s8 %v11734
        %v11736 = vlaneseq
        %v11737 = vshrl.u32 %v11736, 7
        %v11738 = vsub.s32 %v11735, %v11737
        %v11739 = vrot.slane %v11731, %v11738
        %v11741 = vunpack.c.l.s4 1983009808
        %v11742 = vunpack.c.0.s8 %v11741
        %v11743 = vlaneseq
        %v11744 = vshrl.u32 %v11743, 7
        %v11745 = vsub.s32 %v11742, %v11744
        %v11746 = vrot.slane %v11732, %v11745
        %v11747 = vcombine.low %v11739, %v11746
        %v11748 = vcombine.low %v11566, %v11567
        %v11749 = vcombine.low %v11568, %v11569
        %v11751 = vunpack.c.l.s4 1983009808
        %v11752 = vunpack.c.0.s8 %v11751
        %v11753 = vlaneseq
        %v11754 = vshrl.u32 %v11753, 7
        %v11755 = vsub.s32 %v11752, %v11754
        %v11756 = vrot.slane %v11748, %v11755
        %v11758 = vunpack.c.l.s4 1983009808
        %v11759 = vunpack.c.0.s8 %v11758
        %v11760 = vlaneseq
        %v11761 = vshrl.u32 %v11760, 7
        %v11762 = vsub.s32 %v11759, %v11761
        %v11763 = vrot.slane %v11749, %v11762
        %v11764 = vcombine.low %v11756, %v11763
        %v11775 = vcombine.low %v11570, %v11571
        %v11776 = vcombine.low %v11572, %v11573
        %v11778 = vunpack.c.l.s4 1983009808
        %v11779 = vunpack.c.0.s8 %v11778
        %v11780 = vlaneseq
        %v11781 = vshrl.u32 %v11780, 7
        %v11782 = vsub.s32 %v11779, %v11781
        %v11783 = vrot.slane %v11775, %v11782
        %v11785 = vunpack.c.l.s4 1983009808
        %v11786 = vunpack.c.0.s8 %v11785
        %v11787 = vlaneseq
        %v11788 = vshrl.u32 %v11787, 7
        %v11789 = vsub.s32 %v11786, %v11788
        %v11790 = vrot.slane %v11776, %v11789
        %v11791 = vcombine.low %v11783, %v11790
        %v11792 = vcombine.low %v11574, %v11575
        %v11793 = vcombine.low %v11576, %v11577
        %v11795 = vunpack.c.l.s4 1983009808
        %v11796 = vunpack.c.0.s8 %v11795
        %v11797 = vlaneseq
        %v11798 = vshrl.u32 %v11797, 7
        %v11799 = vsub.s32 %v11796, %v11798
        %v11800 = vrot.slane %v11792, %v11799
        %v11802 = vunpack.c.l.s4 1983009808
        %v11803 = vunpack.c.0.s8 %v11802
        %v11804 = vlaneseq
        %v11805 = vshrl.u32 %v11804, 7
        %v11806 = vsub.s32 %v11803, %v11805
        %v11807 = vrot.slane %v11793, %v11806
        %v11808 = vcombine.low %v11800, %v11807
        %11809 = vrot.lane.b32.xlu0 %v11791, 64
        %v11810 = vpop.permute.xlu0 %11809
        %11811 = vrot.lane.b32.xlu0 %v11808, 64
        %v11812 = vpop.permute.xlu0 %11811
        %v11815 = vsel %vm1674, %v11747, %v11810
        %v11816 = vsel %vm1674, %v11764, %v11812
        %v11817 = vpack.c.bf16 %v11816, %v11815
        %v11819 = vunpack.c.l.b16 %v11817
        %v11820 = vunpack.c.h.b16 %v11817
        %v11821 = vpack.c.b16 %v11819, %v11819
        %v11822 = vpack.c.b16 %v11820, %v11820
        %11825 = vst [vmem:[#allocation5 + $0x4] sm:$0xf] %v11821
        %11826 = vst [vmem:[#allocation5 + $0x18] sm:$0xf] %v11822
        %v11835 = vcombine.low %v11578, %v11579
        %v11836 = vcombine.low %v11580, %v11581
        %v11838 = vunpack.c.l.s4 1983009808
        %v11839 = vunpack.c.0.s8 %v11838
        %v11840 = vlaneseq
        %v11841 = vshrl.u32 %v11840, 7
        %v11842 = vsub.s32 %v11839, %v11841
        %v11843 = vrot.slane %v11835, %v11842
        %v11845 = vunpack.c.l.s4 1983009808
        %v11846 = vunpack.c.0.s8 %v11845
        %v11847 = vlaneseq
        %v11848 = vshrl.u32 %v11847, 7
        %v11849 = vsub.s32 %v11846, %v11848
        %v11850 = vrot.slane %v11836, %v11849
        %v11851 = vcombine.low %v11843, %v11850
        %v11852 = vcombine.low %v11582, %v11583
        %v11853 = vcombine.low %v11584, %v11585
        %v11855 = vunpack.c.l.s4 1983009808
        %v11856 = vunpack.c.0.s8 %v11855
        %v11857 = vlaneseq
        %v11858 = vshrl.u32 %v11857, 7
        %v11859 = vsub.s32 %v11856, %v11858
        %v11860 = vrot.slane %v11852, %v11859
        %v11862 = vunpack.c.l.s4 1983009808
        %v11863 = vunpack.c.0.s8 %v11862
        %v11864 = vlaneseq
        %v11865 = vshrl.u32 %v11864, 7
        %v11866 = vsub.s32 %v11863, %v11865
        %v11867 = vrot.slane %v11853, %v11866
        %v11868 = vcombine.low %v11860, %v11867
        %v11879 = vcombine.low %v11586, %v11587
        %v11880 = vcombine.low %v11588, %v11589
        %v11882 = vunpack.c.l.s4 1983009808
        %v11883 = vunpack.c.0.s8 %v11882
        %v11884 = vlaneseq
        %v11885 = vshrl.u32 %v11884, 7
        %v11886 = vsub.s32 %v11883, %v11885
        %v11887 = vrot.slane %v11879, %v11886
        %v11889 = vunpack.c.l.s4 1983009808
        %v11890 = vunpack.c.0.s8 %v11889
        %v11891 = vlaneseq
        %v11892 = vshrl.u32 %v11891, 7
        %v11893 = vsub.s32 %v11890, %v11892
        %v11894 = vrot.slane %v11880, %v11893
        %v11895 = vcombine.low %v11887, %v11894
        %v11896 = vcombine.low %v11590, %v11591
        %v11897 = vcombine.low %v11592, %v11593
        %v11899 = vunpack.c.l.s4 1983009808
        %v11900 = vunpack.c.0.s8 %v11899
        %v11901 = vlaneseq
        %v11902 = vshrl.u32 %v11901, 7
        %v11903 = vsub.s32 %v11900, %v11902
        %v11904 = vrot.slane %v11896, %v11903
        %v11906 = vunpack.c.l.s4 1983009808
        %v11907 = vunpack.c.0.s8 %v11906
        %v11908 = vlaneseq
        %v11909 = vshrl.u32 %v11908, 7
        %v11910 = vsub.s32 %v11907, %v11909
        %v11911 = vrot.slane %v11897, %v11910
        %v11912 = vcombine.low %v11904, %v11911
        %11913 = vrot.lane.b32.xlu0 %v11895, 64
        %v11914 = vpop.permute.xlu0 %11913
        %11915 = vrot.lane.b32.xlu0 %v11912, 64
        %v11916 = vpop.permute.xlu0 %11915
        %v11919 = vsel %vm1674, %v11851, %v11914
        %v11920 = vsel %vm1674, %v11868, %v11916
        %v11921 = vpack.c.bf16 %v11920, %v11919
        %v11923 = vunpack.c.l.b16 %v11921
        %v11924 = vunpack.c.h.b16 %v11921
        %v11925 = vpack.c.b16 %v11923, %v11923
        %v11926 = vpack.c.b16 %v11924, %v11924
        %11929 = vst [vmem:[#allocation5 + $0x8] sm:$0xf] %v11925
        %11930 = vst [vmem:[#allocation5 + $0x1c] sm:$0xf] %v11926
        %v11939 = vcombine.low %v11595, %v11596
        %v11940 = vcombine.low %v11597, %v11598
        %v11942 = vunpack.c.l.s4 1983009808
        %v11943 = vunpack.c.0.s8 %v11942
        %v11944 = vlaneseq
        %v11945 = vshrl.u32 %v11944, 7
        %v11946 = vsub.s32 %v11943, %v11945
        %v11947 = vrot.slane %v11939, %v11946
        %v11949 = vunpack.c.l.s4 1983009808
        %v11950 = vunpack.c.0.s8 %v11949
        %v11951 = vlaneseq
        %v11952 = vshrl.u32 %v11951, 7
        %v11953 = vsub.s32 %v11950, %v11952
        %v11954 = vrot.slane %v11940, %v11953
        %v11955 = vcombine.low %v11947, %v11954
        %v11956 = vcombine.low %v11599, %v11600
        %v11957 = vcombine.low %v11601, %v11602
        %v11959 = vunpack.c.l.s4 1983009808
        %v11960 = vunpack.c.0.s8 %v11959
        %v11961 = vlaneseq
        %v11962 = vshrl.u32 %v11961, 7
        %v11963 = vsub.s32 %v11960, %v11962
        %v11964 = vrot.slane %v11956, %v11963
        %v11966 = vunpack.c.l.s4 1983009808
        %v11967 = vunpack.c.0.s8 %v11966
        %v11968 = vlaneseq
        %v11969 = vshrl.u32 %v11968, 7
        %v11970 = vsub.s32 %v11967, %v11969
        %v11971 = vrot.slane %v11957, %v11970
        %v11972 = vcombine.low %v11964, %v11971
        %v11983 = vcombine.low %v11603, %v11604
        %v11984 = vcombine.low %v11605, %v11606
        %v11986 = vunpack.c.l.s4 1983009808
        %v11987 = vunpack.c.0.s8 %v11986
        %v11988 = vlaneseq
        %v11989 = vshrl.u32 %v11988, 7
        %v11990 = vsub.s32 %v11987, %v11989
        %v11991 = vrot.slane %v11983, %v11990
        %v11993 = vunpack.c.l.s4 1983009808
        %v11994 = vunpack.c.0.s8 %v11993
        %v11995 = vlaneseq
        %v11996 = vshrl.u32 %v11995, 7
        %v11997 = vsub.s32 %v11994, %v11996
        %v11998 = vrot.slane %v11984, %v11997
        %v11999 = vcombine.low %v11991, %v11998
        %v12000 = vcombine.low %v11607, %v11608
        %v12001 = vcombine.low %v11609, %v11610
        %v12003 = vunpack.c.l.s4 1983009808
        %v12004 = vunpack.c.0.s8 %v12003
        %v12005 = vlaneseq
        %v12006 = vshrl.u32 %v12005, 7
        %v12007 = vsub.s32 %v12004, %v12006
        %v12008 = vrot.slane %v12000, %v12007
        %v12010 = vunpack.c.l.s4 1983009808
        %v12011 = vunpack.c.0.s8 %v12010
        %v12012 = vlaneseq
        %v12013 = vshrl.u32 %v12012, 7
        %v12014 = vsub.s32 %v12011, %v12013
        %v12015 = vrot.slane %v12001, %v12014
        %v12016 = vcombine.low %v12008, %v12015
        %12017 = vrot.lane.b32.xlu0 %v11999, 64
        %v12018 = vpop.permute.xlu0 %12017
        %12019 = vrot.lane.b32.xlu0 %v12016, 64
        %v12020 = vpop.permute.xlu0 %12019
        %v12023 = vsel %vm1674, %v11955, %v12018
        %v12024 = vsel %vm1674, %v11972, %v12020
        %v12025 = vpack.c.bf16 %v12024, %v12023
        %v12027 = vunpack.c.l.b16 %v12025
        %v12028 = vunpack.c.h.b16 %v12025
        %v12029 = vpack.c.b16 %v12027, %v12027
        %v12030 = vpack.c.b16 %v12028, %v12028
        %12033 = vst [vmem:[#allocation5 + $0xc] sm:$0xf] %v12029
        %12034 = vst [vmem:[#allocation5 + $0x20] sm:$0xf] %v12030
        %v12043 = vcombine.low %v11611, %v11612
        %v12044 = vcombine.low %v11613, %v11614
        %v12046 = vunpack.c.l.s4 1983009808
        %v12047 = vunpack.c.0.s8 %v12046
        %v12048 = vlaneseq
        %v12049 = vshrl.u32 %v12048, 7
        %v12050 = vsub.s32 %v12047, %v12049
        %v12051 = vrot.slane %v12043, %v12050
        %v12053 = vunpack.c.l.s4 1983009808
        %v12054 = vunpack.c.0.s8 %v12053
        %v12055 = vlaneseq
        %v12056 = vshrl.u32 %v12055, 7
        %v12057 = vsub.s32 %v12054, %v12056
        %v12058 = vrot.slane %v12044, %v12057
        %v12059 = vcombine.low %v12051, %v12058
        %v12060 = vcombine.low %v11615, %v11616
        %v12061 = vcombine.low %v11617, %v11618
        %v12063 = vunpack.c.l.s4 1983009808
        %v12064 = vunpack.c.0.s8 %v12063
        %v12065 = vlaneseq
        %v12066 = vshrl.u32 %v12065, 7
        %v12067 = vsub.s32 %v12064, %v12066
        %v12068 = vrot.slane %v12060, %v12067
        %v12070 = vunpack.c.l.s4 1983009808
        %v12071 = vunpack.c.0.s8 %v12070
        %v12072 = vlaneseq
        %v12073 = vshrl.u32 %v12072, 7
        %v12074 = vsub.s32 %v12071, %v12073
        %v12075 = vrot.slane %v12061, %v12074
        %v12076 = vcombine.low %v12068, %v12075
        %v12079 = vpack.c.bf16 %v12076, %v12059
        %v12081 = vunpack.c.l.b16 %v12079
        %v12082 = vunpack.c.h.b16 %v12079
        %v12083 = vpack.c.b16 %v12081, %v12081
        %v12084 = vpack.c.b16 %v12082, %v12082
        %12087 = vst.msk [vmem:[#allocation5 + $0x10] sm:$0xf] %vm7415, %v12083
        %12088 = vst.msk [vmem:[#allocation5 + $0x24] sm:$0xf] %vm7415, %v12084
        %v12089 = vld [vmem:[#allocation5] sm:$0xff]
        %v12090 = vld [vmem:[#allocation5 + $0x8] sm:$0xff]
        %v12091 = vld [vmem:[#allocation5 + $0x10] sm:$0xf]
        %v12092 = vld [vmem:[#allocation5 + $0x14] sm:$0xff]
        %v12093 = vld [vmem:[#allocation5 + $0x1c] sm:$0xff]
        %v12094 = vld [vmem:[#allocation5 + $0x24] sm:$0xf]
        %v12095 = vld [vmem:[%s7] sm:$0xf]
        %v12096 = vld [vmem:[%s7 + $0x4] sm:$0xf]
        %v12097 = vld [vmem:[%s7 + $0x8] sm:$0xf]
        %v12098 = vld [vmem:[%s7 + $0xc] sm:$0xf]
        %v12099 = vld [vmem:[%s7 + $0x10] sm:$0xf]
        %v12100 = vld [vmem:[%s7 + $0x14] sm:$0xf]
        %v12101 = vld [vmem:[%s7 + $0x18] sm:$0xf]
        %v12102 = vld [vmem:[%s7 + $0x1c] sm:$0xf]
        %v12103 = vld [vmem:[%s7 + $0x20] sm:$0xf]
        %v12104 = vld [vmem:[%s7 + $0x24] sm:$0xf]
        %v12105 = vld [vmem:[%s7 + $0x28] sm:$0xf]
        %v12106 = vld [vmem:[%s7 + $0x2c] sm:$0xf]
        %v12107 = vld [vmem:[%s7 + $0x30] sm:$0xf]
        %v12108 = vld [vmem:[%s7 + $0x34] sm:$0xf]
        %v12109 = vld [vmem:[%s7 + $0x38] sm:$0xf]
        %v12110 = vld [vmem:[%s7 + $0x3c] sm:$0xf]
        %v12111 = vld [vmem:[%s7 + $0x40] sm:$0xf]
        %v12112 = vld [vmem:[%s7 + $0x44] sm:$0xf]
        %v12113 = vld [vmem:[%s7 + $0x48] sm:$0xf]
        %v12114 = vld [vmem:[%s7 + $0x4c] sm:$0xf]
        %v12115 = vld [vmem:[%s7 + $0x50] sm:$0xf]
        %v12116 = vld [vmem:[%s7 + $0x54] sm:$0xf]
        %v12117 = vld [vmem:[%s7 + $0x58] sm:$0xf]
        %v12118 = vld [vmem:[%s7 + $0x5c] sm:$0xf]
        %v12119 = vld [vmem:[%s7 + $0x60] sm:$0xf]
        %v12120 = vld [vmem:[%s7 + $0x64] sm:$0xf]
        %v12121 = vld [vmem:[%s7 + $0x68] sm:$0xf]
        %v12122 = vld [vmem:[%s7 + $0x6c] sm:$0xf]
        %v12123 = vld [vmem:[%s7 + $0x70] sm:$0xf]
        %v12124 = vld [vmem:[%s7 + $0x74] sm:$0xf]
        %v12125 = vld [vmem:[%s7 + $0x78] sm:$0xf]
        %v12126 = vld [vmem:[%s7 + $0x7c] sm:$0xf]
        %v12127 = vld [vmem:[%s7 + $0x80] sm:$0xf]
        %v12128 = vld [vmem:[%s7 + $0x84] sm:$0xf]
        %v12129 = vld [vmem:[%s7 + $0x88] sm:$0xf]
        %v12130 = vld [vmem:[%s7 + $0x8c] sm:$0xf]
        %v12131 = vld [vmem:[%s7 + $0x90] sm:$0xf]
        %v12132 = vld [vmem:[%s7 + $0x94] sm:$0xf]
        %v12133 = vld [vmem:[%s7 + $0x98] sm:$0xf]
        %v12134 = vld [vmem:[%s7 + $0x9c] sm:$0xf]
        %v12135 = vld [vmem:[%s7 + $0xa0] sm:$0xf]
        %v12136 = vld [vmem:[%s7 + $0xa4] sm:$0xf]
        %v12137 = vld [vmem:[%s7 + $0xa8] sm:$0xf]
        %v12138 = vld [vmem:[%s7 + $0xac] sm:$0xf]
        %v12139 = vld [vmem:[%s7 + $0xb0] sm:$0xf]
        %v12140 = vld [vmem:[%s7 + $0xb4] sm:$0xf]
        %v12141 = vld [vmem:[%s7 + $0xb8] sm:$0xf]
        %v12142 = vld [vmem:[%s7 + $0xbc] sm:$0xf]
        %v12143 = vld [vmem:[%s7 + $0xc0] sm:$0xf]
        %v12144 = vld [vmem:[%s7 + $0xc4] sm:$0xf]
        %v12145 = vld [vmem:[%s7 + $0xc8] sm:$0xf]
        %v12146 = vld [vmem:[%s7 + $0xcc] sm:$0xf]
        %v12147 = vld [vmem:[%s7 + $0xd0] sm:$0xf]
        %v12148 = vld [vmem:[%s7 + $0xd4] sm:$0xf]
        %v12149 = vld [vmem:[%s7 + $0xd8] sm:$0xf]
        %v12150 = vld [vmem:[%s7 + $0xdc] sm:$0xf]
        %v12151 = vld [vmem:[%s7 + $0xe0] sm:$0xf]
        %v12152 = vld [vmem:[%s7 + $0xe4] sm:$0xf]
        %v12153 = vld [vmem:[%s7 + $0xe8] sm:$0xf]
        %v12154 = vld [vmem:[%s7 + $0xec] sm:$0xf]
        %v12155 = vld [vmem:[%s7 + $0xf0] sm:$0xf]
        %v12156 = vld [vmem:[%s7 + $0xf4] sm:$0xf]
        %v12157 = vld [vmem:[%s7 + $0xf8] sm:$0xf]
        %v12158 = vld [vmem:[%s7 + $0xfc] sm:$0xf]
        %v12159 = vld [vmem:[%s7 + $0x100] sm:$0xf]
        %v12160 = vld [vmem:[%s7 + $0x104] sm:$0xf]
        %v12161 = vld [vmem:[%s7 + $0x108] sm:$0xf]
        %v12162 = vld [vmem:[%s7 + $0x10c] sm:$0xf]
        %v12163 = vld [vmem:[%s7 + $0x110] sm:$0xf]
        %v12164 = vld [vmem:[%s7 + $0x114] sm:$0xf]
        %v12165 = vld [vmem:[%s7 + $0x118] sm:$0xf]
        %v12166 = vld [vmem:[%s7 + $0x11c] sm:$0xf]
        %v12167 = vld [vmem:[%s8] sm:$0x1]
        %v12169 = vlaneseq
        %v12170 = vshrl.u32 %v12169, 7
        %v12171 = vsub.s32 0, %v12170
        %v12172 = vrot.slane %v12167, %v12171
        %v12180 = vunpack.c.l.b16 %v12089
        %v12181 = vunpack.c.h.b16 %v12089
        %v12182 = vunpack.c.l.b16 %v12090
        %v12183 = vunpack.c.h.b16 %v12090
        %v12184 = vunpack.c.l.b16 %v12091
        %v12185 = vunpack.c.l.b16 %v12092
        %v12186 = vunpack.c.h.b16 %v12092
        %v12187 = vunpack.c.l.b16 %v12093
        %v12188 = vunpack.c.h.b16 %v12093
        %v12189 = vunpack.c.l.b16 %v12094
        %v12190 = vpack.c.b16 %v12185, %v12180
        %v12191 = vpack.c.b16 %v12186, %v12181
        %v12192 = vpack.c.b16 %v12187, %v12182
        %v12193 = vpack.c.b16 %v12188, %v12183
        %v12194 = vpack.c.b16 %v12189, %v12184
        %v12271 = vunpack.c.l.b16 %v12095
        %v12272 = vunpack.c.l.b16 %v12096
        %v12273 = vunpack.c.l.b16 %v12097
        %v12274 = vunpack.c.l.b16 %v12098
        %v12275 = vunpack.c.l.b16 %v12099
        %v12276 = vunpack.c.l.b16 %v12100
        %v12277 = vunpack.c.l.b16 %v12101
        %v12278 = vunpack.c.l.b16 %v12102
        %v12279 = vunpack.c.l.b16 %v12103
        %v12280 = vunpack.c.l.b16 %v12104
        %v12281 = vunpack.c.l.b16 %v12105
        %v12282 = vunpack.c.l.b16 %v12106
        %v12283 = vunpack.c.l.b16 %v12107
        %v12284 = vunpack.c.l.b16 %v12108
        %v12285 = vunpack.c.l.b16 %v12109
        %v12286 = vunpack.c.l.b16 %v12110
        %v12287 = vunpack.c.l.b16 %v12111
        %v12288 = vunpack.c.l.b16 %v12112
        %v12289 = vunpack.c.l.b16 %v12113
        %v12290 = vunpack.c.l.b16 %v12114
        %v12291 = vunpack.c.l.b16 %v12115
        %v12292 = vunpack.c.l.b16 %v12116
        %v12293 = vunpack.c.l.b16 %v12117
        %v12294 = vunpack.c.l.b16 %v12118
        %v12295 = vunpack.c.l.b16 %v12119
        %v12296 = vunpack.c.l.b16 %v12120
        %v12297 = vunpack.c.l.b16 %v12121
        %v12298 = vunpack.c.l.b16 %v12122
        %v12299 = vunpack.c.l.b16 %v12123
        %v12300 = vunpack.c.l.b16 %v12124
        %v12301 = vunpack.c.l.b16 %v12125
        %v12302 = vunpack.c.l.b16 %v12126
        %v12303 = vunpack.c.l.b16 %v12127
        %v12304 = vunpack.c.l.b16 %v12128
        %v12305 = vunpack.c.l.b16 %v12129
        %v12306 = vunpack.c.l.b16 %v12130
        %v12307 = vunpack.c.l.b16 %v12131
        %v12308 = vunpack.c.l.b16 %v12132
        %v12309 = vunpack.c.l.b16 %v12133
        %v12310 = vunpack.c.l.b16 %v12134
        %v12311 = vunpack.c.l.b16 %v12135
        %v12312 = vunpack.c.l.b16 %v12136
        %v12313 = vunpack.c.l.b16 %v12137
        %v12314 = vunpack.c.l.b16 %v12138
        %v12315 = vunpack.c.l.b16 %v12139
        %v12316 = vunpack.c.l.b16 %v12140
        %v12317 = vunpack.c.l.b16 %v12141
        %v12318 = vunpack.c.l.b16 %v12142
        %v12319 = vunpack.c.l.b16 %v12143
        %v12320 = vunpack.c.l.b16 %v12144
        %v12321 = vunpack.c.l.b16 %v12145
        %v12322 = vunpack.c.l.b16 %v12146
        %v12323 = vunpack.c.l.b16 %v12147
        %v12324 = vunpack.c.l.b16 %v12148
        %v12325 = vunpack.c.l.b16 %v12149
        %v12326 = vunpack.c.l.b16 %v12150
        %v12327 = vunpack.c.l.b16 %v12151
        %v12328 = vunpack.c.l.b16 %v12152
        %v12329 = vunpack.c.l.b16 %v12153
        %v12330 = vunpack.c.l.b16 %v12154
        %v12331 = vunpack.c.l.b16 %v12155
        %v12332 = vunpack.c.l.b16 %v12156
        %v12333 = vunpack.c.l.b16 %v12157
        %v12334 = vunpack.c.l.b16 %v12158
        %v12335 = vunpack.c.l.b16 %v12159
        %v12336 = vunpack.c.l.b16 %v12160
        %v12337 = vunpack.c.l.b16 %v12161
        %v12338 = vunpack.c.l.b16 %v12162
        %v12339 = vunpack.c.l.b16 %v12163
        %v12340 = vunpack.c.l.b16 %v12164
        %v12341 = vunpack.c.l.b16 %v12165
        %v12342 = vunpack.c.l.b16 %v12166
        %v12343 = vpack.c.b16 %v12272, %v12271
        %v12344 = vpack.c.b16 %v12274, %v12273
        %v12345 = vpack.c.b16 %v12276, %v12275
        %v12346 = vpack.c.b16 %v12278, %v12277
        %v12347 = vpack.c.b16 %v12280, %v12279
        %v12348 = vpack.c.b16 %v12282, %v12281
        %v12349 = vpack.c.b16 %v12284, %v12283
        %v12350 = vpack.c.b16 %v12286, %v12285
        %v12351 = vpack.c.b16 %v12288, %v12287
        %v12352 = vpack.c.b16 %v12290, %v12289
        %v12353 = vpack.c.b16 %v12292, %v12291
        %v12354 = vpack.c.b16 %v12294, %v12293
        %v12355 = vpack.c.b16 %v12296, %v12295
        %v12356 = vpack.c.b16 %v12298, %v12297
        %v12357 = vpack.c.b16 %v12300, %v12299
        %v12358 = vpack.c.b16 %v12302, %v12301
        %v12359 = vpack.c.b16 %v12304, %v12303
        %v12360 = vpack.c.b16 %v12306, %v12305
        %v12361 = vpack.c.b16 %v12308, %v12307
        %v12362 = vpack.c.b16 %v12310, %v12309
        %v12363 = vpack.c.b16 %v12312, %v12311
        %v12364 = vpack.c.b16 %v12314, %v12313
        %v12365 = vpack.c.b16 %v12316, %v12315
        %v12366 = vpack.c.b16 %v12318, %v12317
        %v12367 = vpack.c.b16 %v12320, %v12319
        %v12368 = vpack.c.b16 %v12322, %v12321
        %v12369 = vpack.c.b16 %v12324, %v12323
        %v12370 = vpack.c.b16 %v12326, %v12325
        %v12371 = vpack.c.b16 %v12328, %v12327
        %v12372 = vpack.c.b16 %v12330, %v12329
        %v12373 = vpack.c.b16 %v12332, %v12331
        %v12374 = vpack.c.b16 %v12334, %v12333
        %v12375 = vpack.c.b16 %v12336, %v12335
        %v12376 = vpack.c.b16 %v12338, %v12337
        %v12377 = vpack.c.b16 %v12340, %v12339
        %v12378 = vpack.c.b16 %v12342, %v12341
        %v12416 = vsel %vm1674, %v12194, 0
        %12418 = vmatprep.subr.bf16.mxu0 0
        %12419 = vmatpush1.bf16.msra.mxu0 %v12350
        %12420 = vmatprep.subr.bf16.mxu0 0
        %12421 = vmatpush1.bf16.msra.mxu0 %v12349
        %12422 = vmatprep.subr.bf16.mxu0 0
        %12423 = vmatpush1.bf16.msra.mxu0 %v12348
        %12424 = vmatprep.subr.bf16.mxu0 0
        %12425 = vmatpush1.bf16.msra.mxu0 %v12347
        %12426 = vmatprep.subr.bf16.mxu0 0
        %12427 = vmatpush1.bf16.msra.mxu0 %v12346
        %12428 = vmatprep.subr.bf16.mxu0 0
        %12429 = vmatpush1.bf16.msra.mxu0 %v12345
        %12430 = vmatprep.subr.bf16.mxu0 0
        %12431 = vmatpush1.bf16.msra.mxu0 %v12344
        %12432 = vmatprep.subr.bf16.mxu0 0
        %12433 = vmatpush1.bf16.msra.mxu0 %v12343
        %12434 = vmatprep.subr.bf16.mxu0 0
        %12435 = vmatpush2.bf16.msra.mxu0 %v12358
        %12436 = vmatprep.subr.bf16.mxu0 0
        %12437 = vmatpush2.bf16.msra.mxu0 %v12357
        %12438 = vmatprep.subr.bf16.mxu0 0
        %12439 = vmatpush2.bf16.msra.mxu0 %v12356
        %12440 = vmatprep.subr.bf16.mxu0 0
        %12441 = vmatpush2.bf16.msra.mxu0 %v12355
        %12442 = vmatprep.subr.bf16.mxu0 0
        %12443 = vmatpush2.bf16.msra.mxu0 %v12354
        %12444 = vmatprep.subr.bf16.mxu0 0
        %12445 = vmatpush2.bf16.msra.mxu0 %v12353
        %12446 = vmatprep.subr.bf16.mxu0 0
        %12447 = vmatpush2.bf16.msra.mxu0 %v12352
        %12448 = vmatprep.subr.bf16.mxu0 0
        %12449 = vmatpush2.bf16.msra.mxu0 %v12351
        %12450 = vmatprep.mubr.bf16.mxu0 %v12191
        %12451 = vmatmul.mubr.bf16.gmra.mxu0 %v12190
        %v12452 = vpop.f32.mrf.mxu0
        %v12453 = vadd.f32 %v12172, %v12452
        %v12454 = vpop.f32.mrf.mxu0
        %v12455 = vpop.f32.mrf.mxu0
        %v12456 = vadd.f32 %v12172, %v12455
        %v12457 = vpop.f32.mrf.mxu0
        %12458 = vdwg.mxu0
        %12459 = vmatprep.subr.bf16.mxu0 0
        %12460 = vmatpush1.bf16.msra.mxu0 %v12366
        %12461 = vmatprep.subr.bf16.mxu0 0
        %12462 = vmatpush1.bf16.msra.mxu0 %v12365
        %12463 = vmatprep.subr.bf16.mxu0 0
        %12464 = vmatpush1.bf16.msra.mxu0 %v12364
        %12465 = vmatprep.subr.bf16.mxu0 0
        %12466 = vmatpush1.bf16.msra.mxu0 %v12363
        %12467 = vmatprep.subr.bf16.mxu0 0
        %12468 = vmatpush1.bf16.msra.mxu0 %v12362
        %12469 = vmatprep.subr.bf16.mxu0 0
        %12470 = vmatpush1.bf16.msra.mxu0 %v12361
        %12471 = vmatprep.subr.bf16.mxu0 0
        %12472 = vmatpush1.bf16.msra.mxu0 %v12360
        %12473 = vmatprep.subr.bf16.mxu0 0
        %12474 = vmatpush1.bf16.msra.mxu0 %v12359
        %12475 = vmatprep.subr.bf16.mxu0 0
        %12476 = vmatpush2.bf16.msra.mxu0 %v12374
        %12477 = vmatprep.subr.bf16.mxu0 0
        %12478 = vmatpush2.bf16.msra.mxu0 %v12373
        %12479 = vmatprep.subr.bf16.mxu0 0
        %12480 = vmatpush2.bf16.msra.mxu0 %v12372
        %12481 = vmatprep.subr.bf16.mxu0 0
        %12482 = vmatpush2.bf16.msra.mxu0 %v12371
        %12483 = vmatprep.subr.bf16.mxu0 0
        %12484 = vmatpush2.bf16.msra.mxu0 %v12370
        %12485 = vmatprep.subr.bf16.mxu0 0
        %12486 = vmatpush2.bf16.msra.mxu0 %v12369
        %12487 = vmatprep.subr.bf16.mxu0 0
        %12488 = vmatpush2.bf16.msra.mxu0 %v12368
        %12489 = vmatprep.subr.bf16.mxu0 0
        %12490 = vmatpush2.bf16.msra.mxu0 %v12367
        %12491 = vmatprep.mubr.bf16.mxu0 %v12193
        %12492 = vmatmul.mubr.bf16.gmra.mxu0 %v12192
        %v12493 = vpop.f32.mrf.mxu0
        %v12494 = vadd.f32 %v12453, %v12493
        %v12495 = vpop.f32.mrf.mxu0
        %v12496 = vpop.f32.mrf.mxu0
        %v12497 = vadd.f32 %v12456, %v12496
        %v12498 = vpop.f32.mrf.mxu0
        %12499 = vdwg.mxu0
        %12500 = vmatprep.subr.bf16.mxu0 0
        %12501 = vmatpush1.bf16.msra.mxu0 0
        %12502 = vmatprep.subr.bf16.mxu0 0
        %12503 = vmatpush1.bf16.msra.mxu0 0
        %12504 = vmatprep.subr.bf16.mxu0 0
        %12505 = vmatpush1.bf16.msra.mxu0 0
        %12506 = vmatprep.subr.bf16.mxu0 0
        %12507 = vmatpush1.bf16.msra.mxu0 0
        %12508 = vmatprep.subr.bf16.mxu0 0
        %12509 = vmatpush1.bf16.msra.mxu0 %v12378
        %12510 = vmatprep.subr.bf16.mxu0 0
        %12511 = vmatpush1.bf16.msra.mxu0 %v12377
        %12512 = vmatprep.subr.bf16.mxu0 0
        %12513 = vmatpush1.bf16.msra.mxu0 %v12376
        %12514 = vmatprep.subr.bf16.mxu0 0
        %12515 = vmatpush1.bf16.msra.mxu0 %v12375
        %12516 = vmatprep.subr.bf16.mxu0 0
        %12517 = vmatpush2.bf16.msra.mxu0 0
        %12518 = vmatprep.subr.bf16.mxu0 0
        %12519 = vmatpush2.bf16.msra.mxu0 0
        %12520 = vmatprep.subr.bf16.mxu0 0
        %12521 = vmatpush2.bf16.msra.mxu0 0
        %12522 = vmatprep.subr.bf16.mxu0 0
        %12523 = vmatpush2.bf16.msra.mxu0 0
        %12524 = vmatprep.subr.bf16.mxu0 0
        %12525 = vmatpush2.bf16.msra.mxu0 0
        %12526 = vmatprep.subr.bf16.mxu0 0
        %12527 = vmatpush2.bf16.msra.mxu0 0
        %12528 = vmatprep.subr.bf16.mxu0 0
        %12529 = vmatpush2.bf16.msra.mxu0 0
        %12530 = vmatprep.subr.bf16.mxu0 0
        %12531 = vmatpush2.bf16.msra.mxu0 0
        %12532 = vmatprep.mubr.bf16.mxu0 0
        %12533 = vmatmul.mubr.bf16.gmra.mxu0 %v12416
        %v12534 = vpop.f32.mrf.mxu0
        %v12535 = vadd.f32 %v12494, %v12534
        %v12536 = vpop.f32.mrf.mxu0
        %v12537 = vpop.f32.mrf.mxu0
        %v12538 = vadd.f32 %v12497, %v12537
        %v12539 = vpop.f32.mrf.mxu0
        %12540 = vdwg.mxu0
        %v12541 = vmax.f32 %v12535, 0.0
        %v12542 = vmax.f32 %v12538, 0.0
        %v12545 = vcombine.high %v12541, %v12541
        %v12546 = vcombine.high %v12542, %v12542
        %v12549 = vsel %vm7415, %v12541, 0.0
        %v12550 = vrot.slane %v12549, 4
        %v12551 = vadd.f32 %v12549, %v12550
        %v12552 = vrot.slane %v12551, 2
        %v12553 = vadd.f32 %v12551, %v12552
        %v12554 = vrot.slane %v12553, 1
        %v12555 = vadd.f32 %v12553, %v12554
        %v12556 = vsel %vm7415, %v12545, 0.0
        %v12557 = vrot.slane %v12556, 4
        %v12558 = vadd.f32 %v12556, %v12557
        %v12559 = vrot.slane %v12558, 2
        %v12560 = vadd.f32 %v12558, %v12559
        %v12561 = vrot.slane %v12560, 1
        %v12562 = vadd.f32 %v12560, %v12561
        %v12563 = vsel %vm7415, %v12542, 0.0
        %v12564 = vrot.slane %v12563, 4
        %v12565 = vadd.f32 %v12563, %v12564
        %v12566 = vrot.slane %v12565, 2
        %v12567 = vadd.f32 %v12565, %v12566
        %v12568 = vrot.slane %v12567, 1
        %v12569 = vadd.f32 %v12567, %v12568
        %v12570 = vsel %vm7415, %v12546, 0.0
        %v12571 = vrot.slane %v12570, 4
        %v12572 = vadd.f32 %v12570, %v12571
        %v12573 = vrot.slane %v12572, 2
        %v12574 = vadd.f32 %v12572, %v12573
        %v12575 = vrot.slane %v12574, 1
        %v12576 = vadd.f32 %v12574, %v12575
        %v12577 = vmul.f32 %v12555, 0.25
        %v12578 = vmul.f32 %v12562, 0.25
        %v12579 = vmul.f32 %v12569, 0.25
        %v12580 = vmul.f32 %v12576, 0.25
        %v12585 = vsel %vm5422, %v12578, %v12577
        %v12586 = vsel %vm5424, %v12579, %v12585
        %v12587 = vsel %vm5426, %v12580, %v12586
        %12589 = vst.msk [vmem:[%s328] sm:$0xf] %vm7415, %v12587
        %s12590 = sand.u32 %s225, 1
        %s12591 = scalar_lea.sflag [#allocation7], %s12590
        %s12592 = sand.u32 %s225, 1
        %s12593 = smul.addr %s12592, 4
        %s12594 = scalar_lea.vmem [#allocation6], %s12593
        // Predicated region
        $region57: #{_convnet_forward_impl.1} parent=55 // pred_check
          %p12595 = pneg %p235
        $region58: #{_convnet_forward_impl.1} parent=55 // pred_check_branch
          %12597 = sbr.rel (%p12595) target = $region60
        $region59: #{_convnet_forward_impl.1} parent=55 // pred_region
          %s12599 = ssub.s32 64, 64
          %12600 = vsyncadd %s12591, %s12599
          %s12601 = smul.addr %s23, 64
          %s12602 = scalar_lea.hbm %s9, %s12601
          %s12604 = sshll.u32 %s12594, 4
          %s12605 = int_to_ptr.vmem [resolvable:$true] %s12604
          %12607 = dma.vmem_to_hbm [thread:$0]  %s12605, 64, %s12602, %s12591
        $region60: #{_convnet_forward_impl.1} parent=55 // pred_fallthru
          _
      $region56: #{_convnet_forward_impl.1} parent=5 // pred_fallthru
        _
      %p12608 = scmp.le.s32.totalorder 2, %s18
      // Predicated region
      $region61: #{_convnet_forward_impl.1} parent=5 // pred_check
        %p12609 = pneg %p12608
      $region62: #{_convnet_forward_impl.1} parent=5 // pred_check_branch
        %12611 = sbr.rel (%p12609) target = $region64
      $region63: #{_convnet_forward_impl.1} parent=5 // pred_region
        %s12612 = ssub.s32 %s18, 2
        // Predicated region
        $region65: #{_convnet_forward_impl.1} parent=63 // pred_check
          %p12613 = pneg %p241
        $region66: #{_convnet_forward_impl.1} parent=63 // pred_check_branch
          %12615 = sbr.rel (%p12613) target = $region68
        $region67: #{_convnet_forward_impl.1} parent=63 // pred_region
          %s12616 = sand.u32 %s226, 1
          %s12617 = scalar_lea.sflag [#allocation7], %s12616
          %s12618 = sand.u32 %s226, 1
          %s12619 = smul.addr %s12618, 4
          %s12620 = scalar_lea.vmem [#allocation6], %s12619
          %12621 = dma.done %s12617, 64
        $region68: #{_convnet_forward_impl.1} parent=63 // pred_fallthru
          _
      $region64: #{_convnet_forward_impl.1} parent=5 // pred_fallthru
        _
    $region6: #{_convnet_forward_impl.1} parent=1 // loop_footer
      %s22 = sadd.s32 1, %s18
    $region7: #{_convnet_forward_impl.1} parent=1 // loop_footer_branch
      %17 = sbr.rel target = $region3
    $region8: #{_convnet_forward_impl.1} parent=1 // loop_exit
      _
    %12622 = vsyncpa [#allocation7], 1
    %s12623 = scalar_lea.sflag [#allocation7], 1
    %12624 = vsyncpa %s12623, 1

</llo_original>
